<compile_context>
chip_gen: v6e
topology: v6e:2x2x1
jax: 0.10.0
libtpu: 0.0.40
codegen_flags: <defaults>
</compile_context>

<pallas_src>
import functools

import jax
import jax.numpy as jnp
import numpy as np
from jax import lax
from jax.experimental import pallas as pl
from jax.experimental.pallas import tpu as pltpu


def _round_up(x, m):
    return (x + m - 1) // m * m


_VMEM_LIMIT = 32 * 1024 * 1024   # explicit scoped-VMEM budget (ok on v5e/v6e/v7x)


# ------------------------------ Pallas kernels ----------------------------- #
def _mm_bias_relu_kernel(x_ref, w_ref, b_ref, o_ref):
    """o = relu(x @ w + b) for one (tm, Kp) x (Kp, Np) tile pair.
    Single full-K block -> no accumulator, no k axis, one store (bf16 out)."""
    y = jnp.dot(x_ref[...], w_ref[...], preferred_element_type=jnp.float32)
    o_ref[...] = jnp.maximum(y + b_ref[...], 0.0).astype(o_ref.dtype)


def _conv3_mu_kernel(x_ref, w3_ref, b3_ref, wmu_ref, bmu_ref, o_ref):
    """Fused conv3 + conv_mu:  o = relu(x @ w3 + b3) @ wmu + bmu.
    Full-K single block: the ReLU'd (tm, 512) tile is cast to bf16 and pushed
    straight back through the MXU against the resident (512, Nzp) wmu block."""
    h = jnp.dot(x_ref[...], w3_ref[...], preferred_element_type=jnp.float32)
    h = jnp.maximum(h + b3_ref[...], 0.0).astype(jnp.bfloat16)
    y = jnp.dot(h, wmu_ref[...], preferred_element_type=jnp.float32)
    o_ref[...] = y + bmu_ref[...]


# ------------------------------- wrappers ----------------------------------- #
def matmul_bias_relu(x, wp, bp, n_valid):
    """y = relu(x @ w + b) on the MXU.
    x: (M, K) bf16 (unpadded), wp: (Kp, Np) bf16 pre-padded, bp: (1, Np) f32.
    Returns bf16 (M, n_valid)."""
    M, K = x.shape
    Kp, Np = wp.shape
    assert K <= Kp
    tm = 128 if M > 128 else _round_up(max(M, 1), 8)
    Mp = _round_up(M, tm)
    xp = jnp.pad(x, ((0, Mp - M), (0, Kp - K)))          # single pad, bf16

    out = pl.pallas_call(
        _mm_bias_relu_kernel,
        out_shape=jax.ShapeDtypeStruct((Mp, Np), jnp.bfloat16),
        grid_spec=pltpu.PrefetchScalarGridSpec(
            num_scalar_prefetch=0,
            grid=(Mp // tm,),
            in_specs=[
                pl.BlockSpec((tm, Kp), lambda i: (i, 0)),   # im2col patches
                pl.BlockSpec((Kp, Np), lambda i: (0, 0)),   # weights (resident)
                pl.BlockSpec((1, Np), lambda i: (0, 0)),    # bias (resident)
            ],
            out_specs=pl.BlockSpec((tm, Np), lambda i: (i, 0)),
        ),
        compiler_params=pltpu.CompilerParams(
            dimension_semantics=("parallel",),
            vmem_limit_bytes=_VMEM_LIMIT),
    )(xp, wp, bp)
    return out[:M, :n_valid]


def conv3_mu_fused(x, w3p, b3p, wmup, bmup, n_valid):
    """Fused y = relu(x @ w3 + b3) @ wmu + bmu.
    x: (M, K3) bf16, w3p: (K3p, N3p) bf16, b3p: (1, N3p) f32,
    wmup: (N3p, Nzp) bf16, bmup: (1, Nzp) f32.  Returns f32 (M, n_valid)."""
    M, K3 = x.shape
    K3p, N3p = w3p.shape
    _, Nzp = wmup.shape
    tm = 128 if M > 128 else _round_up(max(M, 1), 8)
    Mp = _round_up(M, tm)
    xp = jnp.pad(x, ((0, Mp - M), (0, K3p - K3)))

    out = pl.pallas_call(
        _conv3_mu_kernel,
        out_shape=jax.ShapeDtypeStruct((Mp, Nzp), jnp.float32),
        grid_spec=pltpu.PrefetchScalarGridSpec(
            num_scalar_prefetch=0,
            grid=(Mp // tm,),
            in_specs=[
                pl.BlockSpec((tm, K3p), lambda i: (i, 0)),    # conv3 LHS
                pl.BlockSpec((K3p, N3p), lambda i: (0, 0)),   # w3 (one 4 MB DMA)
                pl.BlockSpec((1, N3p), lambda i: (0, 0)),     # b3
                pl.BlockSpec((N3p, Nzp), lambda i: (0, 0)),   # wmu (resident)
                pl.BlockSpec((1, Nzp), lambda i: (0, 0)),     # bmu
            ],
            out_specs=pl.BlockSpec((tm, Nzp), lambda i: (i, 0)),
        ),
        compiler_params=pltpu.CompilerParams(
            dimension_semantics=("parallel",),
            vmem_limit_bytes=_VMEM_LIMIT),
    )(xp, w3p, b3p, wmup, bmup)
    return out[:M, :n_valid]


# ------------------------------- JAX glue ----------------------------------- #
def _extract_patches(x, ksize, stride):
    """x: (N,H,W,C) already zero-padded (any dtype).  Returns
    (N*Ho*Wo, K*K*C), Ho, Wo.  Flat patch order is (kh, kw, ci), matching the
    HWIO weight reshape."""
    n, h, w, c = x.shape
    ho = (h - ksize) // stride + 1
    wo = (w - ksize) // stride + 1
    pats = []
    for kh in range(ksize):
        for kw in range(ksize):
            pats.append(x[:, kh:kh + stride * (ho - 1) + 1:stride,
                             kw:kw + stride * (wo - 1) + 1:stride, :])
    p = jnp.stack(pats, axis=3)                    # (N, Ho, Wo, K*K, C)
    return p.reshape(n * ho * wo, ksize * ksize * c), ho, wo


def init_params(key, channel_in=3, ch=16, z=64):
    ks = jax.random.split(key, 8)
    s = 0.05
    return dict(
        w1=s * jax.random.normal(ks[0], (8, 8, channel_in, ch), jnp.float32),
        b1=s * jax.random.normal(ks[1], (ch,), jnp.float32),
        w2=s * jax.random.normal(ks[2], (4, 4, ch, ch * 2), jnp.float32),
        b2=s * jax.random.normal(ks[3], (ch * 2,), jnp.float32),
        w3=s * jax.random.normal(ks[4], (11, 11, ch * 2, ch * 32), jnp.float32),
        b3=s * jax.random.normal(ks[5], (ch * 32,), jnp.float32),
        wmu=s * jax.random.normal(ks[6], (1, 1, ch * 32, z), jnp.float32),
        bmu=s * jax.random.normal(ks[7], (z,), jnp.float32),
    )


def prepare_params(params, div=1.0):
    """One-time weight preparation (hoisted out of the jitted forward):
    reshape HWIO -> (K, N), fold 1/div into w1, pad K/N to lane multiples,
    cast weights to bf16, pad biases to (1, Np) f32."""
    assert div in (1.0, 255.0)
    cin, ch = params['w1'].shape[2], params['w1'].shape[3]
    z = params['wmu'].shape[3]

    def prep_w(w2d):
        K, N = w2d.shape
        Kp, Np = _round_up(K, 128), _round_up(N, 128)
        return jnp.pad(w2d, ((0, Kp - K), (0, Np - N))).astype(jnp.bfloat16)

    def prep_b(b):
        Np = _round_up(b.shape[0], 128)
        return jnp.pad(b, (0, Np - b.shape[0])).reshape(1, Np).astype(jnp.float32)

    prep = dict(
        w1p=prep_w(params['w1'].reshape(8 * 8 * cin, ch) * (1.0 / div)),
        b1p=prep_b(params['b1']),
        w2p=prep_w(params['w2'].reshape(4 * 4 * ch, 2 * ch)),
        b2p=prep_b(params['b2']),
        w3p=prep_w(params['w3'].reshape(11 * 11 * 2 * ch, 32 * ch)),
        b3p=prep_b(params['b3']),
        wmup=prep_w(params['wmu'].reshape(32 * ch, z)),
        bmup=prep_b(params['bmu']),
    )
    return prep, dict(cin=cin, ch=ch, z=z)


def tencoder_forward(x_nchw, prep, *, ch, z):
    """Pallas implementation of TEncoder.forward (NCHW in, NCHW out).
    `prep` comes from prepare_params (the 1/div scale is already folded in)."""
    n, cin = x_nchw.shape[0], x_nchw.shape[1]
    # NHWC + bf16 up-front: all glue/im2col traffic below is half-width.
    x = jnp.transpose(x_nchw, (0, 2, 3, 1)).astype(jnp.bfloat16)

    # ZeroPad2d((2,2,2,2)) + Conv2d(cin, ch, 8, stride 4) + ReLU
    xp = jnp.pad(x, ((0, 0), (2, 2), (2, 2), (0, 0)))
    p, ho, wo = _extract_patches(xp, 8, 4)
    y = matmul_bias_relu(p, prep['w1p'], prep['b1p'], ch)
    x = y.reshape(n, ho, wo, ch)

    # ZeroPad2d((1,2,1,2)) + Conv2d(ch, 2ch, 4, stride 2) + ReLU
    xp = jnp.pad(x, ((0, 0), (1, 2), (1, 2), (0, 0)))
    p, ho, wo = _extract_patches(xp, 4, 2)
    y = matmul_bias_relu(p, prep['w2p'], prep['b2p'], 2 * ch)
    x = y.reshape(n, ho, wo, 2 * ch)

    # Conv2d(2ch, 32ch, 11, stride 1) + ReLU + conv_mu (1x1) — one fused call.
    # The 11x11 stride-1 kernel spans the whole 11x11 map, and the (kh,kw,ci)
    # patch order is exactly the NHWC flatten -> im2col is a plain reshape.
    assert ho == 11 and wo == 11, "conv stack expects an 84x84 input"
    y = conv3_mu_fused(x.reshape(n, ho * wo * 2 * ch),
                       prep['w3p'], prep['b3p'], prep['wmup'], prep['bmup'], z)
    x = y.reshape(n, 1, 1, z)
    return jnp.transpose(x, (0, 3, 1, 2))                        # -> NCHW


def tencoder_reference(x_nchw, params, div=1.0):
    """Pure-XLA f32 reference used only for a correctness check."""
    dn = ('NCHW', 'HWIO', 'NCHW')
    x = x_nchw.astype(jnp.float32) / div
    x = lax.conv_general_dilated(x, params['w1'], (4, 4), [(2, 2), (2, 2)],
                                 dimension_numbers=dn)
    x = jax.nn.relu(x + params['b1'].reshape(1, -1, 1, 1))
    x = lax.conv_general_dilated(x, params['w2'], (2, 2), [(1, 2), (1, 2)],
                                 dimension_numbers=dn)
    x = jax.nn.relu(x + params['b2'].reshape(1, -1, 1, 1))
    x = lax.conv_general_dilated(x, params['w3'], (1, 1), [(0, 0), (0, 0)],
                                 dimension_numbers=dn)
    x = jax.nn.relu(x + params['b3'].reshape(1, -1, 1, 1))
    x = lax.conv_general_dilated(x, params['wmu'], (1, 1), [(0, 0), (0, 0)],
                                 dimension_numbers=dn)
    return x + params['bmu'].reshape(1, -1, 1, 1)


if __name__ == "__main__":
    key = jax.random.PRNGKey(0)
    kx, kp = jax.random.split(key)
    # 84x84 is the minimum spatial size the conv stack implies (the 11x11 conv
    # needs an 11x11 feature map after the first two convs), as in Atari.
    x = jax.random.normal(kx, (2, 3, 84, 84), jnp.float32)
    params = init_params(kp)

    # One-time weight prep (pad + bf16 cast + 1/div fold) outside the forward.
    prep, dims = prepare_params(params, div=1.0)

    fwd = jax.jit(functools.partial(tencoder_forward, ch=dims['ch'], z=dims['z']))
    out = jax.block_until_ready(fwd(x, prep))
    assert out.shape == (2, 64, 1, 1), out.shape

    ref = jax.block_until_ready(tencoder_reference(x, params))
    # kernels feed the MXU in bf16 (f32 accumulate); reference is full f32.
    np.testing.assert_allclose(np.asarray(out), np.asarray(ref),
                               rtol=2e-2, atol=3e-2)
    print("KERNEL_OK")
</pallas_src>

<mosaic_0001>
module attributes {stable_mosaic.version = 11 : i64} {
  func.func @_mm_bias_relu_kernel(%arg0: i32, %arg1: memref<128x256xbf16, #tpu.memory_space<vmem>>, %arg2: memref<256x128xbf16, #tpu.memory_space<vmem>>, %arg3: memref<1x128xf32, #tpu.memory_space<vmem>>, %arg4: memref<128x128xbf16, #tpu.memory_space<vmem>>) attributes {dimension_semantics = [#tpu.dimension_semantics<parallel>], iteration_bounds = array<i64: 7>, scalar_prefetch = 0 : i64, scratch_operands = 0 : i64, tpu.core_type = #tpu.core_type<tc>, window_params = [{transform_indices = @transform_0, window_bounds = array<i64: 128, 256>}, {pipeline_mode = #tpu.pipeline_mode<synchronous>, transform_indices = @transform_1, window_bounds = array<i64: 256, 128>}, {pipeline_mode = #tpu.pipeline_mode<synchronous>, transform_indices = @transform_2, window_bounds = array<i64: 1, 128>}, {transform_indices = @transform_3, window_bounds = array<i64: 128, 128>}]} {
    %c0 = arith.constant 0 : index
    %c0_0 = arith.constant 0 : index
    %0 = vector.load %arg1[%c0, %c0_0] : memref<128x256xbf16, #tpu.memory_space<vmem>>, vector<128x256xbf16>
    %c0_1 = arith.constant 0 : index
    %c0_2 = arith.constant 0 : index
    %1 = vector.load %arg2[%c0_1, %c0_2] : memref<256x128xbf16, #tpu.memory_space<vmem>>, vector<256x128xbf16>
    %cst = arith.constant dense<0.000000e+00> : vector<128x128xf32>
    %2 = tpu.matmul %0, %1, %cst {dimension_numbers = #tpu.dot_dimension_numbers<[1], [0], [0], [1], [0, 0, 1, 1], [], []>} : vector<128x256xbf16>, vector<256x128xbf16>, vector<128x128xf32> -> vector<128x128xf32>
    %c0_3 = arith.constant 0 : index
    %c0_4 = arith.constant 0 : index
    %3 = vector.load %arg3[%c0_3, %c0_4] : memref<1x128xf32, #tpu.memory_space<vmem>>, vector<1x128xf32>
    %4 = vector.broadcast %3 : vector<1x128xf32> to vector<128x128xf32>
    %5 = arith.addf %2, %4 : vector<128x128xf32>
    %cst_5 = arith.constant 0.000000e+00 : f32
    %6 = vector.broadcast %cst_5 : f32 to vector<128x128xf32>
    %7 = arith.maximumf %5, %6 : vector<128x128xf32>
    %8 = arith.truncf %7 : vector<128x128xf32> to vector<128x128xbf16>
    %c0_6 = arith.constant 0 : index
    %c0_7 = arith.constant 0 : index
    %9 = vector.load %arg4[%c0_6, %c0_7] : memref<128x128xbf16, #tpu.memory_space<vmem>>, vector<128x128xbf16>
    tpu.vector_store %arg4[%c0_6, %c0_7], %8 {strides = array<i32>} : memref<128x128xbf16, #tpu.memory_space<vmem>>, vector<128x128xbf16>,
    return
  }
  func.func @transform_0(%arg0: i32) -> (i32, i32) {
    %c0_i32 = arith.constant 0 : i32
    %c0_i32_0 = arith.constant 0 : i32
    return %arg0, %c0_i32 : i32, i32
  }
  func.func @transform_1(%arg0: i32) -> (i32, i32) {
    %c0_i32 = arith.constant 0 : i32
    %c0_i32_0 = arith.constant 0 : i32
    %c0_i32_1 = arith.constant 0 : i32
    return %c0_i32, %c0_i32_0 : i32, i32
  }
  func.func @transform_2(%arg0: i32) -> (i32, i32) {
    %c0_i32 = arith.constant 0 : i32
    %c0_i32_0 = arith.constant 0 : i32
    %c0_i32_1 = arith.constant 0 : i32
    return %c0_i32, %c0_i32_0 : i32, i32
  }
  func.func @transform_3(%arg0: i32) -> (i32, i32) {
    %c0_i32 = arith.constant 0 : i32
    %c0_i32_0 = arith.constant 0 : i32
    return %arg0, %c0_i32 : i32, i32
  }
}

module attributes {stable_mosaic.version = 11 : i64} {
  func.func @_mm_bias_relu_kernel(%arg0: i32, %arg1: memref<128x256xbf16, #tpu.memory_space<vmem>>, %arg2: memref<256x128xbf16, #tpu.memory_space<vmem>>, %arg3: memref<1x128xf32, #tpu.memory_space<vmem>>, %arg4: memref<128x128xbf16, #tpu.memory_space<vmem>>) attributes {dimension_semantics = [#tpu.dimension_semantics<parallel>], iteration_bounds = array<i64: 2>, scalar_prefetch = 0 : i64, scratch_operands = 0 : i64, tpu.core_type = #tpu.core_type<tc>, window_params = [{transform_indices = @transform_0, window_bounds = array<i64: 128, 256>}, {pipeline_mode = #tpu.pipeline_mode<synchronous>, transform_indices = @transform_1, window_bounds = array<i64: 256, 128>}, {pipeline_mode = #tpu.pipeline_mode<synchronous>, transform_indices = @transform_2, window_bounds = array<i64: 1, 128>}, {transform_indices = @transform_3, window_bounds = array<i64: 128, 128>}]} {
    %c0 = arith.constant 0 : index
    %c0_0 = arith.constant 0 : index
    %0 = vector.load %arg1[%c0, %c0_0] : memref<128x256xbf16, #tpu.memory_space<vmem>>, vector<128x256xbf16>
    %c0_1 = arith.constant 0 : index
    %c0_2 = arith.constant 0 : index
    %1 = vector.load %arg2[%c0_1, %c0_2] : memref<256x128xbf16, #tpu.memory_space<vmem>>, vector<256x128xbf16>
    %cst = arith.constant dense<0.000000e+00> : vector<128x128xf32>
    %2 = tpu.matmul %0, %1, %cst {dimension_numbers = #tpu.dot_dimension_numbers<[1], [0], [0], [1], [0, 0, 1, 1], [], []>} : vector<128x256xbf16>, vector<256x128xbf16>, vector<128x128xf32> -> vector<128x128xf32>
    %c0_3 = arith.constant 0 : index
    %c0_4 = arith.constant 0 : index
    %3 = vector.load %arg3[%c0_3, %c0_4] : memref<1x128xf32, #tpu.memory_space<vmem>>, vector<1x128xf32>
    %4 = vector.broadcast %3 : vector<1x128xf32> to vector<128x128xf32>
    %5 = arith.addf %2, %4 : vector<128x128xf32>
    %cst_5 = arith.constant 0.000000e+00 : f32
    %6 = vector.broadcast %cst_5 : f32 to vector<128x128xf32>
    %7 = arith.maximumf %5, %6 : vector<128x128xf32>
    %8 = arith.truncf %7 : vector<128x128xf32> to vector<128x128xbf16>
    %c0_6 = arith.constant 0 : index
    %c0_7 = arith.constant 0 : index
    %9 = vector.load %arg4[%c0_6, %c0_7] : memref<128x128xbf16, #tpu.memory_space<vmem>>, vector<128x128xbf16>
    tpu.vector_store %arg4[%c0_6, %c0_7], %8 {strides = array<i32>} : memref<128x128xbf16, #tpu.memory_space<vmem>>, vector<128x128xbf16>,
    return
  }
  func.func @transform_0(%arg0: i32) -> (i32, i32) {
    %c0_i32 = arith.constant 0 : i32
    %c0_i32_0 = arith.constant 0 : i32
    return %arg0, %c0_i32 : i32, i32
  }
  func.func @transform_1(%arg0: i32) -> (i32, i32) {
    %c0_i32 = arith.constant 0 : i32
    %c0_i32_0 = arith.constant 0 : i32
    %c0_i32_1 = arith.constant 0 : i32
    return %c0_i32, %c0_i32_0 : i32, i32
  }
  func.func @transform_2(%arg0: i32) -> (i32, i32) {
    %c0_i32 = arith.constant 0 : i32
    %c0_i32_0 = arith.constant 0 : i32
    %c0_i32_1 = arith.constant 0 : i32
    return %c0_i32, %c0_i32_0 : i32, i32
  }
  func.func @transform_3(%arg0: i32) -> (i32, i32) {
    %c0_i32 = arith.constant 0 : i32
    %c0_i32_0 = arith.constant 0 : i32
    return %arg0, %c0_i32 : i32, i32
  }
}

module attributes {stable_mosaic.version = 11 : i64} {
  func.func @_conv3_mu_kernel(%arg0: i32, %arg1: memref<8x3968xbf16, #tpu.memory_space<vmem>>, %arg2: memref<3968x512xbf16, #tpu.memory_space<vmem>>, %arg3: memref<1x512xf32, #tpu.memory_space<vmem>>, %arg4: memref<512x128xbf16, #tpu.memory_space<vmem>>, %arg5: memref<1x128xf32, #tpu.memory_space<vmem>>, %arg6: memref<8x128xf32, #tpu.memory_space<vmem>>) attributes {dimension_semantics = [#tpu.dimension_semantics<parallel>], iteration_bounds = array<i64: 1>, scalar_prefetch = 0 : i64, scratch_operands = 0 : i64, tpu.core_type = #tpu.core_type<tc>, window_params = [{transform_indices = @transform_0, window_bounds = array<i64: 8, 3968>}, {pipeline_mode = #tpu.pipeline_mode<synchronous>, transform_indices = @transform_1, window_bounds = array<i64: 3968, 512>}, {pipeline_mode = #tpu.pipeline_mode<synchronous>, transform_indices = @transform_2, window_bounds = array<i64: 1, 512>}, {pipeline_mode = #tpu.pipeline_mode<synchronous>, transform_indices = @transform_3, window_bounds = array<i64: 512, 128>}, {pipeline_mode = #tpu.pipeline_mode<synchronous>, transform_indices = @transform_4, window_bounds = array<i64: 1, 128>}, {transform_indices = @transform_5, window_bounds = array<i64: 8, 128>}]} {
    %c0 = arith.constant 0 : index
    %c0_0 = arith.constant 0 : index
    %0 = vector.load %arg1[%c0, %c0_0] : memref<8x3968xbf16, #tpu.memory_space<vmem>>, vector<8x3968xbf16>
    %c0_1 = arith.constant 0 : index
    %c0_2 = arith.constant 0 : index
    %1 = vector.load %arg2[%c0_1, %c0_2] : memref<3968x512xbf16, #tpu.memory_space<vmem>>, vector<3968x512xbf16>
    %cst = arith.constant dense<0.000000e+00> : vector<8x512xf32>
    %2 = tpu.matmul %0, %1, %cst {dimension_numbers = #tpu.dot_dimension_numbers<[1], [0], [0], [1], [0, 0, 1, 1], [], []>} : vector<8x3968xbf16>, vector<3968x512xbf16>, vector<8x512xf32> -> vector<8x512xf32>
    %c0_3 = arith.constant 0 : index
    %c0_4 = arith.constant 0 : index
    %3 = vector.load %arg3[%c0_3, %c0_4] : memref<1x512xf32, #tpu.memory_space<vmem>>, vector<1x512xf32>
    %4 = vector.broadcast %3 : vector<1x512xf32> to vector<8x512xf32>
    %5 = arith.addf %2, %4 : vector<8x512xf32>
    %cst_5 = arith.constant 0.000000e+00 : f32
    %6 = vector.broadcast %cst_5 : f32 to vector<8x512xf32>
    %7 = arith.maximumf %5, %6 : vector<8x512xf32>
    %8 = arith.truncf %7 : vector<8x512xf32> to vector<8x512xbf16>
    %c0_6 = arith.constant 0 : index
    %c0_7 = arith.constant 0 : index
    %9 = vector.load %arg4[%c0_6, %c0_7] : memref<512x128xbf16, #tpu.memory_space<vmem>>, vector<512x128xbf16>
    %cst_8 = arith.constant dense<0.000000e+00> : vector<8x128xf32>
    %10 = tpu.matmul %8, %9, %cst_8 {dimension_numbers = #tpu.dot_dimension_numbers<[1], [0], [0], [1], [0, 0, 1, 1], [], []>} : vector<8x512xbf16>, vector<512x128xbf16>, vector<8x128xf32> -> vector<8x128xf32>
    %c0_9 = arith.constant 0 : index
    %c0_10 = arith.constant 0 : index
    %11 = vector.load %arg5[%c0_9, %c0_10] : memref<1x128xf32, #tpu.memory_space<vmem>>, vector<1x128xf32>
    %12 = vector.broadcast %11 : vector<1x128xf32> to vector<8x128xf32>
    %13 = arith.addf %10, %12 : vector<8x128xf32>
    %c0_11 = arith.constant 0 : index
    %c0_12 = arith.constant 0 : index
    %14 = vector.load %arg6[%c0_11, %c0_12] : memref<8x128xf32, #tpu.memory_space<vmem>>, vector<8x128xf32>
    tpu.vector_store %arg6[%c0_11, %c0_12], %13 {strides = array<i32>} : memref<8x128xf32, #tpu.memory_space<vmem>>, vector<8x128xf32>,
    return
  }
  func.func @transform_0(%arg0: i32) -> (i32, i32) {
    %c0_i32 = arith.constant 0 : i32
    %c0_i32_0 = arith.constant 0 : i32
    return %arg0, %c0_i32 : i32, i32
  }
  func.func @transform_1(%arg0: i32) -> (i32, i32) {
    %c0_i32 = arith.constant 0 : i32
    %c0_i32_0 = arith.constant 0 : i32
    %c0_i32_1 = arith.constant 0 : i32
    return %c0_i32, %c0_i32_0 : i32, i32
  }
  func.func @transform_2(%arg0: i32) -> (i32, i32) {
    %c0_i32 = arith.constant 0 : i32
    %c0_i32_0 = arith.constant 0 : i32
    %c0_i32_1 = arith.constant 0 : i32
    return %c0_i32, %c0_i32_0 : i32, i32
  }
  func.func @transform_3(%arg0: i32) -> (i32, i32) {
    %c0_i32 = arith.constant 0 : i32
    %c0_i32_0 = arith.constant 0 : i32
    %c0_i32_1 = arith.constant 0 : i32
    return %c0_i32, %c0_i32_0 : i32, i32
  }
  func.func @transform_4(%arg0: i32) -> (i32, i32) {
    %c0_i32 = arith.constant 0 : i32
    %c0_i32_0 = arith.constant 0 : i32
    %c0_i32_1 = arith.constant 0 : i32
    return %c0_i32, %c0_i32_0 : i32, i32
  }
  func.func @transform_5(%arg0: i32) -> (i32, i32) {
    %c0_i32 = arith.constant 0 : i32
    %c0_i32_0 = arith.constant 0 : i32
    return %arg0, %c0_i32 : i32, i32
  }
}

</mosaic_0001>

<llo_original>
// kernel: tencoder_forward.3
$region0: #{tencoder_forward.3}
  #allocation0 [shape = 'u32[]', space=smem, size = 0x4, offset = 0x4, fixed_abs, tag = 'smem constant byte address 0x4 - core index']
  #allocation1 [shape = 'u32[144,128]{1,0:T(1,128)}', space=vmem, size = 0x12000, scoped, tag = 'internal scratch']
  %s0 = inlined_call_operand.vmem [shape: bf16[896,256], index: 0, kind: input, shape index: {}]
  %s1 = inlined_call_operand.vmem [shape: bf16[256,128], index: 1, kind: input, shape index: {}]
  %s2 = inlined_call_operand.vmem [shape: f32[1,128], index: 2, kind: input, shape index: {}]
  %s3 = inlined_call_operand.vmem [shape: bf16[896,128], index: 3, kind: output, shape index: {}]
  %s4 = sld [smem:[#allocation0]]
  $region45: #{tencoder_forward.3} parent=0
    _
  %s6 = ssub.s32 1, %s4
  %s7 = scalar_select 0, %s6, %s4
  loop: start=0, step=1, limit=9
  $region2: #{tencoder_forward.3} parent=0 // loop_pre_header
    _
  $region3: #{tencoder_forward.3} parent=0 // loop_header
    %s9 = sphi 0, %s13
    %p10 = scmp.ge.s32.totalorder %s9, 9
    %s19 = sphi 0, %s21
    %s22 = sphi 0, %s19
    %s23 = sphi 0, %s22
    %s39 = sphi 0, %s23
    %s43 = sphi 0, %s43
    %s45 = sphi 0, %s43
    %s46 = sphi 0, %s45
    %s60 = sphi 0, %s46
    %s64 = sphi 0, %s64
    %s66 = sphi 0, %s64
    %s67 = sphi 0, %s66
    %s81 = sphi 0, %s67
    %s87 = sphi 0, %s89
    %s90 = sphi 0, %s87
    %s91 = sphi 0, %s90
    %s107 = sphi 0, %s91
  $region4: #{tencoder_forward.3} parent=0 // loop_header_branch
    %12 = sbr.rel (%p10) target = $region8
  $region5: #{tencoder_forward.3} parent=0 // loop_body
    %s14 = ssub.s32 %s9, 1
    %s15 = ssub.s32 %s9, 2
    %s16 = sadd.s32 %s9, 1
    %s17 = ssub.s32 %s9, %s16
    %p18 = scmp.eq.s32.totalorder %s17, 0
    %s20 = sadd.s32 %s19, 1
    %s21 = scalar_select %p18, %s19, %s20
    %p24 = pneg %p18
    %p25 = scmp.eq.s32.totalorder %s9, 6
    %p26 = por %p24, %p25
    %p27 = scmp.ne.s32.totalorder %s19, %s22
    %p28 = scmp.eq.s32.totalorder %s9, 0
    %p29 = por %p27, %p28
    %p30 = scmp.ne.s32.totalorder %s19, %s22
    %p31 = scmp.eq.s32.totalorder %s14, 6
    %p32 = por %p30, %p31
    %p33 = scmp.ne.s32.totalorder %s22, %s23
    %p34 = scmp.eq.s32.totalorder %s14, 0
    %p35 = por %p33, %p34
    %p36 = scmp.ne.s32.totalorder %s22, %s23
    %p37 = scmp.eq.s32.totalorder %s15, 6
    %p38 = por %p36, %p37
    %p40 = scmp.ne.s32.totalorder %s23, %s39
    %p41 = scmp.eq.s32.totalorder %s15, 0
    %p42 = por %p40, %p41
    %s44 = sadd.s32 %s43, 1
    %p47 = scmp.eq.s32.totalorder %s9, 6
    %p48 = scmp.ne.s32.totalorder %s43, %s45
    %p49 = scmp.eq.s32.totalorder %s9, 0
    %p50 = por %p48, %p49
    %p51 = scmp.ne.s32.totalorder %s43, %s45
    %p52 = scmp.eq.s32.totalorder %s14, 6
    %p53 = por %p51, %p52
    %p54 = scmp.ne.s32.totalorder %s45, %s46
    %p55 = scmp.eq.s32.totalorder %s14, 0
    %p56 = por %p54, %p55
    %p57 = scmp.ne.s32.totalorder %s45, %s46
    %p58 = scmp.eq.s32.totalorder %s15, 6
    %p59 = por %p57, %p58
    %p61 = scmp.ne.s32.totalorder %s46, %s60
    %p62 = scmp.eq.s32.totalorder %s15, 0
    %p63 = por %p61, %p62
    %s65 = sadd.s32 %s64, 1
    %p68 = scmp.eq.s32.totalorder %s9, 6
    %p69 = scmp.ne.s32.totalorder %s64, %s66
    %p70 = scmp.eq.s32.totalorder %s9, 0
    %p71 = por %p69, %p70
    %p72 = scmp.ne.s32.totalorder %s64, %s66
    %p73 = scmp.eq.s32.totalorder %s14, 6
    %p74 = por %p72, %p73
    %p75 = scmp.ne.s32.totalorder %s66, %s67
    %p76 = scmp.eq.s32.totalorder %s14, 0
    %p77 = por %p75, %p76
    %p78 = scmp.ne.s32.totalorder %s66, %s67
    %p79 = scmp.eq.s32.totalorder %s15, 6
    %p80 = por %p78, %p79
    %p82 = scmp.ne.s32.totalorder %s67, %s81
    %p83 = scmp.eq.s32.totalorder %s15, 0
    %p84 = por %p82, %p83
    %s85 = ssub.s32 %s9, %s16
    %p86 = scmp.eq.s32.totalorder %s85, 0
    %s88 = sadd.s32 %s87, 1
    %s89 = scalar_select %p86, %s87, %s88
    %p92 = pneg %p86
    %p93 = scmp.eq.s32.totalorder %s9, 6
    %p94 = por %p92, %p93
    %p95 = scmp.ne.s32.totalorder %s87, %s90
    %p96 = scmp.eq.s32.totalorder %s9, 0
    %p97 = por %p95, %p96
    %p98 = scmp.ne.s32.totalorder %s87, %s90
    %p99 = scmp.eq.s32.totalorder %s14, 6
    %p100 = por %p98, %p99
    %p101 = scmp.ne.s32.totalorder %s90, %s91
    %p102 = scmp.eq.s32.totalorder %s14, 0
    %p103 = por %p101, %p102
    %p104 = scmp.ne.s32.totalorder %s90, %s91
    %p105 = scmp.eq.s32.totalorder %s15, 6
    %p106 = por %p104, %p105
    %p108 = scmp.ne.s32.totalorder %s91, %s107
    %p109 = scmp.eq.s32.totalorder %s15, 0
    %p110 = por %p108, %p109
    %p111 = scmp.le.s32.totalorder 1, %s9
    %p112 = scmp.lt.s32.totalorder %s9, 8
    %p113 = pnand %p111, %p112
    %p114 = pneg %p113
    // Predicated region
    $region9: #{tencoder_forward.3} parent=5 // pred_check
      _
    $region10: #{tencoder_forward.3} parent=5 // pred_check_branch
      %116 = sbr.rel (%p113) target = $region12
    $region11: #{tencoder_forward.3} parent=5 // pred_region
      %s117 = ssub.s32 %s9, 1
      // Predicated region
      $region13: #{tencoder_forward.3} parent=11 // pred_check
        %p118 = pneg %p56
      $region14: #{tencoder_forward.3} parent=11 // pred_check_branch
        %120 = sbr.rel (%p118) target = $region16
      $region15: #{tencoder_forward.3} parent=11 // pred_region
        _
      $region16: #{tencoder_forward.3} parent=11 // pred_fallthru
        _
      // Predicated region
      $region17: #{tencoder_forward.3} parent=11 // pred_check
        %p121 = pneg %p77
      $region18: #{tencoder_forward.3} parent=11 // pred_check_branch
        %123 = sbr.rel (%p121) target = $region20
      $region19: #{tencoder_forward.3} parent=11 // pred_region
        _
      $region20: #{tencoder_forward.3} parent=11 // pred_fallthru
        _
    $region12: #{tencoder_forward.3} parent=5 // pred_fallthru
      _
    %p124 = scmp.lt.s32.totalorder %s9, 7
    // Predicated region
    $region21: #{tencoder_forward.3} parent=5 // pred_check
      %p125 = pneg %p124
    $region22: #{tencoder_forward.3} parent=5 // pred_check_branch
      %127 = sbr.rel (%p125) target = $region24
    $region23: #{tencoder_forward.3} parent=5 // pred_region
      // Predicated region
      $region25: #{tencoder_forward.3} parent=23 // pred_check
        %p128 = pneg %p29
      $region26: #{tencoder_forward.3} parent=23 // pred_check_branch
        %130 = sbr.rel (%p128) target = $region28
      $region27: #{tencoder_forward.3} parent=23 // pred_region
        %s131 = smul.u32 16, %s9
        %p132 = scmp.lt.s32.totalorder %s131, 111
        %s133 = scalar_select %p132, %s131, 111
        %s134 = smul.addr %s133, 2
        %s135 = smul.addr %s134, 4
        %s136 = scalar_lea.vmem %s0, %s135
        %s137 = smul.u32 16, %s9
      $region28: #{tencoder_forward.3} parent=23 // pred_fallthru
        _
    $region24: #{tencoder_forward.3} parent=5 // pred_fallthru
      _
    %p138 = scmp.le.s32.totalorder 1, %s9
    %p139 = scmp.lt.s32.totalorder %s9, 8
    %p140 = pnand %p138, %p139
    %p141 = pneg %p140
    // Predicated region
    $region29: #{tencoder_forward.3} parent=5 // pred_check
      _
    $region30: #{tencoder_forward.3} parent=5 // pred_check_branch
      %143 = sbr.rel (%p140) target = $region32
    $region31: #{tencoder_forward.3} parent=5 // pred_region
      %s144 = ssub.s32 %s9, 1
      %s145 = smul.u32 16, %s14
      %p146 = scmp.lt.s32.totalorder %s145, 111
      %s147 = scalar_select %p146, %s145, 111
      %s148 = smul.addr %s147, 2
      %s149 = smul.addr %s148, 4
      %s150 = scalar_lea.vmem %s0, %s149
      %p151 = pneg %p35
      %p152 = pneg %p32
      %p153 = pneg %p56
      %p154 = pneg %p53
      %p155 = pneg %p77
      %p156 = pneg %p74
      %p157 = pneg %p103
      %p158 = pneg %p100
      %s159 = smul.u32 16, %s14
      %p160 = scmp.lt.s32.totalorder %s159, 111
      %s161 = scalar_select %p160, %s159, 111
      %s162 = smul.addr %s161, 4
      %s163 = scalar_lea.vmem %s3, %s162
      %s164 = smul.u32 16, %s14
      %p165 = scmp.lt.s32.totalorder %s164, 111
      %s166 = scalar_select %p165, %s164, 111
      %s167 = smul.addr %s166, 2
      %s168 = smul.addr %s167, 4
      %s169 = scalar_lea.vmem %s0, %s168
      %s170 = smul.u32 16, %s14
      %s171 = smul.u32 16, %s14
      %p172 = scmp.lt.s32.totalorder %s171, 111
      %s173 = scalar_select %p172, %s171, 111
      %s174 = smul.addr %s173, 4
      %s175 = scalar_lea.vmem %s3, %s174
      %s176 = smul.u32 16, %s14
      %v178 = vld [vmem:[%s169] sm:$0xff]
      %v179 = vld [vmem:[%s169 + $0x8] sm:$0xff]
      %v180 = vld [vmem:[%s169 + $0x10] sm:$0xff]
      %v181 = vld [vmem:[%s169 + $0x18] sm:$0xff]
      %v182 = vld [vmem:[%s169 + $0x20] sm:$0xff]
      %v183 = vld [vmem:[%s169 + $0x28] sm:$0xff]
      %v184 = vld [vmem:[%s169 + $0x30] sm:$0xff]
      %v185 = vld [vmem:[%s169 + $0x38] sm:$0xff]
      %v186 = vld [vmem:[%s169 + $0x40] sm:$0xff]
      %v187 = vld [vmem:[%s169 + $0x48] sm:$0xff]
      %v188 = vld [vmem:[%s169 + $0x50] sm:$0xff]
      %v189 = vld [vmem:[%s169 + $0x58] sm:$0xff]
      %v190 = vld [vmem:[%s169 + $0x60] sm:$0xff]
      %v191 = vld [vmem:[%s169 + $0x68] sm:$0xff]
      %v192 = vld [vmem:[%s169 + $0x70] sm:$0xff]
      %v193 = vld [vmem:[%s169 + $0x78] sm:$0xff]
      %v194 = vld [vmem:[%s1] sm:$0xf]
      %v195 = vld [vmem:[%s1 + $0x4] sm:$0xf]
      %v196 = vld [vmem:[%s1 + $0x8] sm:$0xf]
      %v197 = vld [vmem:[%s1 + $0xc] sm:$0xf]
      %v198 = vld [vmem:[%s1 + $0x10] sm:$0xf]
      %v199 = vld [vmem:[%s1 + $0x14] sm:$0xf]
      %v200 = vld [vmem:[%s1 + $0x18] sm:$0xf]
      %v201 = vld [vmem:[%s1 + $0x1c] sm:$0xf]
      %v202 = vld [vmem:[%s1 + $0x20] sm:$0xf]
      %v203 = vld [vmem:[%s1 + $0x24] sm:$0xf]
      %v204 = vld [vmem:[%s1 + $0x28] sm:$0xf]
      %v205 = vld [vmem:[%s1 + $0x2c] sm:$0xf]
      %v206 = vld [vmem:[%s1 + $0x30] sm:$0xf]
      %v207 = vld [vmem:[%s1 + $0x34] sm:$0xf]
      %v208 = vld [vmem:[%s1 + $0x38] sm:$0xf]
      %v209 = vld [vmem:[%s1 + $0x3c] sm:$0xf]
      %v210 = vld [vmem:[%s1 + $0x40] sm:$0xf]
      %v211 = vld [vmem:[%s1 + $0x44] sm:$0xf]
      %v212 = vld [vmem:[%s1 + $0x48] sm:$0xf]
      %v213 = vld [vmem:[%s1 + $0x4c] sm:$0xf]
      %v214 = vld [vmem:[%s1 + $0x50] sm:$0xf]
      %v215 = vld [vmem:[%s1 + $0x54] sm:$0xf]
      %v216 = vld [vmem:[%s1 + $0x58] sm:$0xf]
      %v217 = vld [vmem:[%s1 + $0x5c] sm:$0xf]
      %v218 = vld [vmem:[%s1 + $0x60] sm:$0xf]
      %v219 = vld [vmem:[%s1 + $0x64] sm:$0xf]
      %v220 = vld [vmem:[%s1 + $0x68] sm:$0xf]
      %v221 = vld [vmem:[%s1 + $0x6c] sm:$0xf]
      %v222 = vld [vmem:[%s1 + $0x70] sm:$0xf]
      %v223 = vld [vmem:[%s1 + $0x74] sm:$0xf]
      %v224 = vld [vmem:[%s1 + $0x78] sm:$0xf]
      %v225 = vld [vmem:[%s1 + $0x7c] sm:$0xf]
      %v226 = vld [vmem:[%s2] sm:$0x1]
      %v228 = vlaneseq
      %v229 = vshrl.u32 %v228, 7
      %v230 = vsub.s32 0, %v229
      %v231 = vrot.slane %v226, %v230
      %v249 = vunpack.c.l.b16 %v178
      %v250 = vunpack.c.h.b16 %v178
      %v251 = vunpack.c.l.b16 %v179
      %v252 = vunpack.c.h.b16 %v179
      %v253 = vunpack.c.l.b16 %v180
      %v254 = vunpack.c.h.b16 %v180
      %v255 = vunpack.c.l.b16 %v181
      %v256 = vunpack.c.h.b16 %v181
      %v257 = vunpack.c.l.b16 %v182
      %v258 = vunpack.c.h.b16 %v182
      %v259 = vunpack.c.l.b16 %v183
      %v260 = vunpack.c.h.b16 %v183
      %v261 = vunpack.c.l.b16 %v184
      %v262 = vunpack.c.h.b16 %v184
      %v263 = vunpack.c.l.b16 %v185
      %v264 = vunpack.c.h.b16 %v185
      %v265 = vunpack.c.l.b16 %v186
      %v266 = vunpack.c.h.b16 %v186
      %v267 = vunpack.c.l.b16 %v187
      %v268 = vunpack.c.h.b16 %v187
      %v269 = vunpack.c.l.b16 %v188
      %v270 = vunpack.c.h.b16 %v188
      %v271 = vunpack.c.l.b16 %v189
      %v272 = vunpack.c.h.b16 %v189
      %v273 = vunpack.c.l.b16 %v190
      %v274 = vunpack.c.h.b16 %v190
      %v275 = vunpack.c.l.b16 %v191
      %v276 = vunpack.c.h.b16 %v191
      %v277 = vunpack.c.l.b16 %v192
      %v278 = vunpack.c.h.b16 %v192
      %v279 = vunpack.c.l.b16 %v193
      %v280 = vunpack.c.h.b16 %v193
      %v281 = vpack.c.b16 %v251, %v249
      %v282 = vpack.c.b16 %v252, %v250
      %v283 = vpack.c.b16 %v255, %v253
      %v284 = vpack.c.b16 %v256, %v254
      %v285 = vpack.c.b16 %v259, %v257
      %v286 = vpack.c.b16 %v260, %v258
      %v287 = vpack.c.b16 %v263, %v261
      %v288 = vpack.c.b16 %v264, %v262
      %v289 = vpack.c.b16 %v267, %v265
      %v290 = vpack.c.b16 %v268, %v266
      %v291 = vpack.c.b16 %v271, %v269
      %v292 = vpack.c.b16 %v272, %v270
      %v293 = vpack.c.b16 %v275, %v273
      %v294 = vpack.c.b16 %v276, %v274
      %v295 = vpack.c.b16 %v279, %v277
      %v296 = vpack.c.b16 %v280, %v278
      %v345 = vunpack.c.l.b16 %v194
      %v346 = vunpack.c.l.b16 %v195
      %v347 = vunpack.c.l.b16 %v196
      %v348 = vunpack.c.l.b16 %v197
      %v349 = vunpack.c.l.b16 %v198
      %v350 = vunpack.c.l.b16 %v199
      %v351 = vunpack.c.l.b16 %v200
      %v352 = vunpack.c.l.b16 %v201
      %v353 = vunpack.c.l.b16 %v202
      %v354 = vunpack.c.l.b16 %v203
      %v355 = vunpack.c.l.b16 %v204
      %v356 = vunpack.c.l.b16 %v205
      %v357 = vunpack.c.l.b16 %v206
      %v358 = vunpack.c.l.b16 %v207
      %v359 = vunpack.c.l.b16 %v208
      %v360 = vunpack.c.l.b16 %v209
      %v361 = vunpack.c.l.b16 %v210
      %v362 = vunpack.c.l.b16 %v211
      %v363 = vunpack.c.l.b16 %v212
      %v364 = vunpack.c.l.b16 %v213
      %v365 = vunpack.c.l.b16 %v214
      %v366 = vunpack.c.l.b16 %v215
      %v367 = vunpack.c.l.b16 %v216
      %v368 = vunpack.c.l.b16 %v217
      %v369 = vunpack.c.l.b16 %v218
      %v370 = vunpack.c.l.b16 %v219
      %v371 = vunpack.c.l.b16 %v220
      %v372 = vunpack.c.l.b16 %v221
      %v373 = vunpack.c.l.b16 %v222
      %v374 = vunpack.c.l.b16 %v223
      %v375 = vunpack.c.l.b16 %v224
      %v376 = vunpack.c.l.b16 %v225
      %v377 = vpack.c.b16 %v346, %v345
      %v378 = vpack.c.b16 %v348, %v347
      %v379 = vpack.c.b16 %v350, %v349
      %v380 = vpack.c.b16 %v352, %v351
      %v381 = vpack.c.b16 %v354, %v353
      %v382 = vpack.c.b16 %v356, %v355
      %v383 = vpack.c.b16 %v358, %v357
      %v384 = vpack.c.b16 %v360, %v359
      %v385 = vpack.c.b16 %v362, %v361
      %v386 = vpack.c.b16 %v364, %v363
      %v387 = vpack.c.b16 %v366, %v365
      %v388 = vpack.c.b16 %v368, %v367
      %v389 = vpack.c.b16 %v370, %v369
      %v390 = vpack.c.b16 %v372, %v371
      %v391 = vpack.c.b16 %v374, %v373
      %v392 = vpack.c.b16 %v376, %v375
      %409 = vmatprep.subr.bf16.mxu0 0
      %410 = vmatpush1.bf16.msra.mxu0 %v384
      %411 = vmatprep.subr.bf16.mxu0 0
      %412 = vmatpush1.bf16.msra.mxu0 %v383
      %413 = vmatprep.subr.bf16.mxu0 0
      %414 = vmatpush1.bf16.msra.mxu0 %v382
      %415 = vmatprep.subr.bf16.mxu0 0
      %416 = vmatpush1.bf16.msra.mxu0 %v381
      %417 = vmatprep.subr.bf16.mxu0 0
      %418 = vmatpush1.bf16.msra.mxu0 %v380
      %419 = vmatprep.subr.bf16.mxu0 0
      %420 = vmatpush1.bf16.msra.mxu0 %v379
      %421 = vmatprep.subr.bf16.mxu0 0
      %422 = vmatpush1.bf16.msra.mxu0 %v378
      %423 = vmatprep.subr.bf16.mxu0 0
      %424 = vmatpush1.bf16.msra.mxu0 %v377
      %425 = vmatprep.subr.bf16.mxu0 0
      %426 = vmatpush2.bf16.msra.mxu0 %v392
      %427 = vmatprep.subr.bf16.mxu0 0
      %428 = vmatpush2.bf16.msra.mxu0 %v391
      %429 = vmatprep.subr.bf16.mxu0 0
      %430 = vmatpush2.bf16.msra.mxu0 %v390
      %431 = vmatprep.subr.bf16.mxu0 0
      %432 = vmatpush2.bf16.msra.mxu0 %v389
      %433 = vmatprep.subr.bf16.mxu0 0
      %434 = vmatpush2.bf16.msra.mxu0 %v388
      %435 = vmatprep.subr.bf16.mxu0 0
      %436 = vmatpush2.bf16.msra.mxu0 %v387
      %437 = vmatprep.subr.bf16.mxu0 0
      %438 = vmatpush2.bf16.msra.mxu0 %v386
      %439 = vmatprep.subr.bf16.mxu0 0
      %440 = vmatpush2.bf16.msra.mxu0 %v385
      %441 = vmatprep.mubr.bf16.mxu0 %v282
      %442 = vmatmul.mubr.bf16.gmra.mxu0 %v281
      %v443 = vpop.f32.mrf.mxu0
      %v444 = vadd.f32 %v231, %v443
      %v445 = vpop.f32.mrf.mxu0
      %v446 = vpop.f32.mrf.mxu0
      %v447 = vadd.f32 %v231, %v446
      %v448 = vpop.f32.mrf.mxu0
      %449 = vmatprep.mubr.bf16.mxu0 %v284
      %450 = vmatmul.mubr.bf16.gmra.mxu0 %v283
      %v451 = vpop.f32.mrf.mxu0
      %v452 = vadd.f32 %v231, %v451
      %v453 = vpop.f32.mrf.mxu0
      %v454 = vpop.f32.mrf.mxu0
      %v455 = vadd.f32 %v231, %v454
      %v456 = vpop.f32.mrf.mxu0
      %457 = vmatprep.mubr.bf16.mxu0 %v286
      %458 = vmatmul.mubr.bf16.gmra.mxu0 %v285
      %v459 = vpop.f32.mrf.mxu0
      %v460 = vadd.f32 %v231, %v459
      %v461 = vpop.f32.mrf.mxu0
      %v462 = vpop.f32.mrf.mxu0
      %v463 = vadd.f32 %v231, %v462
      %v464 = vpop.f32.mrf.mxu0
      %465 = vmatprep.mubr.bf16.mxu0 %v288
      %466 = vmatmul.mubr.bf16.gmra.mxu0 %v287
      %v467 = vpop.f32.mrf.mxu0
      %v468 = vadd.f32 %v231, %v467
      %v469 = vpop.f32.mrf.mxu0
      %v470 = vpop.f32.mrf.mxu0
      %v471 = vadd.f32 %v231, %v470
      %v472 = vpop.f32.mrf.mxu0
      %473 = vmatprep.mubr.bf16.mxu0 %v290
      %474 = vmatmul.mubr.bf16.gmra.mxu0 %v289
      %v475 = vpop.f32.mrf.mxu0
      %v476 = vadd.f32 %v231, %v475
      %v477 = vpop.f32.mrf.mxu0
      %v478 = vpop.f32.mrf.mxu0
      %v479 = vadd.f32 %v231, %v478
      %v480 = vpop.f32.mrf.mxu0
      %481 = vmatprep.mubr.bf16.mxu0 %v292
      %482 = vmatmul.mubr.bf16.gmra.mxu0 %v291
      %v483 = vpop.f32.mrf.mxu0
      %v484 = vadd.f32 %v231, %v483
      %v485 = vpop.f32.mrf.mxu0
      %v486 = vpop.f32.mrf.mxu0
      %v487 = vadd.f32 %v231, %v486
      %v488 = vpop.f32.mrf.mxu0
      %489 = vmatprep.mubr.bf16.mxu0 %v294
      %490 = vmatmul.mubr.bf16.gmra.mxu0 %v293
      %v491 = vpop.f32.mrf.mxu0
      %v492 = vadd.f32 %v231, %v491
      %v493 = vpop.f32.mrf.mxu0
      %v494 = vpop.f32.mrf.mxu0
      %v495 = vadd.f32 %v231, %v494
      %v496 = vpop.f32.mrf.mxu0
      %497 = vmatprep.mubr.bf16.mxu0 %v296
      %498 = vmatmul.mubr.bf16.gmra.mxu0 %v295
      %v499 = vpop.f32.mrf.mxu0
      %v500 = vadd.f32 %v231, %v499
      %v501 = vpop.f32.mrf.mxu0
      %v502 = vpop.f32.mrf.mxu0
      %v503 = vadd.f32 %v231, %v502
      %v504 = vpop.f32.mrf.mxu0
      %505 = vdwg.mxu0
      %v506 = vmax.f32 %v444, 0.0
      %v507 = vmax.f32 %v447, 0.0
      %v508 = vmax.f32 %v452, 0.0
      %v509 = vmax.f32 %v455, 0.0
      %v510 = vmax.f32 %v460, 0.0
      %v511 = vmax.f32 %v463, 0.0
      %v512 = vmax.f32 %v468, 0.0
      %v513 = vmax.f32 %v471, 0.0
      %v514 = vmax.f32 %v476, 0.0
      %v515 = vmax.f32 %v479, 0.0
      %v516 = vmax.f32 %v484, 0.0
      %v517 = vmax.f32 %v487, 0.0
      %v518 = vmax.f32 %v492, 0.0
      %v519 = vmax.f32 %v495, 0.0
      %v520 = vmax.f32 %v500, 0.0
      %v521 = vmax.f32 %v503, 0.0
      %v522 = vpack.c.bf16 %v507, %v506
      %v523 = vpack.c.bf16 %v509, %v508
      %v524 = vpack.c.bf16 %v511, %v510
      %v525 = vpack.c.bf16 %v513, %v512
      %v526 = vpack.c.bf16 %v515, %v514
      %v527 = vpack.c.bf16 %v517, %v516
      %v528 = vpack.c.bf16 %v519, %v518
      %v529 = vpack.c.bf16 %v521, %v520
      %v538 = vunpack.c.l.b16 %v522
      %v539 = vunpack.c.h.b16 %v522
      %v540 = vunpack.c.l.b16 %v523
      %v541 = vunpack.c.h.b16 %v523
      %v542 = vunpack.c.l.b16 %v524
      %v543 = vunpack.c.h.b16 %v524
      %v544 = vunpack.c.l.b16 %v525
      %v545 = vunpack.c.h.b16 %v525
      %v546 = vunpack.c.l.b16 %v526
      %v547 = vunpack.c.h.b16 %v526
      %v548 = vunpack.c.l.b16 %v527
      %v549 = vunpack.c.h.b16 %v527
      %v550 = vunpack.c.l.b16 %v528
      %v551 = vunpack.c.h.b16 %v528
      %v552 = vunpack.c.l.b16 %v529
      %v553 = vunpack.c.h.b16 %v529
      %v554 = vpack.c.b16 %v538, %v538
      %v555 = vpack.c.b16 %v539, %v539
      %v556 = vpack.c.b16 %v540, %v540
      %v557 = vpack.c.b16 %v541, %v541
      %v558 = vpack.c.b16 %v542, %v542
      %v559 = vpack.c.b16 %v543, %v543
      %v560 = vpack.c.b16 %v544, %v544
      %v561 = vpack.c.b16 %v545, %v545
      %v562 = vpack.c.b16 %v546, %v546
      %v563 = vpack.c.b16 %v547, %v547
      %v564 = vpack.c.b16 %v548, %v548
      %v565 = vpack.c.b16 %v549, %v549
      %v566 = vpack.c.b16 %v550, %v550
      %v567 = vpack.c.b16 %v551, %v551
      %v568 = vpack.c.b16 %v552, %v552
      %v569 = vpack.c.b16 %v553, %v553
      %586 = vst [vmem:[%s175] sm:$0xf] %v554
      %587 = vst [vmem:[%s175 + $0x4] sm:$0xf] %v555
      %588 = vst [vmem:[%s175 + $0x8] sm:$0xf] %v556
      %589 = vst [vmem:[%s175 + $0xc] sm:$0xf] %v557
      %590 = vst [vmem:[%s175 + $0x10] sm:$0xf] %v558
      %591 = vst [vmem:[%s175 + $0x14] sm:$0xf] %v559
      %592 = vst [vmem:[%s175 + $0x18] sm:$0xf] %v560
      %593 = vst [vmem:[%s175 + $0x1c] sm:$0xf] %v561
      %594 = vst [vmem:[%s175 + $0x20] sm:$0xf] %v562
      %595 = vst [vmem:[%s175 + $0x24] sm:$0xf] %v563
      %596 = vst [vmem:[%s175 + $0x28] sm:$0xf] %v564
      %597 = vst [vmem:[%s175 + $0x2c] sm:$0xf] %v565
      %598 = vst [vmem:[%s175 + $0x30] sm:$0xf] %v566
      %599 = vst [vmem:[%s175 + $0x34] sm:$0xf] %v567
      %600 = vst [vmem:[%s175 + $0x38] sm:$0xf] %v568
      %601 = vst [vmem:[%s175 + $0x3c] sm:$0xf] %v569
      %s602 = smul.u32 16, %s14
      %p603 = scmp.lt.s32.totalorder %s602, 111
      %s604 = scalar_select %p603, %s602, 111
      %s605 = smul.addr %s604, 4
      %s606 = scalar_lea.vmem %s3, %s605
      // Predicated region
      $region33: #{tencoder_forward.3} parent=31 // pred_check
        %p607 = pneg %p100
      $region34: #{tencoder_forward.3} parent=31 // pred_check_branch
        %609 = sbr.rel (%p607) target = $region36
      $region35: #{tencoder_forward.3} parent=31 // pred_region
        %s610 = smul.u32 16, %s14
      $region36: #{tencoder_forward.3} parent=31 // pred_fallthru
        _
    $region32: #{tencoder_forward.3} parent=5 // pred_fallthru
      _
    %p611 = scmp.le.s32.totalorder 2, %s9
    // Predicated region
    $region37: #{tencoder_forward.3} parent=5 // pred_check
      %p612 = pneg %p611
    $region38: #{tencoder_forward.3} parent=5 // pred_check_branch
      %614 = sbr.rel (%p612) target = $region40
    $region39: #{tencoder_forward.3} parent=5 // pred_region
      %s615 = ssub.s32 %s9, 2
      // Predicated region
      $region41: #{tencoder_forward.3} parent=39 // pred_check
        %p616 = pneg %p106
      $region42: #{tencoder_forward.3} parent=39 // pred_check_branch
        %618 = sbr.rel (%p616) target = $region44
      $region43: #{tencoder_forward.3} parent=39 // pred_region
        %s619 = smul.u32 16, %s15
        %p620 = scmp.lt.s32.totalorder %s619, 111
        %s621 = scalar_select %p620, %s619, 111
        %s622 = smul.addr %s621, 4
        %s623 = scalar_lea.vmem %s3, %s622
      $region44: #{tencoder_forward.3} parent=39 // pred_fallthru
        _
    $region40: #{tencoder_forward.3} parent=5 // pred_fallthru
      _
  $region6: #{tencoder_forward.3} parent=0 // loop_footer
    %s13 = sadd.s32 1, %s9
  $region7: #{tencoder_forward.3} parent=0 // loop_footer_branch
    %8 = sbr.rel target = $region3
  $region8: #{tencoder_forward.3} parent=0 // loop_exit
    _

// kernel: tencoder_forward.4
$region0: #{tencoder_forward.4}
  #allocation0 [shape = 'u32[]', space=smem, size = 0x4, offset = 0x4, fixed_abs, tag = 'smem constant byte address 0x4 - core index']
  #allocation1 [shape = 'u32[144,128]{1,0:T(1,128)}', space=vmem, size = 0x12000, scoped, tag = 'internal scratch']
  %s0 = inlined_call_operand.vmem [shape: bf16[256,256], index: 0, kind: input, shape index: {}]
  %s1 = inlined_call_operand.vmem [shape: bf16[256,128], index: 1, kind: input, shape index: {}]
  %s2 = inlined_call_operand.vmem [shape: f32[1,128], index: 2, kind: input, shape index: {}]
  %s3 = inlined_call_operand.vmem [shape: bf16[256,128], index: 3, kind: output, shape index: {}]
  %s4 = sld [smem:[#allocation0]]
  $region45: #{tencoder_forward.4} parent=0
    _
  %s6 = ssub.s32 1, %s4
  %s7 = scalar_select 0, %s6, %s4
  loop: start=0, step=1, limit=4
  $region2: #{tencoder_forward.4} parent=0 // loop_pre_header
    _
  $region3: #{tencoder_forward.4} parent=0 // loop_header
    %s9 = sphi 0, %s13
    %p10 = scmp.ge.s32.totalorder %s9, 4
    %s19 = sphi 0, %s21
    %s22 = sphi 0, %s19
    %s23 = sphi 0, %s22
    %s39 = sphi 0, %s23
    %s43 = sphi 0, %s43
    %s45 = sphi 0, %s43
    %s46 = sphi 0, %s45
    %s60 = sphi 0, %s46
    %s64 = sphi 0, %s64
    %s66 = sphi 0, %s64
    %s67 = sphi 0, %s66
    %s81 = sphi 0, %s67
    %s87 = sphi 0, %s89
    %s90 = sphi 0, %s87
    %s91 = sphi 0, %s90
    %s107 = sphi 0, %s91
  $region4: #{tencoder_forward.4} parent=0 // loop_header_branch
    %12 = sbr.rel (%p10) target = $region8
  $region5: #{tencoder_forward.4} parent=0 // loop_body
    %s14 = ssub.s32 %s9, 1
    %s15 = ssub.s32 %s9, 2
    %s16 = sadd.s32 %s9, 1
    %s17 = ssub.s32 %s9, %s16
    %p18 = scmp.eq.s32.totalorder %s17, 0
    %s20 = sadd.s32 %s19, 1
    %s21 = scalar_select %p18, %s19, %s20
    %p24 = pneg %p18
    %p25 = scmp.eq.s32.totalorder %s9, 1
    %p26 = por %p24, %p25
    %p27 = scmp.ne.s32.totalorder %s19, %s22
    %p28 = scmp.eq.s32.totalorder %s9, 0
    %p29 = por %p27, %p28
    %p30 = scmp.ne.s32.totalorder %s19, %s22
    %p31 = scmp.eq.s32.totalorder %s14, 1
    %p32 = por %p30, %p31
    %p33 = scmp.ne.s32.totalorder %s22, %s23
    %p34 = scmp.eq.s32.totalorder %s14, 0
    %p35 = por %p33, %p34
    %p36 = scmp.ne.s32.totalorder %s22, %s23
    %p37 = scmp.eq.s32.totalorder %s15, 1
    %p38 = por %p36, %p37
    %p40 = scmp.ne.s32.totalorder %s23, %s39
    %p41 = scmp.eq.s32.totalorder %s15, 0
    %p42 = por %p40, %p41
    %s44 = sadd.s32 %s43, 1
    %p47 = scmp.eq.s32.totalorder %s9, 1
    %p48 = scmp.ne.s32.totalorder %s43, %s45
    %p49 = scmp.eq.s32.totalorder %s9, 0
    %p50 = por %p48, %p49
    %p51 = scmp.ne.s32.totalorder %s43, %s45
    %p52 = scmp.eq.s32.totalorder %s14, 1
    %p53 = por %p51, %p52
    %p54 = scmp.ne.s32.totalorder %s45, %s46
    %p55 = scmp.eq.s32.totalorder %s14, 0
    %p56 = por %p54, %p55
    %p57 = scmp.ne.s32.totalorder %s45, %s46
    %p58 = scmp.eq.s32.totalorder %s15, 1
    %p59 = por %p57, %p58
    %p61 = scmp.ne.s32.totalorder %s46, %s60
    %p62 = scmp.eq.s32.totalorder %s15, 0
    %p63 = por %p61, %p62
    %s65 = sadd.s32 %s64, 1
    %p68 = scmp.eq.s32.totalorder %s9, 1
    %p69 = scmp.ne.s32.totalorder %s64, %s66
    %p70 = scmp.eq.s32.totalorder %s9, 0
    %p71 = por %p69, %p70
    %p72 = scmp.ne.s32.totalorder %s64, %s66
    %p73 = scmp.eq.s32.totalorder %s14, 1
    %p74 = por %p72, %p73
    %p75 = scmp.ne.s32.totalorder %s66, %s67
    %p76 = scmp.eq.s32.totalorder %s14, 0
    %p77 = por %p75, %p76
    %p78 = scmp.ne.s32.totalorder %s66, %s67
    %p79 = scmp.eq.s32.totalorder %s15, 1
    %p80 = por %p78, %p79
    %p82 = scmp.ne.s32.totalorder %s67, %s81
    %p83 = scmp.eq.s32.totalorder %s15, 0
    %p84 = por %p82, %p83
    %s85 = ssub.s32 %s9, %s16
    %p86 = scmp.eq.s32.totalorder %s85, 0
    %s88 = sadd.s32 %s87, 1
    %s89 = scalar_select %p86, %s87, %s88
    %p92 = pneg %p86
    %p93 = scmp.eq.s32.totalorder %s9, 1
    %p94 = por %p92, %p93
    %p95 = scmp.ne.s32.totalorder %s87, %s90
    %p96 = scmp.eq.s32.totalorder %s9, 0
    %p97 = por %p95, %p96
    %p98 = scmp.ne.s32.totalorder %s87, %s90
    %p99 = scmp.eq.s32.totalorder %s14, 1
    %p100 = por %p98, %p99
    %p101 = scmp.ne.s32.totalorder %s90, %s91
    %p102 = scmp.eq.s32.totalorder %s14, 0
    %p103 = por %p101, %p102
    %p104 = scmp.ne.s32.totalorder %s90, %s91
    %p105 = scmp.eq.s32.totalorder %s15, 1
    %p106 = por %p104, %p105
    %p108 = scmp.ne.s32.totalorder %s91, %s107
    %p109 = scmp.eq.s32.totalorder %s15, 0
    %p110 = por %p108, %p109
    %p111 = scmp.le.s32.totalorder 1, %s9
    %p112 = scmp.lt.s32.totalorder %s9, 3
    %p113 = pnand %p111, %p112
    %p114 = pneg %p113
    // Predicated region
    $region9: #{tencoder_forward.4} parent=5 // pred_check
      _
    $region10: #{tencoder_forward.4} parent=5 // pred_check_branch
      %116 = sbr.rel (%p113) target = $region12
    $region11: #{tencoder_forward.4} parent=5 // pred_region
      %s117 = ssub.s32 %s9, 1
      // Predicated region
      $region13: #{tencoder_forward.4} parent=11 // pred_check
        %p118 = pneg %p56
      $region14: #{tencoder_forward.4} parent=11 // pred_check_branch
        %120 = sbr.rel (%p118) target = $region16
      $region15: #{tencoder_forward.4} parent=11 // pred_region
        _
      $region16: #{tencoder_forward.4} parent=11 // pred_fallthru
        _
      // Predicated region
      $region17: #{tencoder_forward.4} parent=11 // pred_check
        %p121 = pneg %p77
      $region18: #{tencoder_forward.4} parent=11 // pred_check_branch
        %123 = sbr.rel (%p121) target = $region20
      $region19: #{tencoder_forward.4} parent=11 // pred_region
        _
      $region20: #{tencoder_forward.4} parent=11 // pred_fallthru
        _
    $region12: #{tencoder_forward.4} parent=5 // pred_fallthru
      _
    %p124 = scmp.lt.s32.totalorder %s9, 2
    // Predicated region
    $region21: #{tencoder_forward.4} parent=5 // pred_check
      %p125 = pneg %p124
    $region22: #{tencoder_forward.4} parent=5 // pred_check_branch
      %127 = sbr.rel (%p125) target = $region24
    $region23: #{tencoder_forward.4} parent=5 // pred_region
      // Predicated region
      $region25: #{tencoder_forward.4} parent=23 // pred_check
        %p128 = pneg %p29
      $region26: #{tencoder_forward.4} parent=23 // pred_check_branch
        %130 = sbr.rel (%p128) target = $region28
      $region27: #{tencoder_forward.4} parent=23 // pred_region
        %s131 = smul.u32 16, %s9
        %p132 = scmp.lt.s32.totalorder %s131, 31
        %s133 = scalar_select %p132, %s131, 31
        %s134 = smul.addr %s133, 2
        %s135 = smul.addr %s134, 4
        %s136 = scalar_lea.vmem %s0, %s135
        %s137 = smul.u32 16, %s9
      $region28: #{tencoder_forward.4} parent=23 // pred_fallthru
        _
    $region24: #{tencoder_forward.4} parent=5 // pred_fallthru
      _
    %p138 = scmp.le.s32.totalorder 1, %s9
    %p139 = scmp.lt.s32.totalorder %s9, 3
    %p140 = pnand %p138, %p139
    %p141 = pneg %p140
    // Predicated region
    $region29: #{tencoder_forward.4} parent=5 // pred_check
      _
    $region30: #{tencoder_forward.4} parent=5 // pred_check_branch
      %143 = sbr.rel (%p140) target = $region32
    $region31: #{tencoder_forward.4} parent=5 // pred_region
      %s144 = ssub.s32 %s9, 1
      %s145 = smul.u32 16, %s14
      %p146 = scmp.lt.s32.totalorder %s145, 31
      %s147 = scalar_select %p146, %s145, 31
      %s148 = smul.addr %s147, 2
      %s149 = smul.addr %s148, 4
      %s150 = scalar_lea.vmem %s0, %s149
      %p151 = pneg %p35
      %p152 = pneg %p32
      %p153 = pneg %p56
      %p154 = pneg %p53
      %p155 = pneg %p77
      %p156 = pneg %p74
      %p157 = pneg %p103
      %p158 = pneg %p100
      %s159 = smul.u32 16, %s14
      %p160 = scmp.lt.s32.totalorder %s159, 31
      %s161 = scalar_select %p160, %s159, 31
      %s162 = smul.addr %s161, 4
      %s163 = scalar_lea.vmem %s3, %s162
      %s164 = smul.u32 16, %s14
      %p165 = scmp.lt.s32.totalorder %s164, 31
      %s166 = scalar_select %p165, %s164, 31
      %s167 = smul.addr %s166, 2
      %s168 = smul.addr %s167, 4
      %s169 = scalar_lea.vmem %s0, %s168
      %s170 = smul.u32 16, %s14
      %s171 = smul.u32 16, %s14
      %p172 = scmp.lt.s32.totalorder %s171, 31
      %s173 = scalar_select %p172, %s171, 31
      %s174 = smul.addr %s173, 4
      %s175 = scalar_lea.vmem %s3, %s174
      %s176 = smul.u32 16, %s14
      %v178 = vld [vmem:[%s169] sm:$0xff]
      %v179 = vld [vmem:[%s169 + $0x8] sm:$0xff]
      %v180 = vld [vmem:[%s169 + $0x10] sm:$0xff]
      %v181 = vld [vmem:[%s169 + $0x18] sm:$0xff]
      %v182 = vld [vmem:[%s169 + $0x20] sm:$0xff]
      %v183 = vld [vmem:[%s169 + $0x28] sm:$0xff]
      %v184 = vld [vmem:[%s169 + $0x30] sm:$0xff]
      %v185 = vld [vmem:[%s169 + $0x38] sm:$0xff]
      %v186 = vld [vmem:[%s169 + $0x40] sm:$0xff]
      %v187 = vld [vmem:[%s169 + $0x48] sm:$0xff]
      %v188 = vld [vmem:[%s169 + $0x50] sm:$0xff]
      %v189 = vld [vmem:[%s169 + $0x58] sm:$0xff]
      %v190 = vld [vmem:[%s169 + $0x60] sm:$0xff]
      %v191 = vld [vmem:[%s169 + $0x68] sm:$0xff]
      %v192 = vld [vmem:[%s169 + $0x70] sm:$0xff]
      %v193 = vld [vmem:[%s169 + $0x78] sm:$0xff]
      %v194 = vld [vmem:[%s1] sm:$0xf]
      %v195 = vld [vmem:[%s1 + $0x4] sm:$0xf]
      %v196 = vld [vmem:[%s1 + $0x8] sm:$0xf]
      %v197 = vld [vmem:[%s1 + $0xc] sm:$0xf]
      %v198 = vld [vmem:[%s1 + $0x10] sm:$0xf]
      %v199 = vld [vmem:[%s1 + $0x14] sm:$0xf]
      %v200 = vld [vmem:[%s1 + $0x18] sm:$0xf]
      %v201 = vld [vmem:[%s1 + $0x1c] sm:$0xf]
      %v202 = vld [vmem:[%s1 + $0x20] sm:$0xf]
      %v203 = vld [vmem:[%s1 + $0x24] sm:$0xf]
      %v204 = vld [vmem:[%s1 + $0x28] sm:$0xf]
      %v205 = vld [vmem:[%s1 + $0x2c] sm:$0xf]
      %v206 = vld [vmem:[%s1 + $0x30] sm:$0xf]
      %v207 = vld [vmem:[%s1 + $0x34] sm:$0xf]
      %v208 = vld [vmem:[%s1 + $0x38] sm:$0xf]
      %v209 = vld [vmem:[%s1 + $0x3c] sm:$0xf]
      %v210 = vld [vmem:[%s1 + $0x40] sm:$0xf]
      %v211 = vld [vmem:[%s1 + $0x44] sm:$0xf]
      %v212 = vld [vmem:[%s1 + $0x48] sm:$0xf]
      %v213 = vld [vmem:[%s1 + $0x4c] sm:$0xf]
      %v214 = vld [vmem:[%s1 + $0x50] sm:$0xf]
      %v215 = vld [vmem:[%s1 + $0x54] sm:$0xf]
      %v216 = vld [vmem:[%s1 + $0x58] sm:$0xf]
      %v217 = vld [vmem:[%s1 + $0x5c] sm:$0xf]
      %v218 = vld [vmem:[%s1 + $0x60] sm:$0xf]
      %v219 = vld [vmem:[%s1 + $0x64] sm:$0xf]
      %v220 = vld [vmem:[%s1 + $0x68] sm:$0xf]
      %v221 = vld [vmem:[%s1 + $0x6c] sm:$0xf]
      %v222 = vld [vmem:[%s1 + $0x70] sm:$0xf]
      %v223 = vld [vmem:[%s1 + $0x74] sm:$0xf]
      %v224 = vld [vmem:[%s1 + $0x78] sm:$0xf]
      %v225 = vld [vmem:[%s1 + $0x7c] sm:$0xf]
      %v226 = vld [vmem:[%s2] sm:$0x1]
      %v228 = vlaneseq
      %v229 = vshrl.u32 %v228, 7
      %v230 = vsub.s32 0, %v229
      %v231 = vrot.slane %v226, %v230
      %v249 = vunpack.c.l.b16 %v178
      %v250 = vunpack.c.h.b16 %v178
      %v251 = vunpack.c.l.b16 %v179
      %v252 = vunpack.c.h.b16 %v179
      %v253 = vunpack.c.l.b16 %v180
      %v254 = vunpack.c.h.b16 %v180
      %v255 = vunpack.c.l.b16 %v181
      %v256 = vunpack.c.h.b16 %v181
      %v257 = vunpack.c.l.b16 %v182
      %v258 = vunpack.c.h.b16 %v182
      %v259 = vunpack.c.l.b16 %v183
      %v260 = vunpack.c.h.b16 %v183
      %v261 = vunpack.c.l.b16 %v184
      %v262 = vunpack.c.h.b16 %v184
      %v263 = vunpack.c.l.b16 %v185
      %v264 = vunpack.c.h.b16 %v185
      %v265 = vunpack.c.l.b16 %v186
      %v266 = vunpack.c.h.b16 %v186
      %v267 = vunpack.c.l.b16 %v187
      %v268 = vunpack.c.h.b16 %v187
      %v269 = vunpack.c.l.b16 %v188
      %v270 = vunpack.c.h.b16 %v188
      %v271 = vunpack.c.l.b16 %v189
      %v272 = vunpack.c.h.b16 %v189
      %v273 = vunpack.c.l.b16 %v190
      %v274 = vunpack.c.h.b16 %v190
      %v275 = vunpack.c.l.b16 %v191
      %v276 = vunpack.c.h.b16 %v191
      %v277 = vunpack.c.l.b16 %v192
      %v278 = vunpack.c.h.b16 %v192
      %v279 = vunpack.c.l.b16 %v193
      %v280 = vunpack.c.h.b16 %v193
      %v281 = vpack.c.b16 %v251, %v249
      %v282 = vpack.c.b16 %v252, %v250
      %v283 = vpack.c.b16 %v255, %v253
      %v284 = vpack.c.b16 %v256, %v254
      %v285 = vpack.c.b16 %v259, %v257
      %v286 = vpack.c.b16 %v260, %v258
      %v287 = vpack.c.b16 %v263, %v261
      %v288 = vpack.c.b16 %v264, %v262
      %v289 = vpack.c.b16 %v267, %v265
      %v290 = vpack.c.b16 %v268, %v266
      %v291 = vpack.c.b16 %v271, %v269
      %v292 = vpack.c.b16 %v272, %v270
      %v293 = vpack.c.b16 %v275, %v273
      %v294 = vpack.c.b16 %v276, %v274
      %v295 = vpack.c.b16 %v279, %v277
      %v296 = vpack.c.b16 %v280, %v278
      %v345 = vunpack.c.l.b16 %v194
      %v346 = vunpack.c.l.b16 %v195
      %v347 = vunpack.c.l.b16 %v196
      %v348 = vunpack.c.l.b16 %v197
      %v349 = vunpack.c.l.b16 %v198
      %v350 = vunpack.c.l.b16 %v199
      %v351 = vunpack.c.l.b16 %v200
      %v352 = vunpack.c.l.b16 %v201
      %v353 = vunpack.c.l.b16 %v202
      %v354 = vunpack.c.l.b16 %v203
      %v355 = vunpack.c.l.b16 %v204
      %v356 = vunpack.c.l.b16 %v205
      %v357 = vunpack.c.l.b16 %v206
      %v358 = vunpack.c.l.b16 %v207
      %v359 = vunpack.c.l.b16 %v208
      %v360 = vunpack.c.l.b16 %v209
      %v361 = vunpack.c.l.b16 %v210
      %v362 = vunpack.c.l.b16 %v211
      %v363 = vunpack.c.l.b16 %v212
      %v364 = vunpack.c.l.b16 %v213
      %v365 = vunpack.c.l.b16 %v214
      %v366 = vunpack.c.l.b16 %v215
      %v367 = vunpack.c.l.b16 %v216
      %v368 = vunpack.c.l.b16 %v217
      %v369 = vunpack.c.l.b16 %v218
      %v370 = vunpack.c.l.b16 %v219
      %v371 = vunpack.c.l.b16 %v220
      %v372 = vunpack.c.l.b16 %v221
      %v373 = vunpack.c.l.b16 %v222
      %v374 = vunpack.c.l.b16 %v223
      %v375 = vunpack.c.l.b16 %v224
      %v376 = vunpack.c.l.b16 %v225
      %v377 = vpack.c.b16 %v346, %v345
      %v378 = vpack.c.b16 %v348, %v347
      %v379 = vpack.c.b16 %v350, %v349
      %v380 = vpack.c.b16 %v352, %v351
      %v381 = vpack.c.b16 %v354, %v353
      %v382 = vpack.c.b16 %v356, %v355
      %v383 = vpack.c.b16 %v358, %v357
      %v384 = vpack.c.b16 %v360, %v359
      %v385 = vpack.c.b16 %v362, %v361
      %v386 = vpack.c.b16 %v364, %v363
      %v387 = vpack.c.b16 %v366, %v365
      %v388 = vpack.c.b16 %v368, %v367
      %v389 = vpack.c.b16 %v370, %v369
      %v390 = vpack.c.b16 %v372, %v371
      %v391 = vpack.c.b16 %v374, %v373
      %v392 = vpack.c.b16 %v376, %v375
      %409 = vmatprep.subr.bf16.mxu0 0
      %410 = vmatpush1.bf16.msra.mxu0 %v384
      %411 = vmatprep.subr.bf16.mxu0 0
      %412 = vmatpush1.bf16.msra.mxu0 %v383
      %413 = vmatprep.subr.bf16.mxu0 0
      %414 = vmatpush1.bf16.msra.mxu0 %v382
      %415 = vmatprep.subr.bf16.mxu0 0
      %416 = vmatpush1.bf16.msra.mxu0 %v381
      %417 = vmatprep.subr.bf16.mxu0 0
      %418 = vmatpush1.bf16.msra.mxu0 %v380
      %419 = vmatprep.subr.bf16.mxu0 0
      %420 = vmatpush1.bf16.msra.mxu0 %v379
      %421 = vmatprep.subr.bf16.mxu0 0
      %422 = vmatpush1.bf16.msra.mxu0 %v378
      %423 = vmatprep.subr.bf16.mxu0 0
      %424 = vmatpush1.bf16.msra.mxu0 %v377
      %425 = vmatprep.subr.bf16.mxu0 0
      %426 = vmatpush2.bf16.msra.mxu0 %v392
      %427 = vmatprep.subr.bf16.mxu0 0
      %428 = vmatpush2.bf16.msra.mxu0 %v391
      %429 = vmatprep.subr.bf16.mxu0 0
      %430 = vmatpush2.bf16.msra.mxu0 %v390
      %431 = vmatprep.subr.bf16.mxu0 0
      %432 = vmatpush2.bf16.msra.mxu0 %v389
      %433 = vmatprep.subr.bf16.mxu0 0
      %434 = vmatpush2.bf16.msra.mxu0 %v388
      %435 = vmatprep.subr.bf16.mxu0 0
      %436 = vmatpush2.bf16.msra.mxu0 %v387
      %437 = vmatprep.subr.bf16.mxu0 0
      %438 = vmatpush2.bf16.msra.mxu0 %v386
      %439 = vmatprep.subr.bf16.mxu0 0
      %440 = vmatpush2.bf16.msra.mxu0 %v385
      %441 = vmatprep.mubr.bf16.mxu0 %v282
      %442 = vmatmul.mubr.bf16.gmra.mxu0 %v281
      %v443 = vpop.f32.mrf.mxu0
      %v444 = vadd.f32 %v231, %v443
      %v445 = vpop.f32.mrf.mxu0
      %v446 = vpop.f32.mrf.mxu0
      %v447 = vadd.f32 %v231, %v446
      %v448 = vpop.f32.mrf.mxu0
      %449 = vmatprep.mubr.bf16.mxu0 %v284
      %450 = vmatmul.mubr.bf16.gmra.mxu0 %v283
      %v451 = vpop.f32.mrf.mxu0
      %v452 = vadd.f32 %v231, %v451
      %v453 = vpop.f32.mrf.mxu0
      %v454 = vpop.f32.mrf.mxu0
      %v455 = vadd.f32 %v231, %v454
      %v456 = vpop.f32.mrf.mxu0
      %457 = vmatprep.mubr.bf16.mxu0 %v286
      %458 = vmatmul.mubr.bf16.gmra.mxu0 %v285
      %v459 = vpop.f32.mrf.mxu0
      %v460 = vadd.f32 %v231, %v459
      %v461 = vpop.f32.mrf.mxu0
      %v462 = vpop.f32.mrf.mxu0
      %v463 = vadd.f32 %v231, %v462
      %v464 = vpop.f32.mrf.mxu0
      %465 = vmatprep.mubr.bf16.mxu0 %v288
      %466 = vmatmul.mubr.bf16.gmra.mxu0 %v287
      %v467 = vpop.f32.mrf.mxu0
      %v468 = vadd.f32 %v231, %v467
      %v469 = vpop.f32.mrf.mxu0
      %v470 = vpop.f32.mrf.mxu0
      %v471 = vadd.f32 %v231, %v470
      %v472 = vpop.f32.mrf.mxu0
      %473 = vmatprep.mubr.bf16.mxu0 %v290
      %474 = vmatmul.mubr.bf16.gmra.mxu0 %v289
      %v475 = vpop.f32.mrf.mxu0
      %v476 = vadd.f32 %v231, %v475
      %v477 = vpop.f32.mrf.mxu0
      %v478 = vpop.f32.mrf.mxu0
      %v479 = vadd.f32 %v231, %v478
      %v480 = vpop.f32.mrf.mxu0
      %481 = vmatprep.mubr.bf16.mxu0 %v292
      %482 = vmatmul.mubr.bf16.gmra.mxu0 %v291
      %v483 = vpop.f32.mrf.mxu0
      %v484 = vadd.f32 %v231, %v483
      %v485 = vpop.f32.mrf.mxu0
      %v486 = vpop.f32.mrf.mxu0
      %v487 = vadd.f32 %v231, %v486
      %v488 = vpop.f32.mrf.mxu0
      %489 = vmatprep.mubr.bf16.mxu0 %v294
      %490 = vmatmul.mubr.bf16.gmra.mxu0 %v293
      %v491 = vpop.f32.mrf.mxu0
      %v492 = vadd.f32 %v231, %v491
      %v493 = vpop.f32.mrf.mxu0
      %v494 = vpop.f32.mrf.mxu0
      %v495 = vadd.f32 %v231, %v494
      %v496 = vpop.f32.mrf.mxu0
      %497 = vmatprep.mubr.bf16.mxu0 %v296
      %498 = vmatmul.mubr.bf16.gmra.mxu0 %v295
      %v499 = vpop.f32.mrf.mxu0
      %v500 = vadd.f32 %v231, %v499
      %v501 = vpop.f32.mrf.mxu0
      %v502 = vpop.f32.mrf.mxu0
      %v503 = vadd.f32 %v231, %v502
      %v504 = vpop.f32.mrf.mxu0
      %505 = vdwg.mxu0
      %v506 = vmax.f32 %v444, 0.0
      %v507 = vmax.f32 %v447, 0.0
      %v508 = vmax.f32 %v452, 0.0
      %v509 = vmax.f32 %v455, 0.0
      %v510 = vmax.f32 %v460, 0.0
      %v511 = vmax.f32 %v463, 0.0
      %v512 = vmax.f32 %v468, 0.0
      %v513 = vmax.f32 %v471, 0.0
      %v514 = vmax.f32 %v476, 0.0
      %v515 = vmax.f32 %v479, 0.0
      %v516 = vmax.f32 %v484, 0.0
      %v517 = vmax.f32 %v487, 0.0
      %v518 = vmax.f32 %v492, 0.0
      %v519 = vmax.f32 %v495, 0.0
      %v520 = vmax.f32 %v500, 0.0
      %v521 = vmax.f32 %v503, 0.0
      %v522 = vpack.c.bf16 %v507, %v506
      %v523 = vpack.c.bf16 %v509, %v508
      %v524 = vpack.c.bf16 %v511, %v510
      %v525 = vpack.c.bf16 %v513, %v512
      %v526 = vpack.c.bf16 %v515, %v514
      %v527 = vpack.c.bf16 %v517, %v516
      %v528 = vpack.c.bf16 %v519, %v518
      %v529 = vpack.c.bf16 %v521, %v520
      %v538 = vunpack.c.l.b16 %v522
      %v539 = vunpack.c.h.b16 %v522
      %v540 = vunpack.c.l.b16 %v523
      %v541 = vunpack.c.h.b16 %v523
      %v542 = vunpack.c.l.b16 %v524
      %v543 = vunpack.c.h.b16 %v524
      %v544 = vunpack.c.l.b16 %v525
      %v545 = vunpack.c.h.b16 %v525
      %v546 = vunpack.c.l.b16 %v526
      %v547 = vunpack.c.h.b16 %v526
      %v548 = vunpack.c.l.b16 %v527
      %v549 = vunpack.c.h.b16 %v527
      %v550 = vunpack.c.l.b16 %v528
      %v551 = vunpack.c.h.b16 %v528
      %v552 = vunpack.c.l.b16 %v529
      %v553 = vunpack.c.h.b16 %v529
      %v554 = vpack.c.b16 %v538, %v538
      %v555 = vpack.c.b16 %v539, %v539
      %v556 = vpack.c.b16 %v540, %v540
      %v557 = vpack.c.b16 %v541, %v541
      %v558 = vpack.c.b16 %v542, %v542
      %v559 = vpack.c.b16 %v543, %v543
      %v560 = vpack.c.b16 %v544, %v544
      %v561 = vpack.c.b16 %v545, %v545
      %v562 = vpack.c.b16 %v546, %v546
      %v563 = vpack.c.b16 %v547, %v547
      %v564 = vpack.c.b16 %v548, %v548
      %v565 = vpack.c.b16 %v549, %v549
      %v566 = vpack.c.b16 %v550, %v550
      %v567 = vpack.c.b16 %v551, %v551
      %v568 = vpack.c.b16 %v552, %v552
      %v569 = vpack.c.b16 %v553, %v553
      %586 = vst [vmem:[%s175] sm:$0xf] %v554
      %587 = vst [vmem:[%s175 + $0x4] sm:$0xf] %v555
      %588 = vst [vmem:[%s175 + $0x8] sm:$0xf] %v556
      %589 = vst [vmem:[%s175 + $0xc] sm:$0xf] %v557
      %590 = vst [vmem:[%s175 + $0x10] sm:$0xf] %v558
      %591 = vst [vmem:[%s175 + $0x14] sm:$0xf] %v559
      %592 = vst [vmem:[%s175 + $0x18] sm:$0xf] %v560
      %593 = vst [vmem:[%s175 + $0x1c] sm:$0xf] %v561
      %594 = vst [vmem:[%s175 + $0x20] sm:$0xf] %v562
      %595 = vst [vmem:[%s175 + $0x24] sm:$0xf] %v563
      %596 = vst [vmem:[%s175 + $0x28] sm:$0xf] %v564
      %597 = vst [vmem:[%s175 + $0x2c] sm:$0xf] %v565
      %598 = vst [vmem:[%s175 + $0x30] sm:$0xf] %v566
      %599 = vst [vmem:[%s175 + $0x34] sm:$0xf] %v567
      %600 = vst [vmem:[%s175 + $0x38] sm:$0xf] %v568
      %601 = vst [vmem:[%s175 + $0x3c] sm:$0xf] %v569
      %s602 = smul.u32 16, %s14
      %p603 = scmp.lt.s32.totalorder %s602, 31
      %s604 = scalar_select %p603, %s602, 31
      %s605 = smul.addr %s604, 4
      %s606 = scalar_lea.vmem %s3, %s605
      // Predicated region
      $region33: #{tencoder_forward.4} parent=31 // pred_check
        %p607 = pneg %p100
      $region34: #{tencoder_forward.4} parent=31 // pred_check_branch
        %609 = sbr.rel (%p607) target = $region36
      $region35: #{tencoder_forward.4} parent=31 // pred_region
        %s610 = smul.u32 16, %s14
      $region36: #{tencoder_forward.4} parent=31 // pred_fallthru
        _
    $region32: #{tencoder_forward.4} parent=5 // pred_fallthru
      _
    %p611 = scmp.le.s32.totalorder 2, %s9
    // Predicated region
    $region37: #{tencoder_forward.4} parent=5 // pred_check
      %p612 = pneg %p611
    $region38: #{tencoder_forward.4} parent=5 // pred_check_branch
      %614 = sbr.rel (%p612) target = $region40
    $region39: #{tencoder_forward.4} parent=5 // pred_region
      %s615 = ssub.s32 %s9, 2
      // Predicated region
      $region41: #{tencoder_forward.4} parent=39 // pred_check
        %p616 = pneg %p106
      $region42: #{tencoder_forward.4} parent=39 // pred_check_branch
        %618 = sbr.rel (%p616) target = $region44
      $region43: #{tencoder_forward.4} parent=39 // pred_region
        %s619 = smul.u32 16, %s15
        %p620 = scmp.lt.s32.totalorder %s619, 31
        %s621 = scalar_select %p620, %s619, 31
        %s622 = smul.addr %s621, 4
        %s623 = scalar_lea.vmem %s3, %s622
      $region44: #{tencoder_forward.4} parent=39 // pred_fallthru
        _
    $region40: #{tencoder_forward.4} parent=5 // pred_fallthru
      _
  $region6: #{tencoder_forward.4} parent=0 // loop_footer
    %s13 = sadd.s32 1, %s9
  $region7: #{tencoder_forward.4} parent=0 // loop_footer_branch
    %8 = sbr.rel target = $region3
  $region8: #{tencoder_forward.4} parent=0 // loop_exit
    _

// kernel: tencoder_forward.5
$region0: #{tencoder_forward.5}
  #allocation0 [shape = 'u32[]', space=smem, size = 0x4, offset = 0x4, fixed_abs, tag = 'smem constant byte address 0x4 - core index']
  #allocation1 [shape = 'u32[144,128]{1,0:T(1,128)}', space=vmem, size = 0x12000, scoped, tag = 'internal scratch']
  %s0 = inlined_call_operand.vmem [shape: bf16[8,3968], index: 0, kind: input, shape index: {}]
  %s1 = inlined_call_operand.vmem [shape: bf16[3968,512], index: 1, kind: input, shape index: {}]
  %s2 = inlined_call_operand.vmem [shape: f32[1,512], index: 2, kind: input, shape index: {}]
  %s3 = inlined_call_operand.vmem [shape: bf16[512,128], index: 3, kind: input, shape index: {}]
  %s4 = inlined_call_operand.vmem [shape: f32[1,128], index: 4, kind: input, shape index: {}]
  %s5 = inlined_call_operand.vmem [shape: f32[8,128], index: 5, kind: output, shape index: {}]
  %s6 = sld [smem:[#allocation0]]
  $region30: #{tencoder_forward.5} parent=0
    _
  %s8 = ssub.s32 1, %s6
  %s9 = scalar_select 0, %s8, %s6
  // Predicated region
  $region2: #{tencoder_forward.5} parent=0 // pred_check
    _
  $region3: #{tencoder_forward.5} parent=0 // pred_check_branch
    %11 = sbr.rel (0) target = $region5
  $region4: #{tencoder_forward.5} parent=0 // pred_region
    _
  $region5: #{tencoder_forward.5} parent=0 // pred_fallthru
    _
  // Predicated region
  $region6: #{tencoder_forward.5} parent=0 // pred_check
    _
  $region7: #{tencoder_forward.5} parent=0 // pred_check_branch
    %13 = sbr.rel (0) target = $region9
  $region8: #{tencoder_forward.5} parent=0 // pred_region
    _
  $region9: #{tencoder_forward.5} parent=0 // pred_fallthru
    _
  // Predicated region
  $region10: #{tencoder_forward.5} parent=0 // pred_check
    _
  $region11: #{tencoder_forward.5} parent=0 // pred_check_branch
    %15 = sbr.rel (0) target = $region13
  $region12: #{tencoder_forward.5} parent=0 // pred_region
    _
  $region13: #{tencoder_forward.5} parent=0 // pred_fallthru
    _
  // Predicated region
  $region14: #{tencoder_forward.5} parent=0 // pred_check
    _
  $region15: #{tencoder_forward.5} parent=0 // pred_check_branch
    %17 = sbr.rel (0) target = $region17
  $region16: #{tencoder_forward.5} parent=0 // pred_region
    _
  $region17: #{tencoder_forward.5} parent=0 // pred_fallthru
    _
  // Predicated region
  $region18: #{tencoder_forward.5} parent=0 // pred_check
    _
  $region19: #{tencoder_forward.5} parent=0 // pred_check_branch
    %19 = sbr.rel (0) target = $region21
  $region20: #{tencoder_forward.5} parent=0 // pred_region
    _
  $region21: #{tencoder_forward.5} parent=0 // pred_fallthru
    _
  %v21 = vld [vmem:[%s0] sm:$0xff]
  %v22 = vld [vmem:[%s0 + $0x8] sm:$0xff]
  %v23 = vld [vmem:[%s0 + $0x10] sm:$0xff]
  %v24 = vld [vmem:[%s0 + $0x18] sm:$0xff]
  %v25 = vld [vmem:[%s0 + $0x20] sm:$0xff]
  %v26 = vld [vmem:[%s0 + $0x28] sm:$0xff]
  %v27 = vld [vmem:[%s0 + $0x30] sm:$0xff]
  %v28 = vld [vmem:[%s0 + $0x38] sm:$0xff]
  %v29 = vld [vmem:[%s0 + $0x40] sm:$0xff]
  %v30 = vld [vmem:[%s0 + $0x48] sm:$0xff]
  %v31 = vld [vmem:[%s0 + $0x50] sm:$0xff]
  %v32 = vld [vmem:[%s0 + $0x58] sm:$0xff]
  %v33 = vld [vmem:[%s0 + $0x60] sm:$0xff]
  %v34 = vld [vmem:[%s0 + $0x68] sm:$0xff]
  %v35 = vld [vmem:[%s0 + $0x70] sm:$0xff]
  %v36 = vld [vmem:[%s0 + $0x78] sm:$0xf]
  %v37 = vld [vmem:[%s1] sm:$0xff]
  %v38 = vld [vmem:[%s1 + $0x8] sm:$0xff]
  %v39 = vld [vmem:[%s1 + $0x10] sm:$0xff]
  %v40 = vld [vmem:[%s1 + $0x18] sm:$0xff]
  %v41 = vld [vmem:[%s1 + $0x20] sm:$0xff]
  %v42 = vld [vmem:[%s1 + $0x28] sm:$0xff]
  %v43 = vld [vmem:[%s1 + $0x30] sm:$0xff]
  %v44 = vld [vmem:[%s1 + $0x38] sm:$0xff]
  %v45 = vld [vmem:[%s1 + $0x40] sm:$0xff]
  %v46 = vld [vmem:[%s1 + $0x48] sm:$0xff]
  %v47 = vld [vmem:[%s1 + $0x50] sm:$0xff]
  %v48 = vld [vmem:[%s1 + $0x58] sm:$0xff]
  %v49 = vld [vmem:[%s1 + $0x60] sm:$0xff]
  %v50 = vld [vmem:[%s1 + $0x68] sm:$0xff]
  %v51 = vld [vmem:[%s1 + $0x70] sm:$0xff]
  %v52 = vld [vmem:[%s1 + $0x78] sm:$0xff]
  %v53 = vld [vmem:[%s1 + $0x80] sm:$0xff]
  %v54 = vld [vmem:[%s1 + $0x88] sm:$0xff]
  %v55 = vld [vmem:[%s1 + $0x90] sm:$0xff]
  %v56 = vld [vmem:[%s1 + $0x98] sm:$0xff]
  %v57 = vld [vmem:[%s1 + $0xa0] sm:$0xff]
  %v58 = vld [vmem:[%s1 + $0xa8] sm:$0xff]
  %v59 = vld [vmem:[%s1 + $0xb0] sm:$0xff]
  %v60 = vld [vmem:[%s1 + $0xb8] sm:$0xff]
  %v61 = vld [vmem:[%s1 + $0xc0] sm:$0xff]
  %v62 = vld [vmem:[%s1 + $0xc8] sm:$0xff]
  %v63 = vld [vmem:[%s1 + $0xd0] sm:$0xff]
  %v64 = vld [vmem:[%s1 + $0xd8] sm:$0xff]
  %v65 = vld [vmem:[%s1 + $0xe0] sm:$0xff]
  %v66 = vld [vmem:[%s1 + $0xe8] sm:$0xff]
  %v67 = vld [vmem:[%s1 + $0xf0] sm:$0xff]
  %v68 = vld [vmem:[%s1 + $0xf8] sm:$0xff]
  %v69 = vld [vmem:[%s1 + $0x100] sm:$0xff]
  %v70 = vld [vmem:[%s1 + $0x108] sm:$0xff]
  %v71 = vld [vmem:[%s1 + $0x110] sm:$0xff]
  %v72 = vld [vmem:[%s1 + $0x118] sm:$0xff]
  %v73 = vld [vmem:[%s1 + $0x120] sm:$0xff]
  %v74 = vld [vmem:[%s1 + $0x128] sm:$0xff]
  %v75 = vld [vmem:[%s1 + $0x130] sm:$0xff]
  %v76 = vld [vmem:[%s1 + $0x138] sm:$0xff]
  %v77 = vld [vmem:[%s1 + $0x140] sm:$0xff]
  %v78 = vld [vmem:[%s1 + $0x148] sm:$0xff]
  %v79 = vld [vmem:[%s1 + $0x150] sm:$0xff]
  %v80 = vld [vmem:[%s1 + $0x158] sm:$0xff]
  %v81 = vld [vmem:[%s1 + $0x160] sm:$0xff]
  %v82 = vld [vmem:[%s1 + $0x168] sm:$0xff]
  %v83 = vld [vmem:[%s1 + $0x170] sm:$0xff]
  %v84 = vld [vmem:[%s1 + $0x178] sm:$0xff]
  %v85 = vld [vmem:[%s1 + $0x180] sm:$0xff]
  %v86 = vld [vmem:[%s1 + $0x188] sm:$0xff]
  %v87 = vld [vmem:[%s1 + $0x190] sm:$0xff]
  %v88 = vld [vmem:[%s1 + $0x198] sm:$0xff]
  %v89 = vld [vmem:[%s1 + $0x1a0] sm:$0xff]
  %v90 = vld [vmem:[%s1 + $0x1a8] sm:$0xff]
  %v91 = vld [vmem:[%s1 + $0x1b0] sm:$0xff]
  %v92 = vld [vmem:[%s1 + $0x1b8] sm:$0xff]
  %v93 = vld [vmem:[%s1 + $0x1c0] sm:$0xff]
  %v94 = vld [vmem:[%s1 + $0x1c8] sm:$0xff]
  %v95 = vld [vmem:[%s1 + $0x1d0] sm:$0xff]
  %v96 = vld [vmem:[%s1 + $0x1d8] sm:$0xff]
  %v97 = vld [vmem:[%s1 + $0x1e0] sm:$0xff]
  %v98 = vld [vmem:[%s1 + $0x1e8] sm:$0xff]
  %v99 = vld [vmem:[%s1 + $0x1f0] sm:$0xff]
  %v100 = vld [vmem:[%s1 + $0x1f8] sm:$0xff]
  %v101 = vld [vmem:[%s1 + $0x200] sm:$0xff]
  %v102 = vld [vmem:[%s1 + $0x208] sm:$0xff]
  %v103 = vld [vmem:[%s1 + $0x210] sm:$0xff]
  %v104 = vld [vmem:[%s1 + $0x218] sm:$0xff]
  %v105 = vld [vmem:[%s1 + $0x220] sm:$0xff]
  %v106 = vld [vmem:[%s1 + $0x228] sm:$0xff]
  %v107 = vld [vmem:[%s1 + $0x230] sm:$0xff]
  %v108 = vld [vmem:[%s1 + $0x238] sm:$0xff]
  %v109 = vld [vmem:[%s1 + $0x240] sm:$0xff]
  %v110 = vld [vmem:[%s1 + $0x248] sm:$0xff]
  %v111 = vld [vmem:[%s1 + $0x250] sm:$0xff]
  %v112 = vld [vmem:[%s1 + $0x258] sm:$0xff]
  %v113 = vld [vmem:[%s1 + $0x260] sm:$0xff]
  %v114 = vld [vmem:[%s1 + $0x268] sm:$0xff]
  %v115 = vld [vmem:[%s1 + $0x270] sm:$0xff]
  %v116 = vld [vmem:[%s1 + $0x278] sm:$0xff]
  %v117 = vld [vmem:[%s1 + $0x280] sm:$0xff]
  %v118 = vld [vmem:[%s1 + $0x288] sm:$0xff]
  %v119 = vld [vmem:[%s1 + $0x290] sm:$0xff]
  %v120 = vld [vmem:[%s1 + $0x298] sm:$0xff]
  %v121 = vld [vmem:[%s1 + $0x2a0] sm:$0xff]
  %v122 = vld [vmem:[%s1 + $0x2a8] sm:$0xff]
  %v123 = vld [vmem:[%s1 + $0x2b0] sm:$0xff]
  %v124 = vld [vmem:[%s1 + $0x2b8] sm:$0xff]
  %v125 = vld [vmem:[%s1 + $0x2c0] sm:$0xff]
  %v126 = vld [vmem:[%s1 + $0x2c8] sm:$0xff]
  %v127 = vld [vmem:[%s1 + $0x2d0] sm:$0xff]
  %v128 = vld [vmem:[%s1 + $0x2d8] sm:$0xff]
  %v129 = vld [vmem:[%s1 + $0x2e0] sm:$0xff]
  %v130 = vld [vmem:[%s1 + $0x2e8] sm:$0xff]
  %v131 = vld [vmem:[%s1 + $0x2f0] sm:$0xff]
  %v132 = vld [vmem:[%s1 + $0x2f8] sm:$0xff]
  %v133 = vld [vmem:[%s1 + $0x300] sm:$0xff]
  %v134 = vld [vmem:[%s1 + $0x308] sm:$0xff]
  %v135 = vld [vmem:[%s1 + $0x310] sm:$0xff]
  %v136 = vld [vmem:[%s1 + $0x318] sm:$0xff]
  %v137 = vld [vmem:[%s1 + $0x320] sm:$0xff]
  %v138 = vld [vmem:[%s1 + $0x328] sm:$0xff]
  %v139 = vld [vmem:[%s1 + $0x330] sm:$0xff]
  %v140 = vld [vmem:[%s1 + $0x338] sm:$0xff]
  %v141 = vld [vmem:[%s1 + $0x340] sm:$0xff]
  %v142 = vld [vmem:[%s1 + $0x348] sm:$0xff]
  %v143 = vld [vmem:[%s1 + $0x350] sm:$0xff]
  %v144 = vld [vmem:[%s1 + $0x358] sm:$0xff]
  %v145 = vld [vmem:[%s1 + $0x360] sm:$0xff]
  %v146 = vld [vmem:[%s1 + $0x368] sm:$0xff]
  %v147 = vld [vmem:[%s1 + $0x370] sm:$0xff]
  %v148 = vld [vmem:[%s1 + $0x378] sm:$0xff]
  %v149 = vld [vmem:[%s1 + $0x380] sm:$0xff]
  %v150 = vld [vmem:[%s1 + $0x388] sm:$0xff]
  %v151 = vld [vmem:[%s1 + $0x390] sm:$0xff]
  %v152 = vld [vmem:[%s1 + $0x398] sm:$0xff]
  %v153 = vld [vmem:[%s1 + $0x3a0] sm:$0xff]
  %v154 = vld [vmem:[%s1 + $0x3a8] sm:$0xff]
  %v155 = vld [vmem:[%s1 + $0x3b0] sm:$0xff]
  %v156 = vld [vmem:[%s1 + $0x3b8] sm:$0xff]
  %v157 = vld [vmem:[%s1 + $0x3c0] sm:$0xff]
  %v158 = vld [vmem:[%s1 + $0x3c8] sm:$0xff]
  %v159 = vld [vmem:[%s1 + $0x3d0] sm:$0xff]
  %v160 = vld [vmem:[%s1 + $0x3d8] sm:$0xff]
  %v161 = vld [vmem:[%s1 + $0x3e0] sm:$0xff]
  %v162 = vld [vmem:[%s1 + $0x3e8] sm:$0xff]
  %v163 = vld [vmem:[%s1 + $0x3f0] sm:$0xff]
  %v164 = vld [vmem:[%s1 + $0x3f8] sm:$0xff]
  %v165 = vld [vmem:[%s1 + $0x400] sm:$0xff]
  %v166 = vld [vmem:[%s1 + $0x408] sm:$0xff]
  %v167 = vld [vmem:[%s1 + $0x410] sm:$0xff]
  %v168 = vld [vmem:[%s1 + $0x418] sm:$0xff]
  %v169 = vld [vmem:[%s1 + $0x420] sm:$0xff]
  %v170 = vld [vmem:[%s1 + $0x428] sm:$0xff]
  %v171 = vld [vmem:[%s1 + $0x430] sm:$0xff]
  %v172 = vld [vmem:[%s1 + $0x438] sm:$0xff]
  %v173 = vld [vmem:[%s1 + $0x440] sm:$0xff]
  %v174 = vld [vmem:[%s1 + $0x448] sm:$0xff]
  %v175 = vld [vmem:[%s1 + $0x450] sm:$0xff]
  %v176 = vld [vmem:[%s1 + $0x458] sm:$0xff]
  %v177 = vld [vmem:[%s1 + $0x460] sm:$0xff]
  %v178 = vld [vmem:[%s1 + $0x468] sm:$0xff]
  %v179 = vld [vmem:[%s1 + $0x470] sm:$0xff]
  %v180 = vld [vmem:[%s1 + $0x478] sm:$0xff]
  %v181 = vld [vmem:[%s1 + $0x480] sm:$0xff]
  %v182 = vld [vmem:[%s1 + $0x488] sm:$0xff]
  %v183 = vld [vmem:[%s1 + $0x490] sm:$0xff]
  %v184 = vld [vmem:[%s1 + $0x498] sm:$0xff]
  %v185 = vld [vmem:[%s1 + $0x4a0] sm:$0xff]
  %v186 = vld [vmem:[%s1 + $0x4a8] sm:$0xff]
  %v187 = vld [vmem:[%s1 + $0x4b0] sm:$0xff]
  %v188 = vld [vmem:[%s1 + $0x4b8] sm:$0xff]
  %v189 = vld [vmem:[%s1 + $0x4c0] sm:$0xff]
  %v190 = vld [vmem:[%s1 + $0x4c8] sm:$0xff]
  %v191 = vld [vmem:[%s1 + $0x4d0] sm:$0xff]
  %v192 = vld [vmem:[%s1 + $0x4d8] sm:$0xff]
  %v193 = vld [vmem:[%s1 + $0x4e0] sm:$0xff]
  %v194 = vld [vmem:[%s1 + $0x4e8] sm:$0xff]
  %v195 = vld [vmem:[%s1 + $0x4f0] sm:$0xff]
  %v196 = vld [vmem:[%s1 + $0x4f8] sm:$0xff]
  %v197 = vld [vmem:[%s1 + $0x500] sm:$0xff]
  %v198 = vld [vmem:[%s1 + $0x508] sm:$0xff]
  %v199 = vld [vmem:[%s1 + $0x510] sm:$0xff]
  %v200 = vld [vmem:[%s1 + $0x518] sm:$0xff]
  %v201 = vld [vmem:[%s1 + $0x520] sm:$0xff]
  %v202 = vld [vmem:[%s1 + $0x528] sm:$0xff]
  %v203 = vld [vmem:[%s1 + $0x530] sm:$0xff]
  %v204 = vld [vmem:[%s1 + $0x538] sm:$0xff]
  %v205 = vld [vmem:[%s1 + $0x540] sm:$0xff]
  %v206 = vld [vmem:[%s1 + $0x548] sm:$0xff]
  %v207 = vld [vmem:[%s1 + $0x550] sm:$0xff]
  %v208 = vld [vmem:[%s1 + $0x558] sm:$0xff]
  %v209 = vld [vmem:[%s1 + $0x560] sm:$0xff]
  %v210 = vld [vmem:[%s1 + $0x568] sm:$0xff]
  %v211 = vld [vmem:[%s1 + $0x570] sm:$0xff]
  %v212 = vld [vmem:[%s1 + $0x578] sm:$0xff]
  %v213 = vld [vmem:[%s1 + $0x580] sm:$0xff]
  %v214 = vld [vmem:[%s1 + $0x588] sm:$0xff]
  %v215 = vld [vmem:[%s1 + $0x590] sm:$0xff]
  %v216 = vld [vmem:[%s1 + $0x598] sm:$0xff]
  %v217 = vld [vmem:[%s1 + $0x5a0] sm:$0xff]
  %v218 = vld [vmem:[%s1 + $0x5a8] sm:$0xff]
  %v219 = vld [vmem:[%s1 + $0x5b0] sm:$0xff]
  %v220 = vld [vmem:[%s1 + $0x5b8] sm:$0xff]
  %v221 = vld [vmem:[%s1 + $0x5c0] sm:$0xff]
  %v222 = vld [vmem:[%s1 + $0x5c8] sm:$0xff]
  %v223 = vld [vmem:[%s1 + $0x5d0] sm:$0xff]
  %v224 = vld [vmem:[%s1 + $0x5d8] sm:$0xff]
  %v225 = vld [vmem:[%s1 + $0x5e0] sm:$0xff]
  %v226 = vld [vmem:[%s1 + $0x5e8] sm:$0xff]
  %v227 = vld [vmem:[%s1 + $0x5f0] sm:$0xff]
  %v228 = vld [vmem:[%s1 + $0x5f8] sm:$0xff]
  %v229 = vld [vmem:[%s1 + $0x600] sm:$0xff]
  %v230 = vld [vmem:[%s1 + $0x608] sm:$0xff]
  %v231 = vld [vmem:[%s1 + $0x610] sm:$0xff]
  %v232 = vld [vmem:[%s1 + $0x618] sm:$0xff]
  %v233 = vld [vmem:[%s1 + $0x620] sm:$0xff]
  %v234 = vld [vmem:[%s1 + $0x628] sm:$0xff]
  %v235 = vld [vmem:[%s1 + $0x630] sm:$0xff]
  %v236 = vld [vmem:[%s1 + $0x638] sm:$0xff]
  %v237 = vld [vmem:[%s1 + $0x640] sm:$0xff]
  %v238 = vld [vmem:[%s1 + $0x648] sm:$0xff]
  %v239 = vld [vmem:[%s1 + $0x650] sm:$0xff]
  %v240 = vld [vmem:[%s1 + $0x658] sm:$0xff]
  %v241 = vld [vmem:[%s1 + $0x660] sm:$0xff]
  %v242 = vld [vmem:[%s1 + $0x668] sm:$0xff]
  %v243 = vld [vmem:[%s1 + $0x670] sm:$0xff]
  %v244 = vld [vmem:[%s1 + $0x678] sm:$0xff]
  %v245 = vld [vmem:[%s1 + $0x680] sm:$0xff]
  %v246 = vld [vmem:[%s1 + $0x688] sm:$0xff]
  %v247 = vld [vmem:[%s1 + $0x690] sm:$0xff]
  %v248 = vld [vmem:[%s1 + $0x698] sm:$0xff]
  %v249 = vld [vmem:[%s1 + $0x6a0] sm:$0xff]
  %v250 = vld [vmem:[%s1 + $0x6a8] sm:$0xff]
  %v251 = vld [vmem:[%s1 + $0x6b0] sm:$0xff]
  %v252 = vld [vmem:[%s1 + $0x6b8] sm:$0xff]
  %v253 = vld [vmem:[%s1 + $0x6c0] sm:$0xff]
  %v254 = vld [vmem:[%s1 + $0x6c8] sm:$0xff]
  %v255 = vld [vmem:[%s1 + $0x6d0] sm:$0xff]
  %v256 = vld [vmem:[%s1 + $0x6d8] sm:$0xff]
  %v257 = vld [vmem:[%s1 + $0x6e0] sm:$0xff]
  %v258 = vld [vmem:[%s1 + $0x6e8] sm:$0xff]
  %v259 = vld [vmem:[%s1 + $0x6f0] sm:$0xff]
  %v260 = vld [vmem:[%s1 + $0x6f8] sm:$0xff]
  %v261 = vld [vmem:[%s1 + $0x700] sm:$0xff]
  %v262 = vld [vmem:[%s1 + $0x708] sm:$0xff]
  %v263 = vld [vmem:[%s1 + $0x710] sm:$0xff]
  %v264 = vld [vmem:[%s1 + $0x718] sm:$0xff]
  %v265 = vld [vmem:[%s1 + $0x720] sm:$0xff]
  %v266 = vld [vmem:[%s1 + $0x728] sm:$0xff]
  %v267 = vld [vmem:[%s1 + $0x730] sm:$0xff]
  %v268 = vld [vmem:[%s1 + $0x738] sm:$0xff]
  %v269 = vld [vmem:[%s1 + $0x740] sm:$0xff]
  %v270 = vld [vmem:[%s1 + $0x748] sm:$0xff]
  %v271 = vld [vmem:[%s1 + $0x750] sm:$0xff]
  %v272 = vld [vmem:[%s1 + $0x758] sm:$0xff]
  %v273 = vld [vmem:[%s1 + $0x760] sm:$0xff]
  %v274 = vld [vmem:[%s1 + $0x768] sm:$0xff]
  %v275 = vld [vmem:[%s1 + $0x770] sm:$0xff]
  %v276 = vld [vmem:[%s1 + $0x778] sm:$0xff]
  %v277 = vld [vmem:[%s1 + $0x780] sm:$0xff]
  %v278 = vld [vmem:[%s1 + $0x788] sm:$0xff]
  %v279 = vld [vmem:[%s1 + $0x790] sm:$0xff]
  %v280 = vld [vmem:[%s1 + $0x798] sm:$0xff]
  %v281 = vld [vmem:[%s1 + $0x7a0] sm:$0xff]
  %v282 = vld [vmem:[%s1 + $0x7a8] sm:$0xff]
  %v283 = vld [vmem:[%s1 + $0x7b0] sm:$0xff]
  %v284 = vld [vmem:[%s1 + $0x7b8] sm:$0xff]
  %v285 = vld [vmem:[%s1 + $0x7c0] sm:$0xff]
  %v286 = vld [vmem:[%s1 + $0x7c8] sm:$0xff]
  %v287 = vld [vmem:[%s1 + $0x7d0] sm:$0xff]
  %v288 = vld [vmem:[%s1 + $0x7d8] sm:$0xff]
  %v289 = vld [vmem:[%s1 + $0x7e0] sm:$0xff]
  %v290 = vld [vmem:[%s1 + $0x7e8] sm:$0xff]
  %v291 = vld [vmem:[%s1 + $0x7f0] sm:$0xff]
  %v292 = vld [vmem:[%s1 + $0x7f8] sm:$0xff]
  %v293 = vld [vmem:[%s1 + $0x800] sm:$0xff]
  %v294 = vld [vmem:[%s1 + $0x808] sm:$0xff]
  %v295 = vld [vmem:[%s1 + $0x810] sm:$0xff]
  %v296 = vld [vmem:[%s1 + $0x818] sm:$0xff]
  %v297 = vld [vmem:[%s1 + $0x820] sm:$0xff]
  %v298 = vld [vmem:[%s1 + $0x828] sm:$0xff]
  %v299 = vld [vmem:[%s1 + $0x830] sm:$0xff]
  %v300 = vld [vmem:[%s1 + $0x838] sm:$0xff]
  %v301 = vld [vmem:[%s1 + $0x840] sm:$0xff]
  %v302 = vld [vmem:[%s1 + $0x848] sm:$0xff]
  %v303 = vld [vmem:[%s1 + $0x850] sm:$0xff]
  %v304 = vld [vmem:[%s1 + $0x858] sm:$0xff]
  %v305 = vld [vmem:[%s1 + $0x860] sm:$0xff]
  %v306 = vld [vmem:[%s1 + $0x868] sm:$0xff]
  %v307 = vld [vmem:[%s1 + $0x870] sm:$0xff]
  %v308 = vld [vmem:[%s1 + $0x878] sm:$0xff]
  %v309 = vld [vmem:[%s1 + $0x880] sm:$0xff]
  %v310 = vld [vmem:[%s1 + $0x888] sm:$0xff]
  %v311 = vld [vmem:[%s1 + $0x890] sm:$0xff]
  %v312 = vld [vmem:[%s1 + $0x898] sm:$0xff]
  %v313 = vld [vmem:[%s1 + $0x8a0] sm:$0xff]
  %v314 = vld [vmem:[%s1 + $0x8a8] sm:$0xff]
  %v315 = vld [vmem:[%s1 + $0x8b0] sm:$0xff]
  %v316 = vld [vmem:[%s1 + $0x8b8] sm:$0xff]
  %v317 = vld [vmem:[%s1 + $0x8c0] sm:$0xff]
  %v318 = vld [vmem:[%s1 + $0x8c8] sm:$0xff]
  %v319 = vld [vmem:[%s1 + $0x8d0] sm:$0xff]
  %v320 = vld [vmem:[%s1 + $0x8d8] sm:$0xff]
  %v321 = vld [vmem:[%s1 + $0x8e0] sm:$0xff]
  %v322 = vld [vmem:[%s1 + $0x8e8] sm:$0xff]
  %v323 = vld [vmem:[%s1 + $0x8f0] sm:$0xff]
  %v324 = vld [vmem:[%s1 + $0x8f8] sm:$0xff]
  %v325 = vld [vmem:[%s1 + $0x900] sm:$0xff]
  %v326 = vld [vmem:[%s1 + $0x908] sm:$0xff]
  %v327 = vld [vmem:[%s1 + $0x910] sm:$0xff]
  %v328 = vld [vmem:[%s1 + $0x918] sm:$0xff]
  %v329 = vld [vmem:[%s1 + $0x920] sm:$0xff]
  %v330 = vld [vmem:[%s1 + $0x928] sm:$0xff]
  %v331 = vld [vmem:[%s1 + $0x930] sm:$0xff]
  %v332 = vld [vmem:[%s1 + $0x938] sm:$0xff]
  %v333 = vld [vmem:[%s1 + $0x940] sm:$0xff]
  %v334 = vld [vmem:[%s1 + $0x948] sm:$0xff]
  %v335 = vld [vmem:[%s1 + $0x950] sm:$0xff]
  %v336 = vld [vmem:[%s1 + $0x958] sm:$0xff]
  %v337 = vld [vmem:[%s1 + $0x960] sm:$0xff]
  %v338 = vld [vmem:[%s1 + $0x968] sm:$0xff]
  %v339 = vld [vmem:[%s1 + $0x970] sm:$0xff]
  %v340 = vld [vmem:[%s1 + $0x978] sm:$0xff]
  %v341 = vld [vmem:[%s1 + $0x980] sm:$0xff]
  %v342 = vld [vmem:[%s1 + $0x988] sm:$0xff]
  %v343 = vld [vmem:[%s1 + $0x990] sm:$0xff]
  %v344 = vld [vmem:[%s1 + $0x998] sm:$0xff]
  %v345 = vld [vmem:[%s1 + $0x9a0] sm:$0xff]
  %v346 = vld [vmem:[%s1 + $0x9a8] sm:$0xff]
  %v347 = vld [vmem:[%s1 + $0x9b0] sm:$0xff]
  %v348 = vld [vmem:[%s1 + $0x9b8] sm:$0xff]
  %v349 = vld [vmem:[%s1 + $0x9c0] sm:$0xff]
  %v350 = vld [vmem:[%s1 + $0x9c8] sm:$0xff]
  %v351 = vld [vmem:[%s1 + $0x9d0] sm:$0xff]
  %v352 = vld [vmem:[%s1 + $0x9d8] sm:$0xff]
  %v353 = vld [vmem:[%s1 + $0x9e0] sm:$0xff]
  %v354 = vld [vmem:[%s1 + $0x9e8] sm:$0xff]
  %v355 = vld [vmem:[%s1 + $0x9f0] sm:$0xff]
  %v356 = vld [vmem:[%s1 + $0x9f8] sm:$0xff]
  %v357 = vld [vmem:[%s1 + $0xa00] sm:$0xff]
  %v358 = vld [vmem:[%s1 + $0xa08] sm:$0xff]
  %v359 = vld [vmem:[%s1 + $0xa10] sm:$0xff]
  %v360 = vld [vmem:[%s1 + $0xa18] sm:$0xff]
  %v361 = vld [vmem:[%s1 + $0xa20] sm:$0xff]
  %v362 = vld [vmem:[%s1 + $0xa28] sm:$0xff]
  %v363 = vld [vmem:[%s1 + $0xa30] sm:$0xff]
  %v364 = vld [vmem:[%s1 + $0xa38] sm:$0xff]
  %v365 = vld [vmem:[%s1 + $0xa40] sm:$0xff]
  %v366 = vld [vmem:[%s1 + $0xa48] sm:$0xff]
  %v367 = vld [vmem:[%s1 + $0xa50] sm:$0xff]
  %v368 = vld [vmem:[%s1 + $0xa58] sm:$0xff]
  %v369 = vld [vmem:[%s1 + $0xa60] sm:$0xff]
  %v370 = vld [vmem:[%s1 + $0xa68] sm:$0xff]
  %v371 = vld [vmem:[%s1 + $0xa70] sm:$0xff]
  %v372 = vld [vmem:[%s1 + $0xa78] sm:$0xff]
  %v373 = vld [vmem:[%s1 + $0xa80] sm:$0xff]
  %v374 = vld [vmem:[%s1 + $0xa88] sm:$0xff]
  %v375 = vld [vmem:[%s1 + $0xa90] sm:$0xff]
  %v376 = vld [vmem:[%s1 + $0xa98] sm:$0xff]
  %v377 = vld [vmem:[%s1 + $0xaa0] sm:$0xff]
  %v378 = vld [vmem:[%s1 + $0xaa8] sm:$0xff]
  %v379 = vld [vmem:[%s1 + $0xab0] sm:$0xff]
  %v380 = vld [vmem:[%s1 + $0xab8] sm:$0xff]
  %v381 = vld [vmem:[%s1 + $0xac0] sm:$0xff]
  %v382 = vld [vmem:[%s1 + $0xac8] sm:$0xff]
  %v383 = vld [vmem:[%s1 + $0xad0] sm:$0xff]
  %v384 = vld [vmem:[%s1 + $0xad8] sm:$0xff]
  %v385 = vld [vmem:[%s1 + $0xae0] sm:$0xff]
  %v386 = vld [vmem:[%s1 + $0xae8] sm:$0xff]
  %v387 = vld [vmem:[%s1 + $0xaf0] sm:$0xff]
  %v388 = vld [vmem:[%s1 + $0xaf8] sm:$0xff]
  %v389 = vld [vmem:[%s1 + $0xb00] sm:$0xff]
  %v390 = vld [vmem:[%s1 + $0xb08] sm:$0xff]
  %v391 = vld [vmem:[%s1 + $0xb10] sm:$0xff]
  %v392 = vld [vmem:[%s1 + $0xb18] sm:$0xff]
  %v393 = vld [vmem:[%s1 + $0xb20] sm:$0xff]
  %v394 = vld [vmem:[%s1 + $0xb28] sm:$0xff]
  %v395 = vld [vmem:[%s1 + $0xb30] sm:$0xff]
  %v396 = vld [vmem:[%s1 + $0xb38] sm:$0xff]
  %v397 = vld [vmem:[%s1 + $0xb40] sm:$0xff]
  %v398 = vld [vmem:[%s1 + $0xb48] sm:$0xff]
  %v399 = vld [vmem:[%s1 + $0xb50] sm:$0xff]
  %v400 = vld [vmem:[%s1 + $0xb58] sm:$0xff]
  %v401 = vld [vmem:[%s1 + $0xb60] sm:$0xff]
  %v402 = vld [vmem:[%s1 + $0xb68] sm:$0xff]
  %v403 = vld [vmem:[%s1 + $0xb70] sm:$0xff]
  %v404 = vld [vmem:[%s1 + $0xb78] sm:$0xff]
  %v405 = vld [vmem:[%s1 + $0xb80] sm:$0xff]
  %v406 = vld [vmem:[%s1 + $0xb88] sm:$0xff]
  %v407 = vld [vmem:[%s1 + $0xb90] sm:$0xff]
  %v408 = vld [vmem:[%s1 + $0xb98] sm:$0xff]
  %v409 = vld [vmem:[%s1 + $0xba0] sm:$0xff]
  %v410 = vld [vmem:[%s1 + $0xba8] sm:$0xff]
  %v411 = vld [vmem:[%s1 + $0xbb0] sm:$0xff]
  %v412 = vld [vmem:[%s1 + $0xbb8] sm:$0xff]
  %v413 = vld [vmem:[%s1 + $0xbc0] sm:$0xff]
  %v414 = vld [vmem:[%s1 + $0xbc8] sm:$0xff]
  %v415 = vld [vmem:[%s1 + $0xbd0] sm:$0xff]
  %v416 = vld [vmem:[%s1 + $0xbd8] sm:$0xff]
  %v417 = vld [vmem:[%s1 + $0xbe0] sm:$0xff]
  %v418 = vld [vmem:[%s1 + $0xbe8] sm:$0xff]
  %v419 = vld [vmem:[%s1 + $0xbf0] sm:$0xff]
  %v420 = vld [vmem:[%s1 + $0xbf8] sm:$0xff]
  %v421 = vld [vmem:[%s1 + $0xc00] sm:$0xff]
  %v422 = vld [vmem:[%s1 + $0xc08] sm:$0xff]
  %v423 = vld [vmem:[%s1 + $0xc10] sm:$0xff]
  %v424 = vld [vmem:[%s1 + $0xc18] sm:$0xff]
  %v425 = vld [vmem:[%s1 + $0xc20] sm:$0xff]
  %v426 = vld [vmem:[%s1 + $0xc28] sm:$0xff]
  %v427 = vld [vmem:[%s1 + $0xc30] sm:$0xff]
  %v428 = vld [vmem:[%s1 + $0xc38] sm:$0xff]
  %v429 = vld [vmem:[%s1 + $0xc40] sm:$0xff]
  %v430 = vld [vmem:[%s1 + $0xc48] sm:$0xff]
  %v431 = vld [vmem:[%s1 + $0xc50] sm:$0xff]
  %v432 = vld [vmem:[%s1 + $0xc58] sm:$0xff]
  %v433 = vld [vmem:[%s1 + $0xc60] sm:$0xff]
  %v434 = vld [vmem:[%s1 + $0xc68] sm:$0xff]
  %v435 = vld [vmem:[%s1 + $0xc70] sm:$0xff]
  %v436 = vld [vmem:[%s1 + $0xc78] sm:$0xff]
  %v437 = vld [vmem:[%s1 + $0xc80] sm:$0xff]
  %v438 = vld [vmem:[%s1 + $0xc88] sm:$0xff]
  %v439 = vld [vmem:[%s1 + $0xc90] sm:$0xff]
  %v440 = vld [vmem:[%s1 + $0xc98] sm:$0xff]
  %v441 = vld [vmem:[%s1 + $0xca0] sm:$0xff]
  %v442 = vld [vmem:[%s1 + $0xca8] sm:$0xff]
  %v443 = vld [vmem:[%s1 + $0xcb0] sm:$0xff]
  %v444 = vld [vmem:[%s1 + $0xcb8] sm:$0xff]
  %v445 = vld [vmem:[%s1 + $0xcc0] sm:$0xff]
  %v446 = vld [vmem:[%s1 + $0xcc8] sm:$0xff]
  %v447 = vld [vmem:[%s1 + $0xcd0] sm:$0xff]
  %v448 = vld [vmem:[%s1 + $0xcd8] sm:$0xff]
  %v449 = vld [vmem:[%s1 + $0xce0] sm:$0xff]
  %v450 = vld [vmem:[%s1 + $0xce8] sm:$0xff]
  %v451 = vld [vmem:[%s1 + $0xcf0] sm:$0xff]
  %v452 = vld [vmem:[%s1 + $0xcf8] sm:$0xff]
  %v453 = vld [vmem:[%s1 + $0xd00] sm:$0xff]
  %v454 = vld [vmem:[%s1 + $0xd08] sm:$0xff]
  %v455 = vld [vmem:[%s1 + $0xd10] sm:$0xff]
  %v456 = vld [vmem:[%s1 + $0xd18] sm:$0xff]
  %v457 = vld [vmem:[%s1 + $0xd20] sm:$0xff]
  %v458 = vld [vmem:[%s1 + $0xd28] sm:$0xff]
  %v459 = vld [vmem:[%s1 + $0xd30] sm:$0xff]
  %v460 = vld [vmem:[%s1 + $0xd38] sm:$0xff]
  %v461 = vld [vmem:[%s1 + $0xd40] sm:$0xff]
  %v462 = vld [vmem:[%s1 + $0xd48] sm:$0xff]
  %v463 = vld [vmem:[%s1 + $0xd50] sm:$0xff]
  %v464 = vld [vmem:[%s1 + $0xd58] sm:$0xff]
  %v465 = vld [vmem:[%s1 + $0xd60] sm:$0xff]
  %v466 = vld [vmem:[%s1 + $0xd68] sm:$0xff]
  %v467 = vld [vmem:[%s1 + $0xd70] sm:$0xff]
  %v468 = vld [vmem:[%s1 + $0xd78] sm:$0xff]
  %v469 = vld [vmem:[%s1 + $0xd80] sm:$0xff]
  %v470 = vld [vmem:[%s1 + $0xd88] sm:$0xff]
  %v471 = vld [vmem:[%s1 + $0xd90] sm:$0xff]
  %v472 = vld [vmem:[%s1 + $0xd98] sm:$0xff]
  %v473 = vld [vmem:[%s1 + $0xda0] sm:$0xff]
  %v474 = vld [vmem:[%s1 + $0xda8] sm:$0xff]
  %v475 = vld [vmem:[%s1 + $0xdb0] sm:$0xff]
  %v476 = vld [vmem:[%s1 + $0xdb8] sm:$0xff]
  %v477 = vld [vmem:[%s1 + $0xdc0] sm:$0xff]
  %v478 = vld [vmem:[%s1 + $0xdc8] sm:$0xff]
  %v479 = vld [vmem:[%s1 + $0xdd0] sm:$0xff]
  %v480 = vld [vmem:[%s1 + $0xdd8] sm:$0xff]
  %v481 = vld [vmem:[%s1 + $0xde0] sm:$0xff]
  %v482 = vld [vmem:[%s1 + $0xde8] sm:$0xff]
  %v483 = vld [vmem:[%s1 + $0xdf0] sm:$0xff]
  %v484 = vld [vmem:[%s1 + $0xdf8] sm:$0xff]
  %v485 = vld [vmem:[%s1 + $0xe00] sm:$0xff]
  %v486 = vld [vmem:[%s1 + $0xe08] sm:$0xff]
  %v487 = vld [vmem:[%s1 + $0xe10] sm:$0xff]
  %v488 = vld [vmem:[%s1 + $0xe18] sm:$0xff]
  %v489 = vld [vmem:[%s1 + $0xe20] sm:$0xff]
  %v490 = vld [vmem:[%s1 + $0xe28] sm:$0xff]
  %v491 = vld [vmem:[%s1 + $0xe30] sm:$0xff]
  %v492 = vld [vmem:[%s1 + $0xe38] sm:$0xff]
  %v493 = vld [vmem:[%s1 + $0xe40] sm:$0xff]
  %v494 = vld [vmem:[%s1 + $0xe48] sm:$0xff]
  %v495 = vld [vmem:[%s1 + $0xe50] sm:$0xff]
  %v496 = vld [vmem:[%s1 + $0xe58] sm:$0xff]
  %v497 = vld [vmem:[%s1 + $0xe60] sm:$0xff]
  %v498 = vld [vmem:[%s1 + $0xe68] sm:$0xff]
  %v499 = vld [vmem:[%s1 + $0xe70] sm:$0xff]
  %v500 = vld [vmem:[%s1 + $0xe78] sm:$0xff]
  %v501 = vld [vmem:[%s1 + $0xe80] sm:$0xff]
  %v502 = vld [vmem:[%s1 + $0xe88] sm:$0xff]
  %v503 = vld [vmem:[%s1 + $0xe90] sm:$0xff]
  %v504 = vld [vmem:[%s1 + $0xe98] sm:$0xff]
  %v505 = vld [vmem:[%s1 + $0xea0] sm:$0xff]
  %v506 = vld [vmem:[%s1 + $0xea8] sm:$0xff]
  %v507 = vld [vmem:[%s1 + $0xeb0] sm:$0xff]
  %v508 = vld [vmem:[%s1 + $0xeb8] sm:$0xff]
  %v509 = vld [vmem:[%s1 + $0xec0] sm:$0xff]
  %v510 = vld [vmem:[%s1 + $0xec8] sm:$0xff]
  %v511 = vld [vmem:[%s1 + $0xed0] sm:$0xff]
  %v512 = vld [vmem:[%s1 + $0xed8] sm:$0xff]
  %v513 = vld [vmem:[%s1 + $0xee0] sm:$0xff]
  %v514 = vld [vmem:[%s1 + $0xee8] sm:$0xff]
  %v515 = vld [vmem:[%s1 + $0xef0] sm:$0xff]
  %v516 = vld [vmem:[%s1 + $0xef8] sm:$0xff]
  %v517 = vld [vmem:[%s1 + $0xf00] sm:$0xff]
  %v518 = vld [vmem:[%s1 + $0xf08] sm:$0xff]
  %v519 = vld [vmem:[%s1 + $0xf10] sm:$0xff]
  %v520 = vld [vmem:[%s1 + $0xf18] sm:$0xff]
  %v521 = vld [vmem:[%s1 + $0xf20] sm:$0xff]
  %v522 = vld [vmem:[%s1 + $0xf28] sm:$0xff]
  %v523 = vld [vmem:[%s1 + $0xf30] sm:$0xff]
  %v524 = vld [vmem:[%s1 + $0xf38] sm:$0xff]
  %v525 = vld [vmem:[%s1 + $0xf40] sm:$0xff]
  %v526 = vld [vmem:[%s1 + $0xf48] sm:$0xff]
  %v527 = vld [vmem:[%s1 + $0xf50] sm:$0xff]
  %v528 = vld [vmem:[%s1 + $0xf58] sm:$0xff]
  %v529 = vld [vmem:[%s1 + $0xf60] sm:$0xff]
  %v530 = vld [vmem:[%s1 + $0xf68] sm:$0xff]
  %v531 = vld [vmem:[%s1 + $0xf70] sm:$0xff]
  %v532 = vld [vmem:[%s1 + $0xf78] sm:$0xff]
  %v533 = vld [vmem:[%s1 + $0xf80] sm:$0xff]
  %v534 = vld [vmem:[%s1 + $0xf88] sm:$0xff]
  %v535 = vld [vmem:[%s1 + $0xf90] sm:$0xff]
  %v536 = vld [vmem:[%s1 + $0xf98] sm:$0xff]
  %v537 = vld [vmem:[%s1 + $0xfa0] sm:$0xff]
  %v538 = vld [vmem:[%s1 + $0xfa8] sm:$0xff]
  %v539 = vld [vmem:[%s1 + $0xfb0] sm:$0xff]
  %v540 = vld [vmem:[%s1 + $0xfb8] sm:$0xff]
  %v541 = vld [vmem:[%s1 + $0xfc0] sm:$0xff]
  %v542 = vld [vmem:[%s1 + $0xfc8] sm:$0xff]
  %v543 = vld [vmem:[%s1 + $0xfd0] sm:$0xff]
  %v544 = vld [vmem:[%s1 + $0xfd8] sm:$0xff]
  %v545 = vld [vmem:[%s1 + $0xfe0] sm:$0xff]
  %v546 = vld [vmem:[%s1 + $0xfe8] sm:$0xff]
  %v547 = vld [vmem:[%s1 + $0xff0] sm:$0xff]
  %v548 = vld [vmem:[%s1 + $0xff8] sm:$0xff]
  %v549 = vld [vmem:[%s1 + $0x1000] sm:$0xff]
  %v550 = vld [vmem:[%s1 + $0x1008] sm:$0xff]
  %v551 = vld [vmem:[%s1 + $0x1010] sm:$0xff]
  %v552 = vld [vmem:[%s1 + $0x1018] sm:$0xff]
  %v553 = vld [vmem:[%s1 + $0x1020] sm:$0xff]
  %v554 = vld [vmem:[%s1 + $0x1028] sm:$0xff]
  %v555 = vld [vmem:[%s1 + $0x1030] sm:$0xff]
  %v556 = vld [vmem:[%s1 + $0x1038] sm:$0xff]
  %v557 = vld [vmem:[%s1 + $0x1040] sm:$0xff]
  %v558 = vld [vmem:[%s1 + $0x1048] sm:$0xff]
  %v559 = vld [vmem:[%s1 + $0x1050] sm:$0xff]
  %v560 = vld [vmem:[%s1 + $0x1058] sm:$0xff]
  %v561 = vld [vmem:[%s1 + $0x1060] sm:$0xff]
  %v562 = vld [vmem:[%s1 + $0x1068] sm:$0xff]
  %v563 = vld [vmem:[%s1 + $0x1070] sm:$0xff]
  %v564 = vld [vmem:[%s1 + $0x1078] sm:$0xff]
  %v565 = vld [vmem:[%s1 + $0x1080] sm:$0xff]
  %v566 = vld [vmem:[%s1 + $0x1088] sm:$0xff]
  %v567 = vld [vmem:[%s1 + $0x1090] sm:$0xff]
  %v568 = vld [vmem:[%s1 + $0x1098] sm:$0xff]
  %v569 = vld [vmem:[%s1 + $0x10a0] sm:$0xff]
  %v570 = vld [vmem:[%s1 + $0x10a8] sm:$0xff]
  %v571 = vld [vmem:[%s1 + $0x10b0] sm:$0xff]
  %v572 = vld [vmem:[%s1 + $0x10b8] sm:$0xff]
  %v573 = vld [vmem:[%s1 + $0x10c0] sm:$0xff]
  %v574 = vld [vmem:[%s1 + $0x10c8] sm:$0xff]
  %v575 = vld [vmem:[%s1 + $0x10d0] sm:$0xff]
  %v576 = vld [vmem:[%s1 + $0x10d8] sm:$0xff]
  %v577 = vld [vmem:[%s1 + $0x10e0] sm:$0xff]
  %v578 = vld [vmem:[%s1 + $0x10e8] sm:$0xff]
  %v579 = vld [vmem:[%s1 + $0x10f0] sm:$0xff]
  %v580 = vld [vmem:[%s1 + $0x10f8] sm:$0xff]
  %v581 = vld [vmem:[%s1 + $0x1100] sm:$0xff]
  %v582 = vld [vmem:[%s1 + $0x1108] sm:$0xff]
  %v583 = vld [vmem:[%s1 + $0x1110] sm:$0xff]
  %v584 = vld [vmem:[%s1 + $0x1118] sm:$0xff]
  %v585 = vld [vmem:[%s1 + $0x1120] sm:$0xff]
  %v586 = vld [vmem:[%s1 + $0x1128] sm:$0xff]
  %v587 = vld [vmem:[%s1 + $0x1130] sm:$0xff]
  %v588 = vld [vmem:[%s1 + $0x1138] sm:$0xff]
  %v589 = vld [vmem:[%s1 + $0x1140] sm:$0xff]
  %v590 = vld [vmem:[%s1 + $0x1148] sm:$0xff]
  %v591 = vld [vmem:[%s1 + $0x1150] sm:$0xff]
  %v592 = vld [vmem:[%s1 + $0x1158] sm:$0xff]
  %v593 = vld [vmem:[%s1 + $0x1160] sm:$0xff]
  %v594 = vld [vmem:[%s1 + $0x1168] sm:$0xff]
  %v595 = vld [vmem:[%s1 + $0x1170] sm:$0xff]
  %v596 = vld [vmem:[%s1 + $0x1178] sm:$0xff]
  %v597 = vld [vmem:[%s1 + $0x1180] sm:$0xff]
  %v598 = vld [vmem:[%s1 + $0x1188] sm:$0xff]
  %v599 = vld [vmem:[%s1 + $0x1190] sm:$0xff]
  %v600 = vld [vmem:[%s1 + $0x1198] sm:$0xff]
  %v601 = vld [vmem:[%s1 + $0x11a0] sm:$0xff]
  %v602 = vld [vmem:[%s1 + $0x11a8] sm:$0xff]
  %v603 = vld [vmem:[%s1 + $0x11b0] sm:$0xff]
  %v604 = vld [vmem:[%s1 + $0x11b8] sm:$0xff]
  %v605 = vld [vmem:[%s1 + $0x11c0] sm:$0xff]
  %v606 = vld [vmem:[%s1 + $0x11c8] sm:$0xff]
  %v607 = vld [vmem:[%s1 + $0x11d0] sm:$0xff]
  %v608 = vld [vmem:[%s1 + $0x11d8] sm:$0xff]
  %v609 = vld [vmem:[%s1 + $0x11e0] sm:$0xff]
  %v610 = vld [vmem:[%s1 + $0x11e8] sm:$0xff]
  %v611 = vld [vmem:[%s1 + $0x11f0] sm:$0xff]
  %v612 = vld [vmem:[%s1 + $0x11f8] sm:$0xff]
  %v613 = vld [vmem:[%s1 + $0x1200] sm:$0xff]
  %v614 = vld [vmem:[%s1 + $0x1208] sm:$0xff]
  %v615 = vld [vmem:[%s1 + $0x1210] sm:$0xff]
  %v616 = vld [vmem:[%s1 + $0x1218] sm:$0xff]
  %v617 = vld [vmem:[%s1 + $0x1220] sm:$0xff]
  %v618 = vld [vmem:[%s1 + $0x1228] sm:$0xff]
  %v619 = vld [vmem:[%s1 + $0x1230] sm:$0xff]
  %v620 = vld [vmem:[%s1 + $0x1238] sm:$0xff]
  %v621 = vld [vmem:[%s1 + $0x1240] sm:$0xff]
  %v622 = vld [vmem:[%s1 + $0x1248] sm:$0xff]
  %v623 = vld [vmem:[%s1 + $0x1250] sm:$0xff]
  %v624 = vld [vmem:[%s1 + $0x1258] sm:$0xff]
  %v625 = vld [vmem:[%s1 + $0x1260] sm:$0xff]
  %v626 = vld [vmem:[%s1 + $0x1268] sm:$0xff]
  %v627 = vld [vmem:[%s1 + $0x1270] sm:$0xff]
  %v628 = vld [vmem:[%s1 + $0x1278] sm:$0xff]
  %v629 = vld [vmem:[%s1 + $0x1280] sm:$0xff]
  %v630 = vld [vmem:[%s1 + $0x1288] sm:$0xff]
  %v631 = vld [vmem:[%s1 + $0x1290] sm:$0xff]
  %v632 = vld [vmem:[%s1 + $0x1298] sm:$0xff]
  %v633 = vld [vmem:[%s1 + $0x12a0] sm:$0xff]
  %v634 = vld [vmem:[%s1 + $0x12a8] sm:$0xff]
  %v635 = vld [vmem:[%s1 + $0x12b0] sm:$0xff]
  %v636 = vld [vmem:[%s1 + $0x12b8] sm:$0xff]
  %v637 = vld [vmem:[%s1 + $0x12c0] sm:$0xff]
  %v638 = vld [vmem:[%s1 + $0x12c8] sm:$0xff]
  %v639 = vld [vmem:[%s1 + $0x12d0] sm:$0xff]
  %v640 = vld [vmem:[%s1 + $0x12d8] sm:$0xff]
  %v641 = vld [vmem:[%s1 + $0x12e0] sm:$0xff]
  %v642 = vld [vmem:[%s1 + $0x12e8] sm:$0xff]
  %v643 = vld [vmem:[%s1 + $0x12f0] sm:$0xff]
  %v644 = vld [vmem:[%s1 + $0x12f8] sm:$0xff]
  %v645 = vld [vmem:[%s1 + $0x1300] sm:$0xff]
  %v646 = vld [vmem:[%s1 + $0x1308] sm:$0xff]
  %v647 = vld [vmem:[%s1 + $0x1310] sm:$0xff]
  %v648 = vld [vmem:[%s1 + $0x1318] sm:$0xff]
  %v649 = vld [vmem:[%s1 + $0x1320] sm:$0xff]
  %v650 = vld [vmem:[%s1 + $0x1328] sm:$0xff]
  %v651 = vld [vmem:[%s1 + $0x1330] sm:$0xff]
  %v652 = vld [vmem:[%s1 + $0x1338] sm:$0xff]
  %v653 = vld [vmem:[%s1 + $0x1340] sm:$0xff]
  %v654 = vld [vmem:[%s1 + $0x1348] sm:$0xff]
  %v655 = vld [vmem:[%s1 + $0x1350] sm:$0xff]
  %v656 = vld [vmem:[%s1 + $0x1358] sm:$0xff]
  %v657 = vld [vmem:[%s1 + $0x1360] sm:$0xff]
  %v658 = vld [vmem:[%s1 + $0x1368] sm:$0xff]
  %v659 = vld [vmem:[%s1 + $0x1370] sm:$0xff]
  %v660 = vld [vmem:[%s1 + $0x1378] sm:$0xff]
  %v661 = vld [vmem:[%s1 + $0x1380] sm:$0xff]
  %v662 = vld [vmem:[%s1 + $0x1388] sm:$0xff]
  %v663 = vld [vmem:[%s1 + $0x1390] sm:$0xff]
  %v664 = vld [vmem:[%s1 + $0x1398] sm:$0xff]
  %v665 = vld [vmem:[%s1 + $0x13a0] sm:$0xff]
  %v666 = vld [vmem:[%s1 + $0x13a8] sm:$0xff]
  %v667 = vld [vmem:[%s1 + $0x13b0] sm:$0xff]
  %v668 = vld [vmem:[%s1 + $0x13b8] sm:$0xff]
  %v669 = vld [vmem:[%s1 + $0x13c0] sm:$0xff]
  %v670 = vld [vmem:[%s1 + $0x13c8] sm:$0xff]
  %v671 = vld [vmem:[%s1 + $0x13d0] sm:$0xff]
  %v672 = vld [vmem:[%s1 + $0x13d8] sm:$0xff]
  %v673 = vld [vmem:[%s1 + $0x13e0] sm:$0xff]
  %v674 = vld [vmem:[%s1 + $0x13e8] sm:$0xff]
  %v675 = vld [vmem:[%s1 + $0x13f0] sm:$0xff]
  %v676 = vld [vmem:[%s1 + $0x13f8] sm:$0xff]
  %v677 = vld [vmem:[%s1 + $0x1400] sm:$0xff]
  %v678 = vld [vmem:[%s1 + $0x1408] sm:$0xff]
  %v679 = vld [vmem:[%s1 + $0x1410] sm:$0xff]
  %v680 = vld [vmem:[%s1 + $0x1418] sm:$0xff]
  %v681 = vld [vmem:[%s1 + $0x1420] sm:$0xff]
  %v682 = vld [vmem:[%s1 + $0x1428] sm:$0xff]
  %v683 = vld [vmem:[%s1 + $0x1430] sm:$0xff]
  %v684 = vld [vmem:[%s1 + $0x1438] sm:$0xff]
  %v685 = vld [vmem:[%s1 + $0x1440] sm:$0xff]
  %v686 = vld [vmem:[%s1 + $0x1448] sm:$0xff]
  %v687 = vld [vmem:[%s1 + $0x1450] sm:$0xff]
  %v688 = vld [vmem:[%s1 + $0x1458] sm:$0xff]
  %v689 = vld [vmem:[%s1 + $0x1460] sm:$0xff]
  %v690 = vld [vmem:[%s1 + $0x1468] sm:$0xff]
  %v691 = vld [vmem:[%s1 + $0x1470] sm:$0xff]
  %v692 = vld [vmem:[%s1 + $0x1478] sm:$0xff]
  %v693 = vld [vmem:[%s1 + $0x1480] sm:$0xff]
  %v694 = vld [vmem:[%s1 + $0x1488] sm:$0xff]
  %v695 = vld [vmem:[%s1 + $0x1490] sm:$0xff]
  %v696 = vld [vmem:[%s1 + $0x1498] sm:$0xff]
  %v697 = vld [vmem:[%s1 + $0x14a0] sm:$0xff]
  %v698 = vld [vmem:[%s1 + $0x14a8] sm:$0xff]
  %v699 = vld [vmem:[%s1 + $0x14b0] sm:$0xff]
  %v700 = vld [vmem:[%s1 + $0x14b8] sm:$0xff]
  %v701 = vld [vmem:[%s1 + $0x14c0] sm:$0xff]
  %v702 = vld [vmem:[%s1 + $0x14c8] sm:$0xff]
  %v703 = vld [vmem:[%s1 + $0x14d0] sm:$0xff]
  %v704 = vld [vmem:[%s1 + $0x14d8] sm:$0xff]
  %v705 = vld [vmem:[%s1 + $0x14e0] sm:$0xff]
  %v706 = vld [vmem:[%s1 + $0x14e8] sm:$0xff]
  %v707 = vld [vmem:[%s1 + $0x14f0] sm:$0xff]
  %v708 = vld [vmem:[%s1 + $0x14f8] sm:$0xff]
  %v709 = vld [vmem:[%s1 + $0x1500] sm:$0xff]
  %v710 = vld [vmem:[%s1 + $0x1508] sm:$0xff]
  %v711 = vld [vmem:[%s1 + $0x1510] sm:$0xff]
  %v712 = vld [vmem:[%s1 + $0x1518] sm:$0xff]
  %v713 = vld [vmem:[%s1 + $0x1520] sm:$0xff]
  %v714 = vld [vmem:[%s1 + $0x1528] sm:$0xff]
  %v715 = vld [vmem:[%s1 + $0x1530] sm:$0xff]
  %v716 = vld [vmem:[%s1 + $0x1538] sm:$0xff]
  %v717 = vld [vmem:[%s1 + $0x1540] sm:$0xff]
  %v718 = vld [vmem:[%s1 + $0x1548] sm:$0xff]
  %v719 = vld [vmem:[%s1 + $0x1550] sm:$0xff]
  %v720 = vld [vmem:[%s1 + $0x1558] sm:$0xff]
  %v721 = vld [vmem:[%s1 + $0x1560] sm:$0xff]
  %v722 = vld [vmem:[%s1 + $0x1568] sm:$0xff]
  %v723 = vld [vmem:[%s1 + $0x1570] sm:$0xff]
  %v724 = vld [vmem:[%s1 + $0x1578] sm:$0xff]
  %v725 = vld [vmem:[%s1 + $0x1580] sm:$0xff]
  %v726 = vld [vmem:[%s1 + $0x1588] sm:$0xff]
  %v727 = vld [vmem:[%s1 + $0x1590] sm:$0xff]
  %v728 = vld [vmem:[%s1 + $0x1598] sm:$0xff]
  %v729 = vld [vmem:[%s1 + $0x15a0] sm:$0xff]
  %v730 = vld [vmem:[%s1 + $0x15a8] sm:$0xff]
  %v731 = vld [vmem:[%s1 + $0x15b0] sm:$0xff]
  %v732 = vld [vmem:[%s1 + $0x15b8] sm:$0xff]
  %v733 = vld [vmem:[%s1 + $0x15c0] sm:$0xff]
  %v734 = vld [vmem:[%s1 + $0x15c8] sm:$0xff]
  %v735 = vld [vmem:[%s1 + $0x15d0] sm:$0xff]
  %v736 = vld [vmem:[%s1 + $0x15d8] sm:$0xff]
  %v737 = vld [vmem:[%s1 + $0x15e0] sm:$0xff]
  %v738 = vld [vmem:[%s1 + $0x15e8] sm:$0xff]
  %v739 = vld [vmem:[%s1 + $0x15f0] sm:$0xff]
  %v740 = vld [vmem:[%s1 + $0x15f8] sm:$0xff]
  %v741 = vld [vmem:[%s1 + $0x1600] sm:$0xff]
  %v742 = vld [vmem:[%s1 + $0x1608] sm:$0xff]
  %v743 = vld [vmem:[%s1 + $0x1610] sm:$0xff]
  %v744 = vld [vmem:[%s1 + $0x1618] sm:$0xff]
  %v745 = vld [vmem:[%s1 + $0x1620] sm:$0xff]
  %v746 = vld [vmem:[%s1 + $0x1628] sm:$0xff]
  %v747 = vld [vmem:[%s1 + $0x1630] sm:$0xff]
  %v748 = vld [vmem:[%s1 + $0x1638] sm:$0xff]
  %v749 = vld [vmem:[%s1 + $0x1640] sm:$0xff]
  %v750 = vld [vmem:[%s1 + $0x1648] sm:$0xff]
  %v751 = vld [vmem:[%s1 + $0x1650] sm:$0xff]
  %v752 = vld [vmem:[%s1 + $0x1658] sm:$0xff]
  %v753 = vld [vmem:[%s1 + $0x1660] sm:$0xff]
  %v754 = vld [vmem:[%s1 + $0x1668] sm:$0xff]
  %v755 = vld [vmem:[%s1 + $0x1670] sm:$0xff]
  %v756 = vld [vmem:[%s1 + $0x1678] sm:$0xff]
  %v757 = vld [vmem:[%s1 + $0x1680] sm:$0xff]
  %v758 = vld [vmem:[%s1 + $0x1688] sm:$0xff]
  %v759 = vld [vmem:[%s1 + $0x1690] sm:$0xff]
  %v760 = vld [vmem:[%s1 + $0x1698] sm:$0xff]
  %v761 = vld [vmem:[%s1 + $0x16a0] sm:$0xff]
  %v762 = vld [vmem:[%s1 + $0x16a8] sm:$0xff]
  %v763 = vld [vmem:[%s1 + $0x16b0] sm:$0xff]
  %v764 = vld [vmem:[%s1 + $0x16b8] sm:$0xff]
  %v765 = vld [vmem:[%s1 + $0x16c0] sm:$0xff]
  %v766 = vld [vmem:[%s1 + $0x16c8] sm:$0xff]
  %v767 = vld [vmem:[%s1 + $0x16d0] sm:$0xff]
  %v768 = vld [vmem:[%s1 + $0x16d8] sm:$0xff]
  %v769 = vld [vmem:[%s1 + $0x16e0] sm:$0xff]
  %v770 = vld [vmem:[%s1 + $0x16e8] sm:$0xff]
  %v771 = vld [vmem:[%s1 + $0x16f0] sm:$0xff]
  %v772 = vld [vmem:[%s1 + $0x16f8] sm:$0xff]
  %v773 = vld [vmem:[%s1 + $0x1700] sm:$0xff]
  %v774 = vld [vmem:[%s1 + $0x1708] sm:$0xff]
  %v775 = vld [vmem:[%s1 + $0x1710] sm:$0xff]
  %v776 = vld [vmem:[%s1 + $0x1718] sm:$0xff]
  %v777 = vld [vmem:[%s1 + $0x1720] sm:$0xff]
  %v778 = vld [vmem:[%s1 + $0x1728] sm:$0xff]
  %v779 = vld [vmem:[%s1 + $0x1730] sm:$0xff]
  %v780 = vld [vmem:[%s1 + $0x1738] sm:$0xff]
  %v781 = vld [vmem:[%s1 + $0x1740] sm:$0xff]
  %v782 = vld [vmem:[%s1 + $0x1748] sm:$0xff]
  %v783 = vld [vmem:[%s1 + $0x1750] sm:$0xff]
  %v784 = vld [vmem:[%s1 + $0x1758] sm:$0xff]
  %v785 = vld [vmem:[%s1 + $0x1760] sm:$0xff]
  %v786 = vld [vmem:[%s1 + $0x1768] sm:$0xff]
  %v787 = vld [vmem:[%s1 + $0x1770] sm:$0xff]
  %v788 = vld [vmem:[%s1 + $0x1778] sm:$0xff]
  %v789 = vld [vmem:[%s1 + $0x1780] sm:$0xff]
  %v790 = vld [vmem:[%s1 + $0x1788] sm:$0xff]
  %v791 = vld [vmem:[%s1 + $0x1790] sm:$0xff]
  %v792 = vld [vmem:[%s1 + $0x1798] sm:$0xff]
  %v793 = vld [vmem:[%s1 + $0x17a0] sm:$0xff]
  %v794 = vld [vmem:[%s1 + $0x17a8] sm:$0xff]
  %v795 = vld [vmem:[%s1 + $0x17b0] sm:$0xff]
  %v796 = vld [vmem:[%s1 + $0x17b8] sm:$0xff]
  %v797 = vld [vmem:[%s1 + $0x17c0] sm:$0xff]
  %v798 = vld [vmem:[%s1 + $0x17c8] sm:$0xff]
  %v799 = vld [vmem:[%s1 + $0x17d0] sm:$0xff]
  %v800 = vld [vmem:[%s1 + $0x17d8] sm:$0xff]
  %v801 = vld [vmem:[%s1 + $0x17e0] sm:$0xff]
  %v802 = vld [vmem:[%s1 + $0x17e8] sm:$0xff]
  %v803 = vld [vmem:[%s1 + $0x17f0] sm:$0xff]
  %v804 = vld [vmem:[%s1 + $0x17f8] sm:$0xff]
  %v805 = vld [vmem:[%s1 + $0x1800] sm:$0xff]
  %v806 = vld [vmem:[%s1 + $0x1808] sm:$0xff]
  %v807 = vld [vmem:[%s1 + $0x1810] sm:$0xff]
  %v808 = vld [vmem:[%s1 + $0x1818] sm:$0xff]
  %v809 = vld [vmem:[%s1 + $0x1820] sm:$0xff]
  %v810 = vld [vmem:[%s1 + $0x1828] sm:$0xff]
  %v811 = vld [vmem:[%s1 + $0x1830] sm:$0xff]
  %v812 = vld [vmem:[%s1 + $0x1838] sm:$0xff]
  %v813 = vld [vmem:[%s1 + $0x1840] sm:$0xff]
  %v814 = vld [vmem:[%s1 + $0x1848] sm:$0xff]
  %v815 = vld [vmem:[%s1 + $0x1850] sm:$0xff]
  %v816 = vld [vmem:[%s1 + $0x1858] sm:$0xff]
  %v817 = vld [vmem:[%s1 + $0x1860] sm:$0xff]
  %v818 = vld [vmem:[%s1 + $0x1868] sm:$0xff]
  %v819 = vld [vmem:[%s1 + $0x1870] sm:$0xff]
  %v820 = vld [vmem:[%s1 + $0x1878] sm:$0xff]
  %v821 = vld [vmem:[%s1 + $0x1880] sm:$0xff]
  %v822 = vld [vmem:[%s1 + $0x1888] sm:$0xff]
  %v823 = vld [vmem:[%s1 + $0x1890] sm:$0xff]
  %v824 = vld [vmem:[%s1 + $0x1898] sm:$0xff]
  %v825 = vld [vmem:[%s1 + $0x18a0] sm:$0xff]
  %v826 = vld [vmem:[%s1 + $0x18a8] sm:$0xff]
  %v827 = vld [vmem:[%s1 + $0x18b0] sm:$0xff]
  %v828 = vld [vmem:[%s1 + $0x18b8] sm:$0xff]
  %v829 = vld [vmem:[%s1 + $0x18c0] sm:$0xff]
  %v830 = vld [vmem:[%s1 + $0x18c8] sm:$0xff]
  %v831 = vld [vmem:[%s1 + $0x18d0] sm:$0xff]
  %v832 = vld [vmem:[%s1 + $0x18d8] sm:$0xff]
  %v833 = vld [vmem:[%s1 + $0x18e0] sm:$0xff]
  %v834 = vld [vmem:[%s1 + $0x18e8] sm:$0xff]
  %v835 = vld [vmem:[%s1 + $0x18f0] sm:$0xff]
  %v836 = vld [vmem:[%s1 + $0x18f8] sm:$0xff]
  %v837 = vld [vmem:[%s1 + $0x1900] sm:$0xff]
  %v838 = vld [vmem:[%s1 + $0x1908] sm:$0xff]
  %v839 = vld [vmem:[%s1 + $0x1910] sm:$0xff]
  %v840 = vld [vmem:[%s1 + $0x1918] sm:$0xff]
  %v841 = vld [vmem:[%s1 + $0x1920] sm:$0xff]
  %v842 = vld [vmem:[%s1 + $0x1928] sm:$0xff]
  %v843 = vld [vmem:[%s1 + $0x1930] sm:$0xff]
  %v844 = vld [vmem:[%s1 + $0x1938] sm:$0xff]
  %v845 = vld [vmem:[%s1 + $0x1940] sm:$0xff]
  %v846 = vld [vmem:[%s1 + $0x1948] sm:$0xff]
  %v847 = vld [vmem:[%s1 + $0x1950] sm:$0xff]
  %v848 = vld [vmem:[%s1 + $0x1958] sm:$0xff]
  %v849 = vld [vmem:[%s1 + $0x1960] sm:$0xff]
  %v850 = vld [vmem:[%s1 + $0x1968] sm:$0xff]
  %v851 = vld [vmem:[%s1 + $0x1970] sm:$0xff]
  %v852 = vld [vmem:[%s1 + $0x1978] sm:$0xff]
  %v853 = vld [vmem:[%s1 + $0x1980] sm:$0xff]
  %v854 = vld [vmem:[%s1 + $0x1988] sm:$0xff]
  %v855 = vld [vmem:[%s1 + $0x1990] sm:$0xff]
  %v856 = vld [vmem:[%s1 + $0x1998] sm:$0xff]
  %v857 = vld [vmem:[%s1 + $0x19a0] sm:$0xff]
  %v858 = vld [vmem:[%s1 + $0x19a8] sm:$0xff]
  %v859 = vld [vmem:[%s1 + $0x19b0] sm:$0xff]
  %v860 = vld [vmem:[%s1 + $0x19b8] sm:$0xff]
  %v861 = vld [vmem:[%s1 + $0x19c0] sm:$0xff]
  %v862 = vld [vmem:[%s1 + $0x19c8] sm:$0xff]
  %v863 = vld [vmem:[%s1 + $0x19d0] sm:$0xff]
  %v864 = vld [vmem:[%s1 + $0x19d8] sm:$0xff]
  %v865 = vld [vmem:[%s1 + $0x19e0] sm:$0xff]
  %v866 = vld [vmem:[%s1 + $0x19e8] sm:$0xff]
  %v867 = vld [vmem:[%s1 + $0x19f0] sm:$0xff]
  %v868 = vld [vmem:[%s1 + $0x19f8] sm:$0xff]
  %v869 = vld [vmem:[%s1 + $0x1a00] sm:$0xff]
  %v870 = vld [vmem:[%s1 + $0x1a08] sm:$0xff]
  %v871 = vld [vmem:[%s1 + $0x1a10] sm:$0xff]
  %v872 = vld [vmem:[%s1 + $0x1a18] sm:$0xff]
  %v873 = vld [vmem:[%s1 + $0x1a20] sm:$0xff]
  %v874 = vld [vmem:[%s1 + $0x1a28] sm:$0xff]
  %v875 = vld [vmem:[%s1 + $0x1a30] sm:$0xff]
  %v876 = vld [vmem:[%s1 + $0x1a38] sm:$0xff]
  %v877 = vld [vmem:[%s1 + $0x1a40] sm:$0xff]
  %v878 = vld [vmem:[%s1 + $0x1a48] sm:$0xff]
  %v879 = vld [vmem:[%s1 + $0x1a50] sm:$0xff]
  %v880 = vld [vmem:[%s1 + $0x1a58] sm:$0xff]
  %v881 = vld [vmem:[%s1 + $0x1a60] sm:$0xff]
  %v882 = vld [vmem:[%s1 + $0x1a68] sm:$0xff]
  %v883 = vld [vmem:[%s1 + $0x1a70] sm:$0xff]
  %v884 = vld [vmem:[%s1 + $0x1a78] sm:$0xff]
  %v885 = vld [vmem:[%s1 + $0x1a80] sm:$0xff]
  %v886 = vld [vmem:[%s1 + $0x1a88] sm:$0xff]
  %v887 = vld [vmem:[%s1 + $0x1a90] sm:$0xff]
  %v888 = vld [vmem:[%s1 + $0x1a98] sm:$0xff]
  %v889 = vld [vmem:[%s1 + $0x1aa0] sm:$0xff]
  %v890 = vld [vmem:[%s1 + $0x1aa8] sm:$0xff]
  %v891 = vld [vmem:[%s1 + $0x1ab0] sm:$0xff]
  %v892 = vld [vmem:[%s1 + $0x1ab8] sm:$0xff]
  %v893 = vld [vmem:[%s1 + $0x1ac0] sm:$0xff]
  %v894 = vld [vmem:[%s1 + $0x1ac8] sm:$0xff]
  %v895 = vld [vmem:[%s1 + $0x1ad0] sm:$0xff]
  %v896 = vld [vmem:[%s1 + $0x1ad8] sm:$0xff]
  %v897 = vld [vmem:[%s1 + $0x1ae0] sm:$0xff]
  %v898 = vld [vmem:[%s1 + $0x1ae8] sm:$0xff]
  %v899 = vld [vmem:[%s1 + $0x1af0] sm:$0xff]
  %v900 = vld [vmem:[%s1 + $0x1af8] sm:$0xff]
  %v901 = vld [vmem:[%s1 + $0x1b00] sm:$0xff]
  %v902 = vld [vmem:[%s1 + $0x1b08] sm:$0xff]
  %v903 = vld [vmem:[%s1 + $0x1b10] sm:$0xff]
  %v904 = vld [vmem:[%s1 + $0x1b18] sm:$0xff]
  %v905 = vld [vmem:[%s1 + $0x1b20] sm:$0xff]
  %v906 = vld [vmem:[%s1 + $0x1b28] sm:$0xff]
  %v907 = vld [vmem:[%s1 + $0x1b30] sm:$0xff]
  %v908 = vld [vmem:[%s1 + $0x1b38] sm:$0xff]
  %v909 = vld [vmem:[%s1 + $0x1b40] sm:$0xff]
  %v910 = vld [vmem:[%s1 + $0x1b48] sm:$0xff]
  %v911 = vld [vmem:[%s1 + $0x1b50] sm:$0xff]
  %v912 = vld [vmem:[%s1 + $0x1b58] sm:$0xff]
  %v913 = vld [vmem:[%s1 + $0x1b60] sm:$0xff]
  %v914 = vld [vmem:[%s1 + $0x1b68] sm:$0xff]
  %v915 = vld [vmem:[%s1 + $0x1b70] sm:$0xff]
  %v916 = vld [vmem:[%s1 + $0x1b78] sm:$0xff]
  %v917 = vld [vmem:[%s1 + $0x1b80] sm:$0xff]
  %v918 = vld [vmem:[%s1 + $0x1b88] sm:$0xff]
  %v919 = vld [vmem:[%s1 + $0x1b90] sm:$0xff]
  %v920 = vld [vmem:[%s1 + $0x1b98] sm:$0xff]
  %v921 = vld [vmem:[%s1 + $0x1ba0] sm:$0xff]
  %v922 = vld [vmem:[%s1 + $0x1ba8] sm:$0xff]
  %v923 = vld [vmem:[%s1 + $0x1bb0] sm:$0xff]
  %v924 = vld [vmem:[%s1 + $0x1bb8] sm:$0xff]
  %v925 = vld [vmem:[%s1 + $0x1bc0] sm:$0xff]
  %v926 = vld [vmem:[%s1 + $0x1bc8] sm:$0xff]
  %v927 = vld [vmem:[%s1 + $0x1bd0] sm:$0xff]
  %v928 = vld [vmem:[%s1 + $0x1bd8] sm:$0xff]
  %v929 = vld [vmem:[%s1 + $0x1be0] sm:$0xff]
  %v930 = vld [vmem:[%s1 + $0x1be8] sm:$0xff]
  %v931 = vld [vmem:[%s1 + $0x1bf0] sm:$0xff]
  %v932 = vld [vmem:[%s1 + $0x1bf8] sm:$0xff]
  %v933 = vld [vmem:[%s1 + $0x1c00] sm:$0xff]
  %v934 = vld [vmem:[%s1 + $0x1c08] sm:$0xff]
  %v935 = vld [vmem:[%s1 + $0x1c10] sm:$0xff]
  %v936 = vld [vmem:[%s1 + $0x1c18] sm:$0xff]
  %v937 = vld [vmem:[%s1 + $0x1c20] sm:$0xff]
  %v938 = vld [vmem:[%s1 + $0x1c28] sm:$0xff]
  %v939 = vld [vmem:[%s1 + $0x1c30] sm:$0xff]
  %v940 = vld [vmem:[%s1 + $0x1c38] sm:$0xff]
  %v941 = vld [vmem:[%s1 + $0x1c40] sm:$0xff]
  %v942 = vld [vmem:[%s1 + $0x1c48] sm:$0xff]
  %v943 = vld [vmem:[%s1 + $0x1c50] sm:$0xff]
  %v944 = vld [vmem:[%s1 + $0x1c58] sm:$0xff]
  %v945 = vld [vmem:[%s1 + $0x1c60] sm:$0xff]
  %v946 = vld [vmem:[%s1 + $0x1c68] sm:$0xff]
  %v947 = vld [vmem:[%s1 + $0x1c70] sm:$0xff]
  %v948 = vld [vmem:[%s1 + $0x1c78] sm:$0xff]
  %v949 = vld [vmem:[%s1 + $0x1c80] sm:$0xff]
  %v950 = vld [vmem:[%s1 + $0x1c88] sm:$0xff]
  %v951 = vld [vmem:[%s1 + $0x1c90] sm:$0xff]
  %v952 = vld [vmem:[%s1 + $0x1c98] sm:$0xff]
  %v953 = vld [vmem:[%s1 + $0x1ca0] sm:$0xff]
  %v954 = vld [vmem:[%s1 + $0x1ca8] sm:$0xff]
  %v955 = vld [vmem:[%s1 + $0x1cb0] sm:$0xff]
  %v956 = vld [vmem:[%s1 + $0x1cb8] sm:$0xff]
  %v957 = vld [vmem:[%s1 + $0x1cc0] sm:$0xff]
  %v958 = vld [vmem:[%s1 + $0x1cc8] sm:$0xff]
  %v959 = vld [vmem:[%s1 + $0x1cd0] sm:$0xff]
  %v960 = vld [vmem:[%s1 + $0x1cd8] sm:$0xff]
  %v961 = vld [vmem:[%s1 + $0x1ce0] sm:$0xff]
  %v962 = vld [vmem:[%s1 + $0x1ce8] sm:$0xff]
  %v963 = vld [vmem:[%s1 + $0x1cf0] sm:$0xff]
  %v964 = vld [vmem:[%s1 + $0x1cf8] sm:$0xff]
  %v965 = vld [vmem:[%s1 + $0x1d00] sm:$0xff]
  %v966 = vld [vmem:[%s1 + $0x1d08] sm:$0xff]
  %v967 = vld [vmem:[%s1 + $0x1d10] sm:$0xff]
  %v968 = vld [vmem:[%s1 + $0x1d18] sm:$0xff]
  %v969 = vld [vmem:[%s1 + $0x1d20] sm:$0xff]
  %v970 = vld [vmem:[%s1 + $0x1d28] sm:$0xff]
  %v971 = vld [vmem:[%s1 + $0x1d30] sm:$0xff]
  %v972 = vld [vmem:[%s1 + $0x1d38] sm:$0xff]
  %v973 = vld [vmem:[%s1 + $0x1d40] sm:$0xff]
  %v974 = vld [vmem:[%s1 + $0x1d48] sm:$0xff]
  %v975 = vld [vmem:[%s1 + $0x1d50] sm:$0xff]
  %v976 = vld [vmem:[%s1 + $0x1d58] sm:$0xff]
  %v977 = vld [vmem:[%s1 + $0x1d60] sm:$0xff]
  %v978 = vld [vmem:[%s1 + $0x1d68] sm:$0xff]
  %v979 = vld [vmem:[%s1 + $0x1d70] sm:$0xff]
  %v980 = vld [vmem:[%s1 + $0x1d78] sm:$0xff]
  %v981 = vld [vmem:[%s1 + $0x1d80] sm:$0xff]
  %v982 = vld [vmem:[%s1 + $0x1d88] sm:$0xff]
  %v983 = vld [vmem:[%s1 + $0x1d90] sm:$0xff]
  %v984 = vld [vmem:[%s1 + $0x1d98] sm:$0xff]
  %v985 = vld [vmem:[%s1 + $0x1da0] sm:$0xff]
  %v986 = vld [vmem:[%s1 + $0x1da8] sm:$0xff]
  %v987 = vld [vmem:[%s1 + $0x1db0] sm:$0xff]
  %v988 = vld [vmem:[%s1 + $0x1db8] sm:$0xff]
  %v989 = vld [vmem:[%s1 + $0x1dc0] sm:$0xff]
  %v990 = vld [vmem:[%s1 + $0x1dc8] sm:$0xff]
  %v991 = vld [vmem:[%s1 + $0x1dd0] sm:$0xff]
  %v992 = vld [vmem:[%s1 + $0x1dd8] sm:$0xff]
  %v993 = vld [vmem:[%s1 + $0x1de0] sm:$0xff]
  %v994 = vld [vmem:[%s1 + $0x1de8] sm:$0xff]
  %v995 = vld [vmem:[%s1 + $0x1df0] sm:$0xff]
  %v996 = vld [vmem:[%s1 + $0x1df8] sm:$0xff]
  %v997 = vld [vmem:[%s1 + $0x1e00] sm:$0xff]
  %v998 = vld [vmem:[%s1 + $0x1e08] sm:$0xff]
  %v999 = vld [vmem:[%s1 + $0x1e10] sm:$0xff]
  %v1000 = vld [vmem:[%s1 + $0x1e18] sm:$0xff]
  %v1001 = vld [vmem:[%s1 + $0x1e20] sm:$0xff]
  %v1002 = vld [vmem:[%s1 + $0x1e28] sm:$0xff]
  %v1003 = vld [vmem:[%s1 + $0x1e30] sm:$0xff]
  %v1004 = vld [vmem:[%s1 + $0x1e38] sm:$0xff]
  %v1005 = vld [vmem:[%s1 + $0x1e40] sm:$0xff]
  %v1006 = vld [vmem:[%s1 + $0x1e48] sm:$0xff]
  %v1007 = vld [vmem:[%s1 + $0x1e50] sm:$0xff]
  %v1008 = vld [vmem:[%s1 + $0x1e58] sm:$0xff]
  %v1009 = vld [vmem:[%s1 + $0x1e60] sm:$0xff]
  %v1010 = vld [vmem:[%s1 + $0x1e68] sm:$0xff]
  %v1011 = vld [vmem:[%s1 + $0x1e70] sm:$0xff]
  %v1012 = vld [vmem:[%s1 + $0x1e78] sm:$0xff]
  %v1013 = vld [vmem:[%s1 + $0x1e80] sm:$0xff]
  %v1014 = vld [vmem:[%s1 + $0x1e88] sm:$0xff]
  %v1015 = vld [vmem:[%s1 + $0x1e90] sm:$0xff]
  %v1016 = vld [vmem:[%s1 + $0x1e98] sm:$0xff]
  %v1017 = vld [vmem:[%s1 + $0x1ea0] sm:$0xff]
  %v1018 = vld [vmem:[%s1 + $0x1ea8] sm:$0xff]
  %v1019 = vld [vmem:[%s1 + $0x1eb0] sm:$0xff]
  %v1020 = vld [vmem:[%s1 + $0x1eb8] sm:$0xff]
  %v1021 = vld [vmem:[%s1 + $0x1ec0] sm:$0xff]
  %v1022 = vld [vmem:[%s1 + $0x1ec8] sm:$0xff]
  %v1023 = vld [vmem:[%s1 + $0x1ed0] sm:$0xff]
  %v1024 = vld [vmem:[%s1 + $0x1ed8] sm:$0xff]
  %v1025 = vld [vmem:[%s1 + $0x1ee0] sm:$0xff]
  %v1026 = vld [vmem:[%s1 + $0x1ee8] sm:$0xff]
  %v1027 = vld [vmem:[%s1 + $0x1ef0] sm:$0xff]
  %v1028 = vld [vmem:[%s1 + $0x1ef8] sm:$0xff]
  %v1029 = vld [vmem:[%s2] sm:$0xf]
  %v1031 = vlaneseq
  %v1032 = vshrl.u32 %v1031, 7
  %v1033 = vsub.s32 0, %v1032
  %v1034 = vrot.slane %v1029, %v1033
  %v1035 = vlaneseq
  %v1036 = vshrl.u32 %v1035, 7
  %v1037 = vsub.s32 1, %v1036
  %v1038 = vrot.slane %v1029, %v1037
  %v1039 = vlaneseq
  %v1040 = vshrl.u32 %v1039, 7
  %v1041 = vsub.s32 2, %v1040
  %v1042 = vrot.slane %v1029, %v1041
  %v1043 = vlaneseq
  %v1044 = vshrl.u32 %v1043, 7
  %v1045 = vsub.s32 3, %v1044
  %v1046 = vrot.slane %v1029, %v1045
  %v1067 = vunpack.c.l.b16 %v21
  %v1068 = vunpack.c.h.b16 %v21
  %v1069 = vunpack.c.l.b16 %v22
  %v1070 = vunpack.c.h.b16 %v22
  %v1071 = vunpack.c.l.b16 %v23
  %v1072 = vunpack.c.h.b16 %v23
  %v1073 = vunpack.c.l.b16 %v24
  %v1074 = vunpack.c.h.b16 %v24
  %v1075 = vunpack.c.l.b16 %v25
  %v1076 = vunpack.c.h.b16 %v25
  %v1077 = vunpack.c.l.b16 %v26
  %v1078 = vunpack.c.h.b16 %v26
  %v1079 = vunpack.c.l.b16 %v27
  %v1080 = vunpack.c.h.b16 %v27
  %v1081 = vunpack.c.l.b16 %v28
  %v1082 = vunpack.c.h.b16 %v28
  %v1083 = vunpack.c.l.b16 %v29
  %v1084 = vunpack.c.h.b16 %v29
  %v1085 = vunpack.c.l.b16 %v30
  %v1086 = vunpack.c.h.b16 %v30
  %v1087 = vunpack.c.l.b16 %v31
  %v1088 = vunpack.c.h.b16 %v31
  %v1089 = vunpack.c.l.b16 %v32
  %v1090 = vunpack.c.h.b16 %v32
  %v1091 = vunpack.c.l.b16 %v33
  %v1092 = vunpack.c.h.b16 %v33
  %v1093 = vunpack.c.l.b16 %v34
  %v1094 = vunpack.c.h.b16 %v34
  %v1095 = vunpack.c.l.b16 %v35
  %v1096 = vunpack.c.h.b16 %v35
  %v1097 = vunpack.c.l.b16 %v36
  %v1098 = vpack.c.b16 %v1067, %v1067
  %v1099 = vpack.c.b16 %v1068, %v1068
  %v1100 = vpack.c.b16 %v1069, %v1069
  %v1101 = vpack.c.b16 %v1070, %v1070
  %v1102 = vpack.c.b16 %v1071, %v1071
  %v1103 = vpack.c.b16 %v1072, %v1072
  %v1104 = vpack.c.b16 %v1073, %v1073
  %v1105 = vpack.c.b16 %v1074, %v1074
  %v1106 = vpack.c.b16 %v1075, %v1075
  %v1107 = vpack.c.b16 %v1076, %v1076
  %v1108 = vpack.c.b16 %v1077, %v1077
  %v1109 = vpack.c.b16 %v1078, %v1078
  %v1110 = vpack.c.b16 %v1079, %v1079
  %v1111 = vpack.c.b16 %v1080, %v1080
  %v1112 = vpack.c.b16 %v1081, %v1081
  %v1113 = vpack.c.b16 %v1082, %v1082
  %v1114 = vpack.c.b16 %v1083, %v1083
  %v1115 = vpack.c.b16 %v1084, %v1084
  %v1116 = vpack.c.b16 %v1085, %v1085
  %v1117 = vpack.c.b16 %v1086, %v1086
  %v1118 = vpack.c.b16 %v1087, %v1087
  %v1119 = vpack.c.b16 %v1088, %v1088
  %v1120 = vpack.c.b16 %v1089, %v1089
  %v1121 = vpack.c.b16 %v1090, %v1090
  %v1122 = vpack.c.b16 %v1091, %v1091
  %v1123 = vpack.c.b16 %v1092, %v1092
  %v1124 = vpack.c.b16 %v1093, %v1093
  %v1125 = vpack.c.b16 %v1094, %v1094
  %v1126 = vpack.c.b16 %v1095, %v1095
  %v1127 = vpack.c.b16 %v1096, %v1096
  %v1128 = vpack.c.b16 %v1097, %v1097
  %v2152 = vunpack.c.l.b16 %v37
  %v2153 = vunpack.c.h.b16 %v37
  %v2154 = vunpack.c.l.b16 %v38
  %v2155 = vunpack.c.h.b16 %v38
  %v2156 = vunpack.c.l.b16 %v39
  %v2157 = vunpack.c.h.b16 %v39
  %v2158 = vunpack.c.l.b16 %v40
  %v2159 = vunpack.c.h.b16 %v40
  %v2160 = vunpack.c.l.b16 %v41
  %v2161 = vunpack.c.h.b16 %v41
  %v2162 = vunpack.c.l.b16 %v42
  %v2163 = vunpack.c.h.b16 %v42
  %v2164 = vunpack.c.l.b16 %v43
  %v2165 = vunpack.c.h.b16 %v43
  %v2166 = vunpack.c.l.b16 %v44
  %v2167 = vunpack.c.h.b16 %v44
  %v2168 = vunpack.c.l.b16 %v45
  %v2169 = vunpack.c.h.b16 %v45
  %v2170 = vunpack.c.l.b16 %v46
  %v2171 = vunpack.c.h.b16 %v46
  %v2172 = vunpack.c.l.b16 %v47
  %v2173 = vunpack.c.h.b16 %v47
  %v2174 = vunpack.c.l.b16 %v48
  %v2175 = vunpack.c.h.b16 %v48
  %v2176 = vunpack.c.l.b16 %v49
  %v2177 = vunpack.c.h.b16 %v49
  %v2178 = vunpack.c.l.b16 %v50
  %v2179 = vunpack.c.h.b16 %v50
  %v2180 = vunpack.c.l.b16 %v51
  %v2181 = vunpack.c.h.b16 %v51
  %v2182 = vunpack.c.l.b16 %v52
  %v2183 = vunpack.c.h.b16 %v52
  %v2184 = vunpack.c.l.b16 %v53
  %v2185 = vunpack.c.h.b16 %v53
  %v2186 = vunpack.c.l.b16 %v54
  %v2187 = vunpack.c.h.b16 %v54
  %v2188 = vunpack.c.l.b16 %v55
  %v2189 = vunpack.c.h.b16 %v55
  %v2190 = vunpack.c.l.b16 %v56
  %v2191 = vunpack.c.h.b16 %v56
  %v2192 = vunpack.c.l.b16 %v57
  %v2193 = vunpack.c.h.b16 %v57
  %v2194 = vunpack.c.l.b16 %v58
  %v2195 = vunpack.c.h.b16 %v58
  %v2196 = vunpack.c.l.b16 %v59
  %v2197 = vunpack.c.h.b16 %v59
  %v2198 = vunpack.c.l.b16 %v60
  %v2199 = vunpack.c.h.b16 %v60
  %v2200 = vunpack.c.l.b16 %v61
  %v2201 = vunpack.c.h.b16 %v61
  %v2202 = vunpack.c.l.b16 %v62
  %v2203 = vunpack.c.h.b16 %v62
  %v2204 = vunpack.c.l.b16 %v63
  %v2205 = vunpack.c.h.b16 %v63
  %v2206 = vunpack.c.l.b16 %v64
  %v2207 = vunpack.c.h.b16 %v64
  %v2208 = vunpack.c.l.b16 %v65
  %v2209 = vunpack.c.h.b16 %v65
  %v2210 = vunpack.c.l.b16 %v66
  %v2211 = vunpack.c.h.b16 %v66
  %v2212 = vunpack.c.l.b16 %v67
  %v2213 = vunpack.c.h.b16 %v67
  %v2214 = vunpack.c.l.b16 %v68
  %v2215 = vunpack.c.h.b16 %v68
  %v2216 = vunpack.c.l.b16 %v69
  %v2217 = vunpack.c.h.b16 %v69
  %v2218 = vunpack.c.l.b16 %v70
  %v2219 = vunpack.c.h.b16 %v70
  %v2220 = vunpack.c.l.b16 %v71
  %v2221 = vunpack.c.h.b16 %v71
  %v2222 = vunpack.c.l.b16 %v72
  %v2223 = vunpack.c.h.b16 %v72
  %v2224 = vunpack.c.l.b16 %v73
  %v2225 = vunpack.c.h.b16 %v73
  %v2226 = vunpack.c.l.b16 %v74
  %v2227 = vunpack.c.h.b16 %v74
  %v2228 = vunpack.c.l.b16 %v75
  %v2229 = vunpack.c.h.b16 %v75
  %v2230 = vunpack.c.l.b16 %v76
  %v2231 = vunpack.c.h.b16 %v76
  %v2232 = vunpack.c.l.b16 %v77
  %v2233 = vunpack.c.h.b16 %v77
  %v2234 = vunpack.c.l.b16 %v78
  %v2235 = vunpack.c.h.b16 %v78
  %v2236 = vunpack.c.l.b16 %v79
  %v2237 = vunpack.c.h.b16 %v79
  %v2238 = vunpack.c.l.b16 %v80
  %v2239 = vunpack.c.h.b16 %v80
  %v2240 = vunpack.c.l.b16 %v81
  %v2241 = vunpack.c.h.b16 %v81
  %v2242 = vunpack.c.l.b16 %v82
  %v2243 = vunpack.c.h.b16 %v82
  %v2244 = vunpack.c.l.b16 %v83
  %v2245 = vunpack.c.h.b16 %v83
  %v2246 = vunpack.c.l.b16 %v84
  %v2247 = vunpack.c.h.b16 %v84
  %v2248 = vunpack.c.l.b16 %v85
  %v2249 = vunpack.c.h.b16 %v85
  %v2250 = vunpack.c.l.b16 %v86
  %v2251 = vunpack.c.h.b16 %v86
  %v2252 = vunpack.c.l.b16 %v87
  %v2253 = vunpack.c.h.b16 %v87
  %v2254 = vunpack.c.l.b16 %v88
  %v2255 = vunpack.c.h.b16 %v88
  %v2256 = vunpack.c.l.b16 %v89
  %v2257 = vunpack.c.h.b16 %v89
  %v2258 = vunpack.c.l.b16 %v90
  %v2259 = vunpack.c.h.b16 %v90
  %v2260 = vunpack.c.l.b16 %v91
  %v2261 = vunpack.c.h.b16 %v91
  %v2262 = vunpack.c.l.b16 %v92
  %v2263 = vunpack.c.h.b16 %v92
  %v2264 = vunpack.c.l.b16 %v93
  %v2265 = vunpack.c.h.b16 %v93
  %v2266 = vunpack.c.l.b16 %v94
  %v2267 = vunpack.c.h.b16 %v94
  %v2268 = vunpack.c.l.b16 %v95
  %v2269 = vunpack.c.h.b16 %v95
  %v2270 = vunpack.c.l.b16 %v96
  %v2271 = vunpack.c.h.b16 %v96
  %v2272 = vunpack.c.l.b16 %v97
  %v2273 = vunpack.c.h.b16 %v97
  %v2274 = vunpack.c.l.b16 %v98
  %v2275 = vunpack.c.h.b16 %v98
  %v2276 = vunpack.c.l.b16 %v99
  %v2277 = vunpack.c.h.b16 %v99
  %v2278 = vunpack.c.l.b16 %v100
  %v2279 = vunpack.c.h.b16 %v100
  %v2280 = vunpack.c.l.b16 %v101
  %v2281 = vunpack.c.h.b16 %v101
  %v2282 = vunpack.c.l.b16 %v102
  %v2283 = vunpack.c.h.b16 %v102
  %v2284 = vunpack.c.l.b16 %v103
  %v2285 = vunpack.c.h.b16 %v103
  %v2286 = vunpack.c.l.b16 %v104
  %v2287 = vunpack.c.h.b16 %v104
  %v2288 = vunpack.c.l.b16 %v105
  %v2289 = vunpack.c.h.b16 %v105
  %v2290 = vunpack.c.l.b16 %v106
  %v2291 = vunpack.c.h.b16 %v106
  %v2292 = vunpack.c.l.b16 %v107
  %v2293 = vunpack.c.h.b16 %v107
  %v2294 = vunpack.c.l.b16 %v108
  %v2295 = vunpack.c.h.b16 %v108
  %v2296 = vunpack.c.l.b16 %v109
  %v2297 = vunpack.c.h.b16 %v109
  %v2298 = vunpack.c.l.b16 %v110
  %v2299 = vunpack.c.h.b16 %v110
  %v2300 = vunpack.c.l.b16 %v111
  %v2301 = vunpack.c.h.b16 %v111
  %v2302 = vunpack.c.l.b16 %v112
  %v2303 = vunpack.c.h.b16 %v112
  %v2304 = vunpack.c.l.b16 %v113
  %v2305 = vunpack.c.h.b16 %v113
  %v2306 = vunpack.c.l.b16 %v114
  %v2307 = vunpack.c.h.b16 %v114
  %v2308 = vunpack.c.l.b16 %v115
  %v2309 = vunpack.c.h.b16 %v115
  %v2310 = vunpack.c.l.b16 %v116
  %v2311 = vunpack.c.h.b16 %v116
  %v2312 = vunpack.c.l.b16 %v117
  %v2313 = vunpack.c.h.b16 %v117
  %v2314 = vunpack.c.l.b16 %v118
  %v2315 = vunpack.c.h.b16 %v118
  %v2316 = vunpack.c.l.b16 %v119
  %v2317 = vunpack.c.h.b16 %v119
  %v2318 = vunpack.c.l.b16 %v120
  %v2319 = vunpack.c.h.b16 %v120
  %v2320 = vunpack.c.l.b16 %v121
  %v2321 = vunpack.c.h.b16 %v121
  %v2322 = vunpack.c.l.b16 %v122
  %v2323 = vunpack.c.h.b16 %v122
  %v2324 = vunpack.c.l.b16 %v123
  %v2325 = vunpack.c.h.b16 %v123
  %v2326 = vunpack.c.l.b16 %v124
  %v2327 = vunpack.c.h.b16 %v124
  %v2328 = vunpack.c.l.b16 %v125
  %v2329 = vunpack.c.h.b16 %v125
  %v2330 = vunpack.c.l.b16 %v126
  %v2331 = vunpack.c.h.b16 %v126
  %v2332 = vunpack.c.l.b16 %v127
  %v2333 = vunpack.c.h.b16 %v127
  %v2334 = vunpack.c.l.b16 %v128
  %v2335 = vunpack.c.h.b16 %v128
  %v2336 = vunpack.c.l.b16 %v129
  %v2337 = vunpack.c.h.b16 %v129
  %v2338 = vunpack.c.l.b16 %v130
  %v2339 = vunpack.c.h.b16 %v130
  %v2340 = vunpack.c.l.b16 %v131
  %v2341 = vunpack.c.h.b16 %v131
  %v2342 = vunpack.c.l.b16 %v132
  %v2343 = vunpack.c.h.b16 %v132
  %v2344 = vunpack.c.l.b16 %v133
  %v2345 = vunpack.c.h.b16 %v133
  %v2346 = vunpack.c.l.b16 %v134
  %v2347 = vunpack.c.h.b16 %v134
  %v2348 = vunpack.c.l.b16 %v135
  %v2349 = vunpack.c.h.b16 %v135
  %v2350 = vunpack.c.l.b16 %v136
  %v2351 = vunpack.c.h.b16 %v136
  %v2352 = vunpack.c.l.b16 %v137
  %v2353 = vunpack.c.h.b16 %v137
  %v2354 = vunpack.c.l.b16 %v138
  %v2355 = vunpack.c.h.b16 %v138
  %v2356 = vunpack.c.l.b16 %v139
  %v2357 = vunpack.c.h.b16 %v139
  %v2358 = vunpack.c.l.b16 %v140
  %v2359 = vunpack.c.h.b16 %v140
  %v2360 = vunpack.c.l.b16 %v141
  %v2361 = vunpack.c.h.b16 %v141
  %v2362 = vunpack.c.l.b16 %v142
  %v2363 = vunpack.c.h.b16 %v142
  %v2364 = vunpack.c.l.b16 %v143
  %v2365 = vunpack.c.h.b16 %v143
  %v2366 = vunpack.c.l.b16 %v144
  %v2367 = vunpack.c.h.b16 %v144
  %v2368 = vunpack.c.l.b16 %v145
  %v2369 = vunpack.c.h.b16 %v145
  %v2370 = vunpack.c.l.b16 %v146
  %v2371 = vunpack.c.h.b16 %v146
  %v2372 = vunpack.c.l.b16 %v147
  %v2373 = vunpack.c.h.b16 %v147
  %v2374 = vunpack.c.l.b16 %v148
  %v2375 = vunpack.c.h.b16 %v148
  %v2376 = vunpack.c.l.b16 %v149
  %v2377 = vunpack.c.h.b16 %v149
  %v2378 = vunpack.c.l.b16 %v150
  %v2379 = vunpack.c.h.b16 %v150
  %v2380 = vunpack.c.l.b16 %v151
  %v2381 = vunpack.c.h.b16 %v151
  %v2382 = vunpack.c.l.b16 %v152
  %v2383 = vunpack.c.h.b16 %v152
  %v2384 = vunpack.c.l.b16 %v153
  %v2385 = vunpack.c.h.b16 %v153
  %v2386 = vunpack.c.l.b16 %v154
  %v2387 = vunpack.c.h.b16 %v154
  %v2388 = vunpack.c.l.b16 %v155
  %v2389 = vunpack.c.h.b16 %v155
  %v2390 = vunpack.c.l.b16 %v156
  %v2391 = vunpack.c.h.b16 %v156
  %v2392 = vunpack.c.l.b16 %v157
  %v2393 = vunpack.c.h.b16 %v157
  %v2394 = vunpack.c.l.b16 %v158
  %v2395 = vunpack.c.h.b16 %v158
  %v2396 = vunpack.c.l.b16 %v159
  %v2397 = vunpack.c.h.b16 %v159
  %v2398 = vunpack.c.l.b16 %v160
  %v2399 = vunpack.c.h.b16 %v160
  %v2400 = vunpack.c.l.b16 %v161
  %v2401 = vunpack.c.h.b16 %v161
  %v2402 = vunpack.c.l.b16 %v162
  %v2403 = vunpack.c.h.b16 %v162
  %v2404 = vunpack.c.l.b16 %v163
  %v2405 = vunpack.c.h.b16 %v163
  %v2406 = vunpack.c.l.b16 %v164
  %v2407 = vunpack.c.h.b16 %v164
  %v2408 = vunpack.c.l.b16 %v165
  %v2409 = vunpack.c.h.b16 %v165
  %v2410 = vunpack.c.l.b16 %v166
  %v2411 = vunpack.c.h.b16 %v166
  %v2412 = vunpack.c.l.b16 %v167
  %v2413 = vunpack.c.h.b16 %v167
  %v2414 = vunpack.c.l.b16 %v168
  %v2415 = vunpack.c.h.b16 %v168
  %v2416 = vunpack.c.l.b16 %v169
  %v2417 = vunpack.c.h.b16 %v169
  %v2418 = vunpack.c.l.b16 %v170
  %v2419 = vunpack.c.h.b16 %v170
  %v2420 = vunpack.c.l.b16 %v171
  %v2421 = vunpack.c.h.b16 %v171
  %v2422 = vunpack.c.l.b16 %v172
  %v2423 = vunpack.c.h.b16 %v172
  %v2424 = vunpack.c.l.b16 %v173
  %v2425 = vunpack.c.h.b16 %v173
  %v2426 = vunpack.c.l.b16 %v174
  %v2427 = vunpack.c.h.b16 %v174
  %v2428 = vunpack.c.l.b16 %v175
  %v2429 = vunpack.c.h.b16 %v175
  %v2430 = vunpack.c.l.b16 %v176
  %v2431 = vunpack.c.h.b16 %v176
  %v2432 = vunpack.c.l.b16 %v177
  %v2433 = vunpack.c.h.b16 %v177
  %v2434 = vunpack.c.l.b16 %v178
  %v2435 = vunpack.c.h.b16 %v178
  %v2436 = vunpack.c.l.b16 %v179
  %v2437 = vunpack.c.h.b16 %v179
  %v2438 = vunpack.c.l.b16 %v180
  %v2439 = vunpack.c.h.b16 %v180
  %v2440 = vunpack.c.l.b16 %v181
  %v2441 = vunpack.c.h.b16 %v181
  %v2442 = vunpack.c.l.b16 %v182
  %v2443 = vunpack.c.h.b16 %v182
  %v2444 = vunpack.c.l.b16 %v183
  %v2445 = vunpack.c.h.b16 %v183
  %v2446 = vunpack.c.l.b16 %v184
  %v2447 = vunpack.c.h.b16 %v184
  %v2448 = vunpack.c.l.b16 %v185
  %v2449 = vunpack.c.h.b16 %v185
  %v2450 = vunpack.c.l.b16 %v186
  %v2451 = vunpack.c.h.b16 %v186
  %v2452 = vunpack.c.l.b16 %v187
  %v2453 = vunpack.c.h.b16 %v187
  %v2454 = vunpack.c.l.b16 %v188
  %v2455 = vunpack.c.h.b16 %v188
  %v2456 = vunpack.c.l.b16 %v189
  %v2457 = vunpack.c.h.b16 %v189
  %v2458 = vunpack.c.l.b16 %v190
  %v2459 = vunpack.c.h.b16 %v190
  %v2460 = vunpack.c.l.b16 %v191
  %v2461 = vunpack.c.h.b16 %v191
  %v2462 = vunpack.c.l.b16 %v192
  %v2463 = vunpack.c.h.b16 %v192
  %v2464 = vunpack.c.l.b16 %v193
  %v2465 = vunpack.c.h.b16 %v193
  %v2466 = vunpack.c.l.b16 %v194
  %v2467 = vunpack.c.h.b16 %v194
  %v2468 = vunpack.c.l.b16 %v195
  %v2469 = vunpack.c.h.b16 %v195
  %v2470 = vunpack.c.l.b16 %v196
  %v2471 = vunpack.c.h.b16 %v196
  %v2472 = vunpack.c.l.b16 %v197
  %v2473 = vunpack.c.h.b16 %v197
  %v2474 = vunpack.c.l.b16 %v198
  %v2475 = vunpack.c.h.b16 %v198
  %v2476 = vunpack.c.l.b16 %v199
  %v2477 = vunpack.c.h.b16 %v199
  %v2478 = vunpack.c.l.b16 %v200
  %v2479 = vunpack.c.h.b16 %v200
  %v2480 = vunpack.c.l.b16 %v201
  %v2481 = vunpack.c.h.b16 %v201
  %v2482 = vunpack.c.l.b16 %v202
  %v2483 = vunpack.c.h.b16 %v202
  %v2484 = vunpack.c.l.b16 %v203
  %v2485 = vunpack.c.h.b16 %v203
  %v2486 = vunpack.c.l.b16 %v204
  %v2487 = vunpack.c.h.b16 %v204
  %v2488 = vunpack.c.l.b16 %v205
  %v2489 = vunpack.c.h.b16 %v205
  %v2490 = vunpack.c.l.b16 %v206
  %v2491 = vunpack.c.h.b16 %v206
  %v2492 = vunpack.c.l.b16 %v207
  %v2493 = vunpack.c.h.b16 %v207
  %v2494 = vunpack.c.l.b16 %v208
  %v2495 = vunpack.c.h.b16 %v208
  %v2496 = vunpack.c.l.b16 %v209
  %v2497 = vunpack.c.h.b16 %v209
  %v2498 = vunpack.c.l.b16 %v210
  %v2499 = vunpack.c.h.b16 %v210
  %v2500 = vunpack.c.l.b16 %v211
  %v2501 = vunpack.c.h.b16 %v211
  %v2502 = vunpack.c.l.b16 %v212
  %v2503 = vunpack.c.h.b16 %v212
  %v2504 = vunpack.c.l.b16 %v213
  %v2505 = vunpack.c.h.b16 %v213
  %v2506 = vunpack.c.l.b16 %v214
  %v2507 = vunpack.c.h.b16 %v214
  %v2508 = vunpack.c.l.b16 %v215
  %v2509 = vunpack.c.h.b16 %v215
  %v2510 = vunpack.c.l.b16 %v216
  %v2511 = vunpack.c.h.b16 %v216
  %v2512 = vunpack.c.l.b16 %v217
  %v2513 = vunpack.c.h.b16 %v217
  %v2514 = vunpack.c.l.b16 %v218
  %v2515 = vunpack.c.h.b16 %v218
  %v2516 = vunpack.c.l.b16 %v219
  %v2517 = vunpack.c.h.b16 %v219
  %v2518 = vunpack.c.l.b16 %v220
  %v2519 = vunpack.c.h.b16 %v220
  %v2520 = vunpack.c.l.b16 %v221
  %v2521 = vunpack.c.h.b16 %v221
  %v2522 = vunpack.c.l.b16 %v222
  %v2523 = vunpack.c.h.b16 %v222
  %v2524 = vunpack.c.l.b16 %v223
  %v2525 = vunpack.c.h.b16 %v223
  %v2526 = vunpack.c.l.b16 %v224
  %v2527 = vunpack.c.h.b16 %v224
  %v2528 = vunpack.c.l.b16 %v225
  %v2529 = vunpack.c.h.b16 %v225
  %v2530 = vunpack.c.l.b16 %v226
  %v2531 = vunpack.c.h.b16 %v226
  %v2532 = vunpack.c.l.b16 %v227
  %v2533 = vunpack.c.h.b16 %v227
  %v2534 = vunpack.c.l.b16 %v228
  %v2535 = vunpack.c.h.b16 %v228
  %v2536 = vunpack.c.l.b16 %v229
  %v2537 = vunpack.c.h.b16 %v229
  %v2538 = vunpack.c.l.b16 %v230
  %v2539 = vunpack.c.h.b16 %v230
  %v2540 = vunpack.c.l.b16 %v231
  %v2541 = vunpack.c.h.b16 %v231
  %v2542 = vunpack.c.l.b16 %v232
  %v2543 = vunpack.c.h.b16 %v232
  %v2544 = vunpack.c.l.b16 %v233
  %v2545 = vunpack.c.h.b16 %v233
  %v2546 = vunpack.c.l.b16 %v234
  %v2547 = vunpack.c.h.b16 %v234
  %v2548 = vunpack.c.l.b16 %v235
  %v2549 = vunpack.c.h.b16 %v235
  %v2550 = vunpack.c.l.b16 %v236
  %v2551 = vunpack.c.h.b16 %v236
  %v2552 = vunpack.c.l.b16 %v237
  %v2553 = vunpack.c.h.b16 %v237
  %v2554 = vunpack.c.l.b16 %v238
  %v2555 = vunpack.c.h.b16 %v238
  %v2556 = vunpack.c.l.b16 %v239
  %v2557 = vunpack.c.h.b16 %v239
  %v2558 = vunpack.c.l.b16 %v240
  %v2559 = vunpack.c.h.b16 %v240
  %v2560 = vunpack.c.l.b16 %v241
  %v2561 = vunpack.c.h.b16 %v241
  %v2562 = vunpack.c.l.b16 %v242
  %v2563 = vunpack.c.h.b16 %v242
  %v2564 = vunpack.c.l.b16 %v243
  %v2565 = vunpack.c.h.b16 %v243
  %v2566 = vunpack.c.l.b16 %v244
  %v2567 = vunpack.c.h.b16 %v244
  %v2568 = vunpack.c.l.b16 %v245
  %v2569 = vunpack.c.h.b16 %v245
  %v2570 = vunpack.c.l.b16 %v246
  %v2571 = vunpack.c.h.b16 %v246
  %v2572 = vunpack.c.l.b16 %v247
  %v2573 = vunpack.c.h.b16 %v247
  %v2574 = vunpack.c.l.b16 %v248
  %v2575 = vunpack.c.h.b16 %v248
  %v2576 = vunpack.c.l.b16 %v249
  %v2577 = vunpack.c.h.b16 %v249
  %v2578 = vunpack.c.l.b16 %v250
  %v2579 = vunpack.c.h.b16 %v250
  %v2580 = vunpack.c.l.b16 %v251
  %v2581 = vunpack.c.h.b16 %v251
  %v2582 = vunpack.c.l.b16 %v252
  %v2583 = vunpack.c.h.b16 %v252
  %v2584 = vunpack.c.l.b16 %v253
  %v2585 = vunpack.c.h.b16 %v253
  %v2586 = vunpack.c.l.b16 %v254
  %v2587 = vunpack.c.h.b16 %v254
  %v2588 = vunpack.c.l.b16 %v255
  %v2589 = vunpack.c.h.b16 %v255
  %v2590 = vunpack.c.l.b16 %v256
  %v2591 = vunpack.c.h.b16 %v256
  %v2592 = vunpack.c.l.b16 %v257
  %v2593 = vunpack.c.h.b16 %v257
  %v2594 = vunpack.c.l.b16 %v258
  %v2595 = vunpack.c.h.b16 %v258
  %v2596 = vunpack.c.l.b16 %v259
  %v2597 = vunpack.c.h.b16 %v259
  %v2598 = vunpack.c.l.b16 %v260
  %v2599 = vunpack.c.h.b16 %v260
  %v2600 = vunpack.c.l.b16 %v261
  %v2601 = vunpack.c.h.b16 %v261
  %v2602 = vunpack.c.l.b16 %v262
  %v2603 = vunpack.c.h.b16 %v262
  %v2604 = vunpack.c.l.b16 %v263
  %v2605 = vunpack.c.h.b16 %v263
  %v2606 = vunpack.c.l.b16 %v264
  %v2607 = vunpack.c.h.b16 %v264
  %v2608 = vunpack.c.l.b16 %v265
  %v2609 = vunpack.c.h.b16 %v265
  %v2610 = vunpack.c.l.b16 %v266
  %v2611 = vunpack.c.h.b16 %v266
  %v2612 = vunpack.c.l.b16 %v267
  %v2613 = vunpack.c.h.b16 %v267
  %v2614 = vunpack.c.l.b16 %v268
  %v2615 = vunpack.c.h.b16 %v268
  %v2616 = vunpack.c.l.b16 %v269
  %v2617 = vunpack.c.h.b16 %v269
  %v2618 = vunpack.c.l.b16 %v270
  %v2619 = vunpack.c.h.b16 %v270
  %v2620 = vunpack.c.l.b16 %v271
  %v2621 = vunpack.c.h.b16 %v271
  %v2622 = vunpack.c.l.b16 %v272
  %v2623 = vunpack.c.h.b16 %v272
  %v2624 = vunpack.c.l.b16 %v273
  %v2625 = vunpack.c.h.b16 %v273
  %v2626 = vunpack.c.l.b16 %v274
  %v2627 = vunpack.c.h.b16 %v274
  %v2628 = vunpack.c.l.b16 %v275
  %v2629 = vunpack.c.h.b16 %v275
  %v2630 = vunpack.c.l.b16 %v276
  %v2631 = vunpack.c.h.b16 %v276
  %v2632 = vunpack.c.l.b16 %v277
  %v2633 = vunpack.c.h.b16 %v277
  %v2634 = vunpack.c.l.b16 %v278
  %v2635 = vunpack.c.h.b16 %v278
  %v2636 = vunpack.c.l.b16 %v279
  %v2637 = vunpack.c.h.b16 %v279
  %v2638 = vunpack.c.l.b16 %v280
  %v2639 = vunpack.c.h.b16 %v280
  %v2640 = vunpack.c.l.b16 %v281
  %v2641 = vunpack.c.h.b16 %v281
  %v2642 = vunpack.c.l.b16 %v282
  %v2643 = vunpack.c.h.b16 %v282
  %v2644 = vunpack.c.l.b16 %v283
  %v2645 = vunpack.c.h.b16 %v283
  %v2646 = vunpack.c.l.b16 %v284
  %v2647 = vunpack.c.h.b16 %v284
  %v2648 = vunpack.c.l.b16 %v285
  %v2649 = vunpack.c.h.b16 %v285
  %v2650 = vunpack.c.l.b16 %v286
  %v2651 = vunpack.c.h.b16 %v286
  %v2652 = vunpack.c.l.b16 %v287
  %v2653 = vunpack.c.h.b16 %v287
  %v2654 = vunpack.c.l.b16 %v288
  %v2655 = vunpack.c.h.b16 %v288
  %v2656 = vunpack.c.l.b16 %v289
  %v2657 = vunpack.c.h.b16 %v289
  %v2658 = vunpack.c.l.b16 %v290
  %v2659 = vunpack.c.h.b16 %v290
  %v2660 = vunpack.c.l.b16 %v291
  %v2661 = vunpack.c.h.b16 %v291
  %v2662 = vunpack.c.l.b16 %v292
  %v2663 = vunpack.c.h.b16 %v292
  %v2664 = vunpack.c.l.b16 %v293
  %v2665 = vunpack.c.h.b16 %v293
  %v2666 = vunpack.c.l.b16 %v294
  %v2667 = vunpack.c.h.b16 %v294
  %v2668 = vunpack.c.l.b16 %v295
  %v2669 = vunpack.c.h.b16 %v295
  %v2670 = vunpack.c.l.b16 %v296
  %v2671 = vunpack.c.h.b16 %v296
  %v2672 = vunpack.c.l.b16 %v297
  %v2673 = vunpack.c.h.b16 %v297
  %v2674 = vunpack.c.l.b16 %v298
  %v2675 = vunpack.c.h.b16 %v298
  %v2676 = vunpack.c.l.b16 %v299
  %v2677 = vunpack.c.h.b16 %v299
  %v2678 = vunpack.c.l.b16 %v300
  %v2679 = vunpack.c.h.b16 %v300
  %v2680 = vunpack.c.l.b16 %v301
  %v2681 = vunpack.c.h.b16 %v301
  %v2682 = vunpack.c.l.b16 %v302
  %v2683 = vunpack.c.h.b16 %v302
  %v2684 = vunpack.c.l.b16 %v303
  %v2685 = vunpack.c.h.b16 %v303
  %v2686 = vunpack.c.l.b16 %v304
  %v2687 = vunpack.c.h.b16 %v304
  %v2688 = vunpack.c.l.b16 %v305
  %v2689 = vunpack.c.h.b16 %v305
  %v2690 = vunpack.c.l.b16 %v306
  %v2691 = vunpack.c.h.b16 %v306
  %v2692 = vunpack.c.l.b16 %v307
  %v2693 = vunpack.c.h.b16 %v307
  %v2694 = vunpack.c.l.b16 %v308
  %v2695 = vunpack.c.h.b16 %v308
  %v2696 = vunpack.c.l.b16 %v309
  %v2697 = vunpack.c.h.b16 %v309
  %v2698 = vunpack.c.l.b16 %v310
  %v2699 = vunpack.c.h.b16 %v310
  %v2700 = vunpack.c.l.b16 %v311
  %v2701 = vunpack.c.h.b16 %v311
  %v2702 = vunpack.c.l.b16 %v312
  %v2703 = vunpack.c.h.b16 %v312
  %v2704 = vunpack.c.l.b16 %v313
  %v2705 = vunpack.c.h.b16 %v313
  %v2706 = vunpack.c.l.b16 %v314
  %v2707 = vunpack.c.h.b16 %v314
  %v2708 = vunpack.c.l.b16 %v315
  %v2709 = vunpack.c.h.b16 %v315
  %v2710 = vunpack.c.l.b16 %v316
  %v2711 = vunpack.c.h.b16 %v316
  %v2712 = vunpack.c.l.b16 %v317
  %v2713 = vunpack.c.h.b16 %v317
  %v2714 = vunpack.c.l.b16 %v318
  %v2715 = vunpack.c.h.b16 %v318
  %v2716 = vunpack.c.l.b16 %v319
  %v2717 = vunpack.c.h.b16 %v319
  %v2718 = vunpack.c.l.b16 %v320
  %v2719 = vunpack.c.h.b16 %v320
  %v2720 = vunpack.c.l.b16 %v321
  %v2721 = vunpack.c.h.b16 %v321
  %v2722 = vunpack.c.l.b16 %v322
  %v2723 = vunpack.c.h.b16 %v322
  %v2724 = vunpack.c.l.b16 %v323
  %v2725 = vunpack.c.h.b16 %v323
  %v2726 = vunpack.c.l.b16 %v324
  %v2727 = vunpack.c.h.b16 %v324
  %v2728 = vunpack.c.l.b16 %v325
  %v2729 = vunpack.c.h.b16 %v325
  %v2730 = vunpack.c.l.b16 %v326
  %v2731 = vunpack.c.h.b16 %v326
  %v2732 = vunpack.c.l.b16 %v327
  %v2733 = vunpack.c.h.b16 %v327
  %v2734 = vunpack.c.l.b16 %v328
  %v2735 = vunpack.c.h.b16 %v328
  %v2736 = vunpack.c.l.b16 %v329
  %v2737 = vunpack.c.h.b16 %v329
  %v2738 = vunpack.c.l.b16 %v330
  %v2739 = vunpack.c.h.b16 %v330
  %v2740 = vunpack.c.l.b16 %v331
  %v2741 = vunpack.c.h.b16 %v331
  %v2742 = vunpack.c.l.b16 %v332
  %v2743 = vunpack.c.h.b16 %v332
  %v2744 = vunpack.c.l.b16 %v333
  %v2745 = vunpack.c.h.b16 %v333
  %v2746 = vunpack.c.l.b16 %v334
  %v2747 = vunpack.c.h.b16 %v334
  %v2748 = vunpack.c.l.b16 %v335
  %v2749 = vunpack.c.h.b16 %v335
  %v2750 = vunpack.c.l.b16 %v336
  %v2751 = vunpack.c.h.b16 %v336
  %v2752 = vunpack.c.l.b16 %v337
  %v2753 = vunpack.c.h.b16 %v337
  %v2754 = vunpack.c.l.b16 %v338
  %v2755 = vunpack.c.h.b16 %v338
  %v2756 = vunpack.c.l.b16 %v339
  %v2757 = vunpack.c.h.b16 %v339
  %v2758 = vunpack.c.l.b16 %v340
  %v2759 = vunpack.c.h.b16 %v340
  %v2760 = vunpack.c.l.b16 %v341
  %v2761 = vunpack.c.h.b16 %v341
  %v2762 = vunpack.c.l.b16 %v342
  %v2763 = vunpack.c.h.b16 %v342
  %v2764 = vunpack.c.l.b16 %v343
  %v2765 = vunpack.c.h.b16 %v343
  %v2766 = vunpack.c.l.b16 %v344
  %v2767 = vunpack.c.h.b16 %v344
  %v2768 = vunpack.c.l.b16 %v345
  %v2769 = vunpack.c.h.b16 %v345
  %v2770 = vunpack.c.l.b16 %v346
  %v2771 = vunpack.c.h.b16 %v346
  %v2772 = vunpack.c.l.b16 %v347
  %v2773 = vunpack.c.h.b16 %v347
  %v2774 = vunpack.c.l.b16 %v348
  %v2775 = vunpack.c.h.b16 %v348
  %v2776 = vunpack.c.l.b16 %v349
  %v2777 = vunpack.c.h.b16 %v349
  %v2778 = vunpack.c.l.b16 %v350
  %v2779 = vunpack.c.h.b16 %v350
  %v2780 = vunpack.c.l.b16 %v351
  %v2781 = vunpack.c.h.b16 %v351
  %v2782 = vunpack.c.l.b16 %v352
  %v2783 = vunpack.c.h.b16 %v352
  %v2784 = vunpack.c.l.b16 %v353
  %v2785 = vunpack.c.h.b16 %v353
  %v2786 = vunpack.c.l.b16 %v354
  %v2787 = vunpack.c.h.b16 %v354
  %v2788 = vunpack.c.l.b16 %v355
  %v2789 = vunpack.c.h.b16 %v355
  %v2790 = vunpack.c.l.b16 %v356
  %v2791 = vunpack.c.h.b16 %v356
  %v2792 = vunpack.c.l.b16 %v357
  %v2793 = vunpack.c.h.b16 %v357
  %v2794 = vunpack.c.l.b16 %v358
  %v2795 = vunpack.c.h.b16 %v358
  %v2796 = vunpack.c.l.b16 %v359
  %v2797 = vunpack.c.h.b16 %v359
  %v2798 = vunpack.c.l.b16 %v360
  %v2799 = vunpack.c.h.b16 %v360
  %v2800 = vunpack.c.l.b16 %v361
  %v2801 = vunpack.c.h.b16 %v361
  %v2802 = vunpack.c.l.b16 %v362
  %v2803 = vunpack.c.h.b16 %v362
  %v2804 = vunpack.c.l.b16 %v363
  %v2805 = vunpack.c.h.b16 %v363
  %v2806 = vunpack.c.l.b16 %v364
  %v2807 = vunpack.c.h.b16 %v364
  %v2808 = vunpack.c.l.b16 %v365
  %v2809 = vunpack.c.h.b16 %v365
  %v2810 = vunpack.c.l.b16 %v366
  %v2811 = vunpack.c.h.b16 %v366
  %v2812 = vunpack.c.l.b16 %v367
  %v2813 = vunpack.c.h.b16 %v367
  %v2814 = vunpack.c.l.b16 %v368
  %v2815 = vunpack.c.h.b16 %v368
  %v2816 = vunpack.c.l.b16 %v369
  %v2817 = vunpack.c.h.b16 %v369
  %v2818 = vunpack.c.l.b16 %v370
  %v2819 = vunpack.c.h.b16 %v370
  %v2820 = vunpack.c.l.b16 %v371
  %v2821 = vunpack.c.h.b16 %v371
  %v2822 = vunpack.c.l.b16 %v372
  %v2823 = vunpack.c.h.b16 %v372
  %v2824 = vunpack.c.l.b16 %v373
  %v2825 = vunpack.c.h.b16 %v373
  %v2826 = vunpack.c.l.b16 %v374
  %v2827 = vunpack.c.h.b16 %v374
  %v2828 = vunpack.c.l.b16 %v375
  %v2829 = vunpack.c.h.b16 %v375
  %v2830 = vunpack.c.l.b16 %v376
  %v2831 = vunpack.c.h.b16 %v376
  %v2832 = vunpack.c.l.b16 %v377
  %v2833 = vunpack.c.h.b16 %v377
  %v2834 = vunpack.c.l.b16 %v378
  %v2835 = vunpack.c.h.b16 %v378
  %v2836 = vunpack.c.l.b16 %v379
  %v2837 = vunpack.c.h.b16 %v379
  %v2838 = vunpack.c.l.b16 %v380
  %v2839 = vunpack.c.h.b16 %v380
  %v2840 = vunpack.c.l.b16 %v381
  %v2841 = vunpack.c.h.b16 %v381
  %v2842 = vunpack.c.l.b16 %v382
  %v2843 = vunpack.c.h.b16 %v382
  %v2844 = vunpack.c.l.b16 %v383
  %v2845 = vunpack.c.h.b16 %v383
  %v2846 = vunpack.c.l.b16 %v384
  %v2847 = vunpack.c.h.b16 %v384
  %v2848 = vunpack.c.l.b16 %v385
  %v2849 = vunpack.c.h.b16 %v385
  %v2850 = vunpack.c.l.b16 %v386
  %v2851 = vunpack.c.h.b16 %v386
  %v2852 = vunpack.c.l.b16 %v387
  %v2853 = vunpack.c.h.b16 %v387
  %v2854 = vunpack.c.l.b16 %v388
  %v2855 = vunpack.c.h.b16 %v388
  %v2856 = vunpack.c.l.b16 %v389
  %v2857 = vunpack.c.h.b16 %v389
  %v2858 = vunpack.c.l.b16 %v390
  %v2859 = vunpack.c.h.b16 %v390
  %v2860 = vunpack.c.l.b16 %v391
  %v2861 = vunpack.c.h.b16 %v391
  %v2862 = vunpack.c.l.b16 %v392
  %v2863 = vunpack.c.h.b16 %v392
  %v2864 = vunpack.c.l.b16 %v393
  %v2865 = vunpack.c.h.b16 %v393
  %v2866 = vunpack.c.l.b16 %v394
  %v2867 = vunpack.c.h.b16 %v394
  %v2868 = vunpack.c.l.b16 %v395
  %v2869 = vunpack.c.h.b16 %v395
  %v2870 = vunpack.c.l.b16 %v396
  %v2871 = vunpack.c.h.b16 %v396
  %v2872 = vunpack.c.l.b16 %v397
  %v2873 = vunpack.c.h.b16 %v397
  %v2874 = vunpack.c.l.b16 %v398
  %v2875 = vunpack.c.h.b16 %v398
  %v2876 = vunpack.c.l.b16 %v399
  %v2877 = vunpack.c.h.b16 %v399
  %v2878 = vunpack.c.l.b16 %v400
  %v2879 = vunpack.c.h.b16 %v400
  %v2880 = vunpack.c.l.b16 %v401
  %v2881 = vunpack.c.h.b16 %v401
  %v2882 = vunpack.c.l.b16 %v402
  %v2883 = vunpack.c.h.b16 %v402
  %v2884 = vunpack.c.l.b16 %v403
  %v2885 = vunpack.c.h.b16 %v403
  %v2886 = vunpack.c.l.b16 %v404
  %v2887 = vunpack.c.h.b16 %v404
  %v2888 = vunpack.c.l.b16 %v405
  %v2889 = vunpack.c.h.b16 %v405
  %v2890 = vunpack.c.l.b16 %v406
  %v2891 = vunpack.c.h.b16 %v406
  %v2892 = vunpack.c.l.b16 %v407
  %v2893 = vunpack.c.h.b16 %v407
  %v2894 = vunpack.c.l.b16 %v408
  %v2895 = vunpack.c.h.b16 %v408
  %v2896 = vunpack.c.l.b16 %v409
  %v2897 = vunpack.c.h.b16 %v409
  %v2898 = vunpack.c.l.b16 %v410
  %v2899 = vunpack.c.h.b16 %v410
  %v2900 = vunpack.c.l.b16 %v411
  %v2901 = vunpack.c.h.b16 %v411
  %v2902 = vunpack.c.l.b16 %v412
  %v2903 = vunpack.c.h.b16 %v412
  %v2904 = vunpack.c.l.b16 %v413
  %v2905 = vunpack.c.h.b16 %v413
  %v2906 = vunpack.c.l.b16 %v414
  %v2907 = vunpack.c.h.b16 %v414
  %v2908 = vunpack.c.l.b16 %v415
  %v2909 = vunpack.c.h.b16 %v415
  %v2910 = vunpack.c.l.b16 %v416
  %v2911 = vunpack.c.h.b16 %v416
  %v2912 = vunpack.c.l.b16 %v417
  %v2913 = vunpack.c.h.b16 %v417
  %v2914 = vunpack.c.l.b16 %v418
  %v2915 = vunpack.c.h.b16 %v418
  %v2916 = vunpack.c.l.b16 %v419
  %v2917 = vunpack.c.h.b16 %v419
  %v2918 = vunpack.c.l.b16 %v420
  %v2919 = vunpack.c.h.b16 %v420
  %v2920 = vunpack.c.l.b16 %v421
  %v2921 = vunpack.c.h.b16 %v421
  %v2922 = vunpack.c.l.b16 %v422
  %v2923 = vunpack.c.h.b16 %v422
  %v2924 = vunpack.c.l.b16 %v423
  %v2925 = vunpack.c.h.b16 %v423
  %v2926 = vunpack.c.l.b16 %v424
  %v2927 = vunpack.c.h.b16 %v424
  %v2928 = vunpack.c.l.b16 %v425
  %v2929 = vunpack.c.h.b16 %v425
  %v2930 = vunpack.c.l.b16 %v426
  %v2931 = vunpack.c.h.b16 %v426
  %v2932 = vunpack.c.l.b16 %v427
  %v2933 = vunpack.c.h.b16 %v427
  %v2934 = vunpack.c.l.b16 %v428
  %v2935 = vunpack.c.h.b16 %v428
  %v2936 = vunpack.c.l.b16 %v429
  %v2937 = vunpack.c.h.b16 %v429
  %v2938 = vunpack.c.l.b16 %v430
  %v2939 = vunpack.c.h.b16 %v430
  %v2940 = vunpack.c.l.b16 %v431
  %v2941 = vunpack.c.h.b16 %v431
  %v2942 = vunpack.c.l.b16 %v432
  %v2943 = vunpack.c.h.b16 %v432
  %v2944 = vunpack.c.l.b16 %v433
  %v2945 = vunpack.c.h.b16 %v433
  %v2946 = vunpack.c.l.b16 %v434
  %v2947 = vunpack.c.h.b16 %v434
  %v2948 = vunpack.c.l.b16 %v435
  %v2949 = vunpack.c.h.b16 %v435
  %v2950 = vunpack.c.l.b16 %v436
  %v2951 = vunpack.c.h.b16 %v436
  %v2952 = vunpack.c.l.b16 %v437
  %v2953 = vunpack.c.h.b16 %v437
  %v2954 = vunpack.c.l.b16 %v438
  %v2955 = vunpack.c.h.b16 %v438
  %v2956 = vunpack.c.l.b16 %v439
  %v2957 = vunpack.c.h.b16 %v439
  %v2958 = vunpack.c.l.b16 %v440
  %v2959 = vunpack.c.h.b16 %v440
  %v2960 = vunpack.c.l.b16 %v441
  %v2961 = vunpack.c.h.b16 %v441
  %v2962 = vunpack.c.l.b16 %v442
  %v2963 = vunpack.c.h.b16 %v442
  %v2964 = vunpack.c.l.b16 %v443
  %v2965 = vunpack.c.h.b16 %v443
  %v2966 = vunpack.c.l.b16 %v444
  %v2967 = vunpack.c.h.b16 %v444
  %v2968 = vunpack.c.l.b16 %v445
  %v2969 = vunpack.c.h.b16 %v445
  %v2970 = vunpack.c.l.b16 %v446
  %v2971 = vunpack.c.h.b16 %v446
  %v2972 = vunpack.c.l.b16 %v447
  %v2973 = vunpack.c.h.b16 %v447
  %v2974 = vunpack.c.l.b16 %v448
  %v2975 = vunpack.c.h.b16 %v448
  %v2976 = vunpack.c.l.b16 %v449
  %v2977 = vunpack.c.h.b16 %v449
  %v2978 = vunpack.c.l.b16 %v450
  %v2979 = vunpack.c.h.b16 %v450
  %v2980 = vunpack.c.l.b16 %v451
  %v2981 = vunpack.c.h.b16 %v451
  %v2982 = vunpack.c.l.b16 %v452
  %v2983 = vunpack.c.h.b16 %v452
  %v2984 = vunpack.c.l.b16 %v453
  %v2985 = vunpack.c.h.b16 %v453
  %v2986 = vunpack.c.l.b16 %v454
  %v2987 = vunpack.c.h.b16 %v454
  %v2988 = vunpack.c.l.b16 %v455
  %v2989 = vunpack.c.h.b16 %v455
  %v2990 = vunpack.c.l.b16 %v456
  %v2991 = vunpack.c.h.b16 %v456
  %v2992 = vunpack.c.l.b16 %v457
  %v2993 = vunpack.c.h.b16 %v457
  %v2994 = vunpack.c.l.b16 %v458
  %v2995 = vunpack.c.h.b16 %v458
  %v2996 = vunpack.c.l.b16 %v459
  %v2997 = vunpack.c.h.b16 %v459
  %v2998 = vunpack.c.l.b16 %v460
  %v2999 = vunpack.c.h.b16 %v460
  %v3000 = vunpack.c.l.b16 %v461
  %v3001 = vunpack.c.h.b16 %v461
  %v3002 = vunpack.c.l.b16 %v462
  %v3003 = vunpack.c.h.b16 %v462
  %v3004 = vunpack.c.l.b16 %v463
  %v3005 = vunpack.c.h.b16 %v463
  %v3006 = vunpack.c.l.b16 %v464
  %v3007 = vunpack.c.h.b16 %v464
  %v3008 = vunpack.c.l.b16 %v465
  %v3009 = vunpack.c.h.b16 %v465
  %v3010 = vunpack.c.l.b16 %v466
  %v3011 = vunpack.c.h.b16 %v466
  %v3012 = vunpack.c.l.b16 %v467
  %v3013 = vunpack.c.h.b16 %v467
  %v3014 = vunpack.c.l.b16 %v468
  %v3015 = vunpack.c.h.b16 %v468
  %v3016 = vunpack.c.l.b16 %v469
  %v3017 = vunpack.c.h.b16 %v469
  %v3018 = vunpack.c.l.b16 %v470
  %v3019 = vunpack.c.h.b16 %v470
  %v3020 = vunpack.c.l.b16 %v471
  %v3021 = vunpack.c.h.b16 %v471
  %v3022 = vunpack.c.l.b16 %v472
  %v3023 = vunpack.c.h.b16 %v472
  %v3024 = vunpack.c.l.b16 %v473
  %v3025 = vunpack.c.h.b16 %v473
  %v3026 = vunpack.c.l.b16 %v474
  %v3027 = vunpack.c.h.b16 %v474
  %v3028 = vunpack.c.l.b16 %v475
  %v3029 = vunpack.c.h.b16 %v475
  %v3030 = vunpack.c.l.b16 %v476
  %v3031 = vunpack.c.h.b16 %v476
  %v3032 = vunpack.c.l.b16 %v477
  %v3033 = vunpack.c.h.b16 %v477
  %v3034 = vunpack.c.l.b16 %v478
  %v3035 = vunpack.c.h.b16 %v478
  %v3036 = vunpack.c.l.b16 %v479
  %v3037 = vunpack.c.h.b16 %v479
  %v3038 = vunpack.c.l.b16 %v480
  %v3039 = vunpack.c.h.b16 %v480
  %v3040 = vunpack.c.l.b16 %v481
  %v3041 = vunpack.c.h.b16 %v481
  %v3042 = vunpack.c.l.b16 %v482
  %v3043 = vunpack.c.h.b16 %v482
  %v3044 = vunpack.c.l.b16 %v483
  %v3045 = vunpack.c.h.b16 %v483
  %v3046 = vunpack.c.l.b16 %v484
  %v3047 = vunpack.c.h.b16 %v484
  %v3048 = vunpack.c.l.b16 %v485
  %v3049 = vunpack.c.h.b16 %v485
  %v3050 = vunpack.c.l.b16 %v486
  %v3051 = vunpack.c.h.b16 %v486
  %v3052 = vunpack.c.l.b16 %v487
  %v3053 = vunpack.c.h.b16 %v487
  %v3054 = vunpack.c.l.b16 %v488
  %v3055 = vunpack.c.h.b16 %v488
  %v3056 = vunpack.c.l.b16 %v489
  %v3057 = vunpack.c.h.b16 %v489
  %v3058 = vunpack.c.l.b16 %v490
  %v3059 = vunpack.c.h.b16 %v490
  %v3060 = vunpack.c.l.b16 %v491
  %v3061 = vunpack.c.h.b16 %v491
  %v3062 = vunpack.c.l.b16 %v492
  %v3063 = vunpack.c.h.b16 %v492
  %v3064 = vunpack.c.l.b16 %v493
  %v3065 = vunpack.c.h.b16 %v493
  %v3066 = vunpack.c.l.b16 %v494
  %v3067 = vunpack.c.h.b16 %v494
  %v3068 = vunpack.c.l.b16 %v495
  %v3069 = vunpack.c.h.b16 %v495
  %v3070 = vunpack.c.l.b16 %v496
  %v3071 = vunpack.c.h.b16 %v496
  %v3072 = vunpack.c.l.b16 %v497
  %v3073 = vunpack.c.h.b16 %v497
  %v3074 = vunpack.c.l.b16 %v498
  %v3075 = vunpack.c.h.b16 %v498
  %v3076 = vunpack.c.l.b16 %v499
  %v3077 = vunpack.c.h.b16 %v499
  %v3078 = vunpack.c.l.b16 %v500
  %v3079 = vunpack.c.h.b16 %v500
  %v3080 = vunpack.c.l.b16 %v501
  %v3081 = vunpack.c.h.b16 %v501
  %v3082 = vunpack.c.l.b16 %v502
  %v3083 = vunpack.c.h.b16 %v502
  %v3084 = vunpack.c.l.b16 %v503
  %v3085 = vunpack.c.h.b16 %v503
  %v3086 = vunpack.c.l.b16 %v504
  %v3087 = vunpack.c.h.b16 %v504
  %v3088 = vunpack.c.l.b16 %v505
  %v3089 = vunpack.c.h.b16 %v505
  %v3090 = vunpack.c.l.b16 %v506
  %v3091 = vunpack.c.h.b16 %v506
  %v3092 = vunpack.c.l.b16 %v507
  %v3093 = vunpack.c.h.b16 %v507
  %v3094 = vunpack.c.l.b16 %v508
  %v3095 = vunpack.c.h.b16 %v508
  %v3096 = vunpack.c.l.b16 %v509
  %v3097 = vunpack.c.h.b16 %v509
  %v3098 = vunpack.c.l.b16 %v510
  %v3099 = vunpack.c.h.b16 %v510
  %v3100 = vunpack.c.l.b16 %v511
  %v3101 = vunpack.c.h.b16 %v511
  %v3102 = vunpack.c.l.b16 %v512
  %v3103 = vunpack.c.h.b16 %v512
  %v3104 = vunpack.c.l.b16 %v513
  %v3105 = vunpack.c.h.b16 %v513
  %v3106 = vunpack.c.l.b16 %v514
  %v3107 = vunpack.c.h.b16 %v514
  %v3108 = vunpack.c.l.b16 %v515
  %v3109 = vunpack.c.h.b16 %v515
  %v3110 = vunpack.c.l.b16 %v516
  %v3111 = vunpack.c.h.b16 %v516
  %v3112 = vunpack.c.l.b16 %v517
  %v3113 = vunpack.c.h.b16 %v517
  %v3114 = vunpack.c.l.b16 %v518
  %v3115 = vunpack.c.h.b16 %v518
  %v3116 = vunpack.c.l.b16 %v519
  %v3117 = vunpack.c.h.b16 %v519
  %v3118 = vunpack.c.l.b16 %v520
  %v3119 = vunpack.c.h.b16 %v520
  %v3120 = vunpack.c.l.b16 %v521
  %v3121 = vunpack.c.h.b16 %v521
  %v3122 = vunpack.c.l.b16 %v522
  %v3123 = vunpack.c.h.b16 %v522
  %v3124 = vunpack.c.l.b16 %v523
  %v3125 = vunpack.c.h.b16 %v523
  %v3126 = vunpack.c.l.b16 %v524
  %v3127 = vunpack.c.h.b16 %v524
  %v3128 = vunpack.c.l.b16 %v525
  %v3129 = vunpack.c.h.b16 %v525
  %v3130 = vunpack.c.l.b16 %v526
  %v3131 = vunpack.c.h.b16 %v526
  %v3132 = vunpack.c.l.b16 %v527
  %v3133 = vunpack.c.h.b16 %v527
  %v3134 = vunpack.c.l.b16 %v528
  %v3135 = vunpack.c.h.b16 %v528
  %v3136 = vunpack.c.l.b16 %v529
  %v3137 = vunpack.c.h.b16 %v529
  %v3138 = vunpack.c.l.b16 %v530
  %v3139 = vunpack.c.h.b16 %v530
  %v3140 = vunpack.c.l.b16 %v531
  %v3141 = vunpack.c.h.b16 %v531
  %v3142 = vunpack.c.l.b16 %v532
  %v3143 = vunpack.c.h.b16 %v532
  %v3144 = vunpack.c.l.b16 %v533
  %v3145 = vunpack.c.h.b16 %v533
  %v3146 = vunpack.c.l.b16 %v534
  %v3147 = vunpack.c.h.b16 %v534
  %v3148 = vunpack.c.l.b16 %v535
  %v3149 = vunpack.c.h.b16 %v535
  %v3150 = vunpack.c.l.b16 %v536
  %v3151 = vunpack.c.h.b16 %v536
  %v3152 = vunpack.c.l.b16 %v537
  %v3153 = vunpack.c.h.b16 %v537
  %v3154 = vunpack.c.l.b16 %v538
  %v3155 = vunpack.c.h.b16 %v538
  %v3156 = vunpack.c.l.b16 %v539
  %v3157 = vunpack.c.h.b16 %v539
  %v3158 = vunpack.c.l.b16 %v540
  %v3159 = vunpack.c.h.b16 %v540
  %v3160 = vunpack.c.l.b16 %v541
  %v3161 = vunpack.c.h.b16 %v541
  %v3162 = vunpack.c.l.b16 %v542
  %v3163 = vunpack.c.h.b16 %v542
  %v3164 = vunpack.c.l.b16 %v543
  %v3165 = vunpack.c.h.b16 %v543
  %v3166 = vunpack.c.l.b16 %v544
  %v3167 = vunpack.c.h.b16 %v544
  %v3168 = vunpack.c.l.b16 %v545
  %v3169 = vunpack.c.h.b16 %v545
  %v3170 = vunpack.c.l.b16 %v546
  %v3171 = vunpack.c.h.b16 %v546
  %v3172 = vunpack.c.l.b16 %v547
  %v3173 = vunpack.c.h.b16 %v547
  %v3174 = vunpack.c.l.b16 %v548
  %v3175 = vunpack.c.h.b16 %v548
  %v3176 = vunpack.c.l.b16 %v549
  %v3177 = vunpack.c.h.b16 %v549
  %v3178 = vunpack.c.l.b16 %v550
  %v3179 = vunpack.c.h.b16 %v550
  %v3180 = vunpack.c.l.b16 %v551
  %v3181 = vunpack.c.h.b16 %v551
  %v3182 = vunpack.c.l.b16 %v552
  %v3183 = vunpack.c.h.b16 %v552
  %v3184 = vunpack.c.l.b16 %v553
  %v3185 = vunpack.c.h.b16 %v553
  %v3186 = vunpack.c.l.b16 %v554
  %v3187 = vunpack.c.h.b16 %v554
  %v3188 = vunpack.c.l.b16 %v555
  %v3189 = vunpack.c.h.b16 %v555
  %v3190 = vunpack.c.l.b16 %v556
  %v3191 = vunpack.c.h.b16 %v556
  %v3192 = vunpack.c.l.b16 %v557
  %v3193 = vunpack.c.h.b16 %v557
  %v3194 = vunpack.c.l.b16 %v558
  %v3195 = vunpack.c.h.b16 %v558
  %v3196 = vunpack.c.l.b16 %v559
  %v3197 = vunpack.c.h.b16 %v559
  %v3198 = vunpack.c.l.b16 %v560
  %v3199 = vunpack.c.h.b16 %v560
  %v3200 = vunpack.c.l.b16 %v561
  %v3201 = vunpack.c.h.b16 %v561
  %v3202 = vunpack.c.l.b16 %v562
  %v3203 = vunpack.c.h.b16 %v562
  %v3204 = vunpack.c.l.b16 %v563
  %v3205 = vunpack.c.h.b16 %v563
  %v3206 = vunpack.c.l.b16 %v564
  %v3207 = vunpack.c.h.b16 %v564
  %v3208 = vunpack.c.l.b16 %v565
  %v3209 = vunpack.c.h.b16 %v565
  %v3210 = vunpack.c.l.b16 %v566
  %v3211 = vunpack.c.h.b16 %v566
  %v3212 = vunpack.c.l.b16 %v567
  %v3213 = vunpack.c.h.b16 %v567
  %v3214 = vunpack.c.l.b16 %v568
  %v3215 = vunpack.c.h.b16 %v568
  %v3216 = vunpack.c.l.b16 %v569
  %v3217 = vunpack.c.h.b16 %v569
  %v3218 = vunpack.c.l.b16 %v570
  %v3219 = vunpack.c.h.b16 %v570
  %v3220 = vunpack.c.l.b16 %v571
  %v3221 = vunpack.c.h.b16 %v571
  %v3222 = vunpack.c.l.b16 %v572
  %v3223 = vunpack.c.h.b16 %v572
  %v3224 = vunpack.c.l.b16 %v573
  %v3225 = vunpack.c.h.b16 %v573
  %v3226 = vunpack.c.l.b16 %v574
  %v3227 = vunpack.c.h.b16 %v574
  %v3228 = vunpack.c.l.b16 %v575
  %v3229 = vunpack.c.h.b16 %v575
  %v3230 = vunpack.c.l.b16 %v576
  %v3231 = vunpack.c.h.b16 %v576
  %v3232 = vunpack.c.l.b16 %v577
  %v3233 = vunpack.c.h.b16 %v577
  %v3234 = vunpack.c.l.b16 %v578
  %v3235 = vunpack.c.h.b16 %v578
  %v3236 = vunpack.c.l.b16 %v579
  %v3237 = vunpack.c.h.b16 %v579
  %v3238 = vunpack.c.l.b16 %v580
  %v3239 = vunpack.c.h.b16 %v580
  %v3240 = vunpack.c.l.b16 %v581
  %v3241 = vunpack.c.h.b16 %v581
  %v3242 = vunpack.c.l.b16 %v582
  %v3243 = vunpack.c.h.b16 %v582
  %v3244 = vunpack.c.l.b16 %v583
  %v3245 = vunpack.c.h.b16 %v583
  %v3246 = vunpack.c.l.b16 %v584
  %v3247 = vunpack.c.h.b16 %v584
  %v3248 = vunpack.c.l.b16 %v585
  %v3249 = vunpack.c.h.b16 %v585
  %v3250 = vunpack.c.l.b16 %v586
  %v3251 = vunpack.c.h.b16 %v586
  %v3252 = vunpack.c.l.b16 %v587
  %v3253 = vunpack.c.h.b16 %v587
  %v3254 = vunpack.c.l.b16 %v588
  %v3255 = vunpack.c.h.b16 %v588
  %v3256 = vunpack.c.l.b16 %v589
  %v3257 = vunpack.c.h.b16 %v589
  %v3258 = vunpack.c.l.b16 %v590
  %v3259 = vunpack.c.h.b16 %v590
  %v3260 = vunpack.c.l.b16 %v591
  %v3261 = vunpack.c.h.b16 %v591
  %v3262 = vunpack.c.l.b16 %v592
  %v3263 = vunpack.c.h.b16 %v592
  %v3264 = vunpack.c.l.b16 %v593
  %v3265 = vunpack.c.h.b16 %v593
  %v3266 = vunpack.c.l.b16 %v594
  %v3267 = vunpack.c.h.b16 %v594
  %v3268 = vunpack.c.l.b16 %v595
  %v3269 = vunpack.c.h.b16 %v595
  %v3270 = vunpack.c.l.b16 %v596
  %v3271 = vunpack.c.h.b16 %v596
  %v3272 = vunpack.c.l.b16 %v597
  %v3273 = vunpack.c.h.b16 %v597
  %v3274 = vunpack.c.l.b16 %v598
  %v3275 = vunpack.c.h.b16 %v598
  %v3276 = vunpack.c.l.b16 %v599
  %v3277 = vunpack.c.h.b16 %v599
  %v3278 = vunpack.c.l.b16 %v600
  %v3279 = vunpack.c.h.b16 %v600
  %v3280 = vunpack.c.l.b16 %v601
  %v3281 = vunpack.c.h.b16 %v601
  %v3282 = vunpack.c.l.b16 %v602
  %v3283 = vunpack.c.h.b16 %v602
  %v3284 = vunpack.c.l.b16 %v603
  %v3285 = vunpack.c.h.b16 %v603
  %v3286 = vunpack.c.l.b16 %v604
  %v3287 = vunpack.c.h.b16 %v604
  %v3288 = vunpack.c.l.b16 %v605
  %v3289 = vunpack.c.h.b16 %v605
  %v3290 = vunpack.c.l.b16 %v606
  %v3291 = vunpack.c.h.b16 %v606
  %v3292 = vunpack.c.l.b16 %v607
  %v3293 = vunpack.c.h.b16 %v607
  %v3294 = vunpack.c.l.b16 %v608
  %v3295 = vunpack.c.h.b16 %v608
  %v3296 = vunpack.c.l.b16 %v609
  %v3297 = vunpack.c.h.b16 %v609
  %v3298 = vunpack.c.l.b16 %v610
  %v3299 = vunpack.c.h.b16 %v610
  %v3300 = vunpack.c.l.b16 %v611
  %v3301 = vunpack.c.h.b16 %v611
  %v3302 = vunpack.c.l.b16 %v612
  %v3303 = vunpack.c.h.b16 %v612
  %v3304 = vunpack.c.l.b16 %v613
  %v3305 = vunpack.c.h.b16 %v613
  %v3306 = vunpack.c.l.b16 %v614
  %v3307 = vunpack.c.h.b16 %v614
  %v3308 = vunpack.c.l.b16 %v615
  %v3309 = vunpack.c.h.b16 %v615
  %v3310 = vunpack.c.l.b16 %v616
  %v3311 = vunpack.c.h.b16 %v616
  %v3312 = vunpack.c.l.b16 %v617
  %v3313 = vunpack.c.h.b16 %v617
  %v3314 = vunpack.c.l.b16 %v618
  %v3315 = vunpack.c.h.b16 %v618
  %v3316 = vunpack.c.l.b16 %v619
  %v3317 = vunpack.c.h.b16 %v619
  %v3318 = vunpack.c.l.b16 %v620
  %v3319 = vunpack.c.h.b16 %v620
  %v3320 = vunpack.c.l.b16 %v621
  %v3321 = vunpack.c.h.b16 %v621
  %v3322 = vunpack.c.l.b16 %v622
  %v3323 = vunpack.c.h.b16 %v622
  %v3324 = vunpack.c.l.b16 %v623
  %v3325 = vunpack.c.h.b16 %v623
  %v3326 = vunpack.c.l.b16 %v624
  %v3327 = vunpack.c.h.b16 %v624
  %v3328 = vunpack.c.l.b16 %v625
  %v3329 = vunpack.c.h.b16 %v625
  %v3330 = vunpack.c.l.b16 %v626
  %v3331 = vunpack.c.h.b16 %v626
  %v3332 = vunpack.c.l.b16 %v627
  %v3333 = vunpack.c.h.b16 %v627
  %v3334 = vunpack.c.l.b16 %v628
  %v3335 = vunpack.c.h.b16 %v628
  %v3336 = vunpack.c.l.b16 %v629
  %v3337 = vunpack.c.h.b16 %v629
  %v3338 = vunpack.c.l.b16 %v630
  %v3339 = vunpack.c.h.b16 %v630
  %v3340 = vunpack.c.l.b16 %v631
  %v3341 = vunpack.c.h.b16 %v631
  %v3342 = vunpack.c.l.b16 %v632
  %v3343 = vunpack.c.h.b16 %v632
  %v3344 = vunpack.c.l.b16 %v633
  %v3345 = vunpack.c.h.b16 %v633
  %v3346 = vunpack.c.l.b16 %v634
  %v3347 = vunpack.c.h.b16 %v634
  %v3348 = vunpack.c.l.b16 %v635
  %v3349 = vunpack.c.h.b16 %v635
  %v3350 = vunpack.c.l.b16 %v636
  %v3351 = vunpack.c.h.b16 %v636
  %v3352 = vunpack.c.l.b16 %v637
  %v3353 = vunpack.c.h.b16 %v637
  %v3354 = vunpack.c.l.b16 %v638
  %v3355 = vunpack.c.h.b16 %v638
  %v3356 = vunpack.c.l.b16 %v639
  %v3357 = vunpack.c.h.b16 %v639
  %v3358 = vunpack.c.l.b16 %v640
  %v3359 = vunpack.c.h.b16 %v640
  %v3360 = vunpack.c.l.b16 %v641
  %v3361 = vunpack.c.h.b16 %v641
  %v3362 = vunpack.c.l.b16 %v642
  %v3363 = vunpack.c.h.b16 %v642
  %v3364 = vunpack.c.l.b16 %v643
  %v3365 = vunpack.c.h.b16 %v643
  %v3366 = vunpack.c.l.b16 %v644
  %v3367 = vunpack.c.h.b16 %v644
  %v3368 = vunpack.c.l.b16 %v645
  %v3369 = vunpack.c.h.b16 %v645
  %v3370 = vunpack.c.l.b16 %v646
  %v3371 = vunpack.c.h.b16 %v646
  %v3372 = vunpack.c.l.b16 %v647
  %v3373 = vunpack.c.h.b16 %v647
  %v3374 = vunpack.c.l.b16 %v648
  %v3375 = vunpack.c.h.b16 %v648
  %v3376 = vunpack.c.l.b16 %v649
  %v3377 = vunpack.c.h.b16 %v649
  %v3378 = vunpack.c.l.b16 %v650
  %v3379 = vunpack.c.h.b16 %v650
  %v3380 = vunpack.c.l.b16 %v651
  %v3381 = vunpack.c.h.b16 %v651
  %v3382 = vunpack.c.l.b16 %v652
  %v3383 = vunpack.c.h.b16 %v652
  %v3384 = vunpack.c.l.b16 %v653
  %v3385 = vunpack.c.h.b16 %v653
  %v3386 = vunpack.c.l.b16 %v654
  %v3387 = vunpack.c.h.b16 %v654
  %v3388 = vunpack.c.l.b16 %v655
  %v3389 = vunpack.c.h.b16 %v655
  %v3390 = vunpack.c.l.b16 %v656
  %v3391 = vunpack.c.h.b16 %v656
  %v3392 = vunpack.c.l.b16 %v657
  %v3393 = vunpack.c.h.b16 %v657
  %v3394 = vunpack.c.l.b16 %v658
  %v3395 = vunpack.c.h.b16 %v658
  %v3396 = vunpack.c.l.b16 %v659
  %v3397 = vunpack.c.h.b16 %v659
  %v3398 = vunpack.c.l.b16 %v660
  %v3399 = vunpack.c.h.b16 %v660
  %v3400 = vunpack.c.l.b16 %v661
  %v3401 = vunpack.c.h.b16 %v661
  %v3402 = vunpack.c.l.b16 %v662
  %v3403 = vunpack.c.h.b16 %v662
  %v3404 = vunpack.c.l.b16 %v663
  %v3405 = vunpack.c.h.b16 %v663
  %v3406 = vunpack.c.l.b16 %v664
  %v3407 = vunpack.c.h.b16 %v664
  %v3408 = vunpack.c.l.b16 %v665
  %v3409 = vunpack.c.h.b16 %v665
  %v3410 = vunpack.c.l.b16 %v666
  %v3411 = vunpack.c.h.b16 %v666
  %v3412 = vunpack.c.l.b16 %v667
  %v3413 = vunpack.c.h.b16 %v667
  %v3414 = vunpack.c.l.b16 %v668
  %v3415 = vunpack.c.h.b16 %v668
  %v3416 = vunpack.c.l.b16 %v669
  %v3417 = vunpack.c.h.b16 %v669
  %v3418 = vunpack.c.l.b16 %v670
  %v3419 = vunpack.c.h.b16 %v670
  %v3420 = vunpack.c.l.b16 %v671
  %v3421 = vunpack.c.h.b16 %v671
  %v3422 = vunpack.c.l.b16 %v672
  %v3423 = vunpack.c.h.b16 %v672
  %v3424 = vunpack.c.l.b16 %v673
  %v3425 = vunpack.c.h.b16 %v673
  %v3426 = vunpack.c.l.b16 %v674
  %v3427 = vunpack.c.h.b16 %v674
  %v3428 = vunpack.c.l.b16 %v675
  %v3429 = vunpack.c.h.b16 %v675
  %v3430 = vunpack.c.l.b16 %v676
  %v3431 = vunpack.c.h.b16 %v676
  %v3432 = vunpack.c.l.b16 %v677
  %v3433 = vunpack.c.h.b16 %v677
  %v3434 = vunpack.c.l.b16 %v678
  %v3435 = vunpack.c.h.b16 %v678
  %v3436 = vunpack.c.l.b16 %v679
  %v3437 = vunpack.c.h.b16 %v679
  %v3438 = vunpack.c.l.b16 %v680
  %v3439 = vunpack.c.h.b16 %v680
  %v3440 = vunpack.c.l.b16 %v681
  %v3441 = vunpack.c.h.b16 %v681
  %v3442 = vunpack.c.l.b16 %v682
  %v3443 = vunpack.c.h.b16 %v682
  %v3444 = vunpack.c.l.b16 %v683
  %v3445 = vunpack.c.h.b16 %v683
  %v3446 = vunpack.c.l.b16 %v684
  %v3447 = vunpack.c.h.b16 %v684
  %v3448 = vunpack.c.l.b16 %v685
  %v3449 = vunpack.c.h.b16 %v685
  %v3450 = vunpack.c.l.b16 %v686
  %v3451 = vunpack.c.h.b16 %v686
  %v3452 = vunpack.c.l.b16 %v687
  %v3453 = vunpack.c.h.b16 %v687
  %v3454 = vunpack.c.l.b16 %v688
  %v3455 = vunpack.c.h.b16 %v688
  %v3456 = vunpack.c.l.b16 %v689
  %v3457 = vunpack.c.h.b16 %v689
  %v3458 = vunpack.c.l.b16 %v690
  %v3459 = vunpack.c.h.b16 %v690
  %v3460 = vunpack.c.l.b16 %v691
  %v3461 = vunpack.c.h.b16 %v691
  %v3462 = vunpack.c.l.b16 %v692
  %v3463 = vunpack.c.h.b16 %v692
  %v3464 = vunpack.c.l.b16 %v693
  %v3465 = vunpack.c.h.b16 %v693
  %v3466 = vunpack.c.l.b16 %v694
  %v3467 = vunpack.c.h.b16 %v694
  %v3468 = vunpack.c.l.b16 %v695
  %v3469 = vunpack.c.h.b16 %v695
  %v3470 = vunpack.c.l.b16 %v696
  %v3471 = vunpack.c.h.b16 %v696
  %v3472 = vunpack.c.l.b16 %v697
  %v3473 = vunpack.c.h.b16 %v697
  %v3474 = vunpack.c.l.b16 %v698
  %v3475 = vunpack.c.h.b16 %v698
  %v3476 = vunpack.c.l.b16 %v699
  %v3477 = vunpack.c.h.b16 %v699
  %v3478 = vunpack.c.l.b16 %v700
  %v3479 = vunpack.c.h.b16 %v700
  %v3480 = vunpack.c.l.b16 %v701
  %v3481 = vunpack.c.h.b16 %v701
  %v3482 = vunpack.c.l.b16 %v702
  %v3483 = vunpack.c.h.b16 %v702
  %v3484 = vunpack.c.l.b16 %v703
  %v3485 = vunpack.c.h.b16 %v703
  %v3486 = vunpack.c.l.b16 %v704
  %v3487 = vunpack.c.h.b16 %v704
  %v3488 = vunpack.c.l.b16 %v705
  %v3489 = vunpack.c.h.b16 %v705
  %v3490 = vunpack.c.l.b16 %v706
  %v3491 = vunpack.c.h.b16 %v706
  %v3492 = vunpack.c.l.b16 %v707
  %v3493 = vunpack.c.h.b16 %v707
  %v3494 = vunpack.c.l.b16 %v708
  %v3495 = vunpack.c.h.b16 %v708
  %v3496 = vunpack.c.l.b16 %v709
  %v3497 = vunpack.c.h.b16 %v709
  %v3498 = vunpack.c.l.b16 %v710
  %v3499 = vunpack.c.h.b16 %v710
  %v3500 = vunpack.c.l.b16 %v711
  %v3501 = vunpack.c.h.b16 %v711
  %v3502 = vunpack.c.l.b16 %v712
  %v3503 = vunpack.c.h.b16 %v712
  %v3504 = vunpack.c.l.b16 %v713
  %v3505 = vunpack.c.h.b16 %v713
  %v3506 = vunpack.c.l.b16 %v714
  %v3507 = vunpack.c.h.b16 %v714
  %v3508 = vunpack.c.l.b16 %v715
  %v3509 = vunpack.c.h.b16 %v715
  %v3510 = vunpack.c.l.b16 %v716
  %v3511 = vunpack.c.h.b16 %v716
  %v3512 = vunpack.c.l.b16 %v717
  %v3513 = vunpack.c.h.b16 %v717
  %v3514 = vunpack.c.l.b16 %v718
  %v3515 = vunpack.c.h.b16 %v718
  %v3516 = vunpack.c.l.b16 %v719
  %v3517 = vunpack.c.h.b16 %v719
  %v3518 = vunpack.c.l.b16 %v720
  %v3519 = vunpack.c.h.b16 %v720
  %v3520 = vunpack.c.l.b16 %v721
  %v3521 = vunpack.c.h.b16 %v721
  %v3522 = vunpack.c.l.b16 %v722
  %v3523 = vunpack.c.h.b16 %v722
  %v3524 = vunpack.c.l.b16 %v723
  %v3525 = vunpack.c.h.b16 %v723
  %v3526 = vunpack.c.l.b16 %v724
  %v3527 = vunpack.c.h.b16 %v724
  %v3528 = vunpack.c.l.b16 %v725
  %v3529 = vunpack.c.h.b16 %v725
  %v3530 = vunpack.c.l.b16 %v726
  %v3531 = vunpack.c.h.b16 %v726
  %v3532 = vunpack.c.l.b16 %v727
  %v3533 = vunpack.c.h.b16 %v727
  %v3534 = vunpack.c.l.b16 %v728
  %v3535 = vunpack.c.h.b16 %v728
  %v3536 = vunpack.c.l.b16 %v729
  %v3537 = vunpack.c.h.b16 %v729
  %v3538 = vunpack.c.l.b16 %v730
  %v3539 = vunpack.c.h.b16 %v730
  %v3540 = vunpack.c.l.b16 %v731
  %v3541 = vunpack.c.h.b16 %v731
  %v3542 = vunpack.c.l.b16 %v732
  %v3543 = vunpack.c.h.b16 %v732
  %v3544 = vunpack.c.l.b16 %v733
  %v3545 = vunpack.c.h.b16 %v733
  %v3546 = vunpack.c.l.b16 %v734
  %v3547 = vunpack.c.h.b16 %v734
  %v3548 = vunpack.c.l.b16 %v735
  %v3549 = vunpack.c.h.b16 %v735
  %v3550 = vunpack.c.l.b16 %v736
  %v3551 = vunpack.c.h.b16 %v736
  %v3552 = vunpack.c.l.b16 %v737
  %v3553 = vunpack.c.h.b16 %v737
  %v3554 = vunpack.c.l.b16 %v738
  %v3555 = vunpack.c.h.b16 %v738
  %v3556 = vunpack.c.l.b16 %v739
  %v3557 = vunpack.c.h.b16 %v739
  %v3558 = vunpack.c.l.b16 %v740
  %v3559 = vunpack.c.h.b16 %v740
  %v3560 = vunpack.c.l.b16 %v741
  %v3561 = vunpack.c.h.b16 %v741
  %v3562 = vunpack.c.l.b16 %v742
  %v3563 = vunpack.c.h.b16 %v742
  %v3564 = vunpack.c.l.b16 %v743
  %v3565 = vunpack.c.h.b16 %v743
  %v3566 = vunpack.c.l.b16 %v744
  %v3567 = vunpack.c.h.b16 %v744
  %v3568 = vunpack.c.l.b16 %v745
  %v3569 = vunpack.c.h.b16 %v745
  %v3570 = vunpack.c.l.b16 %v746
  %v3571 = vunpack.c.h.b16 %v746
  %v3572 = vunpack.c.l.b16 %v747
  %v3573 = vunpack.c.h.b16 %v747
  %v3574 = vunpack.c.l.b16 %v748
  %v3575 = vunpack.c.h.b16 %v748
  %v3576 = vunpack.c.l.b16 %v749
  %v3577 = vunpack.c.h.b16 %v749
  %v3578 = vunpack.c.l.b16 %v750
  %v3579 = vunpack.c.h.b16 %v750
  %v3580 = vunpack.c.l.b16 %v751
  %v3581 = vunpack.c.h.b16 %v751
  %v3582 = vunpack.c.l.b16 %v752
  %v3583 = vunpack.c.h.b16 %v752
  %v3584 = vunpack.c.l.b16 %v753
  %v3585 = vunpack.c.h.b16 %v753
  %v3586 = vunpack.c.l.b16 %v754
  %v3587 = vunpack.c.h.b16 %v754
  %v3588 = vunpack.c.l.b16 %v755
  %v3589 = vunpack.c.h.b16 %v755
  %v3590 = vunpack.c.l.b16 %v756
  %v3591 = vunpack.c.h.b16 %v756
  %v3592 = vunpack.c.l.b16 %v757
  %v3593 = vunpack.c.h.b16 %v757
  %v3594 = vunpack.c.l.b16 %v758
  %v3595 = vunpack.c.h.b16 %v758
  %v3596 = vunpack.c.l.b16 %v759
  %v3597 = vunpack.c.h.b16 %v759
  %v3598 = vunpack.c.l.b16 %v760
  %v3599 = vunpack.c.h.b16 %v760
  %v3600 = vunpack.c.l.b16 %v761
  %v3601 = vunpack.c.h.b16 %v761
  %v3602 = vunpack.c.l.b16 %v762
  %v3603 = vunpack.c.h.b16 %v762
  %v3604 = vunpack.c.l.b16 %v763
  %v3605 = vunpack.c.h.b16 %v763
  %v3606 = vunpack.c.l.b16 %v764
  %v3607 = vunpack.c.h.b16 %v764
  %v3608 = vunpack.c.l.b16 %v765
  %v3609 = vunpack.c.h.b16 %v765
  %v3610 = vunpack.c.l.b16 %v766
  %v3611 = vunpack.c.h.b16 %v766
  %v3612 = vunpack.c.l.b16 %v767
  %v3613 = vunpack.c.h.b16 %v767
  %v3614 = vunpack.c.l.b16 %v768
  %v3615 = vunpack.c.h.b16 %v768
  %v3616 = vunpack.c.l.b16 %v769
  %v3617 = vunpack.c.h.b16 %v769
  %v3618 = vunpack.c.l.b16 %v770
  %v3619 = vunpack.c.h.b16 %v770
  %v3620 = vunpack.c.l.b16 %v771
  %v3621 = vunpack.c.h.b16 %v771
  %v3622 = vunpack.c.l.b16 %v772
  %v3623 = vunpack.c.h.b16 %v772
  %v3624 = vunpack.c.l.b16 %v773
  %v3625 = vunpack.c.h.b16 %v773
  %v3626 = vunpack.c.l.b16 %v774
  %v3627 = vunpack.c.h.b16 %v774
  %v3628 = vunpack.c.l.b16 %v775
  %v3629 = vunpack.c.h.b16 %v775
  %v3630 = vunpack.c.l.b16 %v776
  %v3631 = vunpack.c.h.b16 %v776
  %v3632 = vunpack.c.l.b16 %v777
  %v3633 = vunpack.c.h.b16 %v777
  %v3634 = vunpack.c.l.b16 %v778
  %v3635 = vunpack.c.h.b16 %v778
  %v3636 = vunpack.c.l.b16 %v779
  %v3637 = vunpack.c.h.b16 %v779
  %v3638 = vunpack.c.l.b16 %v780
  %v3639 = vunpack.c.h.b16 %v780
  %v3640 = vunpack.c.l.b16 %v781
  %v3641 = vunpack.c.h.b16 %v781
  %v3642 = vunpack.c.l.b16 %v782
  %v3643 = vunpack.c.h.b16 %v782
  %v3644 = vunpack.c.l.b16 %v783
  %v3645 = vunpack.c.h.b16 %v783
  %v3646 = vunpack.c.l.b16 %v784
  %v3647 = vunpack.c.h.b16 %v784
  %v3648 = vunpack.c.l.b16 %v785
  %v3649 = vunpack.c.h.b16 %v785
  %v3650 = vunpack.c.l.b16 %v786
  %v3651 = vunpack.c.h.b16 %v786
  %v3652 = vunpack.c.l.b16 %v787
  %v3653 = vunpack.c.h.b16 %v787
  %v3654 = vunpack.c.l.b16 %v788
  %v3655 = vunpack.c.h.b16 %v788
  %v3656 = vunpack.c.l.b16 %v789
  %v3657 = vunpack.c.h.b16 %v789
  %v3658 = vunpack.c.l.b16 %v790
  %v3659 = vunpack.c.h.b16 %v790
  %v3660 = vunpack.c.l.b16 %v791
  %v3661 = vunpack.c.h.b16 %v791
  %v3662 = vunpack.c.l.b16 %v792
  %v3663 = vunpack.c.h.b16 %v792
  %v3664 = vunpack.c.l.b16 %v793
  %v3665 = vunpack.c.h.b16 %v793
  %v3666 = vunpack.c.l.b16 %v794
  %v3667 = vunpack.c.h.b16 %v794
  %v3668 = vunpack.c.l.b16 %v795
  %v3669 = vunpack.c.h.b16 %v795
  %v3670 = vunpack.c.l.b16 %v796
  %v3671 = vunpack.c.h.b16 %v796
  %v3672 = vunpack.c.l.b16 %v797
  %v3673 = vunpack.c.h.b16 %v797
  %v3674 = vunpack.c.l.b16 %v798
  %v3675 = vunpack.c.h.b16 %v798
  %v3676 = vunpack.c.l.b16 %v799
  %v3677 = vunpack.c.h.b16 %v799
  %v3678 = vunpack.c.l.b16 %v800
  %v3679 = vunpack.c.h.b16 %v800
  %v3680 = vunpack.c.l.b16 %v801
  %v3681 = vunpack.c.h.b16 %v801
  %v3682 = vunpack.c.l.b16 %v802
  %v3683 = vunpack.c.h.b16 %v802
  %v3684 = vunpack.c.l.b16 %v803
  %v3685 = vunpack.c.h.b16 %v803
  %v3686 = vunpack.c.l.b16 %v804
  %v3687 = vunpack.c.h.b16 %v804
  %v3688 = vunpack.c.l.b16 %v805
  %v3689 = vunpack.c.h.b16 %v805
  %v3690 = vunpack.c.l.b16 %v806
  %v3691 = vunpack.c.h.b16 %v806
  %v3692 = vunpack.c.l.b16 %v807
  %v3693 = vunpack.c.h.b16 %v807
  %v3694 = vunpack.c.l.b16 %v808
  %v3695 = vunpack.c.h.b16 %v808
  %v3696 = vunpack.c.l.b16 %v809
  %v3697 = vunpack.c.h.b16 %v809
  %v3698 = vunpack.c.l.b16 %v810
  %v3699 = vunpack.c.h.b16 %v810
  %v3700 = vunpack.c.l.b16 %v811
  %v3701 = vunpack.c.h.b16 %v811
  %v3702 = vunpack.c.l.b16 %v812
  %v3703 = vunpack.c.h.b16 %v812
  %v3704 = vunpack.c.l.b16 %v813
  %v3705 = vunpack.c.h.b16 %v813
  %v3706 = vunpack.c.l.b16 %v814
  %v3707 = vunpack.c.h.b16 %v814
  %v3708 = vunpack.c.l.b16 %v815
  %v3709 = vunpack.c.h.b16 %v815
  %v3710 = vunpack.c.l.b16 %v816
  %v3711 = vunpack.c.h.b16 %v816
  %v3712 = vunpack.c.l.b16 %v817
  %v3713 = vunpack.c.h.b16 %v817
  %v3714 = vunpack.c.l.b16 %v818
  %v3715 = vunpack.c.h.b16 %v818
  %v3716 = vunpack.c.l.b16 %v819
  %v3717 = vunpack.c.h.b16 %v819
  %v3718 = vunpack.c.l.b16 %v820
  %v3719 = vunpack.c.h.b16 %v820
  %v3720 = vunpack.c.l.b16 %v821
  %v3721 = vunpack.c.h.b16 %v821
  %v3722 = vunpack.c.l.b16 %v822
  %v3723 = vunpack.c.h.b16 %v822
  %v3724 = vunpack.c.l.b16 %v823
  %v3725 = vunpack.c.h.b16 %v823
  %v3726 = vunpack.c.l.b16 %v824
  %v3727 = vunpack.c.h.b16 %v824
  %v3728 = vunpack.c.l.b16 %v825
  %v3729 = vunpack.c.h.b16 %v825
  %v3730 = vunpack.c.l.b16 %v826
  %v3731 = vunpack.c.h.b16 %v826
  %v3732 = vunpack.c.l.b16 %v827
  %v3733 = vunpack.c.h.b16 %v827
  %v3734 = vunpack.c.l.b16 %v828
  %v3735 = vunpack.c.h.b16 %v828
  %v3736 = vunpack.c.l.b16 %v829
  %v3737 = vunpack.c.h.b16 %v829
  %v3738 = vunpack.c.l.b16 %v830
  %v3739 = vunpack.c.h.b16 %v830
  %v3740 = vunpack.c.l.b16 %v831
  %v3741 = vunpack.c.h.b16 %v831
  %v3742 = vunpack.c.l.b16 %v832
  %v3743 = vunpack.c.h.b16 %v832
  %v3744 = vunpack.c.l.b16 %v833
  %v3745 = vunpack.c.h.b16 %v833
  %v3746 = vunpack.c.l.b16 %v834
  %v3747 = vunpack.c.h.b16 %v834
  %v3748 = vunpack.c.l.b16 %v835
  %v3749 = vunpack.c.h.b16 %v835
  %v3750 = vunpack.c.l.b16 %v836
  %v3751 = vunpack.c.h.b16 %v836
  %v3752 = vunpack.c.l.b16 %v837
  %v3753 = vunpack.c.h.b16 %v837
  %v3754 = vunpack.c.l.b16 %v838
  %v3755 = vunpack.c.h.b16 %v838
  %v3756 = vunpack.c.l.b16 %v839
  %v3757 = vunpack.c.h.b16 %v839
  %v3758 = vunpack.c.l.b16 %v840
  %v3759 = vunpack.c.h.b16 %v840
  %v3760 = vunpack.c.l.b16 %v841
  %v3761 = vunpack.c.h.b16 %v841
  %v3762 = vunpack.c.l.b16 %v842
  %v3763 = vunpack.c.h.b16 %v842
  %v3764 = vunpack.c.l.b16 %v843
  %v3765 = vunpack.c.h.b16 %v843
  %v3766 = vunpack.c.l.b16 %v844
  %v3767 = vunpack.c.h.b16 %v844
  %v3768 = vunpack.c.l.b16 %v845
  %v3769 = vunpack.c.h.b16 %v845
  %v3770 = vunpack.c.l.b16 %v846
  %v3771 = vunpack.c.h.b16 %v846
  %v3772 = vunpack.c.l.b16 %v847
  %v3773 = vunpack.c.h.b16 %v847
  %v3774 = vunpack.c.l.b16 %v848
  %v3775 = vunpack.c.h.b16 %v848
  %v3776 = vunpack.c.l.b16 %v849
  %v3777 = vunpack.c.h.b16 %v849
  %v3778 = vunpack.c.l.b16 %v850
  %v3779 = vunpack.c.h.b16 %v850
  %v3780 = vunpack.c.l.b16 %v851
  %v3781 = vunpack.c.h.b16 %v851
  %v3782 = vunpack.c.l.b16 %v852
  %v3783 = vunpack.c.h.b16 %v852
  %v3784 = vunpack.c.l.b16 %v853
  %v3785 = vunpack.c.h.b16 %v853
  %v3786 = vunpack.c.l.b16 %v854
  %v3787 = vunpack.c.h.b16 %v854
  %v3788 = vunpack.c.l.b16 %v855
  %v3789 = vunpack.c.h.b16 %v855
  %v3790 = vunpack.c.l.b16 %v856
  %v3791 = vunpack.c.h.b16 %v856
  %v3792 = vunpack.c.l.b16 %v857
  %v3793 = vunpack.c.h.b16 %v857
  %v3794 = vunpack.c.l.b16 %v858
  %v3795 = vunpack.c.h.b16 %v858
  %v3796 = vunpack.c.l.b16 %v859
  %v3797 = vunpack.c.h.b16 %v859
  %v3798 = vunpack.c.l.b16 %v860
  %v3799 = vunpack.c.h.b16 %v860
  %v3800 = vunpack.c.l.b16 %v861
  %v3801 = vunpack.c.h.b16 %v861
  %v3802 = vunpack.c.l.b16 %v862
  %v3803 = vunpack.c.h.b16 %v862
  %v3804 = vunpack.c.l.b16 %v863
  %v3805 = vunpack.c.h.b16 %v863
  %v3806 = vunpack.c.l.b16 %v864
  %v3807 = vunpack.c.h.b16 %v864
  %v3808 = vunpack.c.l.b16 %v865
  %v3809 = vunpack.c.h.b16 %v865
  %v3810 = vunpack.c.l.b16 %v866
  %v3811 = vunpack.c.h.b16 %v866
  %v3812 = vunpack.c.l.b16 %v867
  %v3813 = vunpack.c.h.b16 %v867
  %v3814 = vunpack.c.l.b16 %v868
  %v3815 = vunpack.c.h.b16 %v868
  %v3816 = vunpack.c.l.b16 %v869
  %v3817 = vunpack.c.h.b16 %v869
  %v3818 = vunpack.c.l.b16 %v870
  %v3819 = vunpack.c.h.b16 %v870
  %v3820 = vunpack.c.l.b16 %v871
  %v3821 = vunpack.c.h.b16 %v871
  %v3822 = vunpack.c.l.b16 %v872
  %v3823 = vunpack.c.h.b16 %v872
  %v3824 = vunpack.c.l.b16 %v873
  %v3825 = vunpack.c.h.b16 %v873
  %v3826 = vunpack.c.l.b16 %v874
  %v3827 = vunpack.c.h.b16 %v874
  %v3828 = vunpack.c.l.b16 %v875
  %v3829 = vunpack.c.h.b16 %v875
  %v3830 = vunpack.c.l.b16 %v876
  %v3831 = vunpack.c.h.b16 %v876
  %v3832 = vunpack.c.l.b16 %v877
  %v3833 = vunpack.c.h.b16 %v877
  %v3834 = vunpack.c.l.b16 %v878
  %v3835 = vunpack.c.h.b16 %v878
  %v3836 = vunpack.c.l.b16 %v879
  %v3837 = vunpack.c.h.b16 %v879
  %v3838 = vunpack.c.l.b16 %v880
  %v3839 = vunpack.c.h.b16 %v880
  %v3840 = vunpack.c.l.b16 %v881
  %v3841 = vunpack.c.h.b16 %v881
  %v3842 = vunpack.c.l.b16 %v882
  %v3843 = vunpack.c.h.b16 %v882
  %v3844 = vunpack.c.l.b16 %v883
  %v3845 = vunpack.c.h.b16 %v883
  %v3846 = vunpack.c.l.b16 %v884
  %v3847 = vunpack.c.h.b16 %v884
  %v3848 = vunpack.c.l.b16 %v885
  %v3849 = vunpack.c.h.b16 %v885
  %v3850 = vunpack.c.l.b16 %v886
  %v3851 = vunpack.c.h.b16 %v886
  %v3852 = vunpack.c.l.b16 %v887
  %v3853 = vunpack.c.h.b16 %v887
  %v3854 = vunpack.c.l.b16 %v888
  %v3855 = vunpack.c.h.b16 %v888
  %v3856 = vunpack.c.l.b16 %v889
  %v3857 = vunpack.c.h.b16 %v889
  %v3858 = vunpack.c.l.b16 %v890
  %v3859 = vunpack.c.h.b16 %v890
  %v3860 = vunpack.c.l.b16 %v891
  %v3861 = vunpack.c.h.b16 %v891
  %v3862 = vunpack.c.l.b16 %v892
  %v3863 = vunpack.c.h.b16 %v892
  %v3864 = vunpack.c.l.b16 %v893
  %v3865 = vunpack.c.h.b16 %v893
  %v3866 = vunpack.c.l.b16 %v894
  %v3867 = vunpack.c.h.b16 %v894
  %v3868 = vunpack.c.l.b16 %v895
  %v3869 = vunpack.c.h.b16 %v895
  %v3870 = vunpack.c.l.b16 %v896
  %v3871 = vunpack.c.h.b16 %v896
  %v3872 = vunpack.c.l.b16 %v897
  %v3873 = vunpack.c.h.b16 %v897
  %v3874 = vunpack.c.l.b16 %v898
  %v3875 = vunpack.c.h.b16 %v898
  %v3876 = vunpack.c.l.b16 %v899
  %v3877 = vunpack.c.h.b16 %v899
  %v3878 = vunpack.c.l.b16 %v900
  %v3879 = vunpack.c.h.b16 %v900
  %v3880 = vunpack.c.l.b16 %v901
  %v3881 = vunpack.c.h.b16 %v901
  %v3882 = vunpack.c.l.b16 %v902
  %v3883 = vunpack.c.h.b16 %v902
  %v3884 = vunpack.c.l.b16 %v903
  %v3885 = vunpack.c.h.b16 %v903
  %v3886 = vunpack.c.l.b16 %v904
  %v3887 = vunpack.c.h.b16 %v904
  %v3888 = vunpack.c.l.b16 %v905
  %v3889 = vunpack.c.h.b16 %v905
  %v3890 = vunpack.c.l.b16 %v906
  %v3891 = vunpack.c.h.b16 %v906
  %v3892 = vunpack.c.l.b16 %v907
  %v3893 = vunpack.c.h.b16 %v907
  %v3894 = vunpack.c.l.b16 %v908
  %v3895 = vunpack.c.h.b16 %v908
  %v3896 = vunpack.c.l.b16 %v909
  %v3897 = vunpack.c.h.b16 %v909
  %v3898 = vunpack.c.l.b16 %v910
  %v3899 = vunpack.c.h.b16 %v910
  %v3900 = vunpack.c.l.b16 %v911
  %v3901 = vunpack.c.h.b16 %v911
  %v3902 = vunpack.c.l.b16 %v912
  %v3903 = vunpack.c.h.b16 %v912
  %v3904 = vunpack.c.l.b16 %v913
  %v3905 = vunpack.c.h.b16 %v913
  %v3906 = vunpack.c.l.b16 %v914
  %v3907 = vunpack.c.h.b16 %v914
  %v3908 = vunpack.c.l.b16 %v915
  %v3909 = vunpack.c.h.b16 %v915
  %v3910 = vunpack.c.l.b16 %v916
  %v3911 = vunpack.c.h.b16 %v916
  %v3912 = vunpack.c.l.b16 %v917
  %v3913 = vunpack.c.h.b16 %v917
  %v3914 = vunpack.c.l.b16 %v918
  %v3915 = vunpack.c.h.b16 %v918
  %v3916 = vunpack.c.l.b16 %v919
  %v3917 = vunpack.c.h.b16 %v919
  %v3918 = vunpack.c.l.b16 %v920
  %v3919 = vunpack.c.h.b16 %v920
  %v3920 = vunpack.c.l.b16 %v921
  %v3921 = vunpack.c.h.b16 %v921
  %v3922 = vunpack.c.l.b16 %v922
  %v3923 = vunpack.c.h.b16 %v922
  %v3924 = vunpack.c.l.b16 %v923
  %v3925 = vunpack.c.h.b16 %v923
  %v3926 = vunpack.c.l.b16 %v924
  %v3927 = vunpack.c.h.b16 %v924
  %v3928 = vunpack.c.l.b16 %v925
  %v3929 = vunpack.c.h.b16 %v925
  %v3930 = vunpack.c.l.b16 %v926
  %v3931 = vunpack.c.h.b16 %v926
  %v3932 = vunpack.c.l.b16 %v927
  %v3933 = vunpack.c.h.b16 %v927
  %v3934 = vunpack.c.l.b16 %v928
  %v3935 = vunpack.c.h.b16 %v928
  %v3936 = vunpack.c.l.b16 %v929
  %v3937 = vunpack.c.h.b16 %v929
  %v3938 = vunpack.c.l.b16 %v930
  %v3939 = vunpack.c.h.b16 %v930
  %v3940 = vunpack.c.l.b16 %v931
  %v3941 = vunpack.c.h.b16 %v931
  %v3942 = vunpack.c.l.b16 %v932
  %v3943 = vunpack.c.h.b16 %v932
  %v3944 = vunpack.c.l.b16 %v933
  %v3945 = vunpack.c.h.b16 %v933
  %v3946 = vunpack.c.l.b16 %v934
  %v3947 = vunpack.c.h.b16 %v934
  %v3948 = vunpack.c.l.b16 %v935
  %v3949 = vunpack.c.h.b16 %v935
  %v3950 = vunpack.c.l.b16 %v936
  %v3951 = vunpack.c.h.b16 %v936
  %v3952 = vunpack.c.l.b16 %v937
  %v3953 = vunpack.c.h.b16 %v937
  %v3954 = vunpack.c.l.b16 %v938
  %v3955 = vunpack.c.h.b16 %v938
  %v3956 = vunpack.c.l.b16 %v939
  %v3957 = vunpack.c.h.b16 %v939
  %v3958 = vunpack.c.l.b16 %v940
  %v3959 = vunpack.c.h.b16 %v940
  %v3960 = vunpack.c.l.b16 %v941
  %v3961 = vunpack.c.h.b16 %v941
  %v3962 = vunpack.c.l.b16 %v942
  %v3963 = vunpack.c.h.b16 %v942
  %v3964 = vunpack.c.l.b16 %v943
  %v3965 = vunpack.c.h.b16 %v943
  %v3966 = vunpack.c.l.b16 %v944
  %v3967 = vunpack.c.h.b16 %v944
  %v3968 = vunpack.c.l.b16 %v945
  %v3969 = vunpack.c.h.b16 %v945
  %v3970 = vunpack.c.l.b16 %v946
  %v3971 = vunpack.c.h.b16 %v946
  %v3972 = vunpack.c.l.b16 %v947
  %v3973 = vunpack.c.h.b16 %v947
  %v3974 = vunpack.c.l.b16 %v948
  %v3975 = vunpack.c.h.b16 %v948
  %v3976 = vunpack.c.l.b16 %v949
  %v3977 = vunpack.c.h.b16 %v949
  %v3978 = vunpack.c.l.b16 %v950
  %v3979 = vunpack.c.h.b16 %v950
  %v3980 = vunpack.c.l.b16 %v951
  %v3981 = vunpack.c.h.b16 %v951
  %v3982 = vunpack.c.l.b16 %v952
  %v3983 = vunpack.c.h.b16 %v952
  %v3984 = vunpack.c.l.b16 %v953
  %v3985 = vunpack.c.h.b16 %v953
  %v3986 = vunpack.c.l.b16 %v954
  %v3987 = vunpack.c.h.b16 %v954
  %v3988 = vunpack.c.l.b16 %v955
  %v3989 = vunpack.c.h.b16 %v955
  %v3990 = vunpack.c.l.b16 %v956
  %v3991 = vunpack.c.h.b16 %v956
  %v3992 = vunpack.c.l.b16 %v957
  %v3993 = vunpack.c.h.b16 %v957
  %v3994 = vunpack.c.l.b16 %v958
  %v3995 = vunpack.c.h.b16 %v958
  %v3996 = vunpack.c.l.b16 %v959
  %v3997 = vunpack.c.h.b16 %v959
  %v3998 = vunpack.c.l.b16 %v960
  %v3999 = vunpack.c.h.b16 %v960
  %v4000 = vunpack.c.l.b16 %v961
  %v4001 = vunpack.c.h.b16 %v961
  %v4002 = vunpack.c.l.b16 %v962
  %v4003 = vunpack.c.h.b16 %v962
  %v4004 = vunpack.c.l.b16 %v963
  %v4005 = vunpack.c.h.b16 %v963
  %v4006 = vunpack.c.l.b16 %v964
  %v4007 = vunpack.c.h.b16 %v964
  %v4008 = vunpack.c.l.b16 %v965
  %v4009 = vunpack.c.h.b16 %v965
  %v4010 = vunpack.c.l.b16 %v966
  %v4011 = vunpack.c.h.b16 %v966
  %v4012 = vunpack.c.l.b16 %v967
  %v4013 = vunpack.c.h.b16 %v967
  %v4014 = vunpack.c.l.b16 %v968
  %v4015 = vunpack.c.h.b16 %v968
  %v4016 = vunpack.c.l.b16 %v969
  %v4017 = vunpack.c.h.b16 %v969
  %v4018 = vunpack.c.l.b16 %v970
  %v4019 = vunpack.c.h.b16 %v970
  %v4020 = vunpack.c.l.b16 %v971
  %v4021 = vunpack.c.h.b16 %v971
  %v4022 = vunpack.c.l.b16 %v972
  %v4023 = vunpack.c.h.b16 %v972
  %v4024 = vunpack.c.l.b16 %v973
  %v4025 = vunpack.c.h.b16 %v973
  %v4026 = vunpack.c.l.b16 %v974
  %v4027 = vunpack.c.h.b16 %v974
  %v4028 = vunpack.c.l.b16 %v975
  %v4029 = vunpack.c.h.b16 %v975
  %v4030 = vunpack.c.l.b16 %v976
  %v4031 = vunpack.c.h.b16 %v976
  %v4032 = vunpack.c.l.b16 %v977
  %v4033 = vunpack.c.h.b16 %v977
  %v4034 = vunpack.c.l.b16 %v978
  %v4035 = vunpack.c.h.b16 %v978
  %v4036 = vunpack.c.l.b16 %v979
  %v4037 = vunpack.c.h.b16 %v979
  %v4038 = vunpack.c.l.b16 %v980
  %v4039 = vunpack.c.h.b16 %v980
  %v4040 = vunpack.c.l.b16 %v981
  %v4041 = vunpack.c.h.b16 %v981
  %v4042 = vunpack.c.l.b16 %v982
  %v4043 = vunpack.c.h.b16 %v982
  %v4044 = vunpack.c.l.b16 %v983
  %v4045 = vunpack.c.h.b16 %v983
  %v4046 = vunpack.c.l.b16 %v984
  %v4047 = vunpack.c.h.b16 %v984
  %v4048 = vunpack.c.l.b16 %v985
  %v4049 = vunpack.c.h.b16 %v985
  %v4050 = vunpack.c.l.b16 %v986
  %v4051 = vunpack.c.h.b16 %v986
  %v4052 = vunpack.c.l.b16 %v987
  %v4053 = vunpack.c.h.b16 %v987
  %v4054 = vunpack.c.l.b16 %v988
  %v4055 = vunpack.c.h.b16 %v988
  %v4056 = vunpack.c.l.b16 %v989
  %v4057 = vunpack.c.h.b16 %v989
  %v4058 = vunpack.c.l.b16 %v990
  %v4059 = vunpack.c.h.b16 %v990
  %v4060 = vunpack.c.l.b16 %v991
  %v4061 = vunpack.c.h.b16 %v991
  %v4062 = vunpack.c.l.b16 %v992
  %v4063 = vunpack.c.h.b16 %v992
  %v4064 = vunpack.c.l.b16 %v993
  %v4065 = vunpack.c.h.b16 %v993
  %v4066 = vunpack.c.l.b16 %v994
  %v4067 = vunpack.c.h.b16 %v994
  %v4068 = vunpack.c.l.b16 %v995
  %v4069 = vunpack.c.h.b16 %v995
  %v4070 = vunpack.c.l.b16 %v996
  %v4071 = vunpack.c.h.b16 %v996
  %v4072 = vunpack.c.l.b16 %v997
  %v4073 = vunpack.c.h.b16 %v997
  %v4074 = vunpack.c.l.b16 %v998
  %v4075 = vunpack.c.h.b16 %v998
  %v4076 = vunpack.c.l.b16 %v999
  %v4077 = vunpack.c.h.b16 %v999
  %v4078 = vunpack.c.l.b16 %v1000
  %v4079 = vunpack.c.h.b16 %v1000
  %v4080 = vunpack.c.l.b16 %v1001
  %v4081 = vunpack.c.h.b16 %v1001
  %v4082 = vunpack.c.l.b16 %v1002
  %v4083 = vunpack.c.h.b16 %v1002
  %v4084 = vunpack.c.l.b16 %v1003
  %v4085 = vunpack.c.h.b16 %v1003
  %v4086 = vunpack.c.l.b16 %v1004
  %v4087 = vunpack.c.h.b16 %v1004
  %v4088 = vunpack.c.l.b16 %v1005
  %v4089 = vunpack.c.h.b16 %v1005
  %v4090 = vunpack.c.l.b16 %v1006
  %v4091 = vunpack.c.h.b16 %v1006
  %v4092 = vunpack.c.l.b16 %v1007
  %v4093 = vunpack.c.h.b16 %v1007
  %v4094 = vunpack.c.l.b16 %v1008
  %v4095 = vunpack.c.h.b16 %v1008
  %v4096 = vunpack.c.l.b16 %v1009
  %v4097 = vunpack.c.h.b16 %v1009
  %v4098 = vunpack.c.l.b16 %v1010
  %v4099 = vunpack.c.h.b16 %v1010
  %v4100 = vunpack.c.l.b16 %v1011
  %v4101 = vunpack.c.h.b16 %v1011
  %v4102 = vunpack.c.l.b16 %v1012
  %v4103 = vunpack.c.h.b16 %v1012
  %v4104 = vunpack.c.l.b16 %v1013
  %v4105 = vunpack.c.h.b16 %v1013
  %v4106 = vunpack.c.l.b16 %v1014
  %v4107 = vunpack.c.h.b16 %v1014
  %v4108 = vunpack.c.l.b16 %v1015
  %v4109 = vunpack.c.h.b16 %v1015
  %v4110 = vunpack.c.l.b16 %v1016
  %v4111 = vunpack.c.h.b16 %v1016
  %v4112 = vunpack.c.l.b16 %v1017
  %v4113 = vunpack.c.h.b16 %v1017
  %v4114 = vunpack.c.l.b16 %v1018
  %v4115 = vunpack.c.h.b16 %v1018
  %v4116 = vunpack.c.l.b16 %v1019
  %v4117 = vunpack.c.h.b16 %v1019
  %v4118 = vunpack.c.l.b16 %v1020
  %v4119 = vunpack.c.h.b16 %v1020
  %v4120 = vunpack.c.l.b16 %v1021
  %v4121 = vunpack.c.h.b16 %v1021
  %v4122 = vunpack.c.l.b16 %v1022
  %v4123 = vunpack.c.h.b16 %v1022
  %v4124 = vunpack.c.l.b16 %v1023
  %v4125 = vunpack.c.h.b16 %v1023
  %v4126 = vunpack.c.l.b16 %v1024
  %v4127 = vunpack.c.h.b16 %v1024
  %v4128 = vunpack.c.l.b16 %v1025
  %v4129 = vunpack.c.h.b16 %v1025
  %v4130 = vunpack.c.l.b16 %v1026
  %v4131 = vunpack.c.h.b16 %v1026
  %v4132 = vunpack.c.l.b16 %v1027
  %v4133 = vunpack.c.h.b16 %v1027
  %v4134 = vunpack.c.l.b16 %v1028
  %v4135 = vunpack.c.h.b16 %v1028
  %v4136 = vpack.c.b16 %v2156, %v2152
  %v4137 = vpack.c.b16 %v2157, %v2153
  %v4138 = vpack.c.b16 %v2158, %v2154
  %v4139 = vpack.c.b16 %v2159, %v2155
  %v4140 = vpack.c.b16 %v2164, %v2160
  %v4141 = vpack.c.b16 %v2165, %v2161
  %v4142 = vpack.c.b16 %v2166, %v2162
  %v4143 = vpack.c.b16 %v2167, %v2163
  %v4144 = vpack.c.b16 %v2172, %v2168
  %v4145 = vpack.c.b16 %v2173, %v2169
  %v4146 = vpack.c.b16 %v2174, %v2170
  %v4147 = vpack.c.b16 %v2175, %v2171
  %v4148 = vpack.c.b16 %v2180, %v2176
  %v4149 = vpack.c.b16 %v2181, %v2177
  %v4150 = vpack.c.b16 %v2182, %v2178
  %v4151 = vpack.c.b16 %v2183, %v2179
  %v4152 = vpack.c.b16 %v2188, %v2184
  %v4153 = vpack.c.b16 %v2189, %v2185
  %v4154 = vpack.c.b16 %v2190, %v2186
  %v4155 = vpack.c.b16 %v2191, %v2187
  %v4156 = vpack.c.b16 %v2196, %v2192
  %v4157 = vpack.c.b16 %v2197, %v2193
  %v4158 = vpack.c.b16 %v2198, %v2194
  %v4159 = vpack.c.b16 %v2199, %v2195
  %v4160 = vpack.c.b16 %v2204, %v2200
  %v4161 = vpack.c.b16 %v2205, %v2201
  %v4162 = vpack.c.b16 %v2206, %v2202
  %v4163 = vpack.c.b16 %v2207, %v2203
  %v4164 = vpack.c.b16 %v2212, %v2208
  %v4165 = vpack.c.b16 %v2213, %v2209
  %v4166 = vpack.c.b16 %v2214, %v2210
  %v4167 = vpack.c.b16 %v2215, %v2211
  %v4168 = vpack.c.b16 %v2220, %v2216
  %v4169 = vpack.c.b16 %v2221, %v2217
  %v4170 = vpack.c.b16 %v2222, %v2218
  %v4171 = vpack.c.b16 %v2223, %v2219
  %v4172 = vpack.c.b16 %v2228, %v2224
  %v4173 = vpack.c.b16 %v2229, %v2225
  %v4174 = vpack.c.b16 %v2230, %v2226
  %v4175 = vpack.c.b16 %v2231, %v2227
  %v4176 = vpack.c.b16 %v2236, %v2232
  %v4177 = vpack.c.b16 %v2237, %v2233
  %v4178 = vpack.c.b16 %v2238, %v2234
  %v4179 = vpack.c.b16 %v2239, %v2235
  %v4180 = vpack.c.b16 %v2244, %v2240
  %v4181 = vpack.c.b16 %v2245, %v2241
  %v4182 = vpack.c.b16 %v2246, %v2242
  %v4183 = vpack.c.b16 %v2247, %v2243
  %v4184 = vpack.c.b16 %v2252, %v2248
  %v4185 = vpack.c.b16 %v2253, %v2249
  %v4186 = vpack.c.b16 %v2254, %v2250
  %v4187 = vpack.c.b16 %v2255, %v2251
  %v4188 = vpack.c.b16 %v2260, %v2256
  %v4189 = vpack.c.b16 %v2261, %v2257
  %v4190 = vpack.c.b16 %v2262, %v2258
  %v4191 = vpack.c.b16 %v2263, %v2259
  %v4192 = vpack.c.b16 %v2268, %v2264
  %v4193 = vpack.c.b16 %v2269, %v2265
  %v4194 = vpack.c.b16 %v2270, %v2266
  %v4195 = vpack.c.b16 %v2271, %v2267
  %v4196 = vpack.c.b16 %v2276, %v2272
  %v4197 = vpack.c.b16 %v2277, %v2273
  %v4198 = vpack.c.b16 %v2278, %v2274
  %v4199 = vpack.c.b16 %v2279, %v2275
  %v4200 = vpack.c.b16 %v2284, %v2280
  %v4201 = vpack.c.b16 %v2285, %v2281
  %v4202 = vpack.c.b16 %v2286, %v2282
  %v4203 = vpack.c.b16 %v2287, %v2283
  %v4204 = vpack.c.b16 %v2292, %v2288
  %v4205 = vpack.c.b16 %v2293, %v2289
  %v4206 = vpack.c.b16 %v2294, %v2290
  %v4207 = vpack.c.b16 %v2295, %v2291
  %v4208 = vpack.c.b16 %v2300, %v2296
  %v4209 = vpack.c.b16 %v2301, %v2297
  %v4210 = vpack.c.b16 %v2302, %v2298
  %v4211 = vpack.c.b16 %v2303, %v2299
  %v4212 = vpack.c.b16 %v2308, %v2304
  %v4213 = vpack.c.b16 %v2309, %v2305
  %v4214 = vpack.c.b16 %v2310, %v2306
  %v4215 = vpack.c.b16 %v2311, %v2307
  %v4216 = vpack.c.b16 %v2316, %v2312
  %v4217 = vpack.c.b16 %v2317, %v2313
  %v4218 = vpack.c.b16 %v2318, %v2314
  %v4219 = vpack.c.b16 %v2319, %v2315
  %v4220 = vpack.c.b16 %v2324, %v2320
  %v4221 = vpack.c.b16 %v2325, %v2321
  %v4222 = vpack.c.b16 %v2326, %v2322
  %v4223 = vpack.c.b16 %v2327, %v2323
  %v4224 = vpack.c.b16 %v2332, %v2328
  %v4225 = vpack.c.b16 %v2333, %v2329
  %v4226 = vpack.c.b16 %v2334, %v2330
  %v4227 = vpack.c.b16 %v2335, %v2331
  %v4228 = vpack.c.b16 %v2340, %v2336
  %v4229 = vpack.c.b16 %v2341, %v2337
  %v4230 = vpack.c.b16 %v2342, %v2338
  %v4231 = vpack.c.b16 %v2343, %v2339
  %v4232 = vpack.c.b16 %v2348, %v2344
  %v4233 = vpack.c.b16 %v2349, %v2345
  %v4234 = vpack.c.b16 %v2350, %v2346
  %v4235 = vpack.c.b16 %v2351, %v2347
  %v4236 = vpack.c.b16 %v2356, %v2352
  %v4237 = vpack.c.b16 %v2357, %v2353
  %v4238 = vpack.c.b16 %v2358, %v2354
  %v4239 = vpack.c.b16 %v2359, %v2355
  %v4240 = vpack.c.b16 %v2364, %v2360
  %v4241 = vpack.c.b16 %v2365, %v2361
  %v4242 = vpack.c.b16 %v2366, %v2362
  %v4243 = vpack.c.b16 %v2367, %v2363
  %v4244 = vpack.c.b16 %v2372, %v2368
  %v4245 = vpack.c.b16 %v2373, %v2369
  %v4246 = vpack.c.b16 %v2374, %v2370
  %v4247 = vpack.c.b16 %v2375, %v2371
  %v4248 = vpack.c.b16 %v2380, %v2376
  %v4249 = vpack.c.b16 %v2381, %v2377
  %v4250 = vpack.c.b16 %v2382, %v2378
  %v4251 = vpack.c.b16 %v2383, %v2379
  %v4252 = vpack.c.b16 %v2388, %v2384
  %v4253 = vpack.c.b16 %v2389, %v2385
  %v4254 = vpack.c.b16 %v2390, %v2386
  %v4255 = vpack.c.b16 %v2391, %v2387
  %v4256 = vpack.c.b16 %v2396, %v2392
  %v4257 = vpack.c.b16 %v2397, %v2393
  %v4258 = vpack.c.b16 %v2398, %v2394
  %v4259 = vpack.c.b16 %v2399, %v2395
  %v4260 = vpack.c.b16 %v2404, %v2400
  %v4261 = vpack.c.b16 %v2405, %v2401
  %v4262 = vpack.c.b16 %v2406, %v2402
  %v4263 = vpack.c.b16 %v2407, %v2403
  %v4264 = vpack.c.b16 %v2412, %v2408
  %v4265 = vpack.c.b16 %v2413, %v2409
  %v4266 = vpack.c.b16 %v2414, %v2410
  %v4267 = vpack.c.b16 %v2415, %v2411
  %v4268 = vpack.c.b16 %v2420, %v2416
  %v4269 = vpack.c.b16 %v2421, %v2417
  %v4270 = vpack.c.b16 %v2422, %v2418
  %v4271 = vpack.c.b16 %v2423, %v2419
  %v4272 = vpack.c.b16 %v2428, %v2424
  %v4273 = vpack.c.b16 %v2429, %v2425
  %v4274 = vpack.c.b16 %v2430, %v2426
  %v4275 = vpack.c.b16 %v2431, %v2427
  %v4276 = vpack.c.b16 %v2436, %v2432
  %v4277 = vpack.c.b16 %v2437, %v2433
  %v4278 = vpack.c.b16 %v2438, %v2434
  %v4279 = vpack.c.b16 %v2439, %v2435
  %v4280 = vpack.c.b16 %v2444, %v2440
  %v4281 = vpack.c.b16 %v2445, %v2441
  %v4282 = vpack.c.b16 %v2446, %v2442
  %v4283 = vpack.c.b16 %v2447, %v2443
  %v4284 = vpack.c.b16 %v2452, %v2448
  %v4285 = vpack.c.b16 %v2453, %v2449
  %v4286 = vpack.c.b16 %v2454, %v2450
  %v4287 = vpack.c.b16 %v2455, %v2451
  %v4288 = vpack.c.b16 %v2460, %v2456
  %v4289 = vpack.c.b16 %v2461, %v2457
  %v4290 = vpack.c.b16 %v2462, %v2458
  %v4291 = vpack.c.b16 %v2463, %v2459
  %v4292 = vpack.c.b16 %v2468, %v2464
  %v4293 = vpack.c.b16 %v2469, %v2465
  %v4294 = vpack.c.b16 %v2470, %v2466
  %v4295 = vpack.c.b16 %v2471, %v2467
  %v4296 = vpack.c.b16 %v2476, %v2472
  %v4297 = vpack.c.b16 %v2477, %v2473
  %v4298 = vpack.c.b16 %v2478, %v2474
  %v4299 = vpack.c.b16 %v2479, %v2475
  %v4300 = vpack.c.b16 %v2484, %v2480
  %v4301 = vpack.c.b16 %v2485, %v2481
  %v4302 = vpack.c.b16 %v2486, %v2482
  %v4303 = vpack.c.b16 %v2487, %v2483
  %v4304 = vpack.c.b16 %v2492, %v2488
  %v4305 = vpack.c.b16 %v2493, %v2489
  %v4306 = vpack.c.b16 %v2494, %v2490
  %v4307 = vpack.c.b16 %v2495, %v2491
  %v4308 = vpack.c.b16 %v2500, %v2496
  %v4309 = vpack.c.b16 %v2501, %v2497
  %v4310 = vpack.c.b16 %v2502, %v2498
  %v4311 = vpack.c.b16 %v2503, %v2499
  %v4312 = vpack.c.b16 %v2508, %v2504
  %v4313 = vpack.c.b16 %v2509, %v2505
  %v4314 = vpack.c.b16 %v2510, %v2506
  %v4315 = vpack.c.b16 %v2511, %v2507
  %v4316 = vpack.c.b16 %v2516, %v2512
  %v4317 = vpack.c.b16 %v2517, %v2513
  %v4318 = vpack.c.b16 %v2518, %v2514
  %v4319 = vpack.c.b16 %v2519, %v2515
  %v4320 = vpack.c.b16 %v2524, %v2520
  %v4321 = vpack.c.b16 %v2525, %v2521
  %v4322 = vpack.c.b16 %v2526, %v2522
  %v4323 = vpack.c.b16 %v2527, %v2523
  %v4324 = vpack.c.b16 %v2532, %v2528
  %v4325 = vpack.c.b16 %v2533, %v2529
  %v4326 = vpack.c.b16 %v2534, %v2530
  %v4327 = vpack.c.b16 %v2535, %v2531
  %v4328 = vpack.c.b16 %v2540, %v2536
  %v4329 = vpack.c.b16 %v2541, %v2537
  %v4330 = vpack.c.b16 %v2542, %v2538
  %v4331 = vpack.c.b16 %v2543, %v2539
  %v4332 = vpack.c.b16 %v2548, %v2544
  %v4333 = vpack.c.b16 %v2549, %v2545
  %v4334 = vpack.c.b16 %v2550, %v2546
  %v4335 = vpack.c.b16 %v2551, %v2547
  %v4336 = vpack.c.b16 %v2556, %v2552
  %v4337 = vpack.c.b16 %v2557, %v2553
  %v4338 = vpack.c.b16 %v2558, %v2554
  %v4339 = vpack.c.b16 %v2559, %v2555
  %v4340 = vpack.c.b16 %v2564, %v2560
  %v4341 = vpack.c.b16 %v2565, %v2561
  %v4342 = vpack.c.b16 %v2566, %v2562
  %v4343 = vpack.c.b16 %v2567, %v2563
  %v4344 = vpack.c.b16 %v2572, %v2568
  %v4345 = vpack.c.b16 %v2573, %v2569
  %v4346 = vpack.c.b16 %v2574, %v2570
  %v4347 = vpack.c.b16 %v2575, %v2571
  %v4348 = vpack.c.b16 %v2580, %v2576
  %v4349 = vpack.c.b16 %v2581, %v2577
  %v4350 = vpack.c.b16 %v2582, %v2578
  %v4351 = vpack.c.b16 %v2583, %v2579
  %v4352 = vpack.c.b16 %v2588, %v2584
  %v4353 = vpack.c.b16 %v2589, %v2585
  %v4354 = vpack.c.b16 %v2590, %v2586
  %v4355 = vpack.c.b16 %v2591, %v2587
  %v4356 = vpack.c.b16 %v2596, %v2592
  %v4357 = vpack.c.b16 %v2597, %v2593
  %v4358 = vpack.c.b16 %v2598, %v2594
  %v4359 = vpack.c.b16 %v2599, %v2595
  %v4360 = vpack.c.b16 %v2604, %v2600
  %v4361 = vpack.c.b16 %v2605, %v2601
  %v4362 = vpack.c.b16 %v2606, %v2602
  %v4363 = vpack.c.b16 %v2607, %v2603
  %v4364 = vpack.c.b16 %v2612, %v2608
  %v4365 = vpack.c.b16 %v2613, %v2609
  %v4366 = vpack.c.b16 %v2614, %v2610
  %v4367 = vpack.c.b16 %v2615, %v2611
  %v4368 = vpack.c.b16 %v2620, %v2616
  %v4369 = vpack.c.b16 %v2621, %v2617
  %v4370 = vpack.c.b16 %v2622, %v2618
  %v4371 = vpack.c.b16 %v2623, %v2619
  %v4372 = vpack.c.b16 %v2628, %v2624
  %v4373 = vpack.c.b16 %v2629, %v2625
  %v4374 = vpack.c.b16 %v2630, %v2626
  %v4375 = vpack.c.b16 %v2631, %v2627
  %v4376 = vpack.c.b16 %v2636, %v2632
  %v4377 = vpack.c.b16 %v2637, %v2633
  %v4378 = vpack.c.b16 %v2638, %v2634
  %v4379 = vpack.c.b16 %v2639, %v2635
  %v4380 = vpack.c.b16 %v2644, %v2640
  %v4381 = vpack.c.b16 %v2645, %v2641
  %v4382 = vpack.c.b16 %v2646, %v2642
  %v4383 = vpack.c.b16 %v2647, %v2643
  %v4384 = vpack.c.b16 %v2652, %v2648
  %v4385 = vpack.c.b16 %v2653, %v2649
  %v4386 = vpack.c.b16 %v2654, %v2650
  %v4387 = vpack.c.b16 %v2655, %v2651
  %v4388 = vpack.c.b16 %v2660, %v2656
  %v4389 = vpack.c.b16 %v2661, %v2657
  %v4390 = vpack.c.b16 %v2662, %v2658
  %v4391 = vpack.c.b16 %v2663, %v2659
  %v4392 = vpack.c.b16 %v2668, %v2664
  %v4393 = vpack.c.b16 %v2669, %v2665
  %v4394 = vpack.c.b16 %v2670, %v2666
  %v4395 = vpack.c.b16 %v2671, %v2667
  %v4396 = vpack.c.b16 %v2676, %v2672
  %v4397 = vpack.c.b16 %v2677, %v2673
  %v4398 = vpack.c.b16 %v2678, %v2674
  %v4399 = vpack.c.b16 %v2679, %v2675
  %v4400 = vpack.c.b16 %v2684, %v2680
  %v4401 = vpack.c.b16 %v2685, %v2681
  %v4402 = vpack.c.b16 %v2686, %v2682
  %v4403 = vpack.c.b16 %v2687, %v2683
  %v4404 = vpack.c.b16 %v2692, %v2688
  %v4405 = vpack.c.b16 %v2693, %v2689
  %v4406 = vpack.c.b16 %v2694, %v2690
  %v4407 = vpack.c.b16 %v2695, %v2691
  %v4408 = vpack.c.b16 %v2700, %v2696
  %v4409 = vpack.c.b16 %v2701, %v2697
  %v4410 = vpack.c.b16 %v2702, %v2698
  %v4411 = vpack.c.b16 %v2703, %v2699
  %v4412 = vpack.c.b16 %v2708, %v2704
  %v4413 = vpack.c.b16 %v2709, %v2705
  %v4414 = vpack.c.b16 %v2710, %v2706
  %v4415 = vpack.c.b16 %v2711, %v2707
  %v4416 = vpack.c.b16 %v2716, %v2712
  %v4417 = vpack.c.b16 %v2717, %v2713
  %v4418 = vpack.c.b16 %v2718, %v2714
  %v4419 = vpack.c.b16 %v2719, %v2715
  %v4420 = vpack.c.b16 %v2724, %v2720
  %v4421 = vpack.c.b16 %v2725, %v2721
  %v4422 = vpack.c.b16 %v2726, %v2722
  %v4423 = vpack.c.b16 %v2727, %v2723
  %v4424 = vpack.c.b16 %v2732, %v2728
  %v4425 = vpack.c.b16 %v2733, %v2729
  %v4426 = vpack.c.b16 %v2734, %v2730
  %v4427 = vpack.c.b16 %v2735, %v2731
  %v4428 = vpack.c.b16 %v2740, %v2736
  %v4429 = vpack.c.b16 %v2741, %v2737
  %v4430 = vpack.c.b16 %v2742, %v2738
  %v4431 = vpack.c.b16 %v2743, %v2739
  %v4432 = vpack.c.b16 %v2748, %v2744
  %v4433 = vpack.c.b16 %v2749, %v2745
  %v4434 = vpack.c.b16 %v2750, %v2746
  %v4435 = vpack.c.b16 %v2751, %v2747
  %v4436 = vpack.c.b16 %v2756, %v2752
  %v4437 = vpack.c.b16 %v2757, %v2753
  %v4438 = vpack.c.b16 %v2758, %v2754
  %v4439 = vpack.c.b16 %v2759, %v2755
  %v4440 = vpack.c.b16 %v2764, %v2760
  %v4441 = vpack.c.b16 %v2765, %v2761
  %v4442 = vpack.c.b16 %v2766, %v2762
  %v4443 = vpack.c.b16 %v2767, %v2763
  %v4444 = vpack.c.b16 %v2772, %v2768
  %v4445 = vpack.c.b16 %v2773, %v2769
  %v4446 = vpack.c.b16 %v2774, %v2770
  %v4447 = vpack.c.b16 %v2775, %v2771
  %v4448 = vpack.c.b16 %v2780, %v2776
  %v4449 = vpack.c.b16 %v2781, %v2777
  %v4450 = vpack.c.b16 %v2782, %v2778
  %v4451 = vpack.c.b16 %v2783, %v2779
  %v4452 = vpack.c.b16 %v2788, %v2784
  %v4453 = vpack.c.b16 %v2789, %v2785
  %v4454 = vpack.c.b16 %v2790, %v2786
  %v4455 = vpack.c.b16 %v2791, %v2787
  %v4456 = vpack.c.b16 %v2796, %v2792
  %v4457 = vpack.c.b16 %v2797, %v2793
  %v4458 = vpack.c.b16 %v2798, %v2794
  %v4459 = vpack.c.b16 %v2799, %v2795
  %v4460 = vpack.c.b16 %v2804, %v2800
  %v4461 = vpack.c.b16 %v2805, %v2801
  %v4462 = vpack.c.b16 %v2806, %v2802
  %v4463 = vpack.c.b16 %v2807, %v2803
  %v4464 = vpack.c.b16 %v2812, %v2808
  %v4465 = vpack.c.b16 %v2813, %v2809
  %v4466 = vpack.c.b16 %v2814, %v2810
  %v4467 = vpack.c.b16 %v2815, %v2811
  %v4468 = vpack.c.b16 %v2820, %v2816
  %v4469 = vpack.c.b16 %v2821, %v2817
  %v4470 = vpack.c.b16 %v2822, %v2818
  %v4471 = vpack.c.b16 %v2823, %v2819
  %v4472 = vpack.c.b16 %v2828, %v2824
  %v4473 = vpack.c.b16 %v2829, %v2825
  %v4474 = vpack.c.b16 %v2830, %v2826
  %v4475 = vpack.c.b16 %v2831, %v2827
  %v4476 = vpack.c.b16 %v2836, %v2832
  %v4477 = vpack.c.b16 %v2837, %v2833
  %v4478 = vpack.c.b16 %v2838, %v2834
  %v4479 = vpack.c.b16 %v2839, %v2835
  %v4480 = vpack.c.b16 %v2844, %v2840
  %v4481 = vpack.c.b16 %v2845, %v2841
  %v4482 = vpack.c.b16 %v2846, %v2842
  %v4483 = vpack.c.b16 %v2847, %v2843
  %v4484 = vpack.c.b16 %v2852, %v2848
  %v4485 = vpack.c.b16 %v2853, %v2849
  %v4486 = vpack.c.b16 %v2854, %v2850
  %v4487 = vpack.c.b16 %v2855, %v2851
  %v4488 = vpack.c.b16 %v2860, %v2856
  %v4489 = vpack.c.b16 %v2861, %v2857
  %v4490 = vpack.c.b16 %v2862, %v2858
  %v4491 = vpack.c.b16 %v2863, %v2859
  %v4492 = vpack.c.b16 %v2868, %v2864
  %v4493 = vpack.c.b16 %v2869, %v2865
  %v4494 = vpack.c.b16 %v2870, %v2866
  %v4495 = vpack.c.b16 %v2871, %v2867
  %v4496 = vpack.c.b16 %v2876, %v2872
  %v4497 = vpack.c.b16 %v2877, %v2873
  %v4498 = vpack.c.b16 %v2878, %v2874
  %v4499 = vpack.c.b16 %v2879, %v2875
  %v4500 = vpack.c.b16 %v2884, %v2880
  %v4501 = vpack.c.b16 %v2885, %v2881
  %v4502 = vpack.c.b16 %v2886, %v2882
  %v4503 = vpack.c.b16 %v2887, %v2883
  %v4504 = vpack.c.b16 %v2892, %v2888
  %v4505 = vpack.c.b16 %v2893, %v2889
  %v4506 = vpack.c.b16 %v2894, %v2890
  %v4507 = vpack.c.b16 %v2895, %v2891
  %v4508 = vpack.c.b16 %v2900, %v2896
  %v4509 = vpack.c.b16 %v2901, %v2897
  %v4510 = vpack.c.b16 %v2902, %v2898
  %v4511 = vpack.c.b16 %v2903, %v2899
  %v4512 = vpack.c.b16 %v2908, %v2904
  %v4513 = vpack.c.b16 %v2909, %v2905
  %v4514 = vpack.c.b16 %v2910, %v2906
  %v4515 = vpack.c.b16 %v2911, %v2907
  %v4516 = vpack.c.b16 %v2916, %v2912
  %v4517 = vpack.c.b16 %v2917, %v2913
  %v4518 = vpack.c.b16 %v2918, %v2914
  %v4519 = vpack.c.b16 %v2919, %v2915
  %v4520 = vpack.c.b16 %v2924, %v2920
  %v4521 = vpack.c.b16 %v2925, %v2921
  %v4522 = vpack.c.b16 %v2926, %v2922
  %v4523 = vpack.c.b16 %v2927, %v2923
  %v4524 = vpack.c.b16 %v2932, %v2928
  %v4525 = vpack.c.b16 %v2933, %v2929
  %v4526 = vpack.c.b16 %v2934, %v2930
  %v4527 = vpack.c.b16 %v2935, %v2931
  %v4528 = vpack.c.b16 %v2940, %v2936
  %v4529 = vpack.c.b16 %v2941, %v2937
  %v4530 = vpack.c.b16 %v2942, %v2938
  %v4531 = vpack.c.b16 %v2943, %v2939
  %v4532 = vpack.c.b16 %v2948, %v2944
  %v4533 = vpack.c.b16 %v2949, %v2945
  %v4534 = vpack.c.b16 %v2950, %v2946
  %v4535 = vpack.c.b16 %v2951, %v2947
  %v4536 = vpack.c.b16 %v2956, %v2952
  %v4537 = vpack.c.b16 %v2957, %v2953
  %v4538 = vpack.c.b16 %v2958, %v2954
  %v4539 = vpack.c.b16 %v2959, %v2955
  %v4540 = vpack.c.b16 %v2964, %v2960
  %v4541 = vpack.c.b16 %v2965, %v2961
  %v4542 = vpack.c.b16 %v2966, %v2962
  %v4543 = vpack.c.b16 %v2967, %v2963
  %v4544 = vpack.c.b16 %v2972, %v2968
  %v4545 = vpack.c.b16 %v2973, %v2969
  %v4546 = vpack.c.b16 %v2974, %v2970
  %v4547 = vpack.c.b16 %v2975, %v2971
  %v4548 = vpack.c.b16 %v2980, %v2976
  %v4549 = vpack.c.b16 %v2981, %v2977
  %v4550 = vpack.c.b16 %v2982, %v2978
  %v4551 = vpack.c.b16 %v2983, %v2979
  %v4552 = vpack.c.b16 %v2988, %v2984
  %v4553 = vpack.c.b16 %v2989, %v2985
  %v4554 = vpack.c.b16 %v2990, %v2986
  %v4555 = vpack.c.b16 %v2991, %v2987
  %v4556 = vpack.c.b16 %v2996, %v2992
  %v4557 = vpack.c.b16 %v2997, %v2993
  %v4558 = vpack.c.b16 %v2998, %v2994
  %v4559 = vpack.c.b16 %v2999, %v2995
  %v4560 = vpack.c.b16 %v3004, %v3000
  %v4561 = vpack.c.b16 %v3005, %v3001
  %v4562 = vpack.c.b16 %v3006, %v3002
  %v4563 = vpack.c.b16 %v3007, %v3003
  %v4564 = vpack.c.b16 %v3012, %v3008
  %v4565 = vpack.c.b16 %v3013, %v3009
  %v4566 = vpack.c.b16 %v3014, %v3010
  %v4567 = vpack.c.b16 %v3015, %v3011
  %v4568 = vpack.c.b16 %v3020, %v3016
  %v4569 = vpack.c.b16 %v3021, %v3017
  %v4570 = vpack.c.b16 %v3022, %v3018
  %v4571 = vpack.c.b16 %v3023, %v3019
  %v4572 = vpack.c.b16 %v3028, %v3024
  %v4573 = vpack.c.b16 %v3029, %v3025
  %v4574 = vpack.c.b16 %v3030, %v3026
  %v4575 = vpack.c.b16 %v3031, %v3027
  %v4576 = vpack.c.b16 %v3036, %v3032
  %v4577 = vpack.c.b16 %v3037, %v3033
  %v4578 = vpack.c.b16 %v3038, %v3034
  %v4579 = vpack.c.b16 %v3039, %v3035
  %v4580 = vpack.c.b16 %v3044, %v3040
  %v4581 = vpack.c.b16 %v3045, %v3041
  %v4582 = vpack.c.b16 %v3046, %v3042
  %v4583 = vpack.c.b16 %v3047, %v3043
  %v4584 = vpack.c.b16 %v3052, %v3048
  %v4585 = vpack.c.b16 %v3053, %v3049
  %v4586 = vpack.c.b16 %v3054, %v3050
  %v4587 = vpack.c.b16 %v3055, %v3051
  %v4588 = vpack.c.b16 %v3060, %v3056
  %v4589 = vpack.c.b16 %v3061, %v3057
  %v4590 = vpack.c.b16 %v3062, %v3058
  %v4591 = vpack.c.b16 %v3063, %v3059
  %v4592 = vpack.c.b16 %v3068, %v3064
  %v4593 = vpack.c.b16 %v3069, %v3065
  %v4594 = vpack.c.b16 %v3070, %v3066
  %v4595 = vpack.c.b16 %v3071, %v3067
  %v4596 = vpack.c.b16 %v3076, %v3072
  %v4597 = vpack.c.b16 %v3077, %v3073
  %v4598 = vpack.c.b16 %v3078, %v3074
  %v4599 = vpack.c.b16 %v3079, %v3075
  %v4600 = vpack.c.b16 %v3084, %v3080
  %v4601 = vpack.c.b16 %v3085, %v3081
  %v4602 = vpack.c.b16 %v3086, %v3082
  %v4603 = vpack.c.b16 %v3087, %v3083
  %v4604 = vpack.c.b16 %v3092, %v3088
  %v4605 = vpack.c.b16 %v3093, %v3089
  %v4606 = vpack.c.b16 %v3094, %v3090
  %v4607 = vpack.c.b16 %v3095, %v3091
  %v4608 = vpack.c.b16 %v3100, %v3096
  %v4609 = vpack.c.b16 %v3101, %v3097
  %v4610 = vpack.c.b16 %v3102, %v3098
  %v4611 = vpack.c.b16 %v3103, %v3099
  %v4612 = vpack.c.b16 %v3108, %v3104
  %v4613 = vpack.c.b16 %v3109, %v3105
  %v4614 = vpack.c.b16 %v3110, %v3106
  %v4615 = vpack.c.b16 %v3111, %v3107
  %v4616 = vpack.c.b16 %v3116, %v3112
  %v4617 = vpack.c.b16 %v3117, %v3113
  %v4618 = vpack.c.b16 %v3118, %v3114
  %v4619 = vpack.c.b16 %v3119, %v3115
  %v4620 = vpack.c.b16 %v3124, %v3120
  %v4621 = vpack.c.b16 %v3125, %v3121
  %v4622 = vpack.c.b16 %v3126, %v3122
  %v4623 = vpack.c.b16 %v3127, %v3123
  %v4624 = vpack.c.b16 %v3132, %v3128
  %v4625 = vpack.c.b16 %v3133, %v3129
  %v4626 = vpack.c.b16 %v3134, %v3130
  %v4627 = vpack.c.b16 %v3135, %v3131
  %v4628 = vpack.c.b16 %v3140, %v3136
  %v4629 = vpack.c.b16 %v3141, %v3137
  %v4630 = vpack.c.b16 %v3142, %v3138
  %v4631 = vpack.c.b16 %v3143, %v3139
  %v4632 = vpack.c.b16 %v3148, %v3144
  %v4633 = vpack.c.b16 %v3149, %v3145
  %v4634 = vpack.c.b16 %v3150, %v3146
  %v4635 = vpack.c.b16 %v3151, %v3147
  %v4636 = vpack.c.b16 %v3156, %v3152
  %v4637 = vpack.c.b16 %v3157, %v3153
  %v4638 = vpack.c.b16 %v3158, %v3154
  %v4639 = vpack.c.b16 %v3159, %v3155
  %v4640 = vpack.c.b16 %v3164, %v3160
  %v4641 = vpack.c.b16 %v3165, %v3161
  %v4642 = vpack.c.b16 %v3166, %v3162
  %v4643 = vpack.c.b16 %v3167, %v3163
  %v4644 = vpack.c.b16 %v3172, %v3168
  %v4645 = vpack.c.b16 %v3173, %v3169
  %v4646 = vpack.c.b16 %v3174, %v3170
  %v4647 = vpack.c.b16 %v3175, %v3171
  %v4648 = vpack.c.b16 %v3180, %v3176
  %v4649 = vpack.c.b16 %v3181, %v3177
  %v4650 = vpack.c.b16 %v3182, %v3178
  %v4651 = vpack.c.b16 %v3183, %v3179
  %v4652 = vpack.c.b16 %v3188, %v3184
  %v4653 = vpack.c.b16 %v3189, %v3185
  %v4654 = vpack.c.b16 %v3190, %v3186
  %v4655 = vpack.c.b16 %v3191, %v3187
  %v4656 = vpack.c.b16 %v3196, %v3192
  %v4657 = vpack.c.b16 %v3197, %v3193
  %v4658 = vpack.c.b16 %v3198, %v3194
  %v4659 = vpack.c.b16 %v3199, %v3195
  %v4660 = vpack.c.b16 %v3204, %v3200
  %v4661 = vpack.c.b16 %v3205, %v3201
  %v4662 = vpack.c.b16 %v3206, %v3202
  %v4663 = vpack.c.b16 %v3207, %v3203
  %v4664 = vpack.c.b16 %v3212, %v3208
  %v4665 = vpack.c.b16 %v3213, %v3209
  %v4666 = vpack.c.b16 %v3214, %v3210
  %v4667 = vpack.c.b16 %v3215, %v3211
  %v4668 = vpack.c.b16 %v3220, %v3216
  %v4669 = vpack.c.b16 %v3221, %v3217
  %v4670 = vpack.c.b16 %v3222, %v3218
  %v4671 = vpack.c.b16 %v3223, %v3219
  %v4672 = vpack.c.b16 %v3228, %v3224
  %v4673 = vpack.c.b16 %v3229, %v3225
  %v4674 = vpack.c.b16 %v3230, %v3226
  %v4675 = vpack.c.b16 %v3231, %v3227
  %v4676 = vpack.c.b16 %v3236, %v3232
  %v4677 = vpack.c.b16 %v3237, %v3233
  %v4678 = vpack.c.b16 %v3238, %v3234
  %v4679 = vpack.c.b16 %v3239, %v3235
  %v4680 = vpack.c.b16 %v3244, %v3240
  %v4681 = vpack.c.b16 %v3245, %v3241
  %v4682 = vpack.c.b16 %v3246, %v3242
  %v4683 = vpack.c.b16 %v3247, %v3243
  %v4684 = vpack.c.b16 %v3252, %v3248
  %v4685 = vpack.c.b16 %v3253, %v3249
  %v4686 = vpack.c.b16 %v3254, %v3250
  %v4687 = vpack.c.b16 %v3255, %v3251
  %v4688 = vpack.c.b16 %v3260, %v3256
  %v4689 = vpack.c.b16 %v3261, %v3257
  %v4690 = vpack.c.b16 %v3262, %v3258
  %v4691 = vpack.c.b16 %v3263, %v3259
  %v4692 = vpack.c.b16 %v3268, %v3264
  %v4693 = vpack.c.b16 %v3269, %v3265
  %v4694 = vpack.c.b16 %v3270, %v3266
  %v4695 = vpack.c.b16 %v3271, %v3267
  %v4696 = vpack.c.b16 %v3276, %v3272
  %v4697 = vpack.c.b16 %v3277, %v3273
  %v4698 = vpack.c.b16 %v3278, %v3274
  %v4699 = vpack.c.b16 %v3279, %v3275
  %v4700 = vpack.c.b16 %v3284, %v3280
  %v4701 = vpack.c.b16 %v3285, %v3281
  %v4702 = vpack.c.b16 %v3286, %v3282
  %v4703 = vpack.c.b16 %v3287, %v3283
  %v4704 = vpack.c.b16 %v3292, %v3288
  %v4705 = vpack.c.b16 %v3293, %v3289
  %v4706 = vpack.c.b16 %v3294, %v3290
  %v4707 = vpack.c.b16 %v3295, %v3291
  %v4708 = vpack.c.b16 %v3300, %v3296
  %v4709 = vpack.c.b16 %v3301, %v3297
  %v4710 = vpack.c.b16 %v3302, %v3298
  %v4711 = vpack.c.b16 %v3303, %v3299
  %v4712 = vpack.c.b16 %v3308, %v3304
  %v4713 = vpack.c.b16 %v3309, %v3305
  %v4714 = vpack.c.b16 %v3310, %v3306
  %v4715 = vpack.c.b16 %v3311, %v3307
  %v4716 = vpack.c.b16 %v3316, %v3312
  %v4717 = vpack.c.b16 %v3317, %v3313
  %v4718 = vpack.c.b16 %v3318, %v3314
  %v4719 = vpack.c.b16 %v3319, %v3315
  %v4720 = vpack.c.b16 %v3324, %v3320
  %v4721 = vpack.c.b16 %v3325, %v3321
  %v4722 = vpack.c.b16 %v3326, %v3322
  %v4723 = vpack.c.b16 %v3327, %v3323
  %v4724 = vpack.c.b16 %v3332, %v3328
  %v4725 = vpack.c.b16 %v3333, %v3329
  %v4726 = vpack.c.b16 %v3334, %v3330
  %v4727 = vpack.c.b16 %v3335, %v3331
  %v4728 = vpack.c.b16 %v3340, %v3336
  %v4729 = vpack.c.b16 %v3341, %v3337
  %v4730 = vpack.c.b16 %v3342, %v3338
  %v4731 = vpack.c.b16 %v3343, %v3339
  %v4732 = vpack.c.b16 %v3348, %v3344
  %v4733 = vpack.c.b16 %v3349, %v3345
  %v4734 = vpack.c.b16 %v3350, %v3346
  %v4735 = vpack.c.b16 %v3351, %v3347
  %v4736 = vpack.c.b16 %v3356, %v3352
  %v4737 = vpack.c.b16 %v3357, %v3353
  %v4738 = vpack.c.b16 %v3358, %v3354
  %v4739 = vpack.c.b16 %v3359, %v3355
  %v4740 = vpack.c.b16 %v3364, %v3360
  %v4741 = vpack.c.b16 %v3365, %v3361
  %v4742 = vpack.c.b16 %v3366, %v3362
  %v4743 = vpack.c.b16 %v3367, %v3363
  %v4744 = vpack.c.b16 %v3372, %v3368
  %v4745 = vpack.c.b16 %v3373, %v3369
  %v4746 = vpack.c.b16 %v3374, %v3370
  %v4747 = vpack.c.b16 %v3375, %v3371
  %v4748 = vpack.c.b16 %v3380, %v3376
  %v4749 = vpack.c.b16 %v3381, %v3377
  %v4750 = vpack.c.b16 %v3382, %v3378
  %v4751 = vpack.c.b16 %v3383, %v3379
  %v4752 = vpack.c.b16 %v3388, %v3384
  %v4753 = vpack.c.b16 %v3389, %v3385
  %v4754 = vpack.c.b16 %v3390, %v3386
  %v4755 = vpack.c.b16 %v3391, %v3387
  %v4756 = vpack.c.b16 %v3396, %v3392
  %v4757 = vpack.c.b16 %v3397, %v3393
  %v4758 = vpack.c.b16 %v3398, %v3394
  %v4759 = vpack.c.b16 %v3399, %v3395
  %v4760 = vpack.c.b16 %v3404, %v3400
  %v4761 = vpack.c.b16 %v3405, %v3401
  %v4762 = vpack.c.b16 %v3406, %v3402
  %v4763 = vpack.c.b16 %v3407, %v3403
  %v4764 = vpack.c.b16 %v3412, %v3408
  %v4765 = vpack.c.b16 %v3413, %v3409
  %v4766 = vpack.c.b16 %v3414, %v3410
  %v4767 = vpack.c.b16 %v3415, %v3411
  %v4768 = vpack.c.b16 %v3420, %v3416
  %v4769 = vpack.c.b16 %v3421, %v3417
  %v4770 = vpack.c.b16 %v3422, %v3418
  %v4771 = vpack.c.b16 %v3423, %v3419
  %v4772 = vpack.c.b16 %v3428, %v3424
  %v4773 = vpack.c.b16 %v3429, %v3425
  %v4774 = vpack.c.b16 %v3430, %v3426
  %v4775 = vpack.c.b16 %v3431, %v3427
  %v4776 = vpack.c.b16 %v3436, %v3432
  %v4777 = vpack.c.b16 %v3437, %v3433
  %v4778 = vpack.c.b16 %v3438, %v3434
  %v4779 = vpack.c.b16 %v3439, %v3435
  %v4780 = vpack.c.b16 %v3444, %v3440
  %v4781 = vpack.c.b16 %v3445, %v3441
  %v4782 = vpack.c.b16 %v3446, %v3442
  %v4783 = vpack.c.b16 %v3447, %v3443
  %v4784 = vpack.c.b16 %v3452, %v3448
  %v4785 = vpack.c.b16 %v3453, %v3449
  %v4786 = vpack.c.b16 %v3454, %v3450
  %v4787 = vpack.c.b16 %v3455, %v3451
  %v4788 = vpack.c.b16 %v3460, %v3456
  %v4789 = vpack.c.b16 %v3461, %v3457
  %v4790 = vpack.c.b16 %v3462, %v3458
  %v4791 = vpack.c.b16 %v3463, %v3459
  %v4792 = vpack.c.b16 %v3468, %v3464
  %v4793 = vpack.c.b16 %v3469, %v3465
  %v4794 = vpack.c.b16 %v3470, %v3466
  %v4795 = vpack.c.b16 %v3471, %v3467
  %v4796 = vpack.c.b16 %v3476, %v3472
  %v4797 = vpack.c.b16 %v3477, %v3473
  %v4798 = vpack.c.b16 %v3478, %v3474
  %v4799 = vpack.c.b16 %v3479, %v3475
  %v4800 = vpack.c.b16 %v3484, %v3480
  %v4801 = vpack.c.b16 %v3485, %v3481
  %v4802 = vpack.c.b16 %v3486, %v3482
  %v4803 = vpack.c.b16 %v3487, %v3483
  %v4804 = vpack.c.b16 %v3492, %v3488
  %v4805 = vpack.c.b16 %v3493, %v3489
  %v4806 = vpack.c.b16 %v3494, %v3490
  %v4807 = vpack.c.b16 %v3495, %v3491
  %v4808 = vpack.c.b16 %v3500, %v3496
  %v4809 = vpack.c.b16 %v3501, %v3497
  %v4810 = vpack.c.b16 %v3502, %v3498
  %v4811 = vpack.c.b16 %v3503, %v3499
  %v4812 = vpack.c.b16 %v3508, %v3504
  %v4813 = vpack.c.b16 %v3509, %v3505
  %v4814 = vpack.c.b16 %v3510, %v3506
  %v4815 = vpack.c.b16 %v3511, %v3507
  %v4816 = vpack.c.b16 %v3516, %v3512
  %v4817 = vpack.c.b16 %v3517, %v3513
  %v4818 = vpack.c.b16 %v3518, %v3514
  %v4819 = vpack.c.b16 %v3519, %v3515
  %v4820 = vpack.c.b16 %v3524, %v3520
  %v4821 = vpack.c.b16 %v3525, %v3521
  %v4822 = vpack.c.b16 %v3526, %v3522
  %v4823 = vpack.c.b16 %v3527, %v3523
  %v4824 = vpack.c.b16 %v3532, %v3528
  %v4825 = vpack.c.b16 %v3533, %v3529
  %v4826 = vpack.c.b16 %v3534, %v3530
  %v4827 = vpack.c.b16 %v3535, %v3531
  %v4828 = vpack.c.b16 %v3540, %v3536
  %v4829 = vpack.c.b16 %v3541, %v3537
  %v4830 = vpack.c.b16 %v3542, %v3538
  %v4831 = vpack.c.b16 %v3543, %v3539
  %v4832 = vpack.c.b16 %v3548, %v3544
  %v4833 = vpack.c.b16 %v3549, %v3545
  %v4834 = vpack.c.b16 %v3550, %v3546
  %v4835 = vpack.c.b16 %v3551, %v3547
  %v4836 = vpack.c.b16 %v3556, %v3552
  %v4837 = vpack.c.b16 %v3557, %v3553
  %v4838 = vpack.c.b16 %v3558, %v3554
  %v4839 = vpack.c.b16 %v3559, %v3555
  %v4840 = vpack.c.b16 %v3564, %v3560
  %v4841 = vpack.c.b16 %v3565, %v3561
  %v4842 = vpack.c.b16 %v3566, %v3562
  %v4843 = vpack.c.b16 %v3567, %v3563
  %v4844 = vpack.c.b16 %v3572, %v3568
  %v4845 = vpack.c.b16 %v3573, %v3569
  %v4846 = vpack.c.b16 %v3574, %v3570
  %v4847 = vpack.c.b16 %v3575, %v3571
  %v4848 = vpack.c.b16 %v3580, %v3576
  %v4849 = vpack.c.b16 %v3581, %v3577
  %v4850 = vpack.c.b16 %v3582, %v3578
  %v4851 = vpack.c.b16 %v3583, %v3579
  %v4852 = vpack.c.b16 %v3588, %v3584
  %v4853 = vpack.c.b16 %v3589, %v3585
  %v4854 = vpack.c.b16 %v3590, %v3586
  %v4855 = vpack.c.b16 %v3591, %v3587
  %v4856 = vpack.c.b16 %v3596, %v3592
  %v4857 = vpack.c.b16 %v3597, %v3593
  %v4858 = vpack.c.b16 %v3598, %v3594
  %v4859 = vpack.c.b16 %v3599, %v3595
  %v4860 = vpack.c.b16 %v3604, %v3600
  %v4861 = vpack.c.b16 %v3605, %v3601
  %v4862 = vpack.c.b16 %v3606, %v3602
  %v4863 = vpack.c.b16 %v3607, %v3603
  %v4864 = vpack.c.b16 %v3612, %v3608
  %v4865 = vpack.c.b16 %v3613, %v3609
  %v4866 = vpack.c.b16 %v3614, %v3610
  %v4867 = vpack.c.b16 %v3615, %v3611
  %v4868 = vpack.c.b16 %v3620, %v3616
  %v4869 = vpack.c.b16 %v3621, %v3617
  %v4870 = vpack.c.b16 %v3622, %v3618
  %v4871 = vpack.c.b16 %v3623, %v3619
  %v4872 = vpack.c.b16 %v3628, %v3624
  %v4873 = vpack.c.b16 %v3629, %v3625
  %v4874 = vpack.c.b16 %v3630, %v3626
  %v4875 = vpack.c.b16 %v3631, %v3627
  %v4876 = vpack.c.b16 %v3636, %v3632
  %v4877 = vpack.c.b16 %v3637, %v3633
  %v4878 = vpack.c.b16 %v3638, %v3634
  %v4879 = vpack.c.b16 %v3639, %v3635
  %v4880 = vpack.c.b16 %v3644, %v3640
  %v4881 = vpack.c.b16 %v3645, %v3641
  %v4882 = vpack.c.b16 %v3646, %v3642
  %v4883 = vpack.c.b16 %v3647, %v3643
  %v4884 = vpack.c.b16 %v3652, %v3648
  %v4885 = vpack.c.b16 %v3653, %v3649
  %v4886 = vpack.c.b16 %v3654, %v3650
  %v4887 = vpack.c.b16 %v3655, %v3651
  %v4888 = vpack.c.b16 %v3660, %v3656
  %v4889 = vpack.c.b16 %v3661, %v3657
  %v4890 = vpack.c.b16 %v3662, %v3658
  %v4891 = vpack.c.b16 %v3663, %v3659
  %v4892 = vpack.c.b16 %v3668, %v3664
  %v4893 = vpack.c.b16 %v3669, %v3665
  %v4894 = vpack.c.b16 %v3670, %v3666
  %v4895 = vpack.c.b16 %v3671, %v3667
  %v4896 = vpack.c.b16 %v3676, %v3672
  %v4897 = vpack.c.b16 %v3677, %v3673
  %v4898 = vpack.c.b16 %v3678, %v3674
  %v4899 = vpack.c.b16 %v3679, %v3675
  %v4900 = vpack.c.b16 %v3684, %v3680
  %v4901 = vpack.c.b16 %v3685, %v3681
  %v4902 = vpack.c.b16 %v3686, %v3682
  %v4903 = vpack.c.b16 %v3687, %v3683
  %v4904 = vpack.c.b16 %v3692, %v3688
  %v4905 = vpack.c.b16 %v3693, %v3689
  %v4906 = vpack.c.b16 %v3694, %v3690
  %v4907 = vpack.c.b16 %v3695, %v3691
  %v4908 = vpack.c.b16 %v3700, %v3696
  %v4909 = vpack.c.b16 %v3701, %v3697
  %v4910 = vpack.c.b16 %v3702, %v3698
  %v4911 = vpack.c.b16 %v3703, %v3699
  %v4912 = vpack.c.b16 %v3708, %v3704
  %v4913 = vpack.c.b16 %v3709, %v3705
  %v4914 = vpack.c.b16 %v3710, %v3706
  %v4915 = vpack.c.b16 %v3711, %v3707
  %v4916 = vpack.c.b16 %v3716, %v3712
  %v4917 = vpack.c.b16 %v3717, %v3713
  %v4918 = vpack.c.b16 %v3718, %v3714
  %v4919 = vpack.c.b16 %v3719, %v3715
  %v4920 = vpack.c.b16 %v3724, %v3720
  %v4921 = vpack.c.b16 %v3725, %v3721
  %v4922 = vpack.c.b16 %v3726, %v3722
  %v4923 = vpack.c.b16 %v3727, %v3723
  %v4924 = vpack.c.b16 %v3732, %v3728
  %v4925 = vpack.c.b16 %v3733, %v3729
  %v4926 = vpack.c.b16 %v3734, %v3730
  %v4927 = vpack.c.b16 %v3735, %v3731
  %v4928 = vpack.c.b16 %v3740, %v3736
  %v4929 = vpack.c.b16 %v3741, %v3737
  %v4930 = vpack.c.b16 %v3742, %v3738
  %v4931 = vpack.c.b16 %v3743, %v3739
  %v4932 = vpack.c.b16 %v3748, %v3744
  %v4933 = vpack.c.b16 %v3749, %v3745
  %v4934 = vpack.c.b16 %v3750, %v3746
  %v4935 = vpack.c.b16 %v3751, %v3747
  %v4936 = vpack.c.b16 %v3756, %v3752
  %v4937 = vpack.c.b16 %v3757, %v3753
  %v4938 = vpack.c.b16 %v3758, %v3754
  %v4939 = vpack.c.b16 %v3759, %v3755
  %v4940 = vpack.c.b16 %v3764, %v3760
  %v4941 = vpack.c.b16 %v3765, %v3761
  %v4942 = vpack.c.b16 %v3766, %v3762
  %v4943 = vpack.c.b16 %v3767, %v3763
  %v4944 = vpack.c.b16 %v3772, %v3768
  %v4945 = vpack.c.b16 %v3773, %v3769
  %v4946 = vpack.c.b16 %v3774, %v3770
  %v4947 = vpack.c.b16 %v3775, %v3771
  %v4948 = vpack.c.b16 %v3780, %v3776
  %v4949 = vpack.c.b16 %v3781, %v3777
  %v4950 = vpack.c.b16 %v3782, %v3778
  %v4951 = vpack.c.b16 %v3783, %v3779
  %v4952 = vpack.c.b16 %v3788, %v3784
  %v4953 = vpack.c.b16 %v3789, %v3785
  %v4954 = vpack.c.b16 %v3790, %v3786
  %v4955 = vpack.c.b16 %v3791, %v3787
  %v4956 = vpack.c.b16 %v3796, %v3792
  %v4957 = vpack.c.b16 %v3797, %v3793
  %v4958 = vpack.c.b16 %v3798, %v3794
  %v4959 = vpack.c.b16 %v3799, %v3795
  %v4960 = vpack.c.b16 %v3804, %v3800
  %v4961 = vpack.c.b16 %v3805, %v3801
  %v4962 = vpack.c.b16 %v3806, %v3802
  %v4963 = vpack.c.b16 %v3807, %v3803
  %v4964 = vpack.c.b16 %v3812, %v3808
  %v4965 = vpack.c.b16 %v3813, %v3809
  %v4966 = vpack.c.b16 %v3814, %v3810
  %v4967 = vpack.c.b16 %v3815, %v3811
  %v4968 = vpack.c.b16 %v3820, %v3816
  %v4969 = vpack.c.b16 %v3821, %v3817
  %v4970 = vpack.c.b16 %v3822, %v3818
  %v4971 = vpack.c.b16 %v3823, %v3819
  %v4972 = vpack.c.b16 %v3828, %v3824
  %v4973 = vpack.c.b16 %v3829, %v3825
  %v4974 = vpack.c.b16 %v3830, %v3826
  %v4975 = vpack.c.b16 %v3831, %v3827
  %v4976 = vpack.c.b16 %v3836, %v3832
  %v4977 = vpack.c.b16 %v3837, %v3833
  %v4978 = vpack.c.b16 %v3838, %v3834
  %v4979 = vpack.c.b16 %v3839, %v3835
  %v4980 = vpack.c.b16 %v3844, %v3840
  %v4981 = vpack.c.b16 %v3845, %v3841
  %v4982 = vpack.c.b16 %v3846, %v3842
  %v4983 = vpack.c.b16 %v3847, %v3843
  %v4984 = vpack.c.b16 %v3852, %v3848
  %v4985 = vpack.c.b16 %v3853, %v3849
  %v4986 = vpack.c.b16 %v3854, %v3850
  %v4987 = vpack.c.b16 %v3855, %v3851
  %v4988 = vpack.c.b16 %v3860, %v3856
  %v4989 = vpack.c.b16 %v3861, %v3857
  %v4990 = vpack.c.b16 %v3862, %v3858
  %v4991 = vpack.c.b16 %v3863, %v3859
  %v4992 = vpack.c.b16 %v3868, %v3864
  %v4993 = vpack.c.b16 %v3869, %v3865
  %v4994 = vpack.c.b16 %v3870, %v3866
  %v4995 = vpack.c.b16 %v3871, %v3867
  %v4996 = vpack.c.b16 %v3876, %v3872
  %v4997 = vpack.c.b16 %v3877, %v3873
  %v4998 = vpack.c.b16 %v3878, %v3874
  %v4999 = vpack.c.b16 %v3879, %v3875
  %v5000 = vpack.c.b16 %v3884, %v3880
  %v5001 = vpack.c.b16 %v3885, %v3881
  %v5002 = vpack.c.b16 %v3886, %v3882
  %v5003 = vpack.c.b16 %v3887, %v3883
  %v5004 = vpack.c.b16 %v3892, %v3888
  %v5005 = vpack.c.b16 %v3893, %v3889
  %v5006 = vpack.c.b16 %v3894, %v3890
  %v5007 = vpack.c.b16 %v3895, %v3891
  %v5008 = vpack.c.b16 %v3900, %v3896
  %v5009 = vpack.c.b16 %v3901, %v3897
  %v5010 = vpack.c.b16 %v3902, %v3898
  %v5011 = vpack.c.b16 %v3903, %v3899
  %v5012 = vpack.c.b16 %v3908, %v3904
  %v5013 = vpack.c.b16 %v3909, %v3905
  %v5014 = vpack.c.b16 %v3910, %v3906
  %v5015 = vpack.c.b16 %v3911, %v3907
  %v5016 = vpack.c.b16 %v3916, %v3912
  %v5017 = vpack.c.b16 %v3917, %v3913
  %v5018 = vpack.c.b16 %v3918, %v3914
  %v5019 = vpack.c.b16 %v3919, %v3915
  %v5020 = vpack.c.b16 %v3924, %v3920
  %v5021 = vpack.c.b16 %v3925, %v3921
  %v5022 = vpack.c.b16 %v3926, %v3922
  %v5023 = vpack.c.b16 %v3927, %v3923
  %v5024 = vpack.c.b16 %v3932, %v3928
  %v5025 = vpack.c.b16 %v3933, %v3929
  %v5026 = vpack.c.b16 %v3934, %v3930
  %v5027 = vpack.c.b16 %v3935, %v3931
  %v5028 = vpack.c.b16 %v3940, %v3936
  %v5029 = vpack.c.b16 %v3941, %v3937
  %v5030 = vpack.c.b16 %v3942, %v3938
  %v5031 = vpack.c.b16 %v3943, %v3939
  %v5032 = vpack.c.b16 %v3948, %v3944
  %v5033 = vpack.c.b16 %v3949, %v3945
  %v5034 = vpack.c.b16 %v3950, %v3946
  %v5035 = vpack.c.b16 %v3951, %v3947
  %v5036 = vpack.c.b16 %v3956, %v3952
  %v5037 = vpack.c.b16 %v3957, %v3953
  %v5038 = vpack.c.b16 %v3958, %v3954
  %v5039 = vpack.c.b16 %v3959, %v3955
  %v5040 = vpack.c.b16 %v3964, %v3960
  %v5041 = vpack.c.b16 %v3965, %v3961
  %v5042 = vpack.c.b16 %v3966, %v3962
  %v5043 = vpack.c.b16 %v3967, %v3963
  %v5044 = vpack.c.b16 %v3972, %v3968
  %v5045 = vpack.c.b16 %v3973, %v3969
  %v5046 = vpack.c.b16 %v3974, %v3970
  %v5047 = vpack.c.b16 %v3975, %v3971
  %v5048 = vpack.c.b16 %v3980, %v3976
  %v5049 = vpack.c.b16 %v3981, %v3977
  %v5050 = vpack.c.b16 %v3982, %v3978
  %v5051 = vpack.c.b16 %v3983, %v3979
  %v5052 = vpack.c.b16 %v3988, %v3984
  %v5053 = vpack.c.b16 %v3989, %v3985
  %v5054 = vpack.c.b16 %v3990, %v3986
  %v5055 = vpack.c.b16 %v3991, %v3987
  %v5056 = vpack.c.b16 %v3996, %v3992
  %v5057 = vpack.c.b16 %v3997, %v3993
  %v5058 = vpack.c.b16 %v3998, %v3994
  %v5059 = vpack.c.b16 %v3999, %v3995
  %v5060 = vpack.c.b16 %v4004, %v4000
  %v5061 = vpack.c.b16 %v4005, %v4001
  %v5062 = vpack.c.b16 %v4006, %v4002
  %v5063 = vpack.c.b16 %v4007, %v4003
  %v5064 = vpack.c.b16 %v4012, %v4008
  %v5065 = vpack.c.b16 %v4013, %v4009
  %v5066 = vpack.c.b16 %v4014, %v4010
  %v5067 = vpack.c.b16 %v4015, %v4011
  %v5068 = vpack.c.b16 %v4020, %v4016
  %v5069 = vpack.c.b16 %v4021, %v4017
  %v5070 = vpack.c.b16 %v4022, %v4018
  %v5071 = vpack.c.b16 %v4023, %v4019
  %v5072 = vpack.c.b16 %v4028, %v4024
  %v5073 = vpack.c.b16 %v4029, %v4025
  %v5074 = vpack.c.b16 %v4030, %v4026
  %v5075 = vpack.c.b16 %v4031, %v4027
  %v5076 = vpack.c.b16 %v4036, %v4032
  %v5077 = vpack.c.b16 %v4037, %v4033
  %v5078 = vpack.c.b16 %v4038, %v4034
  %v5079 = vpack.c.b16 %v4039, %v4035
  %v5080 = vpack.c.b16 %v4044, %v4040
  %v5081 = vpack.c.b16 %v4045, %v4041
  %v5082 = vpack.c.b16 %v4046, %v4042
  %v5083 = vpack.c.b16 %v4047, %v4043
  %v5084 = vpack.c.b16 %v4052, %v4048
  %v5085 = vpack.c.b16 %v4053, %v4049
  %v5086 = vpack.c.b16 %v4054, %v4050
  %v5087 = vpack.c.b16 %v4055, %v4051
  %v5088 = vpack.c.b16 %v4060, %v4056
  %v5089 = vpack.c.b16 %v4061, %v4057
  %v5090 = vpack.c.b16 %v4062, %v4058
  %v5091 = vpack.c.b16 %v4063, %v4059
  %v5092 = vpack.c.b16 %v4068, %v4064
  %v5093 = vpack.c.b16 %v4069, %v4065
  %v5094 = vpack.c.b16 %v4070, %v4066
  %v5095 = vpack.c.b16 %v4071, %v4067
  %v5096 = vpack.c.b16 %v4076, %v4072
  %v5097 = vpack.c.b16 %v4077, %v4073
  %v5098 = vpack.c.b16 %v4078, %v4074
  %v5099 = vpack.c.b16 %v4079, %v4075
  %v5100 = vpack.c.b16 %v4084, %v4080
  %v5101 = vpack.c.b16 %v4085, %v4081
  %v5102 = vpack.c.b16 %v4086, %v4082
  %v5103 = vpack.c.b16 %v4087, %v4083
  %v5104 = vpack.c.b16 %v4092, %v4088
  %v5105 = vpack.c.b16 %v4093, %v4089
  %v5106 = vpack.c.b16 %v4094, %v4090
  %v5107 = vpack.c.b16 %v4095, %v4091
  %v5108 = vpack.c.b16 %v4100, %v4096
  %v5109 = vpack.c.b16 %v4101, %v4097
  %v5110 = vpack.c.b16 %v4102, %v4098
  %v5111 = vpack.c.b16 %v4103, %v4099
  %v5112 = vpack.c.b16 %v4108, %v4104
  %v5113 = vpack.c.b16 %v4109, %v4105
  %v5114 = vpack.c.b16 %v4110, %v4106
  %v5115 = vpack.c.b16 %v4111, %v4107
  %v5116 = vpack.c.b16 %v4116, %v4112
  %v5117 = vpack.c.b16 %v4117, %v4113
  %v5118 = vpack.c.b16 %v4118, %v4114
  %v5119 = vpack.c.b16 %v4119, %v4115
  %v5120 = vpack.c.b16 %v4124, %v4120
  %v5121 = vpack.c.b16 %v4125, %v4121
  %v5122 = vpack.c.b16 %v4126, %v4122
  %v5123 = vpack.c.b16 %v4127, %v4123
  %v5124 = vpack.c.b16 %v4132, %v4128
  %v5125 = vpack.c.b16 %v4133, %v4129
  %v5126 = vpack.c.b16 %v4134, %v4130
  %v5127 = vpack.c.b16 %v4135, %v4131
  %6120 = vmatprep.subr.bf16.mxu0 %v4165
  %6121 = vmatpush1.bf16.msra.mxu0 %v4164
  %6122 = vmatprep.subr.bf16.mxu0 %v4161
  %6123 = vmatpush1.bf16.msra.mxu0 %v4160
  %6124 = vmatprep.subr.bf16.mxu0 %v4157
  %6125 = vmatpush1.bf16.msra.mxu0 %v4156
  %6126 = vmatprep.subr.bf16.mxu0 %v4153
  %6127 = vmatpush1.bf16.msra.mxu0 %v4152
  %6128 = vmatprep.subr.bf16.mxu0 %v4149
  %6129 = vmatpush1.bf16.msra.mxu0 %v4148
  %6130 = vmatprep.subr.bf16.mxu0 %v4145
  %6131 = vmatpush1.bf16.msra.mxu0 %v4144
  %6132 = vmatprep.subr.bf16.mxu0 %v4141
  %6133 = vmatpush1.bf16.msra.mxu0 %v4140
  %6134 = vmatprep.subr.bf16.mxu0 %v4137
  %6135 = vmatpush1.bf16.msra.mxu0 %v4136
  %6136 = vmatprep.subr.bf16.mxu0 %v4197
  %6137 = vmatpush2.bf16.msra.mxu0 %v4196
  %6138 = vmatprep.subr.bf16.mxu0 %v4193
  %6139 = vmatpush2.bf16.msra.mxu0 %v4192
  %6140 = vmatprep.subr.bf16.mxu0 %v4189
  %6141 = vmatpush2.bf16.msra.mxu0 %v4188
  %6142 = vmatprep.subr.bf16.mxu0 %v4185
  %6143 = vmatpush2.bf16.msra.mxu0 %v4184
  %6144 = vmatprep.subr.bf16.mxu0 %v4181
  %6145 = vmatpush2.bf16.msra.mxu0 %v4180
  %6146 = vmatprep.subr.bf16.mxu0 %v4177
  %6147 = vmatpush2.bf16.msra.mxu0 %v4176
  %6148 = vmatprep.subr.bf16.mxu0 %v4173
  %6149 = vmatpush2.bf16.msra.mxu0 %v4172
  %6150 = vmatprep.subr.bf16.mxu0 %v4169
  %6151 = vmatpush2.bf16.msra.mxu0 %v4168
  %6152 = vmatprep.mubr.bf16.mxu0 %v1099
  %6153 = vmatmul.mubr.bf16.gmra.mxu0 %v1098
  %v6154 = vpop.f32.mrf.mxu0
  %v6155 = vadd.f32 %v1034, %v6154
  %v6156 = vpop.f32.mrf.mxu0
  %v6157 = vadd.f32 %v1038, %v6156
  %v6158 = vpop.f32.mrf.mxu0
  %v6159 = vpop.f32.mrf.mxu0
  %6160 = vdwg.mxu0
  %6161 = vmatprep.subr.bf16.mxu0 %v4229
  %6162 = vmatpush1.bf16.msra.mxu0 %v4228
  %6163 = vmatprep.subr.bf16.mxu0 %v4225
  %6164 = vmatpush1.bf16.msra.mxu0 %v4224
  %6165 = vmatprep.subr.bf16.mxu0 %v4221
  %6166 = vmatpush1.bf16.msra.mxu0 %v4220
  %6167 = vmatprep.subr.bf16.mxu0 %v4217
  %6168 = vmatpush1.bf16.msra.mxu0 %v4216
  %6169 = vmatprep.subr.bf16.mxu0 %v4213
  %6170 = vmatpush1.bf16.msra.mxu0 %v4212
  %6171 = vmatprep.subr.bf16.mxu0 %v4209
  %6172 = vmatpush1.bf16.msra.mxu0 %v4208
  %6173 = vmatprep.subr.bf16.mxu0 %v4205
  %6174 = vmatpush1.bf16.msra.mxu0 %v4204
  %6175 = vmatprep.subr.bf16.mxu0 %v4201
  %6176 = vmatpush1.bf16.msra.mxu0 %v4200
  %6177 = vmatprep.subr.bf16.mxu0 %v4261
  %6178 = vmatpush2.bf16.msra.mxu0 %v4260
  %6179 = vmatprep.subr.bf16.mxu0 %v4257
  %6180 = vmatpush2.bf16.msra.mxu0 %v4256
  %6181 = vmatprep.subr.bf16.mxu0 %v4253
  %6182 = vmatpush2.bf16.msra.mxu0 %v4252
  %6183 = vmatprep.subr.bf16.mxu0 %v4249
  %6184 = vmatpush2.bf16.msra.mxu0 %v4248
  %6185 = vmatprep.subr.bf16.mxu0 %v4245
  %6186 = vmatpush2.bf16.msra.mxu0 %v4244
  %6187 = vmatprep.subr.bf16.mxu0 %v4241
  %6188 = vmatpush2.bf16.msra.mxu0 %v4240
  %6189 = vmatprep.subr.bf16.mxu0 %v4237
  %6190 = vmatpush2.bf16.msra.mxu0 %v4236
  %6191 = vmatprep.subr.bf16.mxu0 %v4233
  %6192 = vmatpush2.bf16.msra.mxu0 %v4232
  %6193 = vmatprep.mubr.bf16.mxu0 %v1101
  %6194 = vmatmul.mubr.bf16.gmra.mxu0 %v1100
  %v6195 = vpop.f32.mrf.mxu0
  %v6196 = vadd.f32 %v6155, %v6195
  %v6197 = vpop.f32.mrf.mxu0
  %v6198 = vadd.f32 %v6157, %v6197
  %v6199 = vpop.f32.mrf.mxu0
  %v6200 = vpop.f32.mrf.mxu0
  %6201 = vdwg.mxu0
  %6202 = vmatprep.subr.bf16.mxu0 %v4293
  %6203 = vmatpush1.bf16.msra.mxu0 %v4292
  %6204 = vmatprep.subr.bf16.mxu0 %v4289
  %6205 = vmatpush1.bf16.msra.mxu0 %v4288
  %6206 = vmatprep.subr.bf16.mxu0 %v4285
  %6207 = vmatpush1.bf16.msra.mxu0 %v4284
  %6208 = vmatprep.subr.bf16.mxu0 %v4281
  %6209 = vmatpush1.bf16.msra.mxu0 %v4280
  %6210 = vmatprep.subr.bf16.mxu0 %v4277
  %6211 = vmatpush1.bf16.msra.mxu0 %v4276
  %6212 = vmatprep.subr.bf16.mxu0 %v4273
  %6213 = vmatpush1.bf16.msra.mxu0 %v4272
  %6214 = vmatprep.subr.bf16.mxu0 %v4269
  %6215 = vmatpush1.bf16.msra.mxu0 %v4268
  %6216 = vmatprep.subr.bf16.mxu0 %v4265
  %6217 = vmatpush1.bf16.msra.mxu0 %v4264
  %6218 = vmatprep.subr.bf16.mxu0 %v4325
  %6219 = vmatpush2.bf16.msra.mxu0 %v4324
  %6220 = vmatprep.subr.bf16.mxu0 %v4321
  %6221 = vmatpush2.bf16.msra.mxu0 %v4320
  %6222 = vmatprep.subr.bf16.mxu0 %v4317
  %6223 = vmatpush2.bf16.msra.mxu0 %v4316
  %6224 = vmatprep.subr.bf16.mxu0 %v4313
  %6225 = vmatpush2.bf16.msra.mxu0 %v4312
  %6226 = vmatprep.subr.bf16.mxu0 %v4309
  %6227 = vmatpush2.bf16.msra.mxu0 %v4308
  %6228 = vmatprep.subr.bf16.mxu0 %v4305
  %6229 = vmatpush2.bf16.msra.mxu0 %v4304
  %6230 = vmatprep.subr.bf16.mxu0 %v4301
  %6231 = vmatpush2.bf16.msra.mxu0 %v4300
  %6232 = vmatprep.subr.bf16.mxu0 %v4297
  %6233 = vmatpush2.bf16.msra.mxu0 %v4296
  %6234 = vmatprep.mubr.bf16.mxu0 %v1103
  %6235 = vmatmul.mubr.bf16.gmra.mxu0 %v1102
  %v6236 = vpop.f32.mrf.mxu0
  %v6237 = vadd.f32 %v6196, %v6236
  %v6238 = vpop.f32.mrf.mxu0
  %v6239 = vadd.f32 %v6198, %v6238
  %v6240 = vpop.f32.mrf.mxu0
  %v6241 = vpop.f32.mrf.mxu0
  %6242 = vdwg.mxu0
  %6243 = vmatprep.subr.bf16.mxu0 %v4357
  %6244 = vmatpush1.bf16.msra.mxu0 %v4356
  %6245 = vmatprep.subr.bf16.mxu0 %v4353
  %6246 = vmatpush1.bf16.msra.mxu0 %v4352
  %6247 = vmatprep.subr.bf16.mxu0 %v4349
  %6248 = vmatpush1.bf16.msra.mxu0 %v4348
  %6249 = vmatprep.subr.bf16.mxu0 %v4345
  %6250 = vmatpush1.bf16.msra.mxu0 %v4344
  %6251 = vmatprep.subr.bf16.mxu0 %v4341
  %6252 = vmatpush1.bf16.msra.mxu0 %v4340
  %6253 = vmatprep.subr.bf16.mxu0 %v4337
  %6254 = vmatpush1.bf16.msra.mxu0 %v4336
  %6255 = vmatprep.subr.bf16.mxu0 %v4333
  %6256 = vmatpush1.bf16.msra.mxu0 %v4332
  %6257 = vmatprep.subr.bf16.mxu0 %v4329
  %6258 = vmatpush1.bf16.msra.mxu0 %v4328
  %6259 = vmatprep.subr.bf16.mxu0 %v4389
  %6260 = vmatpush2.bf16.msra.mxu0 %v4388
  %6261 = vmatprep.subr.bf16.mxu0 %v4385
  %6262 = vmatpush2.bf16.msra.mxu0 %v4384
  %6263 = vmatprep.subr.bf16.mxu0 %v4381
  %6264 = vmatpush2.bf16.msra.mxu0 %v4380
  %6265 = vmatprep.subr.bf16.mxu0 %v4377
  %6266 = vmatpush2.bf16.msra.mxu0 %v4376
  %6267 = vmatprep.subr.bf16.mxu0 %v4373
  %6268 = vmatpush2.bf16.msra.mxu0 %v4372
  %6269 = vmatprep.subr.bf16.mxu0 %v4369
  %6270 = vmatpush2.bf16.msra.mxu0 %v4368
  %6271 = vmatprep.subr.bf16.mxu0 %v4365
  %6272 = vmatpush2.bf16.msra.mxu0 %v4364
  %6273 = vmatprep.subr.bf16.mxu0 %v4361
  %6274 = vmatpush2.bf16.msra.mxu0 %v4360
  %6275 = vmatprep.mubr.bf16.mxu0 %v1105
  %6276 = vmatmul.mubr.bf16.gmra.mxu0 %v1104
  %v6277 = vpop.f32.mrf.mxu0
  %v6278 = vadd.f32 %v6237, %v6277
  %v6279 = vpop.f32.mrf.mxu0
  %v6280 = vadd.f32 %v6239, %v6279
  %v6281 = vpop.f32.mrf.mxu0
  %v6282 = vpop.f32.mrf.mxu0
  %6283 = vdwg.mxu0
  %6284 = vmatprep.subr.bf16.mxu0 %v4421
  %6285 = vmatpush1.bf16.msra.mxu0 %v4420
  %6286 = vmatprep.subr.bf16.mxu0 %v4417
  %6287 = vmatpush1.bf16.msra.mxu0 %v4416
  %6288 = vmatprep.subr.bf16.mxu0 %v4413
  %6289 = vmatpush1.bf16.msra.mxu0 %v4412
  %6290 = vmatprep.subr.bf16.mxu0 %v4409
  %6291 = vmatpush1.bf16.msra.mxu0 %v4408
  %6292 = vmatprep.subr.bf16.mxu0 %v4405
  %6293 = vmatpush1.bf16.msra.mxu0 %v4404
  %6294 = vmatprep.subr.bf16.mxu0 %v4401
  %6295 = vmatpush1.bf16.msra.mxu0 %v4400
  %6296 = vmatprep.subr.bf16.mxu0 %v4397
  %6297 = vmatpush1.bf16.msra.mxu0 %v4396
  %6298 = vmatprep.subr.bf16.mxu0 %v4393
  %6299 = vmatpush1.bf16.msra.mxu0 %v4392
  %6300 = vmatprep.subr.bf16.mxu0 %v4453
  %6301 = vmatpush2.bf16.msra.mxu0 %v4452
  %6302 = vmatprep.subr.bf16.mxu0 %v4449
  %6303 = vmatpush2.bf16.msra.mxu0 %v4448
  %6304 = vmatprep.subr.bf16.mxu0 %v4445
  %6305 = vmatpush2.bf16.msra.mxu0 %v4444
  %6306 = vmatprep.subr.bf16.mxu0 %v4441
  %6307 = vmatpush2.bf16.msra.mxu0 %v4440
  %6308 = vmatprep.subr.bf16.mxu0 %v4437
  %6309 = vmatpush2.bf16.msra.mxu0 %v4436
  %6310 = vmatprep.subr.bf16.mxu0 %v4433
  %6311 = vmatpush2.bf16.msra.mxu0 %v4432
  %6312 = vmatprep.subr.bf16.mxu0 %v4429
  %6313 = vmatpush2.bf16.msra.mxu0 %v4428
  %6314 = vmatprep.subr.bf16.mxu0 %v4425
  %6315 = vmatpush2.bf16.msra.mxu0 %v4424
  %6316 = vmatprep.mubr.bf16.mxu0 %v1107
  %6317 = vmatmul.mubr.bf16.gmra.mxu0 %v1106
  %v6318 = vpop.f32.mrf.mxu0
  %v6319 = vadd.f32 %v6278, %v6318
  %v6320 = vpop.f32.mrf.mxu0
  %v6321 = vadd.f32 %v6280, %v6320
  %v6322 = vpop.f32.mrf.mxu0
  %v6323 = vpop.f32.mrf.mxu0
  %6324 = vdwg.mxu0
  %6325 = vmatprep.subr.bf16.mxu0 %v4485
  %6326 = vmatpush1.bf16.msra.mxu0 %v4484
  %6327 = vmatprep.subr.bf16.mxu0 %v4481
  %6328 = vmatpush1.bf16.msra.mxu0 %v4480
  %6329 = vmatprep.subr.bf16.mxu0 %v4477
  %6330 = vmatpush1.bf16.msra.mxu0 %v4476
  %6331 = vmatprep.subr.bf16.mxu0 %v4473
  %6332 = vmatpush1.bf16.msra.mxu0 %v4472
  %6333 = vmatprep.subr.bf16.mxu0 %v4469
  %6334 = vmatpush1.bf16.msra.mxu0 %v4468
  %6335 = vmatprep.subr.bf16.mxu0 %v4465
  %6336 = vmatpush1.bf16.msra.mxu0 %v4464
  %6337 = vmatprep.subr.bf16.mxu0 %v4461
  %6338 = vmatpush1.bf16.msra.mxu0 %v4460
  %6339 = vmatprep.subr.bf16.mxu0 %v4457
  %6340 = vmatpush1.bf16.msra.mxu0 %v4456
  %6341 = vmatprep.subr.bf16.mxu0 %v4517
  %6342 = vmatpush2.bf16.msra.mxu0 %v4516
  %6343 = vmatprep.subr.bf16.mxu0 %v4513
  %6344 = vmatpush2.bf16.msra.mxu0 %v4512
  %6345 = vmatprep.subr.bf16.mxu0 %v4509
  %6346 = vmatpush2.bf16.msra.mxu0 %v4508
  %6347 = vmatprep.subr.bf16.mxu0 %v4505
  %6348 = vmatpush2.bf16.msra.mxu0 %v4504
  %6349 = vmatprep.subr.bf16.mxu0 %v4501
  %6350 = vmatpush2.bf16.msra.mxu0 %v4500
  %6351 = vmatprep.subr.bf16.mxu0 %v4497
  %6352 = vmatpush2.bf16.msra.mxu0 %v4496
  %6353 = vmatprep.subr.bf16.mxu0 %v4493
  %6354 = vmatpush2.bf16.msra.mxu0 %v4492
  %6355 = vmatprep.subr.bf16.mxu0 %v4489
  %6356 = vmatpush2.bf16.msra.mxu0 %v4488
  %6357 = vmatprep.mubr.bf16.mxu0 %v1109
  %6358 = vmatmul.mubr.bf16.gmra.mxu0 %v1108
  %v6359 = vpop.f32.mrf.mxu0
  %v6360 = vadd.f32 %v6319, %v6359
  %v6361 = vpop.f32.mrf.mxu0
  %v6362 = vadd.f32 %v6321, %v6361
  %v6363 = vpop.f32.mrf.mxu0
  %v6364 = vpop.f32.mrf.mxu0
  %6365 = vdwg.mxu0
  %6366 = vmatprep.subr.bf16.mxu0 %v4549
  %6367 = vmatpush1.bf16.msra.mxu0 %v4548
  %6368 = vmatprep.subr.bf16.mxu0 %v4545
  %6369 = vmatpush1.bf16.msra.mxu0 %v4544
  %6370 = vmatprep.subr.bf16.mxu0 %v4541
  %6371 = vmatpush1.bf16.msra.mxu0 %v4540
  %6372 = vmatprep.subr.bf16.mxu0 %v4537
  %6373 = vmatpush1.bf16.msra.mxu0 %v4536
  %6374 = vmatprep.subr.bf16.mxu0 %v4533
  %6375 = vmatpush1.bf16.msra.mxu0 %v4532
  %6376 = vmatprep.subr.bf16.mxu0 %v4529
  %6377 = vmatpush1.bf16.msra.mxu0 %v4528
  %6378 = vmatprep.subr.bf16.mxu0 %v4525
  %6379 = vmatpush1.bf16.msra.mxu0 %v4524
  %6380 = vmatprep.subr.bf16.mxu0 %v4521
  %6381 = vmatpush1.bf16.msra.mxu0 %v4520
  %6382 = vmatprep.subr.bf16.mxu0 %v4581
  %6383 = vmatpush2.bf16.msra.mxu0 %v4580
  %6384 = vmatprep.subr.bf16.mxu0 %v4577
  %6385 = vmatpush2.bf16.msra.mxu0 %v4576
  %6386 = vmatprep.subr.bf16.mxu0 %v4573
  %6387 = vmatpush2.bf16.msra.mxu0 %v4572
  %6388 = vmatprep.subr.bf16.mxu0 %v4569
  %6389 = vmatpush2.bf16.msra.mxu0 %v4568
  %6390 = vmatprep.subr.bf16.mxu0 %v4565
  %6391 = vmatpush2.bf16.msra.mxu0 %v4564
  %6392 = vmatprep.subr.bf16.mxu0 %v4561
  %6393 = vmatpush2.bf16.msra.mxu0 %v4560
  %6394 = vmatprep.subr.bf16.mxu0 %v4557
  %6395 = vmatpush2.bf16.msra.mxu0 %v4556
  %6396 = vmatprep.subr.bf16.mxu0 %v4553
  %6397 = vmatpush2.bf16.msra.mxu0 %v4552
  %6398 = vmatprep.mubr.bf16.mxu0 %v1111
  %6399 = vmatmul.mubr.bf16.gmra.mxu0 %v1110
  %v6400 = vpop.f32.mrf.mxu0
  %v6401 = vadd.f32 %v6360, %v6400
  %v6402 = vpop.f32.mrf.mxu0
  %v6403 = vadd.f32 %v6362, %v6402
  %v6404 = vpop.f32.mrf.mxu0
  %v6405 = vpop.f32.mrf.mxu0
  %6406 = vdwg.mxu0
  %6407 = vmatprep.subr.bf16.mxu0 %v4613
  %6408 = vmatpush1.bf16.msra.mxu0 %v4612
  %6409 = vmatprep.subr.bf16.mxu0 %v4609
  %6410 = vmatpush1.bf16.msra.mxu0 %v4608
  %6411 = vmatprep.subr.bf16.mxu0 %v4605
  %6412 = vmatpush1.bf16.msra.mxu0 %v4604
  %6413 = vmatprep.subr.bf16.mxu0 %v4601
  %6414 = vmatpush1.bf16.msra.mxu0 %v4600
  %6415 = vmatprep.subr.bf16.mxu0 %v4597
  %6416 = vmatpush1.bf16.msra.mxu0 %v4596
  %6417 = vmatprep.subr.bf16.mxu0 %v4593
  %6418 = vmatpush1.bf16.msra.mxu0 %v4592
  %6419 = vmatprep.subr.bf16.mxu0 %v4589
  %6420 = vmatpush1.bf16.msra.mxu0 %v4588
  %6421 = vmatprep.subr.bf16.mxu0 %v4585
  %6422 = vmatpush1.bf16.msra.mxu0 %v4584
  %6423 = vmatprep.subr.bf16.mxu0 %v4645
  %6424 = vmatpush2.bf16.msra.mxu0 %v4644
  %6425 = vmatprep.subr.bf16.mxu0 %v4641
  %6426 = vmatpush2.bf16.msra.mxu0 %v4640
  %6427 = vmatprep.subr.bf16.mxu0 %v4637
  %6428 = vmatpush2.bf16.msra.mxu0 %v4636
  %6429 = vmatprep.subr.bf16.mxu0 %v4633
  %6430 = vmatpush2.bf16.msra.mxu0 %v4632
  %6431 = vmatprep.subr.bf16.mxu0 %v4629
  %6432 = vmatpush2.bf16.msra.mxu0 %v4628
  %6433 = vmatprep.subr.bf16.mxu0 %v4625
  %6434 = vmatpush2.bf16.msra.mxu0 %v4624
  %6435 = vmatprep.subr.bf16.mxu0 %v4621
  %6436 = vmatpush2.bf16.msra.mxu0 %v4620
  %6437 = vmatprep.subr.bf16.mxu0 %v4617
  %6438 = vmatpush2.bf16.msra.mxu0 %v4616
  %6439 = vmatprep.mubr.bf16.mxu0 %v1113
  %6440 = vmatmul.mubr.bf16.gmra.mxu0 %v1112
  %v6441 = vpop.f32.mrf.mxu0
  %v6442 = vadd.f32 %v6401, %v6441
  %v6443 = vpop.f32.mrf.mxu0
  %v6444 = vadd.f32 %v6403, %v6443
  %v6445 = vpop.f32.mrf.mxu0
  %v6446 = vpop.f32.mrf.mxu0
  %6447 = vdwg.mxu0
  %6448 = vmatprep.subr.bf16.mxu0 %v4677
  %6449 = vmatpush1.bf16.msra.mxu0 %v4676
  %6450 = vmatprep.subr.bf16.mxu0 %v4673
  %6451 = vmatpush1.bf16.msra.mxu0 %v4672
  %6452 = vmatprep.subr.bf16.mxu0 %v4669
  %6453 = vmatpush1.bf16.msra.mxu0 %v4668
  %6454 = vmatprep.subr.bf16.mxu0 %v4665
  %6455 = vmatpush1.bf16.msra.mxu0 %v4664
  %6456 = vmatprep.subr.bf16.mxu0 %v4661
  %6457 = vmatpush1.bf16.msra.mxu0 %v4660
  %6458 = vmatprep.subr.bf16.mxu0 %v4657
  %6459 = vmatpush1.bf16.msra.mxu0 %v4656
  %6460 = vmatprep.subr.bf16.mxu0 %v4653
  %6461 = vmatpush1.bf16.msra.mxu0 %v4652
  %6462 = vmatprep.subr.bf16.mxu0 %v4649
  %6463 = vmatpush1.bf16.msra.mxu0 %v4648
  %6464 = vmatprep.subr.bf16.mxu0 %v4709
  %6465 = vmatpush2.bf16.msra.mxu0 %v4708
  %6466 = vmatprep.subr.bf16.mxu0 %v4705
  %6467 = vmatpush2.bf16.msra.mxu0 %v4704
  %6468 = vmatprep.subr.bf16.mxu0 %v4701
  %6469 = vmatpush2.bf16.msra.mxu0 %v4700
  %6470 = vmatprep.subr.bf16.mxu0 %v4697
  %6471 = vmatpush2.bf16.msra.mxu0 %v4696
  %6472 = vmatprep.subr.bf16.mxu0 %v4693
  %6473 = vmatpush2.bf16.msra.mxu0 %v4692
  %6474 = vmatprep.subr.bf16.mxu0 %v4689
  %6475 = vmatpush2.bf16.msra.mxu0 %v4688
  %6476 = vmatprep.subr.bf16.mxu0 %v4685
  %6477 = vmatpush2.bf16.msra.mxu0 %v4684
  %6478 = vmatprep.subr.bf16.mxu0 %v4681
  %6479 = vmatpush2.bf16.msra.mxu0 %v4680
  %6480 = vmatprep.mubr.bf16.mxu0 %v1115
  %6481 = vmatmul.mubr.bf16.gmra.mxu0 %v1114
  %v6482 = vpop.f32.mrf.mxu0
  %v6483 = vadd.f32 %v6442, %v6482
  %v6484 = vpop.f32.mrf.mxu0
  %v6485 = vadd.f32 %v6444, %v6484
  %v6486 = vpop.f32.mrf.mxu0
  %v6487 = vpop.f32.mrf.mxu0
  %6488 = vdwg.mxu0
  %6489 = vmatprep.subr.bf16.mxu0 %v4741
  %6490 = vmatpush1.bf16.msra.mxu0 %v4740
  %6491 = vmatprep.subr.bf16.mxu0 %v4737
  %6492 = vmatpush1.bf16.msra.mxu0 %v4736
  %6493 = vmatprep.subr.bf16.mxu0 %v4733
  %6494 = vmatpush1.bf16.msra.mxu0 %v4732
  %6495 = vmatprep.subr.bf16.mxu0 %v4729
  %6496 = vmatpush1.bf16.msra.mxu0 %v4728
  %6497 = vmatprep.subr.bf16.mxu0 %v4725
  %6498 = vmatpush1.bf16.msra.mxu0 %v4724
  %6499 = vmatprep.subr.bf16.mxu0 %v4721
  %6500 = vmatpush1.bf16.msra.mxu0 %v4720
  %6501 = vmatprep.subr.bf16.mxu0 %v4717
  %6502 = vmatpush1.bf16.msra.mxu0 %v4716
  %6503 = vmatprep.subr.bf16.mxu0 %v4713
  %6504 = vmatpush1.bf16.msra.mxu0 %v4712
  %6505 = vmatprep.subr.bf16.mxu0 %v4773
  %6506 = vmatpush2.bf16.msra.mxu0 %v4772
  %6507 = vmatprep.subr.bf16.mxu0 %v4769
  %6508 = vmatpush2.bf16.msra.mxu0 %v4768
  %6509 = vmatprep.subr.bf16.mxu0 %v4765
  %6510 = vmatpush2.bf16.msra.mxu0 %v4764
  %6511 = vmatprep.subr.bf16.mxu0 %v4761
  %6512 = vmatpush2.bf16.msra.mxu0 %v4760
  %6513 = vmatprep.subr.bf16.mxu0 %v4757
  %6514 = vmatpush2.bf16.msra.mxu0 %v4756
  %6515 = vmatprep.subr.bf16.mxu0 %v4753
  %6516 = vmatpush2.bf16.msra.mxu0 %v4752
  %6517 = vmatprep.subr.bf16.mxu0 %v4749
  %6518 = vmatpush2.bf16.msra.mxu0 %v4748
  %6519 = vmatprep.subr.bf16.mxu0 %v4745
  %6520 = vmatpush2.bf16.msra.mxu0 %v4744
  %6521 = vmatprep.mubr.bf16.mxu0 %v1117
  %6522 = vmatmul.mubr.bf16.gmra.mxu0 %v1116
  %v6523 = vpop.f32.mrf.mxu0
  %v6524 = vadd.f32 %v6483, %v6523
  %v6525 = vpop.f32.mrf.mxu0
  %v6526 = vadd.f32 %v6485, %v6525
  %v6527 = vpop.f32.mrf.mxu0
  %v6528 = vpop.f32.mrf.mxu0
  %6529 = vdwg.mxu0
  %6530 = vmatprep.subr.bf16.mxu0 %v4805
  %6531 = vmatpush1.bf16.msra.mxu0 %v4804
  %6532 = vmatprep.subr.bf16.mxu0 %v4801
  %6533 = vmatpush1.bf16.msra.mxu0 %v4800
  %6534 = vmatprep.subr.bf16.mxu0 %v4797
  %6535 = vmatpush1.bf16.msra.mxu0 %v4796
  %6536 = vmatprep.subr.bf16.mxu0 %v4793
  %6537 = vmatpush1.bf16.msra.mxu0 %v4792
  %6538 = vmatprep.subr.bf16.mxu0 %v4789
  %6539 = vmatpush1.bf16.msra.mxu0 %v4788
  %6540 = vmatprep.subr.bf16.mxu0 %v4785
  %6541 = vmatpush1.bf16.msra.mxu0 %v4784
  %6542 = vmatprep.subr.bf16.mxu0 %v4781
  %6543 = vmatpush1.bf16.msra.mxu0 %v4780
  %6544 = vmatprep.subr.bf16.mxu0 %v4777
  %6545 = vmatpush1.bf16.msra.mxu0 %v4776
  %6546 = vmatprep.subr.bf16.mxu0 %v4837
  %6547 = vmatpush2.bf16.msra.mxu0 %v4836
  %6548 = vmatprep.subr.bf16.mxu0 %v4833
  %6549 = vmatpush2.bf16.msra.mxu0 %v4832
  %6550 = vmatprep.subr.bf16.mxu0 %v4829
  %6551 = vmatpush2.bf16.msra.mxu0 %v4828
  %6552 = vmatprep.subr.bf16.mxu0 %v4825
  %6553 = vmatpush2.bf16.msra.mxu0 %v4824
  %6554 = vmatprep.subr.bf16.mxu0 %v4821
  %6555 = vmatpush2.bf16.msra.mxu0 %v4820
  %6556 = vmatprep.subr.bf16.mxu0 %v4817
  %6557 = vmatpush2.bf16.msra.mxu0 %v4816
  %6558 = vmatprep.subr.bf16.mxu0 %v4813
  %6559 = vmatpush2.bf16.msra.mxu0 %v4812
  %6560 = vmatprep.subr.bf16.mxu0 %v4809
  %6561 = vmatpush2.bf16.msra.mxu0 %v4808
  %6562 = vmatprep.mubr.bf16.mxu0 %v1119
  %6563 = vmatmul.mubr.bf16.gmra.mxu0 %v1118
  %v6564 = vpop.f32.mrf.mxu0
  %v6565 = vadd.f32 %v6524, %v6564
  %v6566 = vpop.f32.mrf.mxu0
  %v6567 = vadd.f32 %v6526, %v6566
  %v6568 = vpop.f32.mrf.mxu0
  %v6569 = vpop.f32.mrf.mxu0
  %6570 = vdwg.mxu0
  %6571 = vmatprep.subr.bf16.mxu0 %v4869
  %6572 = vmatpush1.bf16.msra.mxu0 %v4868
  %6573 = vmatprep.subr.bf16.mxu0 %v4865
  %6574 = vmatpush1.bf16.msra.mxu0 %v4864
  %6575 = vmatprep.subr.bf16.mxu0 %v4861
  %6576 = vmatpush1.bf16.msra.mxu0 %v4860
  %6577 = vmatprep.subr.bf16.mxu0 %v4857
  %6578 = vmatpush1.bf16.msra.mxu0 %v4856
  %6579 = vmatprep.subr.bf16.mxu0 %v4853
  %6580 = vmatpush1.bf16.msra.mxu0 %v4852
  %6581 = vmatprep.subr.bf16.mxu0 %v4849
  %6582 = vmatpush1.bf16.msra.mxu0 %v4848
  %6583 = vmatprep.subr.bf16.mxu0 %v4845
  %6584 = vmatpush1.bf16.msra.mxu0 %v4844
  %6585 = vmatprep.subr.bf16.mxu0 %v4841
  %6586 = vmatpush1.bf16.msra.mxu0 %v4840
  %6587 = vmatprep.subr.bf16.mxu0 %v4901
  %6588 = vmatpush2.bf16.msra.mxu0 %v4900
  %6589 = vmatprep.subr.bf16.mxu0 %v4897
  %6590 = vmatpush2.bf16.msra.mxu0 %v4896
  %6591 = vmatprep.subr.bf16.mxu0 %v4893
  %6592 = vmatpush2.bf16.msra.mxu0 %v4892
  %6593 = vmatprep.subr.bf16.mxu0 %v4889
  %6594 = vmatpush2.bf16.msra.mxu0 %v4888
  %6595 = vmatprep.subr.bf16.mxu0 %v4885
  %6596 = vmatpush2.bf16.msra.mxu0 %v4884
  %6597 = vmatprep.subr.bf16.mxu0 %v4881
  %6598 = vmatpush2.bf16.msra.mxu0 %v4880
  %6599 = vmatprep.subr.bf16.mxu0 %v4877
  %6600 = vmatpush2.bf16.msra.mxu0 %v4876
  %6601 = vmatprep.subr.bf16.mxu0 %v4873
  %6602 = vmatpush2.bf16.msra.mxu0 %v4872
  %6603 = vmatprep.mubr.bf16.mxu0 %v1121
  %6604 = vmatmul.mubr.bf16.gmra.mxu0 %v1120
  %v6605 = vpop.f32.mrf.mxu0
  %v6606 = vadd.f32 %v6565, %v6605
  %v6607 = vpop.f32.mrf.mxu0
  %v6608 = vadd.f32 %v6567, %v6607
  %v6609 = vpop.f32.mrf.mxu0
  %v6610 = vpop.f32.mrf.mxu0
  %6611 = vdwg.mxu0
  %6612 = vmatprep.subr.bf16.mxu0 %v4933
  %6613 = vmatpush1.bf16.msra.mxu0 %v4932
  %6614 = vmatprep.subr.bf16.mxu0 %v4929
  %6615 = vmatpush1.bf16.msra.mxu0 %v4928
  %6616 = vmatprep.subr.bf16.mxu0 %v4925
  %6617 = vmatpush1.bf16.msra.mxu0 %v4924
  %6618 = vmatprep.subr.bf16.mxu0 %v4921
  %6619 = vmatpush1.bf16.msra.mxu0 %v4920
  %6620 = vmatprep.subr.bf16.mxu0 %v4917
  %6621 = vmatpush1.bf16.msra.mxu0 %v4916
  %6622 = vmatprep.subr.bf16.mxu0 %v4913
  %6623 = vmatpush1.bf16.msra.mxu0 %v4912
  %6624 = vmatprep.subr.bf16.mxu0 %v4909
  %6625 = vmatpush1.bf16.msra.mxu0 %v4908
  %6626 = vmatprep.subr.bf16.mxu0 %v4905
  %6627 = vmatpush1.bf16.msra.mxu0 %v4904
  %6628 = vmatprep.subr.bf16.mxu0 %v4965
  %6629 = vmatpush2.bf16.msra.mxu0 %v4964
  %6630 = vmatprep.subr.bf16.mxu0 %v4961
  %6631 = vmatpush2.bf16.msra.mxu0 %v4960
  %6632 = vmatprep.subr.bf16.mxu0 %v4957
  %6633 = vmatpush2.bf16.msra.mxu0 %v4956
  %6634 = vmatprep.subr.bf16.mxu0 %v4953
  %6635 = vmatpush2.bf16.msra.mxu0 %v4952
  %6636 = vmatprep.subr.bf16.mxu0 %v4949
  %6637 = vmatpush2.bf16.msra.mxu0 %v4948
  %6638 = vmatprep.subr.bf16.mxu0 %v4945
  %6639 = vmatpush2.bf16.msra.mxu0 %v4944
  %6640 = vmatprep.subr.bf16.mxu0 %v4941
  %6641 = vmatpush2.bf16.msra.mxu0 %v4940
  %6642 = vmatprep.subr.bf16.mxu0 %v4937
  %6643 = vmatpush2.bf16.msra.mxu0 %v4936
  %6644 = vmatprep.mubr.bf16.mxu0 %v1123
  %6645 = vmatmul.mubr.bf16.gmra.mxu0 %v1122
  %v6646 = vpop.f32.mrf.mxu0
  %v6647 = vadd.f32 %v6606, %v6646
  %v6648 = vpop.f32.mrf.mxu0
  %v6649 = vadd.f32 %v6608, %v6648
  %v6650 = vpop.f32.mrf.mxu0
  %v6651 = vpop.f32.mrf.mxu0
  %6652 = vdwg.mxu0
  %6653 = vmatprep.subr.bf16.mxu0 %v4997
  %6654 = vmatpush1.bf16.msra.mxu0 %v4996
  %6655 = vmatprep.subr.bf16.mxu0 %v4993
  %6656 = vmatpush1.bf16.msra.mxu0 %v4992
  %6657 = vmatprep.subr.bf16.mxu0 %v4989
  %6658 = vmatpush1.bf16.msra.mxu0 %v4988
  %6659 = vmatprep.subr.bf16.mxu0 %v4985
  %6660 = vmatpush1.bf16.msra.mxu0 %v4984
  %6661 = vmatprep.subr.bf16.mxu0 %v4981
  %6662 = vmatpush1.bf16.msra.mxu0 %v4980
  %6663 = vmatprep.subr.bf16.mxu0 %v4977
  %6664 = vmatpush1.bf16.msra.mxu0 %v4976
  %6665 = vmatprep.subr.bf16.mxu0 %v4973
  %6666 = vmatpush1.bf16.msra.mxu0 %v4972
  %6667 = vmatprep.subr.bf16.mxu0 %v4969
  %6668 = vmatpush1.bf16.msra.mxu0 %v4968
  %6669 = vmatprep.subr.bf16.mxu0 %v5029
  %6670 = vmatpush2.bf16.msra.mxu0 %v5028
  %6671 = vmatprep.subr.bf16.mxu0 %v5025
  %6672 = vmatpush2.bf16.msra.mxu0 %v5024
  %6673 = vmatprep.subr.bf16.mxu0 %v5021
  %6674 = vmatpush2.bf16.msra.mxu0 %v5020
  %6675 = vmatprep.subr.bf16.mxu0 %v5017
  %6676 = vmatpush2.bf16.msra.mxu0 %v5016
  %6677 = vmatprep.subr.bf16.mxu0 %v5013
  %6678 = vmatpush2.bf16.msra.mxu0 %v5012
  %6679 = vmatprep.subr.bf16.mxu0 %v5009
  %6680 = vmatpush2.bf16.msra.mxu0 %v5008
  %6681 = vmatprep.subr.bf16.mxu0 %v5005
  %6682 = vmatpush2.bf16.msra.mxu0 %v5004
  %6683 = vmatprep.subr.bf16.mxu0 %v5001
  %6684 = vmatpush2.bf16.msra.mxu0 %v5000
  %6685 = vmatprep.mubr.bf16.mxu0 %v1125
  %6686 = vmatmul.mubr.bf16.gmra.mxu0 %v1124
  %v6687 = vpop.f32.mrf.mxu0
  %v6688 = vadd.f32 %v6647, %v6687
  %v6689 = vpop.f32.mrf.mxu0
  %v6690 = vadd.f32 %v6649, %v6689
  %v6691 = vpop.f32.mrf.mxu0
  %v6692 = vpop.f32.mrf.mxu0
  %6693 = vdwg.mxu0
  %6694 = vmatprep.subr.bf16.mxu0 %v5061
  %6695 = vmatpush1.bf16.msra.mxu0 %v5060
  %6696 = vmatprep.subr.bf16.mxu0 %v5057
  %6697 = vmatpush1.bf16.msra.mxu0 %v5056
  %6698 = vmatprep.subr.bf16.mxu0 %v5053
  %6699 = vmatpush1.bf16.msra.mxu0 %v5052
  %6700 = vmatprep.subr.bf16.mxu0 %v5049
  %6701 = vmatpush1.bf16.msra.mxu0 %v5048
  %6702 = vmatprep.subr.bf16.mxu0 %v5045
  %6703 = vmatpush1.bf16.msra.mxu0 %v5044
  %6704 = vmatprep.subr.bf16.mxu0 %v5041
  %6705 = vmatpush1.bf16.msra.mxu0 %v5040
  %6706 = vmatprep.subr.bf16.mxu0 %v5037
  %6707 = vmatpush1.bf16.msra.mxu0 %v5036
  %6708 = vmatprep.subr.bf16.mxu0 %v5033
  %6709 = vmatpush1.bf16.msra.mxu0 %v5032
  %6710 = vmatprep.subr.bf16.mxu0 %v5093
  %6711 = vmatpush2.bf16.msra.mxu0 %v5092
  %6712 = vmatprep.subr.bf16.mxu0 %v5089
  %6713 = vmatpush2.bf16.msra.mxu0 %v5088
  %6714 = vmatprep.subr.bf16.mxu0 %v5085
  %6715 = vmatpush2.bf16.msra.mxu0 %v5084
  %6716 = vmatprep.subr.bf16.mxu0 %v5081
  %6717 = vmatpush2.bf16.msra.mxu0 %v5080
  %6718 = vmatprep.subr.bf16.mxu0 %v5077
  %6719 = vmatpush2.bf16.msra.mxu0 %v5076
  %6720 = vmatprep.subr.bf16.mxu0 %v5073
  %6721 = vmatpush2.bf16.msra.mxu0 %v5072
  %6722 = vmatprep.subr.bf16.mxu0 %v5069
  %6723 = vmatpush2.bf16.msra.mxu0 %v5068
  %6724 = vmatprep.subr.bf16.mxu0 %v5065
  %6725 = vmatpush2.bf16.msra.mxu0 %v5064
  %6726 = vmatprep.mubr.bf16.mxu0 %v1127
  %6727 = vmatmul.mubr.bf16.gmra.mxu0 %v1126
  %v6728 = vpop.f32.mrf.mxu0
  %v6729 = vadd.f32 %v6688, %v6728
  %v6730 = vpop.f32.mrf.mxu0
  %v6731 = vadd.f32 %v6690, %v6730
  %v6732 = vpop.f32.mrf.mxu0
  %v6733 = vpop.f32.mrf.mxu0
  %6734 = vdwg.mxu0
  %6735 = vmatprep.subr.bf16.mxu0 %v5125
  %6736 = vmatpush1.bf16.msra.mxu0 %v5124
  %6737 = vmatprep.subr.bf16.mxu0 %v5121
  %6738 = vmatpush1.bf16.msra.mxu0 %v5120
  %6739 = vmatprep.subr.bf16.mxu0 %v5117
  %6740 = vmatpush1.bf16.msra.mxu0 %v5116
  %6741 = vmatprep.subr.bf16.mxu0 %v5113
  %6742 = vmatpush1.bf16.msra.mxu0 %v5112
  %6743 = vmatprep.subr.bf16.mxu0 %v5109
  %6744 = vmatpush1.bf16.msra.mxu0 %v5108
  %6745 = vmatprep.subr.bf16.mxu0 %v5105
  %6746 = vmatpush1.bf16.msra.mxu0 %v5104
  %6747 = vmatprep.subr.bf16.mxu0 %v5101
  %6748 = vmatpush1.bf16.msra.mxu0 %v5100
  %6749 = vmatprep.subr.bf16.mxu0 %v5097
  %6750 = vmatpush1.bf16.msra.mxu0 %v5096
  %6751 = vmatprep.subr.bf16.mxu0 0
  %6752 = vmatpush2.bf16.msra.mxu0 0
  %6753 = vmatprep.subr.bf16.mxu0 0
  %6754 = vmatpush2.bf16.msra.mxu0 0
  %6755 = vmatprep.subr.bf16.mxu0 0
  %6756 = vmatpush2.bf16.msra.mxu0 0
  %6757 = vmatprep.subr.bf16.mxu0 0
  %6758 = vmatpush2.bf16.msra.mxu0 0
  %6759 = vmatprep.subr.bf16.mxu0 0
  %6760 = vmatpush2.bf16.msra.mxu0 0
  %6761 = vmatprep.subr.bf16.mxu0 0
  %6762 = vmatpush2.bf16.msra.mxu0 0
  %6763 = vmatprep.subr.bf16.mxu0 0
  %6764 = vmatpush2.bf16.msra.mxu0 0
  %6765 = vmatprep.subr.bf16.mxu0 0
  %6766 = vmatpush2.bf16.msra.mxu0 0
  %6767 = vmatprep.mubr.bf16.mxu0 0
  %6768 = vmatmul.mubr.bf16.gmra.mxu0 %v1128
  %v6769 = vpop.f32.mrf.mxu0
  %v6770 = vadd.f32 %v6729, %v6769
  %v6771 = vpop.f32.mrf.mxu0
  %v6772 = vadd.f32 %v6731, %v6771
  %v6773 = vpop.f32.mrf.mxu0
  %v6774 = vpop.f32.mrf.mxu0
  %6775 = vdwg.mxu0
  %6776 = vmatprep.subr.bf16.mxu0 %v4167
  %6777 = vmatpush1.bf16.msra.mxu0 %v4166
  %6778 = vmatprep.subr.bf16.mxu0 %v4163
  %6779 = vmatpush1.bf16.msra.mxu0 %v4162
  %6780 = vmatprep.subr.bf16.mxu0 %v4159
  %6781 = vmatpush1.bf16.msra.mxu0 %v4158
  %6782 = vmatprep.subr.bf16.mxu0 %v4155
  %6783 = vmatpush1.bf16.msra.mxu0 %v4154
  %6784 = vmatprep.subr.bf16.mxu0 %v4151
  %6785 = vmatpush1.bf16.msra.mxu0 %v4150
  %6786 = vmatprep.subr.bf16.mxu0 %v4147
  %6787 = vmatpush1.bf16.msra.mxu0 %v4146
  %6788 = vmatprep.subr.bf16.mxu0 %v4143
  %6789 = vmatpush1.bf16.msra.mxu0 %v4142
  %6790 = vmatprep.subr.bf16.mxu0 %v4139
  %6791 = vmatpush1.bf16.msra.mxu0 %v4138
  %6792 = vmatprep.subr.bf16.mxu0 %v4199
  %6793 = vmatpush2.bf16.msra.mxu0 %v4198
  %6794 = vmatprep.subr.bf16.mxu0 %v4195
  %6795 = vmatpush2.bf16.msra.mxu0 %v4194
  %6796 = vmatprep.subr.bf16.mxu0 %v4191
  %6797 = vmatpush2.bf16.msra.mxu0 %v4190
  %6798 = vmatprep.subr.bf16.mxu0 %v4187
  %6799 = vmatpush2.bf16.msra.mxu0 %v4186
  %6800 = vmatprep.subr.bf16.mxu0 %v4183
  %6801 = vmatpush2.bf16.msra.mxu0 %v4182
  %6802 = vmatprep.subr.bf16.mxu0 %v4179
  %6803 = vmatpush2.bf16.msra.mxu0 %v4178
  %6804 = vmatprep.subr.bf16.mxu0 %v4175
  %6805 = vmatpush2.bf16.msra.mxu0 %v4174
  %6806 = vmatprep.subr.bf16.mxu0 %v4171
  %6807 = vmatpush2.bf16.msra.mxu0 %v4170
  %6808 = vmatprep.mubr.bf16.mxu0 %v1099
  %6809 = vmatmul.mubr.bf16.gmra.mxu0 %v1098
  %v6810 = vpop.f32.mrf.mxu0
  %v6811 = vadd.f32 %v1042, %v6810
  %v6812 = vpop.f32.mrf.mxu0
  %v6813 = vadd.f32 %v1046, %v6812
  %v6814 = vpop.f32.mrf.mxu0
  %v6815 = vpop.f32.mrf.mxu0
  %6816 = vdwg.mxu0
  %6817 = vmatprep.subr.bf16.mxu0 %v4231
  %6818 = vmatpush1.bf16.msra.mxu0 %v4230
  %6819 = vmatprep.subr.bf16.mxu0 %v4227
  %6820 = vmatpush1.bf16.msra.mxu0 %v4226
  %6821 = vmatprep.subr.bf16.mxu0 %v4223
  %6822 = vmatpush1.bf16.msra.mxu0 %v4222
  %6823 = vmatprep.subr.bf16.mxu0 %v4219
  %6824 = vmatpush1.bf16.msra.mxu0 %v4218
  %6825 = vmatprep.subr.bf16.mxu0 %v4215
  %6826 = vmatpush1.bf16.msra.mxu0 %v4214
  %6827 = vmatprep.subr.bf16.mxu0 %v4211
  %6828 = vmatpush1.bf16.msra.mxu0 %v4210
  %6829 = vmatprep.subr.bf16.mxu0 %v4207
  %6830 = vmatpush1.bf16.msra.mxu0 %v4206
  %6831 = vmatprep.subr.bf16.mxu0 %v4203
  %6832 = vmatpush1.bf16.msra.mxu0 %v4202
  %6833 = vmatprep.subr.bf16.mxu0 %v4263
  %6834 = vmatpush2.bf16.msra.mxu0 %v4262
  %6835 = vmatprep.subr.bf16.mxu0 %v4259
  %6836 = vmatpush2.bf16.msra.mxu0 %v4258
  %6837 = vmatprep.subr.bf16.mxu0 %v4255
  %6838 = vmatpush2.bf16.msra.mxu0 %v4254
  %6839 = vmatprep.subr.bf16.mxu0 %v4251
  %6840 = vmatpush2.bf16.msra.mxu0 %v4250
  %6841 = vmatprep.subr.bf16.mxu0 %v4247
  %6842 = vmatpush2.bf16.msra.mxu0 %v4246
  %6843 = vmatprep.subr.bf16.mxu0 %v4243
  %6844 = vmatpush2.bf16.msra.mxu0 %v4242
  %6845 = vmatprep.subr.bf16.mxu0 %v4239
  %6846 = vmatpush2.bf16.msra.mxu0 %v4238
  %6847 = vmatprep.subr.bf16.mxu0 %v4235
  %6848 = vmatpush2.bf16.msra.mxu0 %v4234
  %6849 = vmatprep.mubr.bf16.mxu0 %v1101
  %6850 = vmatmul.mubr.bf16.gmra.mxu0 %v1100
  %v6851 = vpop.f32.mrf.mxu0
  %v6852 = vadd.f32 %v6811, %v6851
  %v6853 = vpop.f32.mrf.mxu0
  %v6854 = vadd.f32 %v6813, %v6853
  %v6855 = vpop.f32.mrf.mxu0
  %v6856 = vpop.f32.mrf.mxu0
  %6857 = vdwg.mxu0
  %6858 = vmatprep.subr.bf16.mxu0 %v4295
  %6859 = vmatpush1.bf16.msra.mxu0 %v4294
  %6860 = vmatprep.subr.bf16.mxu0 %v4291
  %6861 = vmatpush1.bf16.msra.mxu0 %v4290
  %6862 = vmatprep.subr.bf16.mxu0 %v4287
  %6863 = vmatpush1.bf16.msra.mxu0 %v4286
  %6864 = vmatprep.subr.bf16.mxu0 %v4283
  %6865 = vmatpush1.bf16.msra.mxu0 %v4282
  %6866 = vmatprep.subr.bf16.mxu0 %v4279
  %6867 = vmatpush1.bf16.msra.mxu0 %v4278
  %6868 = vmatprep.subr.bf16.mxu0 %v4275
  %6869 = vmatpush1.bf16.msra.mxu0 %v4274
  %6870 = vmatprep.subr.bf16.mxu0 %v4271
  %6871 = vmatpush1.bf16.msra.mxu0 %v4270
  %6872 = vmatprep.subr.bf16.mxu0 %v4267
  %6873 = vmatpush1.bf16.msra.mxu0 %v4266
  %6874 = vmatprep.subr.bf16.mxu0 %v4327
  %6875 = vmatpush2.bf16.msra.mxu0 %v4326
  %6876 = vmatprep.subr.bf16.mxu0 %v4323
  %6877 = vmatpush2.bf16.msra.mxu0 %v4322
  %6878 = vmatprep.subr.bf16.mxu0 %v4319
  %6879 = vmatpush2.bf16.msra.mxu0 %v4318
  %6880 = vmatprep.subr.bf16.mxu0 %v4315
  %6881 = vmatpush2.bf16.msra.mxu0 %v4314
  %6882 = vmatprep.subr.bf16.mxu0 %v4311
  %6883 = vmatpush2.bf16.msra.mxu0 %v4310
  %6884 = vmatprep.subr.bf16.mxu0 %v4307
  %6885 = vmatpush2.bf16.msra.mxu0 %v4306
  %6886 = vmatprep.subr.bf16.mxu0 %v4303
  %6887 = vmatpush2.bf16.msra.mxu0 %v4302
  %6888 = vmatprep.subr.bf16.mxu0 %v4299
  %6889 = vmatpush2.bf16.msra.mxu0 %v4298
  %6890 = vmatprep.mubr.bf16.mxu0 %v1103
  %6891 = vmatmul.mubr.bf16.gmra.mxu0 %v1102
  %v6892 = vpop.f32.mrf.mxu0
  %v6893 = vadd.f32 %v6852, %v6892
  %v6894 = vpop.f32.mrf.mxu0
  %v6895 = vadd.f32 %v6854, %v6894
  %v6896 = vpop.f32.mrf.mxu0
  %v6897 = vpop.f32.mrf.mxu0
  %6898 = vdwg.mxu0
  %6899 = vmatprep.subr.bf16.mxu0 %v4359
  %6900 = vmatpush1.bf16.msra.mxu0 %v4358
  %6901 = vmatprep.subr.bf16.mxu0 %v4355
  %6902 = vmatpush1.bf16.msra.mxu0 %v4354
  %6903 = vmatprep.subr.bf16.mxu0 %v4351
  %6904 = vmatpush1.bf16.msra.mxu0 %v4350
  %6905 = vmatprep.subr.bf16.mxu0 %v4347
  %6906 = vmatpush1.bf16.msra.mxu0 %v4346
  %6907 = vmatprep.subr.bf16.mxu0 %v4343
  %6908 = vmatpush1.bf16.msra.mxu0 %v4342
  %6909 = vmatprep.subr.bf16.mxu0 %v4339
  %6910 = vmatpush1.bf16.msra.mxu0 %v4338
  %6911 = vmatprep.subr.bf16.mxu0 %v4335
  %6912 = vmatpush1.bf16.msra.mxu0 %v4334
  %6913 = vmatprep.subr.bf16.mxu0 %v4331
  %6914 = vmatpush1.bf16.msra.mxu0 %v4330
  %6915 = vmatprep.subr.bf16.mxu0 %v4391
  %6916 = vmatpush2.bf16.msra.mxu0 %v4390
  %6917 = vmatprep.subr.bf16.mxu0 %v4387
  %6918 = vmatpush2.bf16.msra.mxu0 %v4386
  %6919 = vmatprep.subr.bf16.mxu0 %v4383
  %6920 = vmatpush2.bf16.msra.mxu0 %v4382
  %6921 = vmatprep.subr.bf16.mxu0 %v4379
  %6922 = vmatpush2.bf16.msra.mxu0 %v4378
  %6923 = vmatprep.subr.bf16.mxu0 %v4375
  %6924 = vmatpush2.bf16.msra.mxu0 %v4374
  %6925 = vmatprep.subr.bf16.mxu0 %v4371
  %6926 = vmatpush2.bf16.msra.mxu0 %v4370
  %6927 = vmatprep.subr.bf16.mxu0 %v4367
  %6928 = vmatpush2.bf16.msra.mxu0 %v4366
  %6929 = vmatprep.subr.bf16.mxu0 %v4363
  %6930 = vmatpush2.bf16.msra.mxu0 %v4362
  %6931 = vmatprep.mubr.bf16.mxu0 %v1105
  %6932 = vmatmul.mubr.bf16.gmra.mxu0 %v1104
  %v6933 = vpop.f32.mrf.mxu0
  %v6934 = vadd.f32 %v6893, %v6933
  %v6935 = vpop.f32.mrf.mxu0
  %v6936 = vadd.f32 %v6895, %v6935
  %v6937 = vpop.f32.mrf.mxu0
  %v6938 = vpop.f32.mrf.mxu0
  %6939 = vdwg.mxu0
  %6940 = vmatprep.subr.bf16.mxu0 %v4423
  %6941 = vmatpush1.bf16.msra.mxu0 %v4422
  %6942 = vmatprep.subr.bf16.mxu0 %v4419
  %6943 = vmatpush1.bf16.msra.mxu0 %v4418
  %6944 = vmatprep.subr.bf16.mxu0 %v4415
  %6945 = vmatpush1.bf16.msra.mxu0 %v4414
  %6946 = vmatprep.subr.bf16.mxu0 %v4411
  %6947 = vmatpush1.bf16.msra.mxu0 %v4410
  %6948 = vmatprep.subr.bf16.mxu0 %v4407
  %6949 = vmatpush1.bf16.msra.mxu0 %v4406
  %6950 = vmatprep.subr.bf16.mxu0 %v4403
  %6951 = vmatpush1.bf16.msra.mxu0 %v4402
  %6952 = vmatprep.subr.bf16.mxu0 %v4399
  %6953 = vmatpush1.bf16.msra.mxu0 %v4398
  %6954 = vmatprep.subr.bf16.mxu0 %v4395
  %6955 = vmatpush1.bf16.msra.mxu0 %v4394
  %6956 = vmatprep.subr.bf16.mxu0 %v4455
  %6957 = vmatpush2.bf16.msra.mxu0 %v4454
  %6958 = vmatprep.subr.bf16.mxu0 %v4451
  %6959 = vmatpush2.bf16.msra.mxu0 %v4450
  %6960 = vmatprep.subr.bf16.mxu0 %v4447
  %6961 = vmatpush2.bf16.msra.mxu0 %v4446
  %6962 = vmatprep.subr.bf16.mxu0 %v4443
  %6963 = vmatpush2.bf16.msra.mxu0 %v4442
  %6964 = vmatprep.subr.bf16.mxu0 %v4439
  %6965 = vmatpush2.bf16.msra.mxu0 %v4438
  %6966 = vmatprep.subr.bf16.mxu0 %v4435
  %6967 = vmatpush2.bf16.msra.mxu0 %v4434
  %6968 = vmatprep.subr.bf16.mxu0 %v4431
  %6969 = vmatpush2.bf16.msra.mxu0 %v4430
  %6970 = vmatprep.subr.bf16.mxu0 %v4427
  %6971 = vmatpush2.bf16.msra.mxu0 %v4426
  %6972 = vmatprep.mubr.bf16.mxu0 %v1107
  %6973 = vmatmul.mubr.bf16.gmra.mxu0 %v1106
  %v6974 = vpop.f32.mrf.mxu0
  %v6975 = vadd.f32 %v6934, %v6974
  %v6976 = vpop.f32.mrf.mxu0
  %v6977 = vadd.f32 %v6936, %v6976
  %v6978 = vpop.f32.mrf.mxu0
  %v6979 = vpop.f32.mrf.mxu0
  %6980 = vdwg.mxu0
  %6981 = vmatprep.subr.bf16.mxu0 %v4487
  %6982 = vmatpush1.bf16.msra.mxu0 %v4486
  %6983 = vmatprep.subr.bf16.mxu0 %v4483
  %6984 = vmatpush1.bf16.msra.mxu0 %v4482
  %6985 = vmatprep.subr.bf16.mxu0 %v4479
  %6986 = vmatpush1.bf16.msra.mxu0 %v4478
  %6987 = vmatprep.subr.bf16.mxu0 %v4475
  %6988 = vmatpush1.bf16.msra.mxu0 %v4474
  %6989 = vmatprep.subr.bf16.mxu0 %v4471
  %6990 = vmatpush1.bf16.msra.mxu0 %v4470
  %6991 = vmatprep.subr.bf16.mxu0 %v4467
  %6992 = vmatpush1.bf16.msra.mxu0 %v4466
  %6993 = vmatprep.subr.bf16.mxu0 %v4463
  %6994 = vmatpush1.bf16.msra.mxu0 %v4462
  %6995 = vmatprep.subr.bf16.mxu0 %v4459
  %6996 = vmatpush1.bf16.msra.mxu0 %v4458
  %6997 = vmatprep.subr.bf16.mxu0 %v4519
  %6998 = vmatpush2.bf16.msra.mxu0 %v4518
  %6999 = vmatprep.subr.bf16.mxu0 %v4515
  %7000 = vmatpush2.bf16.msra.mxu0 %v4514
  %7001 = vmatprep.subr.bf16.mxu0 %v4511
  %7002 = vmatpush2.bf16.msra.mxu0 %v4510
  %7003 = vmatprep.subr.bf16.mxu0 %v4507
  %7004 = vmatpush2.bf16.msra.mxu0 %v4506
  %7005 = vmatprep.subr.bf16.mxu0 %v4503
  %7006 = vmatpush2.bf16.msra.mxu0 %v4502
  %7007 = vmatprep.subr.bf16.mxu0 %v4499
  %7008 = vmatpush2.bf16.msra.mxu0 %v4498
  %7009 = vmatprep.subr.bf16.mxu0 %v4495
  %7010 = vmatpush2.bf16.msra.mxu0 %v4494
  %7011 = vmatprep.subr.bf16.mxu0 %v4491
  %7012 = vmatpush2.bf16.msra.mxu0 %v4490
  %7013 = vmatprep.mubr.bf16.mxu0 %v1109
  %7014 = vmatmul.mubr.bf16.gmra.mxu0 %v1108
  %v7015 = vpop.f32.mrf.mxu0
  %v7016 = vadd.f32 %v6975, %v7015
  %v7017 = vpop.f32.mrf.mxu0
  %v7018 = vadd.f32 %v6977, %v7017
  %v7019 = vpop.f32.mrf.mxu0
  %v7020 = vpop.f32.mrf.mxu0
  %7021 = vdwg.mxu0
  %7022 = vmatprep.subr.bf16.mxu0 %v4551
  %7023 = vmatpush1.bf16.msra.mxu0 %v4550
  %7024 = vmatprep.subr.bf16.mxu0 %v4547
  %7025 = vmatpush1.bf16.msra.mxu0 %v4546
  %7026 = vmatprep.subr.bf16.mxu0 %v4543
  %7027 = vmatpush1.bf16.msra.mxu0 %v4542
  %7028 = vmatprep.subr.bf16.mxu0 %v4539
  %7029 = vmatpush1.bf16.msra.mxu0 %v4538
  %7030 = vmatprep.subr.bf16.mxu0 %v4535
  %7031 = vmatpush1.bf16.msra.mxu0 %v4534
  %7032 = vmatprep.subr.bf16.mxu0 %v4531
  %7033 = vmatpush1.bf16.msra.mxu0 %v4530
  %7034 = vmatprep.subr.bf16.mxu0 %v4527
  %7035 = vmatpush1.bf16.msra.mxu0 %v4526
  %7036 = vmatprep.subr.bf16.mxu0 %v4523
  %7037 = vmatpush1.bf16.msra.mxu0 %v4522
  %7038 = vmatprep.subr.bf16.mxu0 %v4583
  %7039 = vmatpush2.bf16.msra.mxu0 %v4582
  %7040 = vmatprep.subr.bf16.mxu0 %v4579
  %7041 = vmatpush2.bf16.msra.mxu0 %v4578
  %7042 = vmatprep.subr.bf16.mxu0 %v4575
  %7043 = vmatpush2.bf16.msra.mxu0 %v4574
  %7044 = vmatprep.subr.bf16.mxu0 %v4571
  %7045 = vmatpush2.bf16.msra.mxu0 %v4570
  %7046 = vmatprep.subr.bf16.mxu0 %v4567
  %7047 = vmatpush2.bf16.msra.mxu0 %v4566
  %7048 = vmatprep.subr.bf16.mxu0 %v4563
  %7049 = vmatpush2.bf16.msra.mxu0 %v4562
  %7050 = vmatprep.subr.bf16.mxu0 %v4559
  %7051 = vmatpush2.bf16.msra.mxu0 %v4558
  %7052 = vmatprep.subr.bf16.mxu0 %v4555
  %7053 = vmatpush2.bf16.msra.mxu0 %v4554
  %7054 = vmatprep.mubr.bf16.mxu0 %v1111
  %7055 = vmatmul.mubr.bf16.gmra.mxu0 %v1110
  %v7056 = vpop.f32.mrf.mxu0
  %v7057 = vadd.f32 %v7016, %v7056
  %v7058 = vpop.f32.mrf.mxu0
  %v7059 = vadd.f32 %v7018, %v7058
  %v7060 = vpop.f32.mrf.mxu0
  %v7061 = vpop.f32.mrf.mxu0
  %7062 = vdwg.mxu0
  %7063 = vmatprep.subr.bf16.mxu0 %v4615
  %7064 = vmatpush1.bf16.msra.mxu0 %v4614
  %7065 = vmatprep.subr.bf16.mxu0 %v4611
  %7066 = vmatpush1.bf16.msra.mxu0 %v4610
  %7067 = vmatprep.subr.bf16.mxu0 %v4607
  %7068 = vmatpush1.bf16.msra.mxu0 %v4606
  %7069 = vmatprep.subr.bf16.mxu0 %v4603
  %7070 = vmatpush1.bf16.msra.mxu0 %v4602
  %7071 = vmatprep.subr.bf16.mxu0 %v4599
  %7072 = vmatpush1.bf16.msra.mxu0 %v4598
  %7073 = vmatprep.subr.bf16.mxu0 %v4595
  %7074 = vmatpush1.bf16.msra.mxu0 %v4594
  %7075 = vmatprep.subr.bf16.mxu0 %v4591
  %7076 = vmatpush1.bf16.msra.mxu0 %v4590
  %7077 = vmatprep.subr.bf16.mxu0 %v4587
  %7078 = vmatpush1.bf16.msra.mxu0 %v4586
  %7079 = vmatprep.subr.bf16.mxu0 %v4647
  %7080 = vmatpush2.bf16.msra.mxu0 %v4646
  %7081 = vmatprep.subr.bf16.mxu0 %v4643
  %7082 = vmatpush2.bf16.msra.mxu0 %v4642
  %7083 = vmatprep.subr.bf16.mxu0 %v4639
  %7084 = vmatpush2.bf16.msra.mxu0 %v4638
  %7085 = vmatprep.subr.bf16.mxu0 %v4635
  %7086 = vmatpush2.bf16.msra.mxu0 %v4634
  %7087 = vmatprep.subr.bf16.mxu0 %v4631
  %7088 = vmatpush2.bf16.msra.mxu0 %v4630
  %7089 = vmatprep.subr.bf16.mxu0 %v4627
  %7090 = vmatpush2.bf16.msra.mxu0 %v4626
  %7091 = vmatprep.subr.bf16.mxu0 %v4623
  %7092 = vmatpush2.bf16.msra.mxu0 %v4622
  %7093 = vmatprep.subr.bf16.mxu0 %v4619
  %7094 = vmatpush2.bf16.msra.mxu0 %v4618
  %7095 = vmatprep.mubr.bf16.mxu0 %v1113
  %7096 = vmatmul.mubr.bf16.gmra.mxu0 %v1112
  %v7097 = vpop.f32.mrf.mxu0
  %v7098 = vadd.f32 %v7057, %v7097
  %v7099 = vpop.f32.mrf.mxu0
  %v7100 = vadd.f32 %v7059, %v7099
  %v7101 = vpop.f32.mrf.mxu0
  %v7102 = vpop.f32.mrf.mxu0
  %7103 = vdwg.mxu0
  %7104 = vmatprep.subr.bf16.mxu0 %v4679
  %7105 = vmatpush1.bf16.msra.mxu0 %v4678
  %7106 = vmatprep.subr.bf16.mxu0 %v4675
  %7107 = vmatpush1.bf16.msra.mxu0 %v4674
  %7108 = vmatprep.subr.bf16.mxu0 %v4671
  %7109 = vmatpush1.bf16.msra.mxu0 %v4670
  %7110 = vmatprep.subr.bf16.mxu0 %v4667
  %7111 = vmatpush1.bf16.msra.mxu0 %v4666
  %7112 = vmatprep.subr.bf16.mxu0 %v4663
  %7113 = vmatpush1.bf16.msra.mxu0 %v4662
  %7114 = vmatprep.subr.bf16.mxu0 %v4659
  %7115 = vmatpush1.bf16.msra.mxu0 %v4658
  %7116 = vmatprep.subr.bf16.mxu0 %v4655
  %7117 = vmatpush1.bf16.msra.mxu0 %v4654
  %7118 = vmatprep.subr.bf16.mxu0 %v4651
  %7119 = vmatpush1.bf16.msra.mxu0 %v4650
  %7120 = vmatprep.subr.bf16.mxu0 %v4711
  %7121 = vmatpush2.bf16.msra.mxu0 %v4710
  %7122 = vmatprep.subr.bf16.mxu0 %v4707
  %7123 = vmatpush2.bf16.msra.mxu0 %v4706
  %7124 = vmatprep.subr.bf16.mxu0 %v4703
  %7125 = vmatpush2.bf16.msra.mxu0 %v4702
  %7126 = vmatprep.subr.bf16.mxu0 %v4699
  %7127 = vmatpush2.bf16.msra.mxu0 %v4698
  %7128 = vmatprep.subr.bf16.mxu0 %v4695
  %7129 = vmatpush2.bf16.msra.mxu0 %v4694
  %7130 = vmatprep.subr.bf16.mxu0 %v4691
  %7131 = vmatpush2.bf16.msra.mxu0 %v4690
  %7132 = vmatprep.subr.bf16.mxu0 %v4687
  %7133 = vmatpush2.bf16.msra.mxu0 %v4686
  %7134 = vmatprep.subr.bf16.mxu0 %v4683
  %7135 = vmatpush2.bf16.msra.mxu0 %v4682
  %7136 = vmatprep.mubr.bf16.mxu0 %v1115
  %7137 = vmatmul.mubr.bf16.gmra.mxu0 %v1114
  %v7138 = vpop.f32.mrf.mxu0
  %v7139 = vadd.f32 %v7098, %v7138
  %v7140 = vpop.f32.mrf.mxu0
  %v7141 = vadd.f32 %v7100, %v7140
  %v7142 = vpop.f32.mrf.mxu0
  %v7143 = vpop.f32.mrf.mxu0
  %7144 = vdwg.mxu0
  %7145 = vmatprep.subr.bf16.mxu0 %v4743
  %7146 = vmatpush1.bf16.msra.mxu0 %v4742
  %7147 = vmatprep.subr.bf16.mxu0 %v4739
  %7148 = vmatpush1.bf16.msra.mxu0 %v4738
  %7149 = vmatprep.subr.bf16.mxu0 %v4735
  %7150 = vmatpush1.bf16.msra.mxu0 %v4734
  %7151 = vmatprep.subr.bf16.mxu0 %v4731
  %7152 = vmatpush1.bf16.msra.mxu0 %v4730
  %7153 = vmatprep.subr.bf16.mxu0 %v4727
  %7154 = vmatpush1.bf16.msra.mxu0 %v4726
  %7155 = vmatprep.subr.bf16.mxu0 %v4723
  %7156 = vmatpush1.bf16.msra.mxu0 %v4722
  %7157 = vmatprep.subr.bf16.mxu0 %v4719
  %7158 = vmatpush1.bf16.msra.mxu0 %v4718
  %7159 = vmatprep.subr.bf16.mxu0 %v4715
  %7160 = vmatpush1.bf16.msra.mxu0 %v4714
  %7161 = vmatprep.subr.bf16.mxu0 %v4775
  %7162 = vmatpush2.bf16.msra.mxu0 %v4774
  %7163 = vmatprep.subr.bf16.mxu0 %v4771
  %7164 = vmatpush2.bf16.msra.mxu0 %v4770
  %7165 = vmatprep.subr.bf16.mxu0 %v4767
  %7166 = vmatpush2.bf16.msra.mxu0 %v4766
  %7167 = vmatprep.subr.bf16.mxu0 %v4763
  %7168 = vmatpush2.bf16.msra.mxu0 %v4762
  %7169 = vmatprep.subr.bf16.mxu0 %v4759
  %7170 = vmatpush2.bf16.msra.mxu0 %v4758
  %7171 = vmatprep.subr.bf16.mxu0 %v4755
  %7172 = vmatpush2.bf16.msra.mxu0 %v4754
  %7173 = vmatprep.subr.bf16.mxu0 %v4751
  %7174 = vmatpush2.bf16.msra.mxu0 %v4750
  %7175 = vmatprep.subr.bf16.mxu0 %v4747
  %7176 = vmatpush2.bf16.msra.mxu0 %v4746
  %7177 = vmatprep.mubr.bf16.mxu0 %v1117
  %7178 = vmatmul.mubr.bf16.gmra.mxu0 %v1116
  %v7179 = vpop.f32.mrf.mxu0
  %v7180 = vadd.f32 %v7139, %v7179
  %v7181 = vpop.f32.mrf.mxu0
  %v7182 = vadd.f32 %v7141, %v7181
  %v7183 = vpop.f32.mrf.mxu0
  %v7184 = vpop.f32.mrf.mxu0
  %7185 = vdwg.mxu0
  %7186 = vmatprep.subr.bf16.mxu0 %v4807
  %7187 = vmatpush1.bf16.msra.mxu0 %v4806
  %7188 = vmatprep.subr.bf16.mxu0 %v4803
  %7189 = vmatpush1.bf16.msra.mxu0 %v4802
  %7190 = vmatprep.subr.bf16.mxu0 %v4799
  %7191 = vmatpush1.bf16.msra.mxu0 %v4798
  %7192 = vmatprep.subr.bf16.mxu0 %v4795
  %7193 = vmatpush1.bf16.msra.mxu0 %v4794
  %7194 = vmatprep.subr.bf16.mxu0 %v4791
  %7195 = vmatpush1.bf16.msra.mxu0 %v4790
  %7196 = vmatprep.subr.bf16.mxu0 %v4787
  %7197 = vmatpush1.bf16.msra.mxu0 %v4786
  %7198 = vmatprep.subr.bf16.mxu0 %v4783
  %7199 = vmatpush1.bf16.msra.mxu0 %v4782
  %7200 = vmatprep.subr.bf16.mxu0 %v4779
  %7201 = vmatpush1.bf16.msra.mxu0 %v4778
  %7202 = vmatprep.subr.bf16.mxu0 %v4839
  %7203 = vmatpush2.bf16.msra.mxu0 %v4838
  %7204 = vmatprep.subr.bf16.mxu0 %v4835
  %7205 = vmatpush2.bf16.msra.mxu0 %v4834
  %7206 = vmatprep.subr.bf16.mxu0 %v4831
  %7207 = vmatpush2.bf16.msra.mxu0 %v4830
  %7208 = vmatprep.subr.bf16.mxu0 %v4827
  %7209 = vmatpush2.bf16.msra.mxu0 %v4826
  %7210 = vmatprep.subr.bf16.mxu0 %v4823
  %7211 = vmatpush2.bf16.msra.mxu0 %v4822
  %7212 = vmatprep.subr.bf16.mxu0 %v4819
  %7213 = vmatpush2.bf16.msra.mxu0 %v4818
  %7214 = vmatprep.subr.bf16.mxu0 %v4815
  %7215 = vmatpush2.bf16.msra.mxu0 %v4814
  %7216 = vmatprep.subr.bf16.mxu0 %v4811
  %7217 = vmatpush2.bf16.msra.mxu0 %v4810
  %7218 = vmatprep.mubr.bf16.mxu0 %v1119
  %7219 = vmatmul.mubr.bf16.gmra.mxu0 %v1118
  %v7220 = vpop.f32.mrf.mxu0
  %v7221 = vadd.f32 %v7180, %v7220
  %v7222 = vpop.f32.mrf.mxu0
  %v7223 = vadd.f32 %v7182, %v7222
  %v7224 = vpop.f32.mrf.mxu0
  %v7225 = vpop.f32.mrf.mxu0
  %7226 = vdwg.mxu0
  %7227 = vmatprep.subr.bf16.mxu0 %v4871
  %7228 = vmatpush1.bf16.msra.mxu0 %v4870
  %7229 = vmatprep.subr.bf16.mxu0 %v4867
  %7230 = vmatpush1.bf16.msra.mxu0 %v4866
  %7231 = vmatprep.subr.bf16.mxu0 %v4863
  %7232 = vmatpush1.bf16.msra.mxu0 %v4862
  %7233 = vmatprep.subr.bf16.mxu0 %v4859
  %7234 = vmatpush1.bf16.msra.mxu0 %v4858
  %7235 = vmatprep.subr.bf16.mxu0 %v4855
  %7236 = vmatpush1.bf16.msra.mxu0 %v4854
  %7237 = vmatprep.subr.bf16.mxu0 %v4851
  %7238 = vmatpush1.bf16.msra.mxu0 %v4850
  %7239 = vmatprep.subr.bf16.mxu0 %v4847
  %7240 = vmatpush1.bf16.msra.mxu0 %v4846
  %7241 = vmatprep.subr.bf16.mxu0 %v4843
  %7242 = vmatpush1.bf16.msra.mxu0 %v4842
  %7243 = vmatprep.subr.bf16.mxu0 %v4903
  %7244 = vmatpush2.bf16.msra.mxu0 %v4902
  %7245 = vmatprep.subr.bf16.mxu0 %v4899
  %7246 = vmatpush2.bf16.msra.mxu0 %v4898
  %7247 = vmatprep.subr.bf16.mxu0 %v4895
  %7248 = vmatpush2.bf16.msra.mxu0 %v4894
  %7249 = vmatprep.subr.bf16.mxu0 %v4891
  %7250 = vmatpush2.bf16.msra.mxu0 %v4890
  %7251 = vmatprep.subr.bf16.mxu0 %v4887
  %7252 = vmatpush2.bf16.msra.mxu0 %v4886
  %7253 = vmatprep.subr.bf16.mxu0 %v4883
  %7254 = vmatpush2.bf16.msra.mxu0 %v4882
  %7255 = vmatprep.subr.bf16.mxu0 %v4879
  %7256 = vmatpush2.bf16.msra.mxu0 %v4878
  %7257 = vmatprep.subr.bf16.mxu0 %v4875
  %7258 = vmatpush2.bf16.msra.mxu0 %v4874
  %7259 = vmatprep.mubr.bf16.mxu0 %v1121
  %7260 = vmatmul.mubr.bf16.gmra.mxu0 %v1120
  %v7261 = vpop.f32.mrf.mxu0
  %v7262 = vadd.f32 %v7221, %v7261
  %v7263 = vpop.f32.mrf.mxu0
  %v7264 = vadd.f32 %v7223, %v7263
  %v7265 = vpop.f32.mrf.mxu0
  %v7266 = vpop.f32.mrf.mxu0
  %7267 = vdwg.mxu0
  %7268 = vmatprep.subr.bf16.mxu0 %v4935
  %7269 = vmatpush1.bf16.msra.mxu0 %v4934
  %7270 = vmatprep.subr.bf16.mxu0 %v4931
  %7271 = vmatpush1.bf16.msra.mxu0 %v4930
  %7272 = vmatprep.subr.bf16.mxu0 %v4927
  %7273 = vmatpush1.bf16.msra.mxu0 %v4926
  %7274 = vmatprep.subr.bf16.mxu0 %v4923
  %7275 = vmatpush1.bf16.msra.mxu0 %v4922
  %7276 = vmatprep.subr.bf16.mxu0 %v4919
  %7277 = vmatpush1.bf16.msra.mxu0 %v4918
  %7278 = vmatprep.subr.bf16.mxu0 %v4915
  %7279 = vmatpush1.bf16.msra.mxu0 %v4914
  %7280 = vmatprep.subr.bf16.mxu0 %v4911
  %7281 = vmatpush1.bf16.msra.mxu0 %v4910
  %7282 = vmatprep.subr.bf16.mxu0 %v4907
  %7283 = vmatpush1.bf16.msra.mxu0 %v4906
  %7284 = vmatprep.subr.bf16.mxu0 %v4967
  %7285 = vmatpush2.bf16.msra.mxu0 %v4966
  %7286 = vmatprep.subr.bf16.mxu0 %v4963
  %7287 = vmatpush2.bf16.msra.mxu0 %v4962
  %7288 = vmatprep.subr.bf16.mxu0 %v4959
  %7289 = vmatpush2.bf16.msra.mxu0 %v4958
  %7290 = vmatprep.subr.bf16.mxu0 %v4955
  %7291 = vmatpush2.bf16.msra.mxu0 %v4954
  %7292 = vmatprep.subr.bf16.mxu0 %v4951
  %7293 = vmatpush2.bf16.msra.mxu0 %v4950
  %7294 = vmatprep.subr.bf16.mxu0 %v4947
  %7295 = vmatpush2.bf16.msra.mxu0 %v4946
  %7296 = vmatprep.subr.bf16.mxu0 %v4943
  %7297 = vmatpush2.bf16.msra.mxu0 %v4942
  %7298 = vmatprep.subr.bf16.mxu0 %v4939
  %7299 = vmatpush2.bf16.msra.mxu0 %v4938
  %7300 = vmatprep.mubr.bf16.mxu0 %v1123
  %7301 = vmatmul.mubr.bf16.gmra.mxu0 %v1122
  %v7302 = vpop.f32.mrf.mxu0
  %v7303 = vadd.f32 %v7262, %v7302
  %v7304 = vpop.f32.mrf.mxu0
  %v7305 = vadd.f32 %v7264, %v7304
  %v7306 = vpop.f32.mrf.mxu0
  %v7307 = vpop.f32.mrf.mxu0
  %7308 = vdwg.mxu0
  %7309 = vmatprep.subr.bf16.mxu0 %v4999
  %7310 = vmatpush1.bf16.msra.mxu0 %v4998
  %7311 = vmatprep.subr.bf16.mxu0 %v4995
  %7312 = vmatpush1.bf16.msra.mxu0 %v4994
  %7313 = vmatprep.subr.bf16.mxu0 %v4991
  %7314 = vmatpush1.bf16.msra.mxu0 %v4990
  %7315 = vmatprep.subr.bf16.mxu0 %v4987
  %7316 = vmatpush1.bf16.msra.mxu0 %v4986
  %7317 = vmatprep.subr.bf16.mxu0 %v4983
  %7318 = vmatpush1.bf16.msra.mxu0 %v4982
  %7319 = vmatprep.subr.bf16.mxu0 %v4979
  %7320 = vmatpush1.bf16.msra.mxu0 %v4978
  %7321 = vmatprep.subr.bf16.mxu0 %v4975
  %7322 = vmatpush1.bf16.msra.mxu0 %v4974
  %7323 = vmatprep.subr.bf16.mxu0 %v4971
  %7324 = vmatpush1.bf16.msra.mxu0 %v4970
  %7325 = vmatprep.subr.bf16.mxu0 %v5031
  %7326 = vmatpush2.bf16.msra.mxu0 %v5030
  %7327 = vmatprep.subr.bf16.mxu0 %v5027
  %7328 = vmatpush2.bf16.msra.mxu0 %v5026
  %7329 = vmatprep.subr.bf16.mxu0 %v5023
  %7330 = vmatpush2.bf16.msra.mxu0 %v5022
  %7331 = vmatprep.subr.bf16.mxu0 %v5019
  %7332 = vmatpush2.bf16.msra.mxu0 %v5018
  %7333 = vmatprep.subr.bf16.mxu0 %v5015
  %7334 = vmatpush2.bf16.msra.mxu0 %v5014
  %7335 = vmatprep.subr.bf16.mxu0 %v5011
  %7336 = vmatpush2.bf16.msra.mxu0 %v5010
  %7337 = vmatprep.subr.bf16.mxu0 %v5007
  %7338 = vmatpush2.bf16.msra.mxu0 %v5006
  %7339 = vmatprep.subr.bf16.mxu0 %v5003
  %7340 = vmatpush2.bf16.msra.mxu0 %v5002
  %7341 = vmatprep.mubr.bf16.mxu0 %v1125
  %7342 = vmatmul.mubr.bf16.gmra.mxu0 %v1124
  %v7343 = vpop.f32.mrf.mxu0
  %v7344 = vadd.f32 %v7303, %v7343
  %v7345 = vpop.f32.mrf.mxu0
  %v7346 = vadd.f32 %v7305, %v7345
  %v7347 = vpop.f32.mrf.mxu0
  %v7348 = vpop.f32.mrf.mxu0
  %7349 = vdwg.mxu0
  %7350 = vmatprep.subr.bf16.mxu0 %v5063
  %7351 = vmatpush1.bf16.msra.mxu0 %v5062
  %7352 = vmatprep.subr.bf16.mxu0 %v5059
  %7353 = vmatpush1.bf16.msra.mxu0 %v5058
  %7354 = vmatprep.subr.bf16.mxu0 %v5055
  %7355 = vmatpush1.bf16.msra.mxu0 %v5054
  %7356 = vmatprep.subr.bf16.mxu0 %v5051
  %7357 = vmatpush1.bf16.msra.mxu0 %v5050
  %7358 = vmatprep.subr.bf16.mxu0 %v5047
  %7359 = vmatpush1.bf16.msra.mxu0 %v5046
  %7360 = vmatprep.subr.bf16.mxu0 %v5043
  %7361 = vmatpush1.bf16.msra.mxu0 %v5042
  %7362 = vmatprep.subr.bf16.mxu0 %v5039
  %7363 = vmatpush1.bf16.msra.mxu0 %v5038
  %7364 = vmatprep.subr.bf16.mxu0 %v5035
  %7365 = vmatpush1.bf16.msra.mxu0 %v5034
  %7366 = vmatprep.subr.bf16.mxu0 %v5095
  %7367 = vmatpush2.bf16.msra.mxu0 %v5094
  %7368 = vmatprep.subr.bf16.mxu0 %v5091
  %7369 = vmatpush2.bf16.msra.mxu0 %v5090
  %7370 = vmatprep.subr.bf16.mxu0 %v5087
  %7371 = vmatpush2.bf16.msra.mxu0 %v5086
  %7372 = vmatprep.subr.bf16.mxu0 %v5083
  %7373 = vmatpush2.bf16.msra.mxu0 %v5082
  %7374 = vmatprep.subr.bf16.mxu0 %v5079
  %7375 = vmatpush2.bf16.msra.mxu0 %v5078
  %7376 = vmatprep.subr.bf16.mxu0 %v5075
  %7377 = vmatpush2.bf16.msra.mxu0 %v5074
  %7378 = vmatprep.subr.bf16.mxu0 %v5071
  %7379 = vmatpush2.bf16.msra.mxu0 %v5070
  %7380 = vmatprep.subr.bf16.mxu0 %v5067
  %7381 = vmatpush2.bf16.msra.mxu0 %v5066
  %7382 = vmatprep.mubr.bf16.mxu0 %v1127
  %7383 = vmatmul.mubr.bf16.gmra.mxu0 %v1126
  %v7384 = vpop.f32.mrf.mxu0
  %v7385 = vadd.f32 %v7344, %v7384
  %v7386 = vpop.f32.mrf.mxu0
  %v7387 = vadd.f32 %v7346, %v7386
  %v7388 = vpop.f32.mrf.mxu0
  %v7389 = vpop.f32.mrf.mxu0
  %7390 = vdwg.mxu0
  %7391 = vmatprep.subr.bf16.mxu0 %v5127
  %7392 = vmatpush1.bf16.msra.mxu0 %v5126
  %7393 = vmatprep.subr.bf16.mxu0 %v5123
  %7394 = vmatpush1.bf16.msra.mxu0 %v5122
  %7395 = vmatprep.subr.bf16.mxu0 %v5119
  %7396 = vmatpush1.bf16.msra.mxu0 %v5118
  %7397 = vmatprep.subr.bf16.mxu0 %v5115
  %7398 = vmatpush1.bf16.msra.mxu0 %v5114
  %7399 = vmatprep.subr.bf16.mxu0 %v5111
  %7400 = vmatpush1.bf16.msra.mxu0 %v5110
  %7401 = vmatprep.subr.bf16.mxu0 %v5107
  %7402 = vmatpush1.bf16.msra.mxu0 %v5106
  %7403 = vmatprep.subr.bf16.mxu0 %v5103
  %7404 = vmatpush1.bf16.msra.mxu0 %v5102
  %7405 = vmatprep.subr.bf16.mxu0 %v5099
  %7406 = vmatpush1.bf16.msra.mxu0 %v5098
  %7407 = vmatprep.subr.bf16.mxu0 0
  %7408 = vmatpush2.bf16.msra.mxu0 0
  %7409 = vmatprep.subr.bf16.mxu0 0
  %7410 = vmatpush2.bf16.msra.mxu0 0
  %7411 = vmatprep.subr.bf16.mxu0 0
  %7412 = vmatpush2.bf16.msra.mxu0 0
  %7413 = vmatprep.subr.bf16.mxu0 0
  %7414 = vmatpush2.bf16.msra.mxu0 0
  %7415 = vmatprep.subr.bf16.mxu0 0
  %7416 = vmatpush2.bf16.msra.mxu0 0
  %7417 = vmatprep.subr.bf16.mxu0 0
  %7418 = vmatpush2.bf16.msra.mxu0 0
  %7419 = vmatprep.subr.bf16.mxu0 0
  %7420 = vmatpush2.bf16.msra.mxu0 0
  %7421 = vmatprep.subr.bf16.mxu0 0
  %7422 = vmatpush2.bf16.msra.mxu0 0
  %7423 = vmatprep.mubr.bf16.mxu0 0
  %7424 = vmatmul.mubr.bf16.gmra.mxu0 %v1128
  %v7425 = vpop.f32.mrf.mxu0
  %v7426 = vadd.f32 %v7385, %v7425
  %v7427 = vpop.f32.mrf.mxu0
  %v7428 = vadd.f32 %v7387, %v7427
  %v7429 = vpop.f32.mrf.mxu0
  %v7430 = vpop.f32.mrf.mxu0
  %7431 = vdwg.mxu0
  %v7432 = vmax.f32 %v6770, 0.0
  %v7433 = vmax.f32 %v6772, 0.0
  %v7434 = vmax.f32 %v7426, 0.0
  %v7435 = vmax.f32 %v7428, 0.0
  %v7436 = vpack.c.bf16 %v7432, %v7432
  %v7437 = vpack.c.bf16 %v7433, %v7433
  %v7438 = vpack.c.bf16 %v7434, %v7434
  %v7439 = vpack.c.bf16 %v7435, %v7435
  %v7440 = vld [vmem:[%s3] sm:$0xf]
  %v7441 = vld [vmem:[%s3 + $0x4] sm:$0xf]
  %v7442 = vld [vmem:[%s3 + $0x8] sm:$0xf]
  %v7443 = vld [vmem:[%s3 + $0xc] sm:$0xf]
  %v7444 = vld [vmem:[%s3 + $0x10] sm:$0xf]
  %v7445 = vld [vmem:[%s3 + $0x14] sm:$0xf]
  %v7446 = vld [vmem:[%s3 + $0x18] sm:$0xf]
  %v7447 = vld [vmem:[%s3 + $0x1c] sm:$0xf]
  %v7448 = vld [vmem:[%s3 + $0x20] sm:$0xf]
  %v7449 = vld [vmem:[%s3 + $0x24] sm:$0xf]
  %v7450 = vld [vmem:[%s3 + $0x28] sm:$0xf]
  %v7451 = vld [vmem:[%s3 + $0x2c] sm:$0xf]
  %v7452 = vld [vmem:[%s3 + $0x30] sm:$0xf]
  %v7453 = vld [vmem:[%s3 + $0x34] sm:$0xf]
  %v7454 = vld [vmem:[%s3 + $0x38] sm:$0xf]
  %v7455 = vld [vmem:[%s3 + $0x3c] sm:$0xf]
  %v7456 = vld [vmem:[%s3 + $0x40] sm:$0xf]
  %v7457 = vld [vmem:[%s3 + $0x44] sm:$0xf]
  %v7458 = vld [vmem:[%s3 + $0x48] sm:$0xf]
  %v7459 = vld [vmem:[%s3 + $0x4c] sm:$0xf]
  %v7460 = vld [vmem:[%s3 + $0x50] sm:$0xf]
  %v7461 = vld [vmem:[%s3 + $0x54] sm:$0xf]
  %v7462 = vld [vmem:[%s3 + $0x58] sm:$0xf]
  %v7463 = vld [vmem:[%s3 + $0x5c] sm:$0xf]
  %v7464 = vld [vmem:[%s3 + $0x60] sm:$0xf]
  %v7465 = vld [vmem:[%s3 + $0x64] sm:$0xf]
  %v7466 = vld [vmem:[%s3 + $0x68] sm:$0xf]
  %v7467 = vld [vmem:[%s3 + $0x6c] sm:$0xf]
  %v7468 = vld [vmem:[%s3 + $0x70] sm:$0xf]
  %v7469 = vld [vmem:[%s3 + $0x74] sm:$0xf]
  %v7470 = vld [vmem:[%s3 + $0x78] sm:$0xf]
  %v7471 = vld [vmem:[%s3 + $0x7c] sm:$0xf]
  %v7472 = vld [vmem:[%s3 + $0x80] sm:$0xf]
  %v7473 = vld [vmem:[%s3 + $0x84] sm:$0xf]
  %v7474 = vld [vmem:[%s3 + $0x88] sm:$0xf]
  %v7475 = vld [vmem:[%s3 + $0x8c] sm:$0xf]
  %v7476 = vld [vmem:[%s3 + $0x90] sm:$0xf]
  %v7477 = vld [vmem:[%s3 + $0x94] sm:$0xf]
  %v7478 = vld [vmem:[%s3 + $0x98] sm:$0xf]
  %v7479 = vld [vmem:[%s3 + $0x9c] sm:$0xf]
  %v7480 = vld [vmem:[%s3 + $0xa0] sm:$0xf]
  %v7481 = vld [vmem:[%s3 + $0xa4] sm:$0xf]
  %v7482 = vld [vmem:[%s3 + $0xa8] sm:$0xf]
  %v7483 = vld [vmem:[%s3 + $0xac] sm:$0xf]
  %v7484 = vld [vmem:[%s3 + $0xb0] sm:$0xf]
  %v7485 = vld [vmem:[%s3 + $0xb4] sm:$0xf]
  %v7486 = vld [vmem:[%s3 + $0xb8] sm:$0xf]
  %v7487 = vld [vmem:[%s3 + $0xbc] sm:$0xf]
  %v7488 = vld [vmem:[%s3 + $0xc0] sm:$0xf]
  %v7489 = vld [vmem:[%s3 + $0xc4] sm:$0xf]
  %v7490 = vld [vmem:[%s3 + $0xc8] sm:$0xf]
  %v7491 = vld [vmem:[%s3 + $0xcc] sm:$0xf]
  %v7492 = vld [vmem:[%s3 + $0xd0] sm:$0xf]
  %v7493 = vld [vmem:[%s3 + $0xd4] sm:$0xf]
  %v7494 = vld [vmem:[%s3 + $0xd8] sm:$0xf]
  %v7495 = vld [vmem:[%s3 + $0xdc] sm:$0xf]
  %v7496 = vld [vmem:[%s3 + $0xe0] sm:$0xf]
  %v7497 = vld [vmem:[%s3 + $0xe4] sm:$0xf]
  %v7498 = vld [vmem:[%s3 + $0xe8] sm:$0xf]
  %v7499 = vld [vmem:[%s3 + $0xec] sm:$0xf]
  %v7500 = vld [vmem:[%s3 + $0xf0] sm:$0xf]
  %v7501 = vld [vmem:[%s3 + $0xf4] sm:$0xf]
  %v7502 = vld [vmem:[%s3 + $0xf8] sm:$0xf]
  %v7503 = vld [vmem:[%s3 + $0xfc] sm:$0xf]
  %v7504 = vld [vmem:[%s4] sm:$0x1]
  %v7506 = vlaneseq
  %v7507 = vshrl.u32 %v7506, 7
  %v7508 = vsub.s32 0, %v7507
  %v7509 = vrot.slane %v7504, %v7508
  %v7575 = vunpack.c.l.b16 %v7440
  %v7576 = vunpack.c.l.b16 %v7441
  %v7577 = vunpack.c.l.b16 %v7442
  %v7578 = vunpack.c.l.b16 %v7443
  %v7579 = vunpack.c.l.b16 %v7444
  %v7580 = vunpack.c.l.b16 %v7445
  %v7581 = vunpack.c.l.b16 %v7446
  %v7582 = vunpack.c.l.b16 %v7447
  %v7583 = vunpack.c.l.b16 %v7448
  %v7584 = vunpack.c.l.b16 %v7449
  %v7585 = vunpack.c.l.b16 %v7450
  %v7586 = vunpack.c.l.b16 %v7451
  %v7587 = vunpack.c.l.b16 %v7452
  %v7588 = vunpack.c.l.b16 %v7453
  %v7589 = vunpack.c.l.b16 %v7454
  %v7590 = vunpack.c.l.b16 %v7455
  %v7591 = vunpack.c.l.b16 %v7456
  %v7592 = vunpack.c.l.b16 %v7457
  %v7593 = vunpack.c.l.b16 %v7458
  %v7594 = vunpack.c.l.b16 %v7459
  %v7595 = vunpack.c.l.b16 %v7460
  %v7596 = vunpack.c.l.b16 %v7461
  %v7597 = vunpack.c.l.b16 %v7462
  %v7598 = vunpack.c.l.b16 %v7463
  %v7599 = vunpack.c.l.b16 %v7464
  %v7600 = vunpack.c.l.b16 %v7465
  %v7601 = vunpack.c.l.b16 %v7466
  %v7602 = vunpack.c.l.b16 %v7467
  %v7603 = vunpack.c.l.b16 %v7468
  %v7604 = vunpack.c.l.b16 %v7469
  %v7605 = vunpack.c.l.b16 %v7470
  %v7606 = vunpack.c.l.b16 %v7471
  %v7607 = vunpack.c.l.b16 %v7472
  %v7608 = vunpack.c.l.b16 %v7473
  %v7609 = vunpack.c.l.b16 %v7474
  %v7610 = vunpack.c.l.b16 %v7475
  %v7611 = vunpack.c.l.b16 %v7476
  %v7612 = vunpack.c.l.b16 %v7477
  %v7613 = vunpack.c.l.b16 %v7478
  %v7614 = vunpack.c.l.b16 %v7479
  %v7615 = vunpack.c.l.b16 %v7480
  %v7616 = vunpack.c.l.b16 %v7481
  %v7617 = vunpack.c.l.b16 %v7482
  %v7618 = vunpack.c.l.b16 %v7483
  %v7619 = vunpack.c.l.b16 %v7484
  %v7620 = vunpack.c.l.b16 %v7485
  %v7621 = vunpack.c.l.b16 %v7486
  %v7622 = vunpack.c.l.b16 %v7487
  %v7623 = vunpack.c.l.b16 %v7488
  %v7624 = vunpack.c.l.b16 %v7489
  %v7625 = vunpack.c.l.b16 %v7490
  %v7626 = vunpack.c.l.b16 %v7491
  %v7627 = vunpack.c.l.b16 %v7492
  %v7628 = vunpack.c.l.b16 %v7493
  %v7629 = vunpack.c.l.b16 %v7494
  %v7630 = vunpack.c.l.b16 %v7495
  %v7631 = vunpack.c.l.b16 %v7496
  %v7632 = vunpack.c.l.b16 %v7497
  %v7633 = vunpack.c.l.b16 %v7498
  %v7634 = vunpack.c.l.b16 %v7499
  %v7635 = vunpack.c.l.b16 %v7500
  %v7636 = vunpack.c.l.b16 %v7501
  %v7637 = vunpack.c.l.b16 %v7502
  %v7638 = vunpack.c.l.b16 %v7503
  %v7639 = vpack.c.b16 %v7576, %v7575
  %v7640 = vpack.c.b16 %v7578, %v7577
  %v7641 = vpack.c.b16 %v7580, %v7579
  %v7642 = vpack.c.b16 %v7582, %v7581
  %v7643 = vpack.c.b16 %v7584, %v7583
  %v7644 = vpack.c.b16 %v7586, %v7585
  %v7645 = vpack.c.b16 %v7588, %v7587
  %v7646 = vpack.c.b16 %v7590, %v7589
  %v7647 = vpack.c.b16 %v7592, %v7591
  %v7648 = vpack.c.b16 %v7594, %v7593
  %v7649 = vpack.c.b16 %v7596, %v7595
  %v7650 = vpack.c.b16 %v7598, %v7597
  %v7651 = vpack.c.b16 %v7600, %v7599
  %v7652 = vpack.c.b16 %v7602, %v7601
  %v7653 = vpack.c.b16 %v7604, %v7603
  %v7654 = vpack.c.b16 %v7606, %v7605
  %v7655 = vpack.c.b16 %v7608, %v7607
  %v7656 = vpack.c.b16 %v7610, %v7609
  %v7657 = vpack.c.b16 %v7612, %v7611
  %v7658 = vpack.c.b16 %v7614, %v7613
  %v7659 = vpack.c.b16 %v7616, %v7615
  %v7660 = vpack.c.b16 %v7618, %v7617
  %v7661 = vpack.c.b16 %v7620, %v7619
  %v7662 = vpack.c.b16 %v7622, %v7621
  %v7663 = vpack.c.b16 %v7624, %v7623
  %v7664 = vpack.c.b16 %v7626, %v7625
  %v7665 = vpack.c.b16 %v7628, %v7627
  %v7666 = vpack.c.b16 %v7630, %v7629
  %v7667 = vpack.c.b16 %v7632, %v7631
  %v7668 = vpack.c.b16 %v7634, %v7633
  %v7669 = vpack.c.b16 %v7636, %v7635
  %v7670 = vpack.c.b16 %v7638, %v7637
  %7703 = vmatprep.subr.bf16.mxu0 0
  %7704 = vmatpush1.bf16.msra.mxu0 %v7646
  %7705 = vmatprep.subr.bf16.mxu0 0
  %7706 = vmatpush1.bf16.msra.mxu0 %v7645
  %7707 = vmatprep.subr.bf16.mxu0 0
  %7708 = vmatpush1.bf16.msra.mxu0 %v7644
  %7709 = vmatprep.subr.bf16.mxu0 0
  %7710 = vmatpush1.bf16.msra.mxu0 %v7643
  %7711 = vmatprep.subr.bf16.mxu0 0
  %7712 = vmatpush1.bf16.msra.mxu0 %v7642
  %7713 = vmatprep.subr.bf16.mxu0 0
  %7714 = vmatpush1.bf16.msra.mxu0 %v7641
  %7715 = vmatprep.subr.bf16.mxu0 0
  %7716 = vmatpush1.bf16.msra.mxu0 %v7640
  %7717 = vmatprep.subr.bf16.mxu0 0
  %7718 = vmatpush1.bf16.msra.mxu0 %v7639
  %7719 = vmatprep.subr.bf16.mxu0 0
  %7720 = vmatpush2.bf16.msra.mxu0 %v7654
  %7721 = vmatprep.subr.bf16.mxu0 0
  %7722 = vmatpush2.bf16.msra.mxu0 %v7653
  %7723 = vmatprep.subr.bf16.mxu0 0
  %7724 = vmatpush2.bf16.msra.mxu0 %v7652
  %7725 = vmatprep.subr.bf16.mxu0 0
  %7726 = vmatpush2.bf16.msra.mxu0 %v7651
  %7727 = vmatprep.subr.bf16.mxu0 0
  %7728 = vmatpush2.bf16.msra.mxu0 %v7650
  %7729 = vmatprep.subr.bf16.mxu0 0
  %7730 = vmatpush2.bf16.msra.mxu0 %v7649
  %7731 = vmatprep.subr.bf16.mxu0 0
  %7732 = vmatpush2.bf16.msra.mxu0 %v7648
  %7733 = vmatprep.subr.bf16.mxu0 0
  %7734 = vmatpush2.bf16.msra.mxu0 %v7647
  %7735 = vmatprep.mubr.bf16.mxu0 %v7437
  %7736 = vmatmul.mubr.bf16.gmra.mxu0 %v7436
  %v7737 = vpop.f32.mrf.mxu0
  %v7738 = vadd.f32 %v7509, %v7737
  %v7739 = vpop.f32.mrf.mxu0
  %v7740 = vpop.f32.mrf.mxu0
  %v7741 = vpop.f32.mrf.mxu0
  %7742 = vdwg.mxu0
  %7743 = vmatprep.subr.bf16.mxu0 0
  %7744 = vmatpush1.bf16.msra.mxu0 %v7662
  %7745 = vmatprep.subr.bf16.mxu0 0
  %7746 = vmatpush1.bf16.msra.mxu0 %v7661
  %7747 = vmatprep.subr.bf16.mxu0 0
  %7748 = vmatpush1.bf16.msra.mxu0 %v7660
  %7749 = vmatprep.subr.bf16.mxu0 0
  %7750 = vmatpush1.bf16.msra.mxu0 %v7659
  %7751 = vmatprep.subr.bf16.mxu0 0
  %7752 = vmatpush1.bf16.msra.mxu0 %v7658
  %7753 = vmatprep.subr.bf16.mxu0 0
  %7754 = vmatpush1.bf16.msra.mxu0 %v7657
  %7755 = vmatprep.subr.bf16.mxu0 0
  %7756 = vmatpush1.bf16.msra.mxu0 %v7656
  %7757 = vmatprep.subr.bf16.mxu0 0
  %7758 = vmatpush1.bf16.msra.mxu0 %v7655
  %7759 = vmatprep.subr.bf16.mxu0 0
  %7760 = vmatpush2.bf16.msra.mxu0 %v7670
  %7761 = vmatprep.subr.bf16.mxu0 0
  %7762 = vmatpush2.bf16.msra.mxu0 %v7669
  %7763 = vmatprep.subr.bf16.mxu0 0
  %7764 = vmatpush2.bf16.msra.mxu0 %v7668
  %7765 = vmatprep.subr.bf16.mxu0 0
  %7766 = vmatpush2.bf16.msra.mxu0 %v7667
  %7767 = vmatprep.subr.bf16.mxu0 0
  %7768 = vmatpush2.bf16.msra.mxu0 %v7666
  %7769 = vmatprep.subr.bf16.mxu0 0
  %7770 = vmatpush2.bf16.msra.mxu0 %v7665
  %7771 = vmatprep.subr.bf16.mxu0 0
  %7772 = vmatpush2.bf16.msra.mxu0 %v7664
  %7773 = vmatprep.subr.bf16.mxu0 0
  %7774 = vmatpush2.bf16.msra.mxu0 %v7663
  %7775 = vmatprep.mubr.bf16.mxu0 %v7439
  %7776 = vmatmul.mubr.bf16.gmra.mxu0 %v7438
  %v7777 = vpop.f32.mrf.mxu0
  %v7778 = vadd.f32 %v7738, %v7777
  %v7779 = vpop.f32.mrf.mxu0
  %v7780 = vpop.f32.mrf.mxu0
  %v7781 = vpop.f32.mrf.mxu0
  %7782 = vdwg.mxu0
  %7783 = vst [vmem:[%s5] sm:$0xff] %v7778
  // Predicated region
  $region22: #{tencoder_forward.5} parent=0 // pred_check
    _
  $region23: #{tencoder_forward.5} parent=0 // pred_check_branch
    %7785 = sbr.rel (0) target = $region25
  $region24: #{tencoder_forward.5} parent=0 // pred_region
    _
  $region25: #{tencoder_forward.5} parent=0 // pred_fallthru
    _
  // Predicated region
  $region26: #{tencoder_forward.5} parent=0 // pred_check
    _
  $region27: #{tencoder_forward.5} parent=0 // pred_check_branch
    %7787 = sbr.rel (0) target = $region29
  $region28: #{tencoder_forward.5} parent=0 // pred_region
    _
  $region29: #{tencoder_forward.5} parent=0 // pred_fallthru
    _

</llo_original>
